<compile_context>
chip_gen: v5e
topology: v5e:2x2
jax: 0.10.0
libtpu: 0.0.40
codegen_flags: <defaults>
</compile_context>

<pallas_src>
import math
from functools import partial

import jax
import jax.numpy as jnp
from jax import lax
from jax.experimental import pallas as pl
from jax.experimental.pallas import tpu as pltpu


def _attn_kernel(x_ref, wq_ref, wk_ref, wv_ref, bq_ref, bk_ref, bv_ref,
                 bias_ref, o_ref, *, heads, head_dim, scale):
    # One grid point = one batch element; all heads handled inside.
    f32 = jnp.float32
    x = x_ref[0]                                        # (T, C) bf16

    def proj(w_ref, b_ref):
        # (T, C) @ (C, H*Dh) -> (T, H*Dh), f32 accumulate on the MXU.
        y = jnp.dot(x, w_ref[...], preferred_element_type=f32)
        y = y + b_ref[...].astype(f32)                  # (1, H*Dh) broadcast
        return y.astype(x.dtype)                        # back to bf16 (like torch Linear)

    q = proj(wq_ref, bq_ref)                            # (T, H*Dh)
    k = proj(wk_ref, bk_ref)                            # (T, H*Dh)
    v = proj(wv_ref, bv_ref)                            # (T, H*Dh)

    bias_col = bias_ref[0].astype(f32)                  # (T, 1): per-query, const over keys

    # Contract last dims of q,k directly (no transpose materialization).
    dnums = (((1,), (1,)), ((), ()))

    for h in range(heads):                              # static unrolled loop
        lo = h * head_dim
        qh = q[:, lo:lo + head_dim]                     # (T, Dh)
        kh = k[:, lo:lo + head_dim]
        vh = v[:, lo:lo + head_dim]

        s = lax.dot_general(qh, kh, dnums, preferred_element_type=f32) * scale  # (T, T)
        s = s + bias_col                                # matches torch attn_mask semantics

        m = jnp.max(s, axis=-1, keepdims=True)
        e = jnp.exp(s - m)
        denom = jnp.sum(e, axis=-1, keepdims=True)
        p = (e * pl.reciprocal(denom, approx=True)).astype(v.dtype)             # (T, T) bf16

        oh = jnp.dot(p, vh, preferred_element_type=f32)                          # (T, Dh)
        o_ref[0, :, pl.ds(lo, head_dim)] = oh.astype(o_ref.dtype)


def attn_forward(x, wq, wk, wv, bq, bk, bv, bias, *, heads, head_dim):
    """x: (B, T, C) bf16; w*: (C, heads*head_dim); b*: (heads*head_dim,); bias: (B, T)."""
    B, T, C = x.shape
    HD = heads * head_dim
    scale = 1.0 / math.sqrt(head_dim)

    bias_col = bias[:, :, None]                         # (B, T, 1)
    bq2 = bq.reshape(1, HD)
    bk2 = bk.reshape(1, HD)
    bv2 = bv.reshape(1, HD)

    out_flat = pl.pallas_call(
        partial(_attn_kernel, heads=heads, head_dim=head_dim, scale=scale),
        out_shape=jax.ShapeDtypeStruct((B, T, HD), x.dtype),
        grid_spec=pltpu.PrefetchScalarGridSpec(
            num_scalar_prefetch=0,
            grid=(B,),
            in_specs=[
                pl.BlockSpec((1, T, C), lambda b: (b, 0, 0)),    # x (per batch)
                pl.BlockSpec((C, HD), lambda b: (0, 0)),         # Wq (resident; fetched once)
                pl.BlockSpec((C, HD), lambda b: (0, 0)),         # Wk
                pl.BlockSpec((C, HD), lambda b: (0, 0)),         # Wv
                pl.BlockSpec((1, HD), lambda b: (0, 0)),         # bq
                pl.BlockSpec((1, HD), lambda b: (0, 0)),         # bk
                pl.BlockSpec((1, HD), lambda b: (0, 0)),         # bv
                pl.BlockSpec((1, T, 1), lambda b: (b, 0, 0)),    # attn bias (per batch)
            ],
            out_specs=pl.BlockSpec((1, T, HD), lambda b: (b, 0, 0)),   # lane-dense slab
        ),
        compiler_params=pltpu.CompilerParams(
            dimension_semantics=("parallel",)),                  # B>=2 -> both TCs on v7x
    )(x, wq, wk, wv, bq2, bk2, bv2, bias_col)

    # Layout plumbing only: (B, T, H*Dh) -> (B, H, T, Dh) to match 'b t (h c) -> b h t c'.
    return out_flat.reshape(B, T, heads, head_dim).transpose(0, 2, 1, 3)


def attn_reference(x, wq, wk, wv, bq, bk, bv, bias, *, heads, head_dim):
    """Pure-JAX reference (fp32 math) for correctness checking."""
    B, T, C = x.shape
    xf = x.astype(jnp.float32)

    def proj(w, b):
        y = xf @ w.astype(jnp.float32) + b.astype(jnp.float32)
        return y.reshape(B, T, heads, head_dim).transpose(0, 2, 1, 3)   # (B,H,T,Dh)

    q, k, v = proj(wq, bq), proj(wk, bk), proj(wv, bv)
    s = jnp.einsum("bhqd,bhkd->bhqk", q, k) / math.sqrt(head_dim)
    s = s + bias.astype(jnp.float32)[:, None, :, None]
    p = jax.nn.softmax(s, axis=-1)
    return jnp.einsum("bhqk,bhkd->bhqd", p, v)


if __name__ == "__main__":
    # Small but shape-consistent with the module defaults:
    #   in_dim=320, heads=8, head_dim=64; batch=2, seq=128.
    B, T, IN_DIM, HEADS, HEAD_DIM = 2, 128, 320, 8, 64
    dtype = jnp.bfloat16

    key = jax.random.PRNGKey(0)
    kx, kb, kwq, kwk, kwv, kbq, kbk, kbv = jax.random.split(key, 8)

    x = jax.random.normal(kx, (B, T, IN_DIM), dtype=jnp.float32).astype(dtype)
    bias = jax.random.normal(kb, (B, T), dtype=jnp.float32).astype(dtype)

    def make_w(k):
        return (jax.random.normal(k, (IN_DIM, HEADS * HEAD_DIM), dtype=jnp.float32)
                * (1.0 / math.sqrt(IN_DIM))).astype(dtype)

    def make_b(k):
        return (jax.random.normal(k, (HEADS * HEAD_DIM,), dtype=jnp.float32)
                * 0.02).astype(dtype)

    wq, wk, wv = make_w(kwq), make_w(kwk), make_w(kwv)
    bq, bk, bv = make_b(kbq), make_b(kbk), make_b(kbv)

    out = attn_forward(x, wq, wk, wv, bq, bk, bv, bias,
                       heads=HEADS, head_dim=HEAD_DIM)
    out = jax.block_until_ready(out)
    assert out.shape == (B, HEADS, T, HEAD_DIM) and out.dtype == dtype

    ref = attn_reference(x, wq, wk, wv, bq, bk, bv, bias,
                         heads=HEADS, head_dim=HEAD_DIM)
    err = jnp.max(jnp.abs(out.astype(jnp.float32) - ref))
    assert float(err) < 5e-2, f"max abs err too large: {float(err)}"

    print("KERNEL_OK")
</pallas_src>

<mosaic_0001>
module attributes {stable_mosaic.version = 11 : i64} {
  func.func @_attn_kernel(%arg0: i32, %arg1: memref<1x128x320xbf16, #tpu.memory_space<vmem>>, %arg2: memref<320x512xbf16, #tpu.memory_space<vmem>>, %arg3: memref<320x512xbf16, #tpu.memory_space<vmem>>, %arg4: memref<320x512xbf16, #tpu.memory_space<vmem>>, %arg5: memref<1x512xbf16, #tpu.memory_space<vmem>>, %arg6: memref<1x512xbf16, #tpu.memory_space<vmem>>, %arg7: memref<1x512xbf16, #tpu.memory_space<vmem>>, %arg8: memref<1x128x1xbf16, #tpu.memory_space<vmem>>, %arg9: memref<1x128x512xbf16, #tpu.memory_space<vmem>>) attributes {dimension_semantics = [#tpu.dimension_semantics<parallel>], iteration_bounds = array<i64: 2>, scalar_prefetch = 0 : i64, scratch_operands = 0 : i64, tpu.core_type = #tpu.core_type<tc>, window_params = [{transform_indices = @transform_0, window_bounds = array<i64: 1, 128, 320>}, {pipeline_mode = #tpu.pipeline_mode<synchronous>, transform_indices = @transform_1, window_bounds = array<i64: 320, 512>}, {pipeline_mode = #tpu.pipeline_mode<synchronous>, transform_indices = @transform_2, window_bounds = array<i64: 320, 512>}, {pipeline_mode = #tpu.pipeline_mode<synchronous>, transform_indices = @transform_3, window_bounds = array<i64: 320, 512>}, {pipeline_mode = #tpu.pipeline_mode<synchronous>, transform_indices = @transform_4, window_bounds = array<i64: 1, 512>}, {pipeline_mode = #tpu.pipeline_mode<synchronous>, transform_indices = @transform_5, window_bounds = array<i64: 1, 512>}, {pipeline_mode = #tpu.pipeline_mode<synchronous>, transform_indices = @transform_6, window_bounds = array<i64: 1, 512>}, {transform_indices = @transform_7, window_bounds = array<i64: 1, 128, 1>}, {transform_indices = @transform_8, window_bounds = array<i64: 1, 128, 512>}]} {
    %c0 = arith.constant 0 : index
    %c0_0 = arith.constant 0 : index
    %c0_1 = arith.constant 0 : index
    %0 = vector.load %arg1[%c0, %c0_0, %c0_1] : memref<1x128x320xbf16, #tpu.memory_space<vmem>>, vector<1x128x320xbf16>
    %1 = vector.shape_cast %0 : vector<1x128x320xbf16> to vector<128x320xbf16>
    %c0_2 = arith.constant 0 : index
    %c0_3 = arith.constant 0 : index
    %2 = vector.load %arg2[%c0_2, %c0_3] : memref<320x512xbf16, #tpu.memory_space<vmem>>, vector<320x512xbf16>
    %cst = arith.constant dense<0.000000e+00> : vector<128x512xf32>
    %3 = tpu.matmul %1, %2, %cst {dimension_numbers = #tpu.dot_dimension_numbers<[1], [0], [0], [1], [0, 0, 1, 1], [], []>} : vector<128x320xbf16>, vector<320x512xbf16>, vector<128x512xf32> -> vector<128x512xf32>
    %c0_4 = arith.constant 0 : index
    %c0_5 = arith.constant 0 : index
    %4 = vector.load %arg5[%c0_4, %c0_5] : memref<1x512xbf16, #tpu.memory_space<vmem>>, vector<1x512xbf16>
    %5 = arith.extf %4 : vector<1x512xbf16> to vector<1x512xf32>
    %6 = vector.broadcast %5 : vector<1x512xf32> to vector<128x512xf32>
    %7 = arith.addf %3, %6 : vector<128x512xf32>
    %8 = arith.truncf %7 : vector<128x512xf32> to vector<128x512xbf16>
    %c0_6 = arith.constant 0 : index
    %c0_7 = arith.constant 0 : index
    %9 = vector.load %arg3[%c0_6, %c0_7] : memref<320x512xbf16, #tpu.memory_space<vmem>>, vector<320x512xbf16>
    %cst_8 = arith.constant dense<0.000000e+00> : vector<128x512xf32>
    %10 = tpu.matmul %1, %9, %cst_8 {dimension_numbers = #tpu.dot_dimension_numbers<[1], [0], [0], [1], [0, 0, 1, 1], [], []>} : vector<128x320xbf16>, vector<320x512xbf16>, vector<128x512xf32> -> vector<128x512xf32>
    %c0_9 = arith.constant 0 : index
    %c0_10 = arith.constant 0 : index
    %11 = vector.load %arg6[%c0_9, %c0_10] : memref<1x512xbf16, #tpu.memory_space<vmem>>, vector<1x512xbf16>
    %12 = arith.extf %11 : vector<1x512xbf16> to vector<1x512xf32>
    %13 = vector.broadcast %12 : vector<1x512xf32> to vector<128x512xf32>
    %14 = arith.addf %10, %13 : vector<128x512xf32>
    %15 = arith.truncf %14 : vector<128x512xf32> to vector<128x512xbf16>
    %c0_11 = arith.constant 0 : index
    %c0_12 = arith.constant 0 : index
    %16 = vector.load %arg4[%c0_11, %c0_12] : memref<320x512xbf16, #tpu.memory_space<vmem>>, vector<320x512xbf16>
    %cst_13 = arith.constant dense<0.000000e+00> : vector<128x512xf32>
    %17 = tpu.matmul %1, %16, %cst_13 {dimension_numbers = #tpu.dot_dimension_numbers<[1], [0], [0], [1], [0, 0, 1, 1], [], []>} : vector<128x320xbf16>, vector<320x512xbf16>, vector<128x512xf32> -> vector<128x512xf32>
    %c0_14 = arith.constant 0 : index
    %c0_15 = arith.constant 0 : index
    %18 = vector.load %arg7[%c0_14, %c0_15] : memref<1x512xbf16, #tpu.memory_space<vmem>>, vector<1x512xbf16>
    %19 = arith.extf %18 : vector<1x512xbf16> to vector<1x512xf32>
    %20 = vector.broadcast %19 : vector<1x512xf32> to vector<128x512xf32>
    %21 = arith.addf %17, %20 : vector<128x512xf32>
    %22 = arith.truncf %21 : vector<128x512xf32> to vector<128x512xbf16>
    %c0_16 = arith.constant 0 : index
    %c0_17 = arith.constant 0 : index
    %c0_18 = arith.constant 0 : index
    %23 = vector.load %arg8[%c0_16, %c0_17, %c0_18] : memref<1x128x1xbf16, #tpu.memory_space<vmem>>, vector<1x128x1xbf16>
    %24 = vector.shape_cast %23 : vector<1x128x1xbf16> to vector<128x1xbf16>
    %25 = arith.extf %24 : vector<128x1xbf16> to vector<128x1xf32>
    %26 = vector.extract_strided_slice %8 {offsets = [0, 0], sizes = [128, 64], strides = [1, 1]} : vector<128x512xbf16> to vector<128x64xbf16>
    %27 = vector.extract_strided_slice %15 {offsets = [0, 0], sizes = [128, 64], strides = [1, 1]} : vector<128x512xbf16> to vector<128x64xbf16>
    %28 = vector.extract_strided_slice %22 {offsets = [0, 0], sizes = [128, 64], strides = [1, 1]} : vector<128x512xbf16> to vector<128x64xbf16>
    %cst_19 = arith.constant dense<0.000000e+00> : vector<128x128xf32>
    %29 = tpu.matmul %26, %27, %cst_19 {dimension_numbers = #tpu.dot_dimension_numbers<[1], [1], [0], [0], [0, 0, 1, 0], [], []>} : vector<128x64xbf16>, vector<128x64xbf16>, vector<128x128xf32> -> vector<128x128xf32>
    %cst_20 = arith.constant 1.250000e-01 : f32
    %30 = vector.broadcast %cst_20 : f32 to vector<128x128xf32>
    %31 = arith.mulf %29, %30 : vector<128x128xf32>
    %32 = vector.broadcast %25 : vector<128x1xf32> to vector<128x128xf32>
    %33 = arith.addf %31, %32 : vector<128x128xf32>
    %cst_21 = arith.constant dense<0xFF800000> : vector<128xf32>
    %34 = vector.multi_reduction <maximumf>, %33, %cst_21 [1] : vector<128x128xf32> to vector<128xf32>
    %35 = vector.shape_cast %34 : vector<128xf32> to vector<128x1xf32>
    %36 = vector.broadcast %35 : vector<128x1xf32> to vector<128x128xf32>
    %37 = arith.subf %33, %36 : vector<128x128xf32>
    %38 = math.exp %37 : vector<128x128xf32>
    %cst_22 = arith.constant dense<0.000000e+00> : vector<128xf32>
    %39 = vector.multi_reduction <add>, %38, %cst_22 [1] : vector<128x128xf32> to vector<128xf32>
    %40 = vector.shape_cast %39 : vector<128xf32> to vector<128x1xf32>
    %41 = tpu.reciprocal %40 {approx = true} : vector<128x1xf32> -> vector<128x1xf32>
    %42 = vector.broadcast %41 : vector<128x1xf32> to vector<128x128xf32>
    %43 = arith.mulf %38, %42 : vector<128x128xf32>
    %44 = arith.truncf %43 : vector<128x128xf32> to vector<128x128xbf16>
    %cst_23 = arith.constant dense<0.000000e+00> : vector<128x64xf32>
    %45 = tpu.matmul %44, %28, %cst_23 {dimension_numbers = #tpu.dot_dimension_numbers<[1], [0], [0], [1], [0, 0, 1, 1], [], []>} : vector<128x128xbf16>, vector<128x64xbf16>, vector<128x64xf32> -> vector<128x64xf32>
    %46 = arith.truncf %45 : vector<128x64xf32> to vector<128x64xbf16>
    %c0_24 = arith.constant 0 : index
    %c0_25 = arith.constant 0 : index
    %c0_26 = arith.constant 0 : index
    %47 = vector.load %arg9[%c0_24, %c0_25, %c0_26] : memref<1x128x512xbf16, #tpu.memory_space<vmem>>, vector<1x128x64xbf16>
    %48 = vector.shape_cast %47 : vector<1x128x64xbf16> to vector<128x64xbf16>
    %49 = vector.shape_cast %46 : vector<128x64xbf16> to vector<1x128x64xbf16>
    tpu.vector_store %arg9[%c0_24, %c0_25, %c0_26], %49 {strides = array<i32>} : memref<1x128x512xbf16, #tpu.memory_space<vmem>>, vector<1x128x64xbf16>,
    %50 = vector.extract_strided_slice %8 {offsets = [0, 64], sizes = [128, 64], strides = [1, 1]} : vector<128x512xbf16> to vector<128x64xbf16>
    %51 = vector.extract_strided_slice %15 {offsets = [0, 64], sizes = [128, 64], strides = [1, 1]} : vector<128x512xbf16> to vector<128x64xbf16>
    %52 = vector.extract_strided_slice %22 {offsets = [0, 64], sizes = [128, 64], strides = [1, 1]} : vector<128x512xbf16> to vector<128x64xbf16>
    %cst_27 = arith.constant dense<0.000000e+00> : vector<128x128xf32>
    %53 = tpu.matmul %50, %51, %cst_27 {dimension_numbers = #tpu.dot_dimension_numbers<[1], [1], [0], [0], [0, 0, 1, 0], [], []>} : vector<128x64xbf16>, vector<128x64xbf16>, vector<128x128xf32> -> vector<128x128xf32>
    %cst_28 = arith.constant 1.250000e-01 : f32
    %54 = vector.broadcast %cst_28 : f32 to vector<128x128xf32>
    %55 = arith.mulf %53, %54 : vector<128x128xf32>
    %56 = vector.broadcast %25 : vector<128x1xf32> to vector<128x128xf32>
    %57 = arith.addf %55, %56 : vector<128x128xf32>
    %cst_29 = arith.constant dense<0xFF800000> : vector<128xf32>
    %58 = vector.multi_reduction <maximumf>, %57, %cst_29 [1] : vector<128x128xf32> to vector<128xf32>
    %59 = vector.shape_cast %58 : vector<128xf32> to vector<128x1xf32>
    %60 = vector.broadcast %59 : vector<128x1xf32> to vector<128x128xf32>
    %61 = arith.subf %57, %60 : vector<128x128xf32>
    %62 = math.exp %61 : vector<128x128xf32>
    %cst_30 = arith.constant dense<0.000000e+00> : vector<128xf32>
    %63 = vector.multi_reduction <add>, %62, %cst_30 [1] : vector<128x128xf32> to vector<128xf32>
    %64 = vector.shape_cast %63 : vector<128xf32> to vector<128x1xf32>
    %65 = tpu.reciprocal %64 {approx = true} : vector<128x1xf32> -> vector<128x1xf32>
    %66 = vector.broadcast %65 : vector<128x1xf32> to vector<128x128xf32>
    %67 = arith.mulf %62, %66 : vector<128x128xf32>
    %68 = arith.truncf %67 : vector<128x128xf32> to vector<128x128xbf16>
    %cst_31 = arith.constant dense<0.000000e+00> : vector<128x64xf32>
    %69 = tpu.matmul %68, %52, %cst_31 {dimension_numbers = #tpu.dot_dimension_numbers<[1], [0], [0], [1], [0, 0, 1, 1], [], []>} : vector<128x128xbf16>, vector<128x64xbf16>, vector<128x64xf32> -> vector<128x64xf32>
    %70 = arith.truncf %69 : vector<128x64xf32> to vector<128x64xbf16>
    %c0_32 = arith.constant 0 : index
    %c0_33 = arith.constant 0 : index
    %c64 = arith.constant 64 : index
    %71 = vector.load %arg9[%c0_32, %c0_33, %c64] : memref<1x128x512xbf16, #tpu.memory_space<vmem>>, vector<1x128x64xbf16>
    %72 = vector.shape_cast %71 : vector<1x128x64xbf16> to vector<128x64xbf16>
    %73 = vector.shape_cast %70 : vector<128x64xbf16> to vector<1x128x64xbf16>
    tpu.vector_store %arg9[%c0_32, %c0_33, %c64], %73 {strides = array<i32>} : memref<1x128x512xbf16, #tpu.memory_space<vmem>>, vector<1x128x64xbf16>,
    %74 = vector.extract_strided_slice %8 {offsets = [0, 128], sizes = [128, 64], strides = [1, 1]} : vector<128x512xbf16> to vector<128x64xbf16>
    %75 = vector.extract_strided_slice %15 {offsets = [0, 128], sizes = [128, 64], strides = [1, 1]} : vector<128x512xbf16> to vector<128x64xbf16>
    %76 = vector.extract_strided_slice %22 {offsets = [0, 128], sizes = [128, 64], strides = [1, 1]} : vector<128x512xbf16> to vector<128x64xbf16>
    %cst_34 = arith.constant dense<0.000000e+00> : vector<128x128xf32>
    %77 = tpu.matmul %74, %75, %cst_34 {dimension_numbers = #tpu.dot_dimension_numbers<[1], [1], [0], [0], [0, 0, 1, 0], [], []>} : vector<128x64xbf16>, vector<128x64xbf16>, vector<128x128xf32> -> vector<128x128xf32>
    %cst_35 = arith.constant 1.250000e-01 : f32
    %78 = vector.broadcast %cst_35 : f32 to vector<128x128xf32>
    %79 = arith.mulf %77, %78 : vector<128x128xf32>
    %80 = vector.broadcast %25 : vector<128x1xf32> to vector<128x128xf32>
    %81 = arith.addf %79, %80 : vector<128x128xf32>
    %cst_36 = arith.constant dense<0xFF800000> : vector<128xf32>
    %82 = vector.multi_reduction <maximumf>, %81, %cst_36 [1] : vector<128x128xf32> to vector<128xf32>
    %83 = vector.shape_cast %82 : vector<128xf32> to vector<128x1xf32>
    %84 = vector.broadcast %83 : vector<128x1xf32> to vector<128x128xf32>
    %85 = arith.subf %81, %84 : vector<128x128xf32>
    %86 = math.exp %85 : vector<128x128xf32>
    %cst_37 = arith.constant dense<0.000000e+00> : vector<128xf32>
    %87 = vector.multi_reduction <add>, %86, %cst_37 [1] : vector<128x128xf32> to vector<128xf32>
    %88 = vector.shape_cast %87 : vector<128xf32> to vector<128x1xf32>
    %89 = tpu.reciprocal %88 {approx = true} : vector<128x1xf32> -> vector<128x1xf32>
    %90 = vector.broadcast %89 : vector<128x1xf32> to vector<128x128xf32>
    %91 = arith.mulf %86, %90 : vector<128x128xf32>
    %92 = arith.truncf %91 : vector<128x128xf32> to vector<128x128xbf16>
    %cst_38 = arith.constant dense<0.000000e+00> : vector<128x64xf32>
    %93 = tpu.matmul %92, %76, %cst_38 {dimension_numbers = #tpu.dot_dimension_numbers<[1], [0], [0], [1], [0, 0, 1, 1], [], []>} : vector<128x128xbf16>, vector<128x64xbf16>, vector<128x64xf32> -> vector<128x64xf32>
    %94 = arith.truncf %93 : vector<128x64xf32> to vector<128x64xbf16>
    %c0_39 = arith.constant 0 : index
    %c0_40 = arith.constant 0 : index
    %c128 = arith.constant 128 : index
    %95 = vector.load %arg9[%c0_39, %c0_40, %c128] : memref<1x128x512xbf16, #tpu.memory_space<vmem>>, vector<1x128x64xbf16>
    %96 = vector.shape_cast %95 : vector<1x128x64xbf16> to vector<128x64xbf16>
    %97 = vector.shape_cast %94 : vector<128x64xbf16> to vector<1x128x64xbf16>
    tpu.vector_store %arg9[%c0_39, %c0_40, %c128], %97 {strides = array<i32>} : memref<1x128x512xbf16, #tpu.memory_space<vmem>>, vector<1x128x64xbf16>,
    %98 = vector.extract_strided_slice %8 {offsets = [0, 192], sizes = [128, 64], strides = [1, 1]} : vector<128x512xbf16> to vector<128x64xbf16>
    %99 = vector.extract_strided_slice %15 {offsets = [0, 192], sizes = [128, 64], strides = [1, 1]} : vector<128x512xbf16> to vector<128x64xbf16>
    %100 = vector.extract_strided_slice %22 {offsets = [0, 192], sizes = [128, 64], strides = [1, 1]} : vector<128x512xbf16> to vector<128x64xbf16>
    %cst_41 = arith.constant dense<0.000000e+00> : vector<128x128xf32>
    %101 = tpu.matmul %98, %99, %cst_41 {dimension_numbers = #tpu.dot_dimension_numbers<[1], [1], [0], [0], [0, 0, 1, 0], [], []>} : vector<128x64xbf16>, vector<128x64xbf16>, vector<128x128xf32> -> vector<128x128xf32>
    %cst_42 = arith.constant 1.250000e-01 : f32
    %102 = vector.broadcast %cst_42 : f32 to vector<128x128xf32>
    %103 = arith.mulf %101, %102 : vector<128x128xf32>
    %104 = vector.broadcast %25 : vector<128x1xf32> to vector<128x128xf32>
    %105 = arith.addf %103, %104 : vector<128x128xf32>
    %cst_43 = arith.constant dense<0xFF800000> : vector<128xf32>
    %106 = vector.multi_reduction <maximumf>, %105, %cst_43 [1] : vector<128x128xf32> to vector<128xf32>
    %107 = vector.shape_cast %106 : vector<128xf32> to vector<128x1xf32>
    %108 = vector.broadcast %107 : vector<128x1xf32> to vector<128x128xf32>
    %109 = arith.subf %105, %108 : vector<128x128xf32>
    %110 = math.exp %109 : vector<128x128xf32>
    %cst_44 = arith.constant dense<0.000000e+00> : vector<128xf32>
    %111 = vector.multi_reduction <add>, %110, %cst_44 [1] : vector<128x128xf32> to vector<128xf32>
    %112 = vector.shape_cast %111 : vector<128xf32> to vector<128x1xf32>
    %113 = tpu.reciprocal %112 {approx = true} : vector<128x1xf32> -> vector<128x1xf32>
    %114 = vector.broadcast %113 : vector<128x1xf32> to vector<128x128xf32>
    %115 = arith.mulf %110, %114 : vector<128x128xf32>
    %116 = arith.truncf %115 : vector<128x128xf32> to vector<128x128xbf16>
    %cst_45 = arith.constant dense<0.000000e+00> : vector<128x64xf32>
    %117 = tpu.matmul %116, %100, %cst_45 {dimension_numbers = #tpu.dot_dimension_numbers<[1], [0], [0], [1], [0, 0, 1, 1], [], []>} : vector<128x128xbf16>, vector<128x64xbf16>, vector<128x64xf32> -> vector<128x64xf32>
    %118 = arith.truncf %117 : vector<128x64xf32> to vector<128x64xbf16>
    %c0_46 = arith.constant 0 : index
    %c0_47 = arith.constant 0 : index
    %c192 = arith.constant 192 : index
    %119 = vector.load %arg9[%c0_46, %c0_47, %c192] : memref<1x128x512xbf16, #tpu.memory_space<vmem>>, vector<1x128x64xbf16>
    %120 = vector.shape_cast %119 : vector<1x128x64xbf16> to vector<128x64xbf16>
    %121 = vector.shape_cast %118 : vector<128x64xbf16> to vector<1x128x64xbf16>
    tpu.vector_store %arg9[%c0_46, %c0_47, %c192], %121 {strides = array<i32>} : memref<1x128x512xbf16, #tpu.memory_space<vmem>>, vector<1x128x64xbf16>,
    %122 = vector.extract_strided_slice %8 {offsets = [0, 256], sizes = [128, 64], strides = [1, 1]} : vector<128x512xbf16> to vector<128x64xbf16>
    %123 = vector.extract_strided_slice %15 {offsets = [0, 256], sizes = [128, 64], strides = [1, 1]} : vector<128x512xbf16> to vector<128x64xbf16>
    %124 = vector.extract_strided_slice %22 {offsets = [0, 256], sizes = [128, 64], strides = [1, 1]} : vector<128x512xbf16> to vector<128x64xbf16>
    %cst_48 = arith.constant dense<0.000000e+00> : vector<128x128xf32>
    %125 = tpu.matmul %122, %123, %cst_48 {dimension_numbers = #tpu.dot_dimension_numbers<[1], [1], [0], [0], [0, 0, 1, 0], [], []>} : vector<128x64xbf16>, vector<128x64xbf16>, vector<128x128xf32> -> vector<128x128xf32>
    %cst_49 = arith.constant 1.250000e-01 : f32
    %126 = vector.broadcast %cst_49 : f32 to vector<128x128xf32>
    %127 = arith.mulf %125, %126 : vector<128x128xf32>
    %128 = vector.broadcast %25 : vector<128x1xf32> to vector<128x128xf32>
    %129 = arith.addf %127, %128 : vector<128x128xf32>
    %cst_50 = arith.constant dense<0xFF800000> : vector<128xf32>
    %130 = vector.multi_reduction <maximumf>, %129, %cst_50 [1] : vector<128x128xf32> to vector<128xf32>
    %131 = vector.shape_cast %130 : vector<128xf32> to vector<128x1xf32>
    %132 = vector.broadcast %131 : vector<128x1xf32> to vector<128x128xf32>
    %133 = arith.subf %129, %132 : vector<128x128xf32>
    %134 = math.exp %133 : vector<128x128xf32>
    %cst_51 = arith.constant dense<0.000000e+00> : vector<128xf32>
    %135 = vector.multi_reduction <add>, %134, %cst_51 [1] : vector<128x128xf32> to vector<128xf32>
    %136 = vector.shape_cast %135 : vector<128xf32> to vector<128x1xf32>
    %137 = tpu.reciprocal %136 {approx = true} : vector<128x1xf32> -> vector<128x1xf32>
    %138 = vector.broadcast %137 : vector<128x1xf32> to vector<128x128xf32>
    %139 = arith.mulf %134, %138 : vector<128x128xf32>
    %140 = arith.truncf %139 : vector<128x128xf32> to vector<128x128xbf16>
    %cst_52 = arith.constant dense<0.000000e+00> : vector<128x64xf32>
    %141 = tpu.matmul %140, %124, %cst_52 {dimension_numbers = #tpu.dot_dimension_numbers<[1], [0], [0], [1], [0, 0, 1, 1], [], []>} : vector<128x128xbf16>, vector<128x64xbf16>, vector<128x64xf32> -> vector<128x64xf32>
    %142 = arith.truncf %141 : vector<128x64xf32> to vector<128x64xbf16>
    %c0_53 = arith.constant 0 : index
    %c0_54 = arith.constant 0 : index
    %c256 = arith.constant 256 : index
    %143 = vector.load %arg9[%c0_53, %c0_54, %c256] : memref<1x128x512xbf16, #tpu.memory_space<vmem>>, vector<1x128x64xbf16>
    %144 = vector.shape_cast %143 : vector<1x128x64xbf16> to vector<128x64xbf16>
    %145 = vector.shape_cast %142 : vector<128x64xbf16> to vector<1x128x64xbf16>
    tpu.vector_store %arg9[%c0_53, %c0_54, %c256], %145 {strides = array<i32>} : memref<1x128x512xbf16, #tpu.memory_space<vmem>>, vector<1x128x64xbf16>,
    %146 = vector.extract_strided_slice %8 {offsets = [0, 320], sizes = [128, 64], strides = [1, 1]} : vector<128x512xbf16> to vector<128x64xbf16>
    %147 = vector.extract_strided_slice %15 {offsets = [0, 320], sizes = [128, 64], strides = [1, 1]} : vector<128x512xbf16> to vector<128x64xbf16>
    %148 = vector.extract_strided_slice %22 {offsets = [0, 320], sizes = [128, 64], strides = [1, 1]} : vector<128x512xbf16> to vector<128x64xbf16>
    %cst_55 = arith.constant dense<0.000000e+00> : vector<128x128xf32>
    %149 = tpu.matmul %146, %147, %cst_55 {dimension_numbers = #tpu.dot_dimension_numbers<[1], [1], [0], [0], [0, 0, 1, 0], [], []>} : vector<128x64xbf16>, vector<128x64xbf16>, vector<128x128xf32> -> vector<128x128xf32>
    %cst_56 = arith.constant 1.250000e-01 : f32
    %150 = vector.broadcast %cst_56 : f32 to vector<128x128xf32>
    %151 = arith.mulf %149, %150 : vector<128x128xf32>
    %152 = vector.broadcast %25 : vector<128x1xf32> to vector<128x128xf32>
    %153 = arith.addf %151, %152 : vector<128x128xf32>
    %cst_57 = arith.constant dense<0xFF800000> : vector<128xf32>
    %154 = vector.multi_reduction <maximumf>, %153, %cst_57 [1] : vector<128x128xf32> to vector<128xf32>
    %155 = vector.shape_cast %154 : vector<128xf32> to vector<128x1xf32>
    %156 = vector.broadcast %155 : vector<128x1xf32> to vector<128x128xf32>
    %157 = arith.subf %153, %156 : vector<128x128xf32>
    %158 = math.exp %157 : vector<128x128xf32>
    %cst_58 = arith.constant dense<0.000000e+00> : vector<128xf32>
    %159 = vector.multi_reduction <add>, %158, %cst_58 [1] : vector<128x128xf32> to vector<128xf32>
    %160 = vector.shape_cast %159 : vector<128xf32> to vector<128x1xf32>
    %161 = tpu.reciprocal %160 {approx = true} : vector<128x1xf32> -> vector<128x1xf32>
    %162 = vector.broadcast %161 : vector<128x1xf32> to vector<128x128xf32>
    %163 = arith.mulf %158, %162 : vector<128x128xf32>
    %164 = arith.truncf %163 : vector<128x128xf32> to vector<128x128xbf16>
    %cst_59 = arith.constant dense<0.000000e+00> : vector<128x64xf32>
    %165 = tpu.matmul %164, %148, %cst_59 {dimension_numbers = #tpu.dot_dimension_numbers<[1], [0], [0], [1], [0, 0, 1, 1], [], []>} : vector<128x128xbf16>, vector<128x64xbf16>, vector<128x64xf32> -> vector<128x64xf32>
    %166 = arith.truncf %165 : vector<128x64xf32> to vector<128x64xbf16>
    %c0_60 = arith.constant 0 : index
    %c0_61 = arith.constant 0 : index
    %c320 = arith.constant 320 : index
    %167 = vector.load %arg9[%c0_60, %c0_61, %c320] : memref<1x128x512xbf16, #tpu.memory_space<vmem>>, vector<1x128x64xbf16>
    %168 = vector.shape_cast %167 : vector<1x128x64xbf16> to vector<128x64xbf16>
    %169 = vector.shape_cast %166 : vector<128x64xbf16> to vector<1x128x64xbf16>
    tpu.vector_store %arg9[%c0_60, %c0_61, %c320], %169 {strides = array<i32>} : memref<1x128x512xbf16, #tpu.memory_space<vmem>>, vector<1x128x64xbf16>,
    %170 = vector.extract_strided_slice %8 {offsets = [0, 384], sizes = [128, 64], strides = [1, 1]} : vector<128x512xbf16> to vector<128x64xbf16>
    %171 = vector.extract_strided_slice %15 {offsets = [0, 384], sizes = [128, 64], strides = [1, 1]} : vector<128x512xbf16> to vector<128x64xbf16>
    %172 = vector.extract_strided_slice %22 {offsets = [0, 384], sizes = [128, 64], strides = [1, 1]} : vector<128x512xbf16> to vector<128x64xbf16>
    %cst_62 = arith.constant dense<0.000000e+00> : vector<128x128xf32>
    %173 = tpu.matmul %170, %171, %cst_62 {dimension_numbers = #tpu.dot_dimension_numbers<[1], [1], [0], [0], [0, 0, 1, 0], [], []>} : vector<128x64xbf16>, vector<128x64xbf16>, vector<128x128xf32> -> vector<128x128xf32>
    %cst_63 = arith.constant 1.250000e-01 : f32
    %174 = vector.broadcast %cst_63 : f32 to vector<128x128xf32>
    %175 = arith.mulf %173, %174 : vector<128x128xf32>
    %176 = vector.broadcast %25 : vector<128x1xf32> to vector<128x128xf32>
    %177 = arith.addf %175, %176 : vector<128x128xf32>
    %cst_64 = arith.constant dense<0xFF800000> : vector<128xf32>
    %178 = vector.multi_reduction <maximumf>, %177, %cst_64 [1] : vector<128x128xf32> to vector<128xf32>
    %179 = vector.shape_cast %178 : vector<128xf32> to vector<128x1xf32>
    %180 = vector.broadcast %179 : vector<128x1xf32> to vector<128x128xf32>
    %181 = arith.subf %177, %180 : vector<128x128xf32>
    %182 = math.exp %181 : vector<128x128xf32>
    %cst_65 = arith.constant dense<0.000000e+00> : vector<128xf32>
    %183 = vector.multi_reduction <add>, %182, %cst_65 [1] : vector<128x128xf32> to vector<128xf32>
    %184 = vector.shape_cast %183 : vector<128xf32> to vector<128x1xf32>
    %185 = tpu.reciprocal %184 {approx = true} : vector<128x1xf32> -> vector<128x1xf32>
    %186 = vector.broadcast %185 : vector<128x1xf32> to vector<128x128xf32>
    %187 = arith.mulf %182, %186 : vector<128x128xf32>
    %188 = arith.truncf %187 : vector<128x128xf32> to vector<128x128xbf16>
    %cst_66 = arith.constant dense<0.000000e+00> : vector<128x64xf32>
    %189 = tpu.matmul %188, %172, %cst_66 {dimension_numbers = #tpu.dot_dimension_numbers<[1], [0], [0], [1], [0, 0, 1, 1], [], []>} : vector<128x128xbf16>, vector<128x64xbf16>, vector<128x64xf32> -> vector<128x64xf32>
    %190 = arith.truncf %189 : vector<128x64xf32> to vector<128x64xbf16>
    %c0_67 = arith.constant 0 : index
    %c0_68 = arith.constant 0 : index
    %c384 = arith.constant 384 : index
    %191 = vector.load %arg9[%c0_67, %c0_68, %c384] : memref<1x128x512xbf16, #tpu.memory_space<vmem>>, vector<1x128x64xbf16>
    %192 = vector.shape_cast %191 : vector<1x128x64xbf16> to vector<128x64xbf16>
    %193 = vector.shape_cast %190 : vector<128x64xbf16> to vector<1x128x64xbf16>
    tpu.vector_store %arg9[%c0_67, %c0_68, %c384], %193 {strides = array<i32>} : memref<1x128x512xbf16, #tpu.memory_space<vmem>>, vector<1x128x64xbf16>,
    %194 = vector.extract_strided_slice %8 {offsets = [0, 448], sizes = [128, 64], strides = [1, 1]} : vector<128x512xbf16> to vector<128x64xbf16>
    %195 = vector.extract_strided_slice %15 {offsets = [0, 448], sizes = [128, 64], strides = [1, 1]} : vector<128x512xbf16> to vector<128x64xbf16>
    %196 = vector.extract_strided_slice %22 {offsets = [0, 448], sizes = [128, 64], strides = [1, 1]} : vector<128x512xbf16> to vector<128x64xbf16>
    %cst_69 = arith.constant dense<0.000000e+00> : vector<128x128xf32>
    %197 = tpu.matmul %194, %195, %cst_69 {dimension_numbers = #tpu.dot_dimension_numbers<[1], [1], [0], [0], [0, 0, 1, 0], [], []>} : vector<128x64xbf16>, vector<128x64xbf16>, vector<128x128xf32> -> vector<128x128xf32>
    %cst_70 = arith.constant 1.250000e-01 : f32
    %198 = vector.broadcast %cst_70 : f32 to vector<128x128xf32>
    %199 = arith.mulf %197, %198 : vector<128x128xf32>
    %200 = vector.broadcast %25 : vector<128x1xf32> to vector<128x128xf32>
    %201 = arith.addf %199, %200 : vector<128x128xf32>
    %cst_71 = arith.constant dense<0xFF800000> : vector<128xf32>
    %202 = vector.multi_reduction <maximumf>, %201, %cst_71 [1] : vector<128x128xf32> to vector<128xf32>
    %203 = vector.shape_cast %202 : vector<128xf32> to vector<128x1xf32>
    %204 = vector.broadcast %203 : vector<128x1xf32> to vector<128x128xf32>
    %205 = arith.subf %201, %204 : vector<128x128xf32>
    %206 = math.exp %205 : vector<128x128xf32>
    %cst_72 = arith.constant dense<0.000000e+00> : vector<128xf32>
    %207 = vector.multi_reduction <add>, %206, %cst_72 [1] : vector<128x128xf32> to vector<128xf32>
    %208 = vector.shape_cast %207 : vector<128xf32> to vector<128x1xf32>
    %209 = tpu.reciprocal %208 {approx = true} : vector<128x1xf32> -> vector<128x1xf32>
    %210 = vector.broadcast %209 : vector<128x1xf32> to vector<128x128xf32>
    %211 = arith.mulf %206, %210 : vector<128x128xf32>
    %212 = arith.truncf %211 : vector<128x128xf32> to vector<128x128xbf16>
    %cst_73 = arith.constant dense<0.000000e+00> : vector<128x64xf32>
    %213 = tpu.matmul %212, %196, %cst_73 {dimension_numbers = #tpu.dot_dimension_numbers<[1], [0], [0], [1], [0, 0, 1, 1], [], []>} : vector<128x128xbf16>, vector<128x64xbf16>, vector<128x64xf32> -> vector<128x64xf32>
    %214 = arith.truncf %213 : vector<128x64xf32> to vector<128x64xbf16>
    %c0_74 = arith.constant 0 : index
    %c0_75 = arith.constant 0 : index
    %c448 = arith.constant 448 : index
    %215 = vector.load %arg9[%c0_74, %c0_75, %c448] : memref<1x128x512xbf16, #tpu.memory_space<vmem>>, vector<1x128x64xbf16>
    %216 = vector.shape_cast %215 : vector<1x128x64xbf16> to vector<128x64xbf16>
    %217 = vector.shape_cast %214 : vector<128x64xbf16> to vector<1x128x64xbf16>
    tpu.vector_store %arg9[%c0_74, %c0_75, %c448], %217 {strides = array<i32>} : memref<1x128x512xbf16, #tpu.memory_space<vmem>>, vector<1x128x64xbf16>,
    return
  }
  func.func @transform_0(%arg0: i32) -> (i32, i32, i32) {
    %c0_i32 = arith.constant 0 : i32
    %c0_i32_0 = arith.constant 0 : i32
    %c0_i32_1 = arith.constant 0 : i32
    return %arg0, %c0_i32, %c0_i32_0 : i32, i32, i32
  }
  func.func @transform_1(%arg0: i32) -> (i32, i32) {
    %c0_i32 = arith.constant 0 : i32
    %c0_i32_0 = arith.constant 0 : i32
    %c0_i32_1 = arith.constant 0 : i32
    return %c0_i32, %c0_i32_0 : i32, i32
  }
  func.func @transform_2(%arg0: i32) -> (i32, i32) {
    %c0_i32 = arith.constant 0 : i32
    %c0_i32_0 = arith.constant 0 : i32
    %c0_i32_1 = arith.constant 0 : i32
    return %c0_i32, %c0_i32_0 : i32, i32
  }
  func.func @transform_3(%arg0: i32) -> (i32, i32) {
    %c0_i32 = arith.constant 0 : i32
    %c0_i32_0 = arith.constant 0 : i32
    %c0_i32_1 = arith.constant 0 : i32
    return %c0_i32, %c0_i32_0 : i32, i32
  }
  func.func @transform_4(%arg0: i32) -> (i32, i32) {
    %c0_i32 = arith.constant 0 : i32
    %c0_i32_0 = arith.constant 0 : i32
    %c0_i32_1 = arith.constant 0 : i32
    return %c0_i32, %c0_i32_0 : i32, i32
  }
  func.func @transform_5(%arg0: i32) -> (i32, i32) {
    %c0_i32 = arith.constant 0 : i32
    %c0_i32_0 = arith.constant 0 : i32
    %c0_i32_1 = arith.constant 0 : i32
    return %c0_i32, %c0_i32_0 : i32, i32
  }
  func.func @transform_6(%arg0: i32) -> (i32, i32) {
    %c0_i32 = arith.constant 0 : i32
    %c0_i32_0 = arith.constant 0 : i32
    %c0_i32_1 = arith.constant 0 : i32
    return %c0_i32, %c0_i32_0 : i32, i32
  }
  func.func @transform_7(%arg0: i32) -> (i32, i32, i32) {
    %c0_i32 = arith.constant 0 : i32
    %c0_i32_0 = arith.constant 0 : i32
    %c0_i32_1 = arith.constant 0 : i32
    return %arg0, %c0_i32, %c0_i32_0 : i32, i32, i32
  }
  func.func @transform_8(%arg0: i32) -> (i32, i32, i32) {
    %c0_i32 = arith.constant 0 : i32
    %c0_i32_0 = arith.constant 0 : i32
    %c0_i32_1 = arith.constant 0 : i32
    return %arg0, %c0_i32, %c0_i32_0 : i32, i32, i32
  }
}

</mosaic_0001>

<llo_original>
// kernel: tpu_custom_call.1
$region0: #{tpu_custom_call.1}
  #allocation0 [shape = 'u32[]', space=smem, size = 0x4, offset = 0x4, fixed_abs, tag = 'smem constant byte address 0x4 - core index']
  #allocation1 [shape = 'u32[72,128]{1,0:T(1,128)}', space=vmem, size = 0x9000, scoped, tag = 'internal scratch']
  %s0 = inlined_call_operand.vmem [shape: bf16[2,128,320], index: 0, kind: input, shape index: {}]
  %s1 = inlined_call_operand.vmem [shape: bf16[320,512], index: 1, kind: input, shape index: {}]
  %s2 = inlined_call_operand.hbm [shape: bf16[320,512], index: 2, kind: input, shape index: {}]
  %s3 = inlined_call_operand.hbm [shape: bf16[320,512], index: 3, kind: input, shape index: {}]
  %s4 = inlined_call_operand.vmem [shape: bf16[1,512], index: 4, kind: input, shape index: {}]
  %s5 = inlined_call_operand.vmem [shape: bf16[1,512], index: 5, kind: input, shape index: {}]
  %s6 = inlined_call_operand.vmem [shape: bf16[1,512], index: 6, kind: input, shape index: {}]
  %s7 = inlined_call_operand.vmem [shape: bf16[2,128,1], index: 7, kind: input, shape index: {}]
  %s8 = inlined_call_operand.hbm [shape: bf16[2,128,512], index: 8, kind: output, shape index: {}]
  %s9 = sld [smem:[#allocation0]]
  $region73: #{tpu_custom_call.1} parent=0
    _
  %s11 = ssub.s32 1, %s9
  %s12 = scalar_select 0, %s11, %s9
  $region1: #{tpu_custom_call.1} parent=0
    #allocation2 [shape = 'u8[327680]{0}', space=vmem, size = 0x50000, scoped, tag = 'input window, operand 2, single buffered']
    #allocation3 [shape = 's32[2]{0}', space=sflag, size = 0x8, scoped, tag = 'scoped memory for tpu_custom_call.1']
    #allocation4 [shape = 's32[2]{0}', space=sflag, size = 0x8, scoped, tag = 'scoped memory for tpu_custom_call.1']
    #allocation5 [shape = 'u8[327680]{0}', space=vmem, size = 0x50000, scoped, tag = 'input window, operand 3, single buffered']
    #allocation6 [shape = 's32[1]{0}', space=sflag, size = 0x4, scoped, tag = 'scoped memory for tpu_custom_call.1']
    #allocation7 [shape = 'u8[262144]{0}', space=vmem, size = 0x40000, scoped, tag = 'output window, operand 0']
    %13 = vsyncpa [#allocation3], 0
    %14 = vsyncpa [#allocation6], 0
    %15 = vsyncpa [#allocation4], 0
    %s16 = scalar_lea.sflag [#allocation4], 1
    %17 = vsyncpa %s16, 0
    loop: start=0, step=1, limit=4
    $region2: #{tpu_custom_call.1} parent=1 // loop_pre_header
      _
    $region3: #{tpu_custom_call.1} parent=1 // loop_header
      %s19 = sphi 0, %s23
      %p20 = scmp.ge.s32.totalorder %s19, 4
      %s29 = sphi 0, %s31
      %s32 = sphi 0, %s29
      %s33 = sphi 0, %s32
      %s49 = sphi 0, %s33
      %s53 = sphi 0, %s53
      %s55 = sphi 0, %s53
      %s56 = sphi 0, %s55
      %s70 = sphi 0, %s56
      %s74 = sphi 0, %s74
      %s76 = sphi 0, %s74
      %s77 = sphi 0, %s76
      %s91 = sphi 0, %s77
      %s95 = sphi 0, %s95
      %s97 = sphi 0, %s95
      %s98 = sphi 0, %s97
      %s112 = sphi 0, %s98
      %s116 = sphi 0, %s116
      %s118 = sphi 0, %s116
      %s119 = sphi 0, %s118
      %s133 = sphi 0, %s119
      %s137 = sphi 0, %s137
      %s139 = sphi 0, %s137
      %s140 = sphi 0, %s139
      %s154 = sphi 0, %s140
      %s158 = sphi 0, %s158
      %s160 = sphi 0, %s158
      %s161 = sphi 0, %s160
      %s175 = sphi 0, %s161
      %s181 = sphi 0, %s183
      %s184 = sphi 0, %s181
      %s185 = sphi 0, %s184
      %s201 = sphi 0, %s185
      %s207 = sphi 0, %s209
      %s210 = sphi 0, %s207
      %s211 = sphi 0, %s210
      %s227 = sphi 0, %s211
    $region4: #{tpu_custom_call.1} parent=1 // loop_header_branch
      %22 = sbr.rel (%p20) target = $region8
    $region5: #{tpu_custom_call.1} parent=1 // loop_body
      %s24 = ssub.s32 %s19, 1
      %s25 = ssub.s32 %s19, 2
      %s26 = sadd.s32 %s19, 1
      %s27 = ssub.s32 %s19, %s26
      %p28 = scmp.eq.s32.totalorder %s27, 0
      %s30 = sadd.s32 %s29, 1
      %s31 = scalar_select %p28, %s29, %s30
      %p34 = pneg %p28
      %p35 = scmp.eq.s32.totalorder %s19, 1
      %p36 = por %p34, %p35
      %p37 = scmp.ne.s32.totalorder %s29, %s32
      %p38 = scmp.eq.s32.totalorder %s19, 0
      %p39 = por %p37, %p38
      %p40 = scmp.ne.s32.totalorder %s29, %s32
      %p41 = scmp.eq.s32.totalorder %s24, 1
      %p42 = por %p40, %p41
      %p43 = scmp.ne.s32.totalorder %s32, %s33
      %p44 = scmp.eq.s32.totalorder %s24, 0
      %p45 = por %p43, %p44
      %p46 = scmp.ne.s32.totalorder %s32, %s33
      %p47 = scmp.eq.s32.totalorder %s25, 1
      %p48 = por %p46, %p47
      %p50 = scmp.ne.s32.totalorder %s33, %s49
      %p51 = scmp.eq.s32.totalorder %s25, 0
      %p52 = por %p50, %p51
      %s54 = sadd.s32 %s53, 1
      %p57 = scmp.eq.s32.totalorder %s19, 1
      %p58 = scmp.ne.s32.totalorder %s53, %s55
      %p59 = scmp.eq.s32.totalorder %s19, 0
      %p60 = por %p58, %p59
      %p61 = scmp.ne.s32.totalorder %s53, %s55
      %p62 = scmp.eq.s32.totalorder %s24, 1
      %p63 = por %p61, %p62
      %p64 = scmp.ne.s32.totalorder %s55, %s56
      %p65 = scmp.eq.s32.totalorder %s24, 0
      %p66 = por %p64, %p65
      %p67 = scmp.ne.s32.totalorder %s55, %s56
      %p68 = scmp.eq.s32.totalorder %s25, 1
      %p69 = por %p67, %p68
      %p71 = scmp.ne.s32.totalorder %s56, %s70
      %p72 = scmp.eq.s32.totalorder %s25, 0
      %p73 = por %p71, %p72
      %s75 = sadd.s32 %s74, 1
      %p78 = scmp.eq.s32.totalorder %s19, 1
      %p79 = scmp.ne.s32.totalorder %s74, %s76
      %p80 = scmp.eq.s32.totalorder %s19, 0
      %p81 = por %p79, %p80
      %p82 = scmp.ne.s32.totalorder %s74, %s76
      %p83 = scmp.eq.s32.totalorder %s24, 1
      %p84 = por %p82, %p83
      %p85 = scmp.ne.s32.totalorder %s76, %s77
      %p86 = scmp.eq.s32.totalorder %s24, 0
      %p87 = por %p85, %p86
      %p88 = scmp.ne.s32.totalorder %s76, %s77
      %p89 = scmp.eq.s32.totalorder %s25, 1
      %p90 = por %p88, %p89
      %p92 = scmp.ne.s32.totalorder %s77, %s91
      %p93 = scmp.eq.s32.totalorder %s25, 0
      %p94 = por %p92, %p93
      %s96 = sadd.s32 %s95, 1
      %p99 = scmp.eq.s32.totalorder %s19, 1
      %p100 = scmp.ne.s32.totalorder %s95, %s97
      %p101 = scmp.eq.s32.totalorder %s19, 0
      %p102 = por %p100, %p101
      %p103 = scmp.ne.s32.totalorder %s95, %s97
      %p104 = scmp.eq.s32.totalorder %s24, 1
      %p105 = por %p103, %p104
      %p106 = scmp.ne.s32.totalorder %s97, %s98
      %p107 = scmp.eq.s32.totalorder %s24, 0
      %p108 = por %p106, %p107
      %p109 = scmp.ne.s32.totalorder %s97, %s98
      %p110 = scmp.eq.s32.totalorder %s25, 1
      %p111 = por %p109, %p110
      %p113 = scmp.ne.s32.totalorder %s98, %s112
      %p114 = scmp.eq.s32.totalorder %s25, 0
      %p115 = por %p113, %p114
      %s117 = sadd.s32 %s116, 1
      %p120 = scmp.eq.s32.totalorder %s19, 1
      %p121 = scmp.ne.s32.totalorder %s116, %s118
      %p122 = scmp.eq.s32.totalorder %s19, 0
      %p123 = por %p121, %p122
      %p124 = scmp.ne.s32.totalorder %s116, %s118
      %p125 = scmp.eq.s32.totalorder %s24, 1
      %p126 = por %p124, %p125
      %p127 = scmp.ne.s32.totalorder %s118, %s119
      %p128 = scmp.eq.s32.totalorder %s24, 0
      %p129 = por %p127, %p128
      %p130 = scmp.ne.s32.totalorder %s118, %s119
      %p131 = scmp.eq.s32.totalorder %s25, 1
      %p132 = por %p130, %p131
      %p134 = scmp.ne.s32.totalorder %s119, %s133
      %p135 = scmp.eq.s32.totalorder %s25, 0
      %p136 = por %p134, %p135
      %s138 = sadd.s32 %s137, 1
      %p141 = scmp.eq.s32.totalorder %s19, 1
      %p142 = scmp.ne.s32.totalorder %s137, %s139
      %p143 = scmp.eq.s32.totalorder %s19, 0
      %p144 = por %p142, %p143
      %p145 = scmp.ne.s32.totalorder %s137, %s139
      %p146 = scmp.eq.s32.totalorder %s24, 1
      %p147 = por %p145, %p146
      %p148 = scmp.ne.s32.totalorder %s139, %s140
      %p149 = scmp.eq.s32.totalorder %s24, 0
      %p150 = por %p148, %p149
      %p151 = scmp.ne.s32.totalorder %s139, %s140
      %p152 = scmp.eq.s32.totalorder %s25, 1
      %p153 = por %p151, %p152
      %p155 = scmp.ne.s32.totalorder %s140, %s154
      %p156 = scmp.eq.s32.totalorder %s25, 0
      %p157 = por %p155, %p156
      %s159 = sadd.s32 %s158, 1
      %p162 = scmp.eq.s32.totalorder %s19, 1
      %p163 = scmp.ne.s32.totalorder %s158, %s160
      %p164 = scmp.eq.s32.totalorder %s19, 0
      %p165 = por %p163, %p164
      %p166 = scmp.ne.s32.totalorder %s158, %s160
      %p167 = scmp.eq.s32.totalorder %s24, 1
      %p168 = por %p166, %p167
      %p169 = scmp.ne.s32.totalorder %s160, %s161
      %p170 = scmp.eq.s32.totalorder %s24, 0
      %p171 = por %p169, %p170
      %p172 = scmp.ne.s32.totalorder %s160, %s161
      %p173 = scmp.eq.s32.totalorder %s25, 1
      %p174 = por %p172, %p173
      %p176 = scmp.ne.s32.totalorder %s161, %s175
      %p177 = scmp.eq.s32.totalorder %s25, 0
      %p178 = por %p176, %p177
      %s179 = ssub.s32 %s19, %s26
      %p180 = scmp.eq.s32.totalorder %s179, 0
      %s182 = sadd.s32 %s181, 1
      %s183 = scalar_select %p180, %s181, %s182
      %p186 = pneg %p180
      %p187 = scmp.eq.s32.totalorder %s19, 1
      %p188 = por %p186, %p187
      %p189 = scmp.ne.s32.totalorder %s181, %s184
      %p190 = scmp.eq.s32.totalorder %s19, 0
      %p191 = por %p189, %p190
      %p192 = scmp.ne.s32.totalorder %s181, %s184
      %p193 = scmp.eq.s32.totalorder %s24, 1
      %p194 = por %p192, %p193
      %p195 = scmp.ne.s32.totalorder %s184, %s185
      %p196 = scmp.eq.s32.totalorder %s24, 0
      %p197 = por %p195, %p196
      %p198 = scmp.ne.s32.totalorder %s184, %s185
      %p199 = scmp.eq.s32.totalorder %s25, 1
      %p200 = por %p198, %p199
      %p202 = scmp.ne.s32.totalorder %s185, %s201
      %p203 = scmp.eq.s32.totalorder %s25, 0
      %p204 = por %p202, %p203
      %s205 = ssub.s32 %s19, %s26
      %p206 = scmp.eq.s32.totalorder %s205, 0
      %s208 = sadd.s32 %s207, 1
      %s209 = scalar_select %p206, %s207, %s208
      %p212 = pneg %p206
      %p213 = scmp.eq.s32.totalorder %s19, 1
      %p214 = por %p212, %p213
      %p215 = scmp.ne.s32.totalorder %s207, %s210
      %p216 = scmp.eq.s32.totalorder %s19, 0
      %p217 = por %p215, %p216
      %p218 = scmp.ne.s32.totalorder %s207, %s210
      %p219 = scmp.eq.s32.totalorder %s24, 1
      %p220 = por %p218, %p219
      %p221 = scmp.ne.s32.totalorder %s210, %s211
      %p222 = scmp.eq.s32.totalorder %s24, 0
      %p223 = por %p221, %p222
      %p224 = scmp.ne.s32.totalorder %s210, %s211
      %p225 = scmp.eq.s32.totalorder %s25, 1
      %p226 = por %p224, %p225
      %p228 = scmp.ne.s32.totalorder %s211, %s227
      %p229 = scmp.eq.s32.totalorder %s25, 0
      %p230 = por %p228, %p229
      %p231 = scmp.le.s32.totalorder 1, %s19
      %p232 = scmp.lt.s32.totalorder %s19, 3
      %p233 = pnand %p231, %p232
      %p234 = pneg %p233
      // Predicated region
      $region9: #{tpu_custom_call.1} parent=5 // pred_check
        _
      $region10: #{tpu_custom_call.1} parent=5 // pred_check_branch
        %236 = sbr.rel (%p233) target = $region12
      $region11: #{tpu_custom_call.1} parent=5 // pred_region
        %s237 = ssub.s32 %s19, 1
        // Predicated region
        $region13: #{tpu_custom_call.1} parent=11 // pred_check
          %p238 = pneg %p66
        $region14: #{tpu_custom_call.1} parent=11 // pred_check_branch
          %240 = sbr.rel (%p238) target = $region16
        $region15: #{tpu_custom_call.1} parent=11 // pred_region
          _
        $region16: #{tpu_custom_call.1} parent=11 // pred_fallthru
          _
        // Predicated region
        $region17: #{tpu_custom_call.1} parent=11 // pred_check
          %p241 = pneg %p87
        $region18: #{tpu_custom_call.1} parent=11 // pred_check_branch
          %243 = sbr.rel (%p241) target = $region20
        $region19: #{tpu_custom_call.1} parent=11 // pred_region
          %245 = vsyncadd [#allocation3], 0
          %s246 = sshll.u32 %s2, 4
          %s247 = int_to_ptr.hbm [resolvable:$true] %s246
          %s248 = sshll.u32 [#allocation2], 4
          %s249 = int_to_ptr.vmem [resolvable:$true] %s248
          %254 = dma.hbm_to_vmem [thread:$0]  %s247, 10240, %s249, [#allocation3], 256, 256, 16
        $region20: #{tpu_custom_call.1} parent=11 // pred_fallthru
          _
        // Predicated region
        $region21: #{tpu_custom_call.1} parent=11 // pred_check
          %p255 = pneg %p108
        $region22: #{tpu_custom_call.1} parent=11 // pred_check_branch
          %257 = sbr.rel (%p255) target = $region24
        $region23: #{tpu_custom_call.1} parent=11 // pred_region
          %259 = vsyncadd [#allocation6], 0
          %s260 = sshll.u32 %s3, 4
          %s261 = int_to_ptr.hbm [resolvable:$true] %s260
          %s262 = sshll.u32 [#allocation5], 4
          %s263 = int_to_ptr.vmem [resolvable:$true] %s262
          %268 = dma.hbm_to_vmem [thread:$0]  %s261, 10240, %s263, [#allocation6], 256, 256, 16
        $region24: #{tpu_custom_call.1} parent=11 // pred_fallthru
          _
        // Predicated region
        $region25: #{tpu_custom_call.1} parent=11 // pred_check
          %p269 = pneg %p129
        $region26: #{tpu_custom_call.1} parent=11 // pred_check_branch
          %271 = sbr.rel (%p269) target = $region28
        $region27: #{tpu_custom_call.1} parent=11 // pred_region
          _
        $region28: #{tpu_custom_call.1} parent=11 // pred_fallthru
          _
        // Predicated region
        $region29: #{tpu_custom_call.1} parent=11 // pred_check
          %p272 = pneg %p150
        $region30: #{tpu_custom_call.1} parent=11 // pred_check_branch
          %274 = sbr.rel (%p272) target = $region32
        $region31: #{tpu_custom_call.1} parent=11 // pred_region
          _
        $region32: #{tpu_custom_call.1} parent=11 // pred_fallthru
          _
        // Predicated region
        $region33: #{tpu_custom_call.1} parent=11 // pred_check
          %p275 = pneg %p171
        $region34: #{tpu_custom_call.1} parent=11 // pred_check_branch
          %277 = sbr.rel (%p275) target = $region36
        $region35: #{tpu_custom_call.1} parent=11 // pred_region
          _
        $region36: #{tpu_custom_call.1} parent=11 // pred_fallthru
          _
      $region12: #{tpu_custom_call.1} parent=5 // pred_fallthru
        _
      %p278 = scmp.lt.s32.totalorder %s19, 2
      // Predicated region
      $region37: #{tpu_custom_call.1} parent=5 // pred_check
        %p279 = pneg %p278
      $region38: #{tpu_custom_call.1} parent=5 // pred_check_branch
        %281 = sbr.rel (%p279) target = $region40
      $region39: #{tpu_custom_call.1} parent=5 // pred_region
        // Predicated region
        $region41: #{tpu_custom_call.1} parent=39 // pred_check
          %p282 = pneg %p39
        $region42: #{tpu_custom_call.1} parent=39 // pred_check_branch
          %284 = sbr.rel (%p282) target = $region44
        $region43: #{tpu_custom_call.1} parent=39 // pred_region
          %p285 = scmp.lt.s32.totalorder %s19, 1
          %s286 = scalar_select %p285, %s19, 1
          %s287 = smul.addr %s286, 48
          %s288 = smul.addr %s287, 4
          %s289 = scalar_lea.vmem %s0, %s288
        $region44: #{tpu_custom_call.1} parent=39 // pred_fallthru
          _
        // Predicated region
        $region45: #{tpu_custom_call.1} parent=39 // pred_check
          %p290 = pneg %p191
        $region46: #{tpu_custom_call.1} parent=39 // pred_check_branch
          %292 = sbr.rel (%p290) target = $region48
        $region47: #{tpu_custom_call.1} parent=39 // pred_region
          %p293 = scmp.lt.s32.totalorder %s19, 1
          %s294 = scalar_select %p293, %s19, 1
          %s295 = smul.addr %s294, 16
          %s296 = smul.addr %s295, 4
          %s297 = scalar_lea.vmem %s7, %s296
        $region48: #{tpu_custom_call.1} parent=39 // pred_fallthru
          _
      $region40: #{tpu_custom_call.1} parent=5 // pred_fallthru
        _
      %p298 = scmp.le.s32.totalorder 1, %s19
      %p299 = scmp.lt.s32.totalorder %s19, 3
      %p300 = pnand %p298, %p299
      %p301 = pneg %p300
      // Predicated region
      $region49: #{tpu_custom_call.1} parent=5 // pred_check
        _
      $region50: #{tpu_custom_call.1} parent=5 // pred_check_branch
        %303 = sbr.rel (%p300) target = $region52
      $region51: #{tpu_custom_call.1} parent=5 // pred_region
        %s304 = ssub.s32 %s19, 1
        // Predicated region
        $region53: #{tpu_custom_call.1} parent=51 // pred_check
          %p305 = pneg %p87
        $region54: #{tpu_custom_call.1} parent=51 // pred_check_branch
          %307 = sbr.rel (%p305) target = $region56
        $region55: #{tpu_custom_call.1} parent=51 // pred_region
          %309 = dma.done [#allocation3], 10240
        $region56: #{tpu_custom_call.1} parent=51 // pred_fallthru
          _
        // Predicated region
        $region57: #{tpu_custom_call.1} parent=51 // pred_check
          %p310 = pneg %p108
        $region58: #{tpu_custom_call.1} parent=51 // pred_check_branch
          %312 = sbr.rel (%p310) target = $region60
        $region59: #{tpu_custom_call.1} parent=51 // pred_region
          %314 = dma.done [#allocation6], 10240
        $region60: #{tpu_custom_call.1} parent=51 // pred_fallthru
          _
        %p315 = scmp.lt.s32.totalorder %s24, 1
        %s316 = scalar_select %p315, %s24, 1
        %s317 = smul.addr %s316, 48
        %s318 = smul.addr %s317, 4
        %s319 = scalar_lea.vmem %s0, %s318
        %p320 = pneg %p45
        %p321 = pneg %p42
        %p322 = pneg %p66
        %p323 = pneg %p63
        %p324 = pneg %p87
        %p325 = pneg %p84
        %p326 = pneg %p108
        %p327 = pneg %p105
        %p328 = pneg %p129
        %p329 = pneg %p126
        %p330 = pneg %p150
        %p331 = pneg %p147
        %p332 = pneg %p171
        %p333 = pneg %p168
        %p334 = scmp.lt.s32.totalorder %s24, 1
        %s335 = scalar_select %p334, %s24, 1
        %s336 = smul.addr %s335, 16
        %s337 = smul.addr %s336, 4
        %s338 = scalar_lea.vmem %s7, %s337
        %p339 = pneg %p197
        %p340 = pneg %p194
        %p341 = pneg %p223
        %p342 = pneg %p220
        %s343 = sand.u32 %s210, 1
        %s344 = scalar_lea.sflag [#allocation4], %s343
        %s345 = sand.u32 %s210, 1
        %s346 = smul.addr %s345, 256
        %s347 = scalar_lea.vmem [#allocation7], %s346
        %p348 = scmp.lt.s32.totalorder %s24, 1
        %s349 = scalar_select %p348, %s24, 1
        %s350 = smul.addr %s349, 48
        %s351 = smul.addr %s350, 4
        %s352 = scalar_lea.vmem %s0, %s351
        %p353 = scmp.lt.s32.totalorder %s24, 1
        %s354 = scalar_select %p353, %s24, 1
        %s355 = smul.addr %s354, 16
        %s356 = smul.addr %s355, 4
        %s357 = scalar_lea.vmem %s7, %s356
        %v359 = vld [vmem:[%s352] sm:$0xff]
        %v360 = vld [vmem:[%s352 + $0x8] sm:$0xf]
        %v361 = vld [vmem:[%s352 + $0xc] sm:$0xff]
        %v362 = vld [vmem:[%s352 + $0x14] sm:$0xf]
        %v363 = vld [vmem:[%s352 + $0x18] sm:$0xff]
        %v364 = vld [vmem:[%s352 + $0x20] sm:$0xf]
        %v365 = vld [vmem:[%s352 + $0x24] sm:$0xff]
        %v366 = vld [vmem:[%s352 + $0x2c] sm:$0xf]
        %v367 = vld [vmem:[%s352 + $0x30] sm:$0xff]
        %v368 = vld [vmem:[%s352 + $0x38] sm:$0xf]
        %v369 = vld [vmem:[%s352 + $0x3c] sm:$0xff]
        %v370 = vld [vmem:[%s352 + $0x44] sm:$0xf]
        %v371 = vld [vmem:[%s352 + $0x48] sm:$0xff]
        %v372 = vld [vmem:[%s352 + $0x50] sm:$0xf]
        %v373 = vld [vmem:[%s352 + $0x54] sm:$0xff]
        %v374 = vld [vmem:[%s352 + $0x5c] sm:$0xf]
        %v375 = vld [vmem:[%s352 + $0x60] sm:$0xff]
        %v376 = vld [vmem:[%s352 + $0x68] sm:$0xf]
        %v377 = vld [vmem:[%s352 + $0x6c] sm:$0xff]
        %v378 = vld [vmem:[%s352 + $0x74] sm:$0xf]
        %v379 = vld [vmem:[%s352 + $0x78] sm:$0xff]
        %v380 = vld [vmem:[%s352 + $0x80] sm:$0xf]
        %v381 = vld [vmem:[%s352 + $0x84] sm:$0xff]
        %v382 = vld [vmem:[%s352 + $0x8c] sm:$0xf]
        %v383 = vld [vmem:[%s352 + $0x90] sm:$0xff]
        %v384 = vld [vmem:[%s352 + $0x98] sm:$0xf]
        %v385 = vld [vmem:[%s352 + $0x9c] sm:$0xff]
        %v386 = vld [vmem:[%s352 + $0xa4] sm:$0xf]
        %v387 = vld [vmem:[%s352 + $0xa8] sm:$0xff]
        %v388 = vld [vmem:[%s352 + $0xb0] sm:$0xf]
        %v389 = vld [vmem:[%s352 + $0xb4] sm:$0xff]
        %v390 = vld [vmem:[%s352 + $0xbc] sm:$0xf]
        %v391 = vld [vmem:[%s1] sm:$0xff]
        %v392 = vld [vmem:[%s1 + $0x8] sm:$0xff]
        %v393 = vld [vmem:[%s1 + $0x10] sm:$0xff]
        %v394 = vld [vmem:[%s1 + $0x18] sm:$0xff]
        %v395 = vld [vmem:[%s1 + $0x20] sm:$0xff]
        %v396 = vld [vmem:[%s1 + $0x28] sm:$0xff]
        %v397 = vld [vmem:[%s1 + $0x30] sm:$0xff]
        %v398 = vld [vmem:[%s1 + $0x38] sm:$0xff]
        %v399 = vld [vmem:[%s1 + $0x40] sm:$0xff]
        %v400 = vld [vmem:[%s1 + $0x48] sm:$0xff]
        %v401 = vld [vmem:[%s1 + $0x50] sm:$0xff]
        %v402 = vld [vmem:[%s1 + $0x58] sm:$0xff]
        %v403 = vld [vmem:[%s1 + $0x60] sm:$0xff]
        %v404 = vld [vmem:[%s1 + $0x68] sm:$0xff]
        %v405 = vld [vmem:[%s1 + $0x70] sm:$0xff]
        %v406 = vld [vmem:[%s1 + $0x78] sm:$0xff]
        %v407 = vld [vmem:[%s1 + $0x80] sm:$0xff]
        %v408 = vld [vmem:[%s1 + $0x88] sm:$0xff]
        %v409 = vld [vmem:[%s1 + $0x90] sm:$0xff]
        %v410 = vld [vmem:[%s1 + $0x98] sm:$0xff]
        %v411 = vld [vmem:[%s1 + $0xa0] sm:$0xff]
        %v412 = vld [vmem:[%s1 + $0xa8] sm:$0xff]
        %v413 = vld [vmem:[%s1 + $0xb0] sm:$0xff]
        %v414 = vld [vmem:[%s1 + $0xb8] sm:$0xff]
        %v415 = vld [vmem:[%s1 + $0xc0] sm:$0xff]
        %v416 = vld [vmem:[%s1 + $0xc8] sm:$0xff]
        %v417 = vld [vmem:[%s1 + $0xd0] sm:$0xff]
        %v418 = vld [vmem:[%s1 + $0xd8] sm:$0xff]
        %v419 = vld [vmem:[%s1 + $0xe0] sm:$0xff]
        %v420 = vld [vmem:[%s1 + $0xe8] sm:$0xff]
        %v421 = vld [vmem:[%s1 + $0xf0] sm:$0xff]
        %v422 = vld [vmem:[%s1 + $0xf8] sm:$0xff]
        %v423 = vld [vmem:[%s1 + $0x100] sm:$0xff]
        %v424 = vld [vmem:[%s1 + $0x108] sm:$0xff]
        %v425 = vld [vmem:[%s1 + $0x110] sm:$0xff]
        %v426 = vld [vmem:[%s1 + $0x118] sm:$0xff]
        %v427 = vld [vmem:[%s1 + $0x120] sm:$0xff]
        %v428 = vld [vmem:[%s1 + $0x128] sm:$0xff]
        %v429 = vld [vmem:[%s1 + $0x130] sm:$0xff]
        %v430 = vld [vmem:[%s1 + $0x138] sm:$0xff]
        %v431 = vld [vmem:[%s1 + $0x140] sm:$0xff]
        %v432 = vld [vmem:[%s1 + $0x148] sm:$0xff]
        %v433 = vld [vmem:[%s1 + $0x150] sm:$0xff]
        %v434 = vld [vmem:[%s1 + $0x158] sm:$0xff]
        %v435 = vld [vmem:[%s1 + $0x160] sm:$0xff]
        %v436 = vld [vmem:[%s1 + $0x168] sm:$0xff]
        %v437 = vld [vmem:[%s1 + $0x170] sm:$0xff]
        %v438 = vld [vmem:[%s1 + $0x178] sm:$0xff]
        %v439 = vld [vmem:[%s1 + $0x180] sm:$0xff]
        %v440 = vld [vmem:[%s1 + $0x188] sm:$0xff]
        %v441 = vld [vmem:[%s1 + $0x190] sm:$0xff]
        %v442 = vld [vmem:[%s1 + $0x198] sm:$0xff]
        %v443 = vld [vmem:[%s1 + $0x1a0] sm:$0xff]
        %v444 = vld [vmem:[%s1 + $0x1a8] sm:$0xff]
        %v445 = vld [vmem:[%s1 + $0x1b0] sm:$0xff]
        %v446 = vld [vmem:[%s1 + $0x1b8] sm:$0xff]
        %v447 = vld [vmem:[%s1 + $0x1c0] sm:$0xff]
        %v448 = vld [vmem:[%s1 + $0x1c8] sm:$0xff]
        %v449 = vld [vmem:[%s1 + $0x1d0] sm:$0xff]
        %v450 = vld [vmem:[%s1 + $0x1d8] sm:$0xff]
        %v451 = vld [vmem:[%s1 + $0x1e0] sm:$0xff]
        %v452 = vld [vmem:[%s1 + $0x1e8] sm:$0xff]
        %v453 = vld [vmem:[%s1 + $0x1f0] sm:$0xff]
        %v454 = vld [vmem:[%s1 + $0x1f8] sm:$0xff]
        %v455 = vld [vmem:[%s1 + $0x200] sm:$0xff]
        %v456 = vld [vmem:[%s1 + $0x208] sm:$0xff]
        %v457 = vld [vmem:[%s1 + $0x210] sm:$0xff]
        %v458 = vld [vmem:[%s1 + $0x218] sm:$0xff]
        %v459 = vld [vmem:[%s1 + $0x220] sm:$0xff]
        %v460 = vld [vmem:[%s1 + $0x228] sm:$0xff]
        %v461 = vld [vmem:[%s1 + $0x230] sm:$0xff]
        %v462 = vld [vmem:[%s1 + $0x238] sm:$0xff]
        %v463 = vld [vmem:[%s1 + $0x240] sm:$0xff]
        %v464 = vld [vmem:[%s1 + $0x248] sm:$0xff]
        %v465 = vld [vmem:[%s1 + $0x250] sm:$0xff]
        %v466 = vld [vmem:[%s1 + $0x258] sm:$0xff]
        %v467 = vld [vmem:[%s1 + $0x260] sm:$0xff]
        %v468 = vld [vmem:[%s1 + $0x268] sm:$0xff]
        %v469 = vld [vmem:[%s1 + $0x270] sm:$0xff]
        %v470 = vld [vmem:[%s1 + $0x278] sm:$0xff]
        %v471 = vld [vmem:[%s4] sm:$0xf]
        %v472 = vunpack.c.l.bf16 %v471
        %v474 = vperm.slane %v472, 0
        %v475 = vperm.slane %v472, 2
        %v476 = vperm.slane %v472, 4
        %v477 = vperm.slane %v472, 6
        %v482 = vperm.slane %v474, 0
        %v483 = vperm.slane %v475, 0
        %v484 = vperm.slane %v476, 0
        %v485 = vperm.slane %v477, 0
        %v518 = vunpack.c.l.b16 %v359
        %v519 = vunpack.c.h.b16 %v359
        %v520 = vunpack.c.l.b16 %v360
        %v521 = vunpack.c.l.b16 %v361
        %v522 = vunpack.c.h.b16 %v361
        %v523 = vunpack.c.l.b16 %v362
        %v524 = vunpack.c.l.b16 %v363
        %v525 = vunpack.c.h.b16 %v363
        %v526 = vunpack.c.l.b16 %v364
        %v527 = vunpack.c.l.b16 %v365
        %v528 = vunpack.c.h.b16 %v365
        %v529 = vunpack.c.l.b16 %v366
        %v530 = vunpack.c.l.b16 %v367
        %v531 = vunpack.c.h.b16 %v367
        %v532 = vunpack.c.l.b16 %v368
        %v533 = vunpack.c.l.b16 %v369
        %v534 = vunpack.c.h.b16 %v369
        %v535 = vunpack.c.l.b16 %v370
        %v536 = vunpack.c.l.b16 %v371
        %v537 = vunpack.c.h.b16 %v371
        %v538 = vunpack.c.l.b16 %v372
        %v539 = vunpack.c.l.b16 %v373
        %v540 = vunpack.c.h.b16 %v373
        %v541 = vunpack.c.l.b16 %v374
        %v542 = vunpack.c.l.b16 %v375
        %v543 = vunpack.c.h.b16 %v375
        %v544 = vunpack.c.l.b16 %v376
        %v545 = vunpack.c.l.b16 %v377
        %v546 = vunpack.c.h.b16 %v377
        %v547 = vunpack.c.l.b16 %v378
        %v548 = vunpack.c.l.b16 %v379
        %v549 = vunpack.c.h.b16 %v379
        %v550 = vunpack.c.l.b16 %v380
        %v551 = vunpack.c.l.b16 %v381
        %v552 = vunpack.c.h.b16 %v381
        %v553 = vunpack.c.l.b16 %v382
        %v554 = vunpack.c.l.b16 %v383
        %v555 = vunpack.c.h.b16 %v383
        %v556 = vunpack.c.l.b16 %v384
        %v557 = vunpack.c.l.b16 %v385
        %v558 = vunpack.c.h.b16 %v385
        %v559 = vunpack.c.l.b16 %v386
        %v560 = vunpack.c.l.b16 %v387
        %v561 = vunpack.c.h.b16 %v387
        %v562 = vunpack.c.l.b16 %v388
        %v563 = vunpack.c.l.b16 %v389
        %v564 = vunpack.c.h.b16 %v389
        %v565 = vunpack.c.l.b16 %v390
        %v566 = vpack.c.b16 %v521, %v518
        %v567 = vpack.c.b16 %v522, %v519
        %v568 = vpack.c.b16 %v523, %v520
        %v569 = vpack.c.b16 %v527, %v524
        %v570 = vpack.c.b16 %v528, %v525
        %v571 = vpack.c.b16 %v529, %v526
        %v572 = vpack.c.b16 %v533, %v530
        %v573 = vpack.c.b16 %v534, %v531
        %v574 = vpack.c.b16 %v535, %v532
        %v575 = vpack.c.b16 %v539, %v536
        %v576 = vpack.c.b16 %v540, %v537
        %v577 = vpack.c.b16 %v541, %v538
        %v578 = vpack.c.b16 %v545, %v542
        %v579 = vpack.c.b16 %v546, %v543
        %v580 = vpack.c.b16 %v547, %v544
        %v581 = vpack.c.b16 %v551, %v548
        %v582 = vpack.c.b16 %v552, %v549
        %v583 = vpack.c.b16 %v553, %v550
        %v584 = vpack.c.b16 %v557, %v554
        %v585 = vpack.c.b16 %v558, %v555
        %v586 = vpack.c.b16 %v559, %v556
        %v587 = vpack.c.b16 %v563, %v560
        %v588 = vpack.c.b16 %v564, %v561
        %v589 = vpack.c.b16 %v565, %v562
        %v686 = vunpack.c.l.b16 %v391
        %v687 = vunpack.c.h.b16 %v391
        %v688 = vunpack.c.l.b16 %v392
        %v689 = vunpack.c.h.b16 %v392
        %v690 = vunpack.c.l.b16 %v393
        %v691 = vunpack.c.h.b16 %v393
        %v692 = vunpack.c.l.b16 %v394
        %v693 = vunpack.c.h.b16 %v394
        %v694 = vunpack.c.l.b16 %v395
        %v695 = vunpack.c.h.b16 %v395
        %v696 = vunpack.c.l.b16 %v396
        %v697 = vunpack.c.h.b16 %v396
        %v698 = vunpack.c.l.b16 %v397
        %v699 = vunpack.c.h.b16 %v397
        %v700 = vunpack.c.l.b16 %v398
        %v701 = vunpack.c.h.b16 %v398
        %v702 = vunpack.c.l.b16 %v399
        %v703 = vunpack.c.h.b16 %v399
        %v704 = vunpack.c.l.b16 %v400
        %v705 = vunpack.c.h.b16 %v400
        %v706 = vunpack.c.l.b16 %v401
        %v707 = vunpack.c.h.b16 %v401
        %v708 = vunpack.c.l.b16 %v402
        %v709 = vunpack.c.h.b16 %v402
        %v710 = vunpack.c.l.b16 %v403
        %v711 = vunpack.c.h.b16 %v403
        %v712 = vunpack.c.l.b16 %v404
        %v713 = vunpack.c.h.b16 %v404
        %v714 = vunpack.c.l.b16 %v405
        %v715 = vunpack.c.h.b16 %v405
        %v716 = vunpack.c.l.b16 %v406
        %v717 = vunpack.c.h.b16 %v406
        %v718 = vunpack.c.l.b16 %v407
        %v719 = vunpack.c.h.b16 %v407
        %v720 = vunpack.c.l.b16 %v408
        %v721 = vunpack.c.h.b16 %v408
        %v722 = vunpack.c.l.b16 %v409
        %v723 = vunpack.c.h.b16 %v409
        %v724 = vunpack.c.l.b16 %v410
        %v725 = vunpack.c.h.b16 %v410
        %v726 = vunpack.c.l.b16 %v411
        %v727 = vunpack.c.h.b16 %v411
        %v728 = vunpack.c.l.b16 %v412
        %v729 = vunpack.c.h.b16 %v412
        %v730 = vunpack.c.l.b16 %v413
        %v731 = vunpack.c.h.b16 %v413
        %v732 = vunpack.c.l.b16 %v414
        %v733 = vunpack.c.h.b16 %v414
        %v734 = vunpack.c.l.b16 %v415
        %v735 = vunpack.c.h.b16 %v415
        %v736 = vunpack.c.l.b16 %v416
        %v737 = vunpack.c.h.b16 %v416
        %v738 = vunpack.c.l.b16 %v417
        %v739 = vunpack.c.h.b16 %v417
        %v740 = vunpack.c.l.b16 %v418
        %v741 = vunpack.c.h.b16 %v418
        %v742 = vunpack.c.l.b16 %v419
        %v743 = vunpack.c.h.b16 %v419
        %v744 = vunpack.c.l.b16 %v420
        %v745 = vunpack.c.h.b16 %v420
        %v746 = vunpack.c.l.b16 %v421
        %v747 = vunpack.c.h.b16 %v421
        %v748 = vunpack.c.l.b16 %v422
        %v749 = vunpack.c.h.b16 %v422
        %v750 = vunpack.c.l.b16 %v423
        %v751 = vunpack.c.h.b16 %v423
        %v752 = vunpack.c.l.b16 %v424
        %v753 = vunpack.c.h.b16 %v424
        %v754 = vunpack.c.l.b16 %v425
        %v755 = vunpack.c.h.b16 %v425
        %v756 = vunpack.c.l.b16 %v426
        %v757 = vunpack.c.h.b16 %v426
        %v758 = vunpack.c.l.b16 %v427
        %v759 = vunpack.c.h.b16 %v427
        %v760 = vunpack.c.l.b16 %v428
        %v761 = vunpack.c.h.b16 %v428
        %v762 = vunpack.c.l.b16 %v429
        %v763 = vunpack.c.h.b16 %v429
        %v764 = vunpack.c.l.b16 %v430
        %v765 = vunpack.c.h.b16 %v430
        %v766 = vunpack.c.l.b16 %v431
        %v767 = vunpack.c.h.b16 %v431
        %v768 = vunpack.c.l.b16 %v432
        %v769 = vunpack.c.h.b16 %v432
        %v770 = vunpack.c.l.b16 %v433
        %v771 = vunpack.c.h.b16 %v433
        %v772 = vunpack.c.l.b16 %v434
        %v773 = vunpack.c.h.b16 %v434
        %v774 = vunpack.c.l.b16 %v435
        %v775 = vunpack.c.h.b16 %v435
        %v776 = vunpack.c.l.b16 %v436
        %v777 = vunpack.c.h.b16 %v436
        %v778 = vunpack.c.l.b16 %v437
        %v779 = vunpack.c.h.b16 %v437
        %v780 = vunpack.c.l.b16 %v438
        %v781 = vunpack.c.h.b16 %v438
        %v782 = vunpack.c.l.b16 %v439
        %v783 = vunpack.c.h.b16 %v439
        %v784 = vunpack.c.l.b16 %v440
        %v785 = vunpack.c.h.b16 %v440
        %v786 = vunpack.c.l.b16 %v441
        %v787 = vunpack.c.h.b16 %v441
        %v788 = vunpack.c.l.b16 %v442
        %v789 = vunpack.c.h.b16 %v442
        %v790 = vunpack.c.l.b16 %v443
        %v791 = vunpack.c.h.b16 %v443
        %v792 = vunpack.c.l.b16 %v444
        %v793 = vunpack.c.h.b16 %v444
        %v794 = vunpack.c.l.b16 %v445
        %v795 = vunpack.c.h.b16 %v445
        %v796 = vunpack.c.l.b16 %v446
        %v797 = vunpack.c.h.b16 %v446
        %v798 = vunpack.c.l.b16 %v447
        %v799 = vunpack.c.h.b16 %v447
        %v800 = vunpack.c.l.b16 %v448
        %v801 = vunpack.c.h.b16 %v448
        %v802 = vunpack.c.l.b16 %v449
        %v803 = vunpack.c.h.b16 %v449
        %v804 = vunpack.c.l.b16 %v450
        %v805 = vunpack.c.h.b16 %v450
        %v806 = vunpack.c.l.b16 %v451
        %v807 = vunpack.c.h.b16 %v451
        %v808 = vunpack.c.l.b16 %v452
        %v809 = vunpack.c.h.b16 %v452
        %v810 = vunpack.c.l.b16 %v453
        %v811 = vunpack.c.h.b16 %v453
        %v812 = vunpack.c.l.b16 %v454
        %v813 = vunpack.c.h.b16 %v454
        %v814 = vunpack.c.l.b16 %v455
        %v815 = vunpack.c.h.b16 %v455
        %v816 = vunpack.c.l.b16 %v456
        %v817 = vunpack.c.h.b16 %v456
        %v818 = vunpack.c.l.b16 %v457
        %v819 = vunpack.c.h.b16 %v457
        %v820 = vunpack.c.l.b16 %v458
        %v821 = vunpack.c.h.b16 %v458
        %v822 = vunpack.c.l.b16 %v459
        %v823 = vunpack.c.h.b16 %v459
        %v824 = vunpack.c.l.b16 %v460
        %v825 = vunpack.c.h.b16 %v460
        %v826 = vunpack.c.l.b16 %v461
        %v827 = vunpack.c.h.b16 %v461
        %v828 = vunpack.c.l.b16 %v462
        %v829 = vunpack.c.h.b16 %v462
        %v830 = vunpack.c.l.b16 %v463
        %v831 = vunpack.c.h.b16 %v463
        %v832 = vunpack.c.l.b16 %v464
        %v833 = vunpack.c.h.b16 %v464
        %v834 = vunpack.c.l.b16 %v465
        %v835 = vunpack.c.h.b16 %v465
        %v836 = vunpack.c.l.b16 %v466
        %v837 = vunpack.c.h.b16 %v466
        %v838 = vunpack.c.l.b16 %v467
        %v839 = vunpack.c.h.b16 %v467
        %v840 = vunpack.c.l.b16 %v468
        %v841 = vunpack.c.h.b16 %v468
        %v842 = vunpack.c.l.b16 %v469
        %v843 = vunpack.c.h.b16 %v469
        %v844 = vunpack.c.l.b16 %v470
        %v845 = vunpack.c.h.b16 %v470
        %v846 = vpack.c.b16 %v690, %v686
        %v847 = vpack.c.b16 %v691, %v687
        %v848 = vpack.c.b16 %v692, %v688
        %v849 = vpack.c.b16 %v693, %v689
        %v850 = vpack.c.b16 %v698, %v694
        %v851 = vpack.c.b16 %v699, %v695
        %v852 = vpack.c.b16 %v700, %v696
        %v853 = vpack.c.b16 %v701, %v697
        %v854 = vpack.c.b16 %v706, %v702
        %v855 = vpack.c.b16 %v707, %v703
        %v856 = vpack.c.b16 %v708, %v704
        %v857 = vpack.c.b16 %v709, %v705
        %v858 = vpack.c.b16 %v714, %v710
        %v859 = vpack.c.b16 %v715, %v711
        %v860 = vpack.c.b16 %v716, %v712
        %v861 = vpack.c.b16 %v717, %v713
        %v862 = vpack.c.b16 %v722, %v718
        %v863 = vpack.c.b16 %v723, %v719
        %v864 = vpack.c.b16 %v724, %v720
        %v865 = vpack.c.b16 %v725, %v721
        %v866 = vpack.c.b16 %v730, %v726
        %v867 = vpack.c.b16 %v731, %v727
        %v868 = vpack.c.b16 %v732, %v728
        %v869 = vpack.c.b16 %v733, %v729
        %v870 = vpack.c.b16 %v738, %v734
        %v871 = vpack.c.b16 %v739, %v735
        %v872 = vpack.c.b16 %v740, %v736
        %v873 = vpack.c.b16 %v741, %v737
        %v874 = vpack.c.b16 %v746, %v742
        %v875 = vpack.c.b16 %v747, %v743
        %v876 = vpack.c.b16 %v748, %v744
        %v877 = vpack.c.b16 %v749, %v745
        %v878 = vpack.c.b16 %v754, %v750
        %v879 = vpack.c.b16 %v755, %v751
        %v880 = vpack.c.b16 %v756, %v752
        %v881 = vpack.c.b16 %v757, %v753
        %v882 = vpack.c.b16 %v762, %v758
        %v883 = vpack.c.b16 %v763, %v759
        %v884 = vpack.c.b16 %v764, %v760
        %v885 = vpack.c.b16 %v765, %v761
        %v886 = vpack.c.b16 %v770, %v766
        %v887 = vpack.c.b16 %v771, %v767
        %v888 = vpack.c.b16 %v772, %v768
        %v889 = vpack.c.b16 %v773, %v769
        %v890 = vpack.c.b16 %v778, %v774
        %v891 = vpack.c.b16 %v779, %v775
        %v892 = vpack.c.b16 %v780, %v776
        %v893 = vpack.c.b16 %v781, %v777
        %v894 = vpack.c.b16 %v786, %v782
        %v895 = vpack.c.b16 %v787, %v783
        %v896 = vpack.c.b16 %v788, %v784
        %v897 = vpack.c.b16 %v789, %v785
        %v898 = vpack.c.b16 %v794, %v790
        %v899 = vpack.c.b16 %v795, %v791
        %v900 = vpack.c.b16 %v796, %v792
        %v901 = vpack.c.b16 %v797, %v793
        %v902 = vpack.c.b16 %v802, %v798
        %v903 = vpack.c.b16 %v803, %v799
        %v904 = vpack.c.b16 %v804, %v800
        %v905 = vpack.c.b16 %v805, %v801
        %v906 = vpack.c.b16 %v810, %v806
        %v907 = vpack.c.b16 %v811, %v807
        %v908 = vpack.c.b16 %v812, %v808
        %v909 = vpack.c.b16 %v813, %v809
        %v910 = vpack.c.b16 %v818, %v814
        %v911 = vpack.c.b16 %v819, %v815
        %v912 = vpack.c.b16 %v820, %v816
        %v913 = vpack.c.b16 %v821, %v817
        %v914 = vpack.c.b16 %v826, %v822
        %v915 = vpack.c.b16 %v827, %v823
        %v916 = vpack.c.b16 %v828, %v824
        %v917 = vpack.c.b16 %v829, %v825
        %v918 = vpack.c.b16 %v834, %v830
        %v919 = vpack.c.b16 %v835, %v831
        %v920 = vpack.c.b16 %v836, %v832
        %v921 = vpack.c.b16 %v837, %v833
        %v922 = vpack.c.b16 %v842, %v838
        %v923 = vpack.c.b16 %v843, %v839
        %v924 = vpack.c.b16 %v844, %v840
        %v925 = vpack.c.b16 %v845, %v841
        %vm1006 = vcmask 523264
        %v1008 = vsel %vm1006, %v568, 0
        %v1011 = vsel %vm1006, %v571, 0
        %v1014 = vsel %vm1006, %v574, 0
        %v1017 = vsel %vm1006, %v577, 0
        %v1020 = vsel %vm1006, %v580, 0
        %v1023 = vsel %vm1006, %v583, 0
        %v1026 = vsel %vm1006, %v586, 0
        %v1029 = vsel %vm1006, %v589, 0
        %1031 = vmatpush.bf16.msra.mxu0 %v874
        %1032 = vmatpush.bf16.msra.mxu0 %v870
        %1033 = vmatpush.bf16.msra.mxu0 %v866
        %1034 = vmatpush.bf16.msra.mxu0 %v862
        %1035 = vmatpush.bf16.msra.mxu0 %v858
        %1036 = vmatpush.bf16.msra.mxu0 %v854
        %1037 = vmatpush.bf16.msra.mxu0 %v850
        %1038 = vmatpush.bf16.msra.mxu0 %v846
        %1039 = vmatmul.bf16.gmra.mxu0 %v566
        %v1040 = vpop.f32.mrf.mxu0
        %v1041 = vadd.f32 %v482, %v1040
        %v1042 = vpop.f32.mrf.mxu0
        %v1043 = vadd.f32 %v482, %v1042
        %1044 = vmatmul.bf16.gmra.mxu0 %v569
        %v1045 = vpop.f32.mrf.mxu0
        %v1046 = vadd.f32 %v482, %v1045
        %v1047 = vpop.f32.mrf.mxu0
        %v1048 = vadd.f32 %v482, %v1047
        %1049 = vmatmul.bf16.gmra.mxu0 %v572
        %v1050 = vpop.f32.mrf.mxu0
        %v1051 = vadd.f32 %v482, %v1050
        %v1052 = vpop.f32.mrf.mxu0
        %v1053 = vadd.f32 %v482, %v1052
        %1054 = vmatmul.bf16.gmra.mxu0 %v575
        %v1055 = vpop.f32.mrf.mxu0
        %v1056 = vadd.f32 %v482, %v1055
        %v1057 = vpop.f32.mrf.mxu0
        %v1058 = vadd.f32 %v482, %v1057
        %1059 = vmatmul.bf16.gmra.mxu0 %v578
        %v1060 = vpop.f32.mrf.mxu0
        %v1061 = vadd.f32 %v482, %v1060
        %v1062 = vpop.f32.mrf.mxu0
        %v1063 = vadd.f32 %v482, %v1062
        %1064 = vmatmul.bf16.gmra.mxu0 %v581
        %v1065 = vpop.f32.mrf.mxu0
        %v1066 = vadd.f32 %v482, %v1065
        %v1067 = vpop.f32.mrf.mxu0
        %v1068 = vadd.f32 %v482, %v1067
        %1069 = vmatmul.bf16.gmra.mxu0 %v584
        %v1070 = vpop.f32.mrf.mxu0
        %v1071 = vadd.f32 %v482, %v1070
        %v1072 = vpop.f32.mrf.mxu0
        %v1073 = vadd.f32 %v482, %v1072
        %1074 = vmatmul.bf16.gmra.mxu0 %v587
        %v1075 = vpop.f32.mrf.mxu0
        %v1076 = vadd.f32 %v482, %v1075
        %v1077 = vpop.f32.mrf.mxu0
        %v1078 = vadd.f32 %v482, %v1077
        %1079 = vdwg.mxu0
        %1080 = vmatpush.bf16.msra.mxu0 %v906
        %1081 = vmatpush.bf16.msra.mxu0 %v902
        %1082 = vmatpush.bf16.msra.mxu0 %v898
        %1083 = vmatpush.bf16.msra.mxu0 %v894
        %1084 = vmatpush.bf16.msra.mxu0 %v890
        %1085 = vmatpush.bf16.msra.mxu0 %v886
        %1086 = vmatpush.bf16.msra.mxu0 %v882
        %1087 = vmatpush.bf16.msra.mxu0 %v878
        %1088 = vmatmul.bf16.gmra.mxu0 %v567
        %v1089 = vpop.f32.mrf.mxu0
        %v1090 = vadd.f32 %v1041, %v1089
        %v1091 = vpop.f32.mrf.mxu0
        %v1092 = vadd.f32 %v1043, %v1091
        %1093 = vmatmul.bf16.gmra.mxu0 %v570
        %v1094 = vpop.f32.mrf.mxu0
        %v1095 = vadd.f32 %v1046, %v1094
        %v1096 = vpop.f32.mrf.mxu0
        %v1097 = vadd.f32 %v1048, %v1096
        %1098 = vmatmul.bf16.gmra.mxu0 %v573
        %v1099 = vpop.f32.mrf.mxu0
        %v1100 = vadd.f32 %v1051, %v1099
        %v1101 = vpop.f32.mrf.mxu0
        %v1102 = vadd.f32 %v1053, %v1101
        %1103 = vmatmul.bf16.gmra.mxu0 %v576
        %v1104 = vpop.f32.mrf.mxu0
        %v1105 = vadd.f32 %v1056, %v1104
        %v1106 = vpop.f32.mrf.mxu0
        %v1107 = vadd.f32 %v1058, %v1106
        %1108 = vmatmul.bf16.gmra.mxu0 %v579
        %v1109 = vpop.f32.mrf.mxu0
        %v1110 = vadd.f32 %v1061, %v1109
        %v1111 = vpop.f32.mrf.mxu0
        %v1112 = vadd.f32 %v1063, %v1111
        %1113 = vmatmul.bf16.gmra.mxu0 %v582
        %v1114 = vpop.f32.mrf.mxu0
        %v1115 = vadd.f32 %v1066, %v1114
        %v1116 = vpop.f32.mrf.mxu0
        %v1117 = vadd.f32 %v1068, %v1116
        %1118 = vmatmul.bf16.gmra.mxu0 %v585
        %v1119 = vpop.f32.mrf.mxu0
        %v1120 = vadd.f32 %v1071, %v1119
        %v1121 = vpop.f32.mrf.mxu0
        %v1122 = vadd.f32 %v1073, %v1121
        %1123 = vmatmul.bf16.gmra.mxu0 %v588
        %v1124 = vpop.f32.mrf.mxu0
        %v1125 = vadd.f32 %v1076, %v1124
        %v1126 = vpop.f32.mrf.mxu0
        %v1127 = vadd.f32 %v1078, %v1126
        %1128 = vdwg.mxu0
        %1129 = vmatpush.bf16.msra.mxu0 0
        %1130 = vmatpush.bf16.msra.mxu0 0
        %1131 = vmatpush.bf16.msra.mxu0 0
        %1132 = vmatpush.bf16.msra.mxu0 0
        %1133 = vmatpush.bf16.msra.mxu0 %v922
        %1134 = vmatpush.bf16.msra.mxu0 %v918
        %1135 = vmatpush.bf16.msra.mxu0 %v914
        %1136 = vmatpush.bf16.msra.mxu0 %v910
        %1137 = vmatmul.bf16.gmra.mxu0 %v1008
        %v1138 = vpop.f32.mrf.mxu0
        %v1139 = vadd.f32 %v1090, %v1138
        %v1140 = vpop.f32.mrf.mxu0
        %v1141 = vadd.f32 %v1092, %v1140
        %1142 = vmatmul.bf16.gmra.mxu0 %v1011
        %v1143 = vpop.f32.mrf.mxu0
        %v1144 = vadd.f32 %v1095, %v1143
        %v1145 = vpop.f32.mrf.mxu0
        %v1146 = vadd.f32 %v1097, %v1145
        %1147 = vmatmul.bf16.gmra.mxu0 %v1014
        %v1148 = vpop.f32.mrf.mxu0
        %v1149 = vadd.f32 %v1100, %v1148
        %v1150 = vpop.f32.mrf.mxu0
        %v1151 = vadd.f32 %v1102, %v1150
        %1152 = vmatmul.bf16.gmra.mxu0 %v1017
        %v1153 = vpop.f32.mrf.mxu0
        %v1154 = vadd.f32 %v1105, %v1153
        %v1155 = vpop.f32.mrf.mxu0
        %v1156 = vadd.f32 %v1107, %v1155
        %1157 = vmatmul.bf16.gmra.mxu0 %v1020
        %v1158 = vpop.f32.mrf.mxu0
        %v1159 = vadd.f32 %v1110, %v1158
        %v1160 = vpop.f32.mrf.mxu0
        %v1161 = vadd.f32 %v1112, %v1160
        %1162 = vmatmul.bf16.gmra.mxu0 %v1023
        %v1163 = vpop.f32.mrf.mxu0
        %v1164 = vadd.f32 %v1115, %v1163
        %v1165 = vpop.f32.mrf.mxu0
        %v1166 = vadd.f32 %v1117, %v1165
        %1167 = vmatmul.bf16.gmra.mxu0 %v1026
        %v1168 = vpop.f32.mrf.mxu0
        %v1169 = vadd.f32 %v1120, %v1168
        %v1170 = vpop.f32.mrf.mxu0
        %v1171 = vadd.f32 %v1122, %v1170
        %1172 = vmatmul.bf16.gmra.mxu0 %v1029
        %v1173 = vpop.f32.mrf.mxu0
        %v1174 = vadd.f32 %v1125, %v1173
        %v1175 = vpop.f32.mrf.mxu0
        %v1176 = vadd.f32 %v1127, %v1175
        %1177 = vdwg.mxu0
        %1178 = vmatpush.bf16.msra.mxu0 %v875
        %1179 = vmatpush.bf16.msra.mxu0 %v871
        %1180 = vmatpush.bf16.msra.mxu0 %v867
        %1181 = vmatpush.bf16.msra.mxu0 %v863
        %1182 = vmatpush.bf16.msra.mxu0 %v859
        %1183 = vmatpush.bf16.msra.mxu0 %v855
        %1184 = vmatpush.bf16.msra.mxu0 %v851
        %1185 = vmatpush.bf16.msra.mxu0 %v847
        %1186 = vmatmul.bf16.gmra.mxu0 %v566
        %v1187 = vpop.f32.mrf.mxu0
        %v1188 = vadd.f32 %v483, %v1187
        %v1189 = vpop.f32.mrf.mxu0
        %v1190 = vadd.f32 %v483, %v1189
        %1191 = vmatmul.bf16.gmra.mxu0 %v569
        %v1192 = vpop.f32.mrf.mxu0
        %v1193 = vadd.f32 %v483, %v1192
        %v1194 = vpop.f32.mrf.mxu0
        %v1195 = vadd.f32 %v483, %v1194
        %1196 = vmatmul.bf16.gmra.mxu0 %v572
        %v1197 = vpop.f32.mrf.mxu0
        %v1198 = vadd.f32 %v483, %v1197
        %v1199 = vpop.f32.mrf.mxu0
        %v1200 = vadd.f32 %v483, %v1199
        %1201 = vmatmul.bf16.gmra.mxu0 %v575
        %v1202 = vpop.f32.mrf.mxu0
        %v1203 = vadd.f32 %v483, %v1202
        %v1204 = vpop.f32.mrf.mxu0
        %v1205 = vadd.f32 %v483, %v1204
        %1206 = vmatmul.bf16.gmra.mxu0 %v578
        %v1207 = vpop.f32.mrf.mxu0
        %v1208 = vadd.f32 %v483, %v1207
        %v1209 = vpop.f32.mrf.mxu0
        %v1210 = vadd.f32 %v483, %v1209
        %1211 = vmatmul.bf16.gmra.mxu0 %v581
        %v1212 = vpop.f32.mrf.mxu0
        %v1213 = vadd.f32 %v483, %v1212
        %v1214 = vpop.f32.mrf.mxu0
        %v1215 = vadd.f32 %v483, %v1214
        %1216 = vmatmul.bf16.gmra.mxu0 %v584
        %v1217 = vpop.f32.mrf.mxu0
        %v1218 = vadd.f32 %v483, %v1217
        %v1219 = vpop.f32.mrf.mxu0
        %v1220 = vadd.f32 %v483, %v1219
        %1221 = vmatmul.bf16.gmra.mxu0 %v587
        %v1222 = vpop.f32.mrf.mxu0
        %v1223 = vadd.f32 %v483, %v1222
        %v1224 = vpop.f32.mrf.mxu0
        %v1225 = vadd.f32 %v483, %v1224
        %1226 = vdwg.mxu0
        %1227 = vmatpush.bf16.msra.mxu0 %v907
        %1228 = vmatpush.bf16.msra.mxu0 %v903
        %1229 = vmatpush.bf16.msra.mxu0 %v899
        %1230 = vmatpush.bf16.msra.mxu0 %v895
        %1231 = vmatpush.bf16.msra.mxu0 %v891
        %1232 = vmatpush.bf16.msra.mxu0 %v887
        %1233 = vmatpush.bf16.msra.mxu0 %v883
        %1234 = vmatpush.bf16.msra.mxu0 %v879
        %1235 = vmatmul.bf16.gmra.mxu0 %v567
        %v1236 = vpop.f32.mrf.mxu0
        %v1237 = vadd.f32 %v1188, %v1236
        %v1238 = vpop.f32.mrf.mxu0
        %v1239 = vadd.f32 %v1190, %v1238
        %1240 = vmatmul.bf16.gmra.mxu0 %v570
        %v1241 = vpop.f32.mrf.mxu0
        %v1242 = vadd.f32 %v1193, %v1241
        %v1243 = vpop.f32.mrf.mxu0
        %v1244 = vadd.f32 %v1195, %v1243
        %1245 = vmatmul.bf16.gmra.mxu0 %v573
        %v1246 = vpop.f32.mrf.mxu0
        %v1247 = vadd.f32 %v1198, %v1246
        %v1248 = vpop.f32.mrf.mxu0
        %v1249 = vadd.f32 %v1200, %v1248
        %1250 = vmatmul.bf16.gmra.mxu0 %v576
        %v1251 = vpop.f32.mrf.mxu0
        %v1252 = vadd.f32 %v1203, %v1251
        %v1253 = vpop.f32.mrf.mxu0
        %v1254 = vadd.f32 %v1205, %v1253
        %1255 = vmatmul.bf16.gmra.mxu0 %v579
        %v1256 = vpop.f32.mrf.mxu0
        %v1257 = vadd.f32 %v1208, %v1256
        %v1258 = vpop.f32.mrf.mxu0
        %v1259 = vadd.f32 %v1210, %v1258
        %1260 = vmatmul.bf16.gmra.mxu0 %v582
        %v1261 = vpop.f32.mrf.mxu0
        %v1262 = vadd.f32 %v1213, %v1261
        %v1263 = vpop.f32.mrf.mxu0
        %v1264 = vadd.f32 %v1215, %v1263
        %1265 = vmatmul.bf16.gmra.mxu0 %v585
        %v1266 = vpop.f32.mrf.mxu0
        %v1267 = vadd.f32 %v1218, %v1266
        %v1268 = vpop.f32.mrf.mxu0
        %v1269 = vadd.f32 %v1220, %v1268
        %1270 = vmatmul.bf16.gmra.mxu0 %v588
        %v1271 = vpop.f32.mrf.mxu0
        %v1272 = vadd.f32 %v1223, %v1271
        %v1273 = vpop.f32.mrf.mxu0
        %v1274 = vadd.f32 %v1225, %v1273
        %1275 = vdwg.mxu0
        %1276 = vmatpush.bf16.msra.mxu0 0
        %1277 = vmatpush.bf16.msra.mxu0 0
        %1278 = vmatpush.bf16.msra.mxu0 0
        %1279 = vmatpush.bf16.msra.mxu0 0
        %1280 = vmatpush.bf16.msra.mxu0 %v923
        %1281 = vmatpush.bf16.msra.mxu0 %v919
        %1282 = vmatpush.bf16.msra.mxu0 %v915
        %1283 = vmatpush.bf16.msra.mxu0 %v911
        %1284 = vmatmul.bf16.gmra.mxu0 %v1008
        %v1285 = vpop.f32.mrf.mxu0
        %v1286 = vadd.f32 %v1237, %v1285
        %v1287 = vpop.f32.mrf.mxu0
        %v1288 = vadd.f32 %v1239, %v1287
        %1289 = vmatmul.bf16.gmra.mxu0 %v1011
        %v1290 = vpop.f32.mrf.mxu0
        %v1291 = vadd.f32 %v1242, %v1290
        %v1292 = vpop.f32.mrf.mxu0
        %v1293 = vadd.f32 %v1244, %v1292
        %1294 = vmatmul.bf16.gmra.mxu0 %v1014
        %v1295 = vpop.f32.mrf.mxu0
        %v1296 = vadd.f32 %v1247, %v1295
        %v1297 = vpop.f32.mrf.mxu0
        %v1298 = vadd.f32 %v1249, %v1297
        %1299 = vmatmul.bf16.gmra.mxu0 %v1017
        %v1300 = vpop.f32.mrf.mxu0
        %v1301 = vadd.f32 %v1252, %v1300
        %v1302 = vpop.f32.mrf.mxu0
        %v1303 = vadd.f32 %v1254, %v1302
        %1304 = vmatmul.bf16.gmra.mxu0 %v1020
        %v1305 = vpop.f32.mrf.mxu0
        %v1306 = vadd.f32 %v1257, %v1305
        %v1307 = vpop.f32.mrf.mxu0
        %v1308 = vadd.f32 %v1259, %v1307
        %1309 = vmatmul.bf16.gmra.mxu0 %v1023
        %v1310 = vpop.f32.mrf.mxu0
        %v1311 = vadd.f32 %v1262, %v1310
        %v1312 = vpop.f32.mrf.mxu0
        %v1313 = vadd.f32 %v1264, %v1312
        %1314 = vmatmul.bf16.gmra.mxu0 %v1026
        %v1315 = vpop.f32.mrf.mxu0
        %v1316 = vadd.f32 %v1267, %v1315
        %v1317 = vpop.f32.mrf.mxu0
        %v1318 = vadd.f32 %v1269, %v1317
        %1319 = vmatmul.bf16.gmra.mxu0 %v1029
        %v1320 = vpop.f32.mrf.mxu0
        %v1321 = vadd.f32 %v1272, %v1320
        %v1322 = vpop.f32.mrf.mxu0
        %v1323 = vadd.f32 %v1274, %v1322
        %1324 = vdwg.mxu0
        %1325 = vmatpush.bf16.msra.mxu0 %v876
        %1326 = vmatpush.bf16.msra.mxu0 %v872
        %1327 = vmatpush.bf16.msra.mxu0 %v868
        %1328 = vmatpush.bf16.msra.mxu0 %v864
        %1329 = vmatpush.bf16.msra.mxu0 %v860
        %1330 = vmatpush.bf16.msra.mxu0 %v856
        %1331 = vmatpush.bf16.msra.mxu0 %v852
        %1332 = vmatpush.bf16.msra.mxu0 %v848
        %1333 = vmatmul.bf16.gmra.mxu0 %v566
        %v1334 = vpop.f32.mrf.mxu0
        %v1335 = vadd.f32 %v484, %v1334
        %v1336 = vpop.f32.mrf.mxu0
        %v1337 = vadd.f32 %v484, %v1336
        %1338 = vmatmul.bf16.gmra.mxu0 %v569
        %v1339 = vpop.f32.mrf.mxu0
        %v1340 = vadd.f32 %v484, %v1339
        %v1341 = vpop.f32.mrf.mxu0
        %v1342 = vadd.f32 %v484, %v1341
        %1343 = vmatmul.bf16.gmra.mxu0 %v572
        %v1344 = vpop.f32.mrf.mxu0
        %v1345 = vadd.f32 %v484, %v1344
        %v1346 = vpop.f32.mrf.mxu0
        %v1347 = vadd.f32 %v484, %v1346
        %1348 = vmatmul.bf16.gmra.mxu0 %v575
        %v1349 = vpop.f32.mrf.mxu0
        %v1350 = vadd.f32 %v484, %v1349
        %v1351 = vpop.f32.mrf.mxu0
        %v1352 = vadd.f32 %v484, %v1351
        %1353 = vmatmul.bf16.gmra.mxu0 %v578
        %v1354 = vpop.f32.mrf.mxu0
        %v1355 = vadd.f32 %v484, %v1354
        %v1356 = vpop.f32.mrf.mxu0
        %v1357 = vadd.f32 %v484, %v1356
        %1358 = vmatmul.bf16.gmra.mxu0 %v581
        %v1359 = vpop.f32.mrf.mxu0
        %v1360 = vadd.f32 %v484, %v1359
        %v1361 = vpop.f32.mrf.mxu0
        %v1362 = vadd.f32 %v484, %v1361
        %1363 = vmatmul.bf16.gmra.mxu0 %v584
        %v1364 = vpop.f32.mrf.mxu0
        %v1365 = vadd.f32 %v484, %v1364
        %v1366 = vpop.f32.mrf.mxu0
        %v1367 = vadd.f32 %v484, %v1366
        %1368 = vmatmul.bf16.gmra.mxu0 %v587
        %v1369 = vpop.f32.mrf.mxu0
        %v1370 = vadd.f32 %v484, %v1369
        %v1371 = vpop.f32.mrf.mxu0
        %v1372 = vadd.f32 %v484, %v1371
        %1373 = vdwg.mxu0
        %1374 = vmatpush.bf16.msra.mxu0 %v908
        %1375 = vmatpush.bf16.msra.mxu0 %v904
        %1376 = vmatpush.bf16.msra.mxu0 %v900
        %1377 = vmatpush.bf16.msra.mxu0 %v896
        %1378 = vmatpush.bf16.msra.mxu0 %v892
        %1379 = vmatpush.bf16.msra.mxu0 %v888
        %1380 = vmatpush.bf16.msra.mxu0 %v884
        %1381 = vmatpush.bf16.msra.mxu0 %v880
        %1382 = vmatmul.bf16.gmra.mxu0 %v567
        %v1383 = vpop.f32.mrf.mxu0
        %v1384 = vadd.f32 %v1335, %v1383
        %v1385 = vpop.f32.mrf.mxu0
        %v1386 = vadd.f32 %v1337, %v1385
        %1387 = vmatmul.bf16.gmra.mxu0 %v570
        %v1388 = vpop.f32.mrf.mxu0
        %v1389 = vadd.f32 %v1340, %v1388
        %v1390 = vpop.f32.mrf.mxu0
        %v1391 = vadd.f32 %v1342, %v1390
        %1392 = vmatmul.bf16.gmra.mxu0 %v573
        %v1393 = vpop.f32.mrf.mxu0
        %v1394 = vadd.f32 %v1345, %v1393
        %v1395 = vpop.f32.mrf.mxu0
        %v1396 = vadd.f32 %v1347, %v1395
        %1397 = vmatmul.bf16.gmra.mxu0 %v576
        %v1398 = vpop.f32.mrf.mxu0
        %v1399 = vadd.f32 %v1350, %v1398
        %v1400 = vpop.f32.mrf.mxu0
        %v1401 = vadd.f32 %v1352, %v1400
        %1402 = vmatmul.bf16.gmra.mxu0 %v579
        %v1403 = vpop.f32.mrf.mxu0
        %v1404 = vadd.f32 %v1355, %v1403
        %v1405 = vpop.f32.mrf.mxu0
        %v1406 = vadd.f32 %v1357, %v1405
        %1407 = vmatmul.bf16.gmra.mxu0 %v582
        %v1408 = vpop.f32.mrf.mxu0
        %v1409 = vadd.f32 %v1360, %v1408
        %v1410 = vpop.f32.mrf.mxu0
        %v1411 = vadd.f32 %v1362, %v1410
        %1412 = vmatmul.bf16.gmra.mxu0 %v585
        %v1413 = vpop.f32.mrf.mxu0
        %v1414 = vadd.f32 %v1365, %v1413
        %v1415 = vpop.f32.mrf.mxu0
        %v1416 = vadd.f32 %v1367, %v1415
        %1417 = vmatmul.bf16.gmra.mxu0 %v588
        %v1418 = vpop.f32.mrf.mxu0
        %v1419 = vadd.f32 %v1370, %v1418
        %v1420 = vpop.f32.mrf.mxu0
        %v1421 = vadd.f32 %v1372, %v1420
        %1422 = vdwg.mxu0
        %1423 = vmatpush.bf16.msra.mxu0 0
        %1424 = vmatpush.bf16.msra.mxu0 0
        %1425 = vmatpush.bf16.msra.mxu0 0
        %1426 = vmatpush.bf16.msra.mxu0 0
        %1427 = vmatpush.bf16.msra.mxu0 %v924
        %1428 = vmatpush.bf16.msra.mxu0 %v920
        %1429 = vmatpush.bf16.msra.mxu0 %v916
        %1430 = vmatpush.bf16.msra.mxu0 %v912
        %1431 = vmatmul.bf16.gmra.mxu0 %v1008
        %v1432 = vpop.f32.mrf.mxu0
        %v1433 = vadd.f32 %v1384, %v1432
        %v1434 = vpop.f32.mrf.mxu0
        %v1435 = vadd.f32 %v1386, %v1434
        %1436 = vmatmul.bf16.gmra.mxu0 %v1011
        %v1437 = vpop.f32.mrf.mxu0
        %v1438 = vadd.f32 %v1389, %v1437
        %v1439 = vpop.f32.mrf.mxu0
        %v1440 = vadd.f32 %v1391, %v1439
        %1441 = vmatmul.bf16.gmra.mxu0 %v1014
        %v1442 = vpop.f32.mrf.mxu0
        %v1443 = vadd.f32 %v1394, %v1442
        %v1444 = vpop.f32.mrf.mxu0
        %v1445 = vadd.f32 %v1396, %v1444
        %1446 = vmatmul.bf16.gmra.mxu0 %v1017
        %v1447 = vpop.f32.mrf.mxu0
        %v1448 = vadd.f32 %v1399, %v1447
        %v1449 = vpop.f32.mrf.mxu0
        %v1450 = vadd.f32 %v1401, %v1449
        %1451 = vmatmul.bf16.gmra.mxu0 %v1020
        %v1452 = vpop.f32.mrf.mxu0
        %v1453 = vadd.f32 %v1404, %v1452
        %v1454 = vpop.f32.mrf.mxu0
        %v1455 = vadd.f32 %v1406, %v1454
        %1456 = vmatmul.bf16.gmra.mxu0 %v1023
        %v1457 = vpop.f32.mrf.mxu0
        %v1458 = vadd.f32 %v1409, %v1457
        %v1459 = vpop.f32.mrf.mxu0
        %v1460 = vadd.f32 %v1411, %v1459
        %1461 = vmatmul.bf16.gmra.mxu0 %v1026
        %v1462 = vpop.f32.mrf.mxu0
        %v1463 = vadd.f32 %v1414, %v1462
        %v1464 = vpop.f32.mrf.mxu0
        %v1465 = vadd.f32 %v1416, %v1464
        %1466 = vmatmul.bf16.gmra.mxu0 %v1029
        %v1467 = vpop.f32.mrf.mxu0
        %v1468 = vadd.f32 %v1419, %v1467
        %v1469 = vpop.f32.mrf.mxu0
        %v1470 = vadd.f32 %v1421, %v1469
        %1471 = vdwg.mxu0
        %1472 = vmatpush.bf16.msra.mxu0 %v877
        %1473 = vmatpush.bf16.msra.mxu0 %v873
        %1474 = vmatpush.bf16.msra.mxu0 %v869
        %1475 = vmatpush.bf16.msra.mxu0 %v865
        %1476 = vmatpush.bf16.msra.mxu0 %v861
        %1477 = vmatpush.bf16.msra.mxu0 %v857
        %1478 = vmatpush.bf16.msra.mxu0 %v853
        %1479 = vmatpush.bf16.msra.mxu0 %v849
        %1480 = vmatmul.bf16.gmra.mxu0 %v566
        %v1481 = vpop.f32.mrf.mxu0
        %v1482 = vadd.f32 %v485, %v1481
        %v1483 = vpop.f32.mrf.mxu0
        %v1484 = vadd.f32 %v485, %v1483
        %1485 = vmatmul.bf16.gmra.mxu0 %v569
        %v1486 = vpop.f32.mrf.mxu0
        %v1487 = vadd.f32 %v485, %v1486
        %v1488 = vpop.f32.mrf.mxu0
        %v1489 = vadd.f32 %v485, %v1488
        %1490 = vmatmul.bf16.gmra.mxu0 %v572
        %v1491 = vpop.f32.mrf.mxu0
        %v1492 = vadd.f32 %v485, %v1491
        %v1493 = vpop.f32.mrf.mxu0
        %v1494 = vadd.f32 %v485, %v1493
        %1495 = vmatmul.bf16.gmra.mxu0 %v575
        %v1496 = vpop.f32.mrf.mxu0
        %v1497 = vadd.f32 %v485, %v1496
        %v1498 = vpop.f32.mrf.mxu0
        %v1499 = vadd.f32 %v485, %v1498
        %1500 = vmatmul.bf16.gmra.mxu0 %v578
        %v1501 = vpop.f32.mrf.mxu0
        %v1502 = vadd.f32 %v485, %v1501
        %v1503 = vpop.f32.mrf.mxu0
        %v1504 = vadd.f32 %v485, %v1503
        %1505 = vmatmul.bf16.gmra.mxu0 %v581
        %v1506 = vpop.f32.mrf.mxu0
        %v1507 = vadd.f32 %v485, %v1506
        %v1508 = vpop.f32.mrf.mxu0
        %v1509 = vadd.f32 %v485, %v1508
        %1510 = vmatmul.bf16.gmra.mxu0 %v584
        %v1511 = vpop.f32.mrf.mxu0
        %v1512 = vadd.f32 %v485, %v1511
        %v1513 = vpop.f32.mrf.mxu0
        %v1514 = vadd.f32 %v485, %v1513
        %1515 = vmatmul.bf16.gmra.mxu0 %v587
        %v1516 = vpop.f32.mrf.mxu0
        %v1517 = vadd.f32 %v485, %v1516
        %v1518 = vpop.f32.mrf.mxu0
        %v1519 = vadd.f32 %v485, %v1518
        %1520 = vdwg.mxu0
        %1521 = vmatpush.bf16.msra.mxu0 %v909
        %1522 = vmatpush.bf16.msra.mxu0 %v905
        %1523 = vmatpush.bf16.msra.mxu0 %v901
        %1524 = vmatpush.bf16.msra.mxu0 %v897
        %1525 = vmatpush.bf16.msra.mxu0 %v893
        %1526 = vmatpush.bf16.msra.mxu0 %v889
        %1527 = vmatpush.bf16.msra.mxu0 %v885
        %1528 = vmatpush.bf16.msra.mxu0 %v881
        %1529 = vmatmul.bf16.gmra.mxu0 %v567
        %v1530 = vpop.f32.mrf.mxu0
        %v1531 = vadd.f32 %v1482, %v1530
        %v1532 = vpop.f32.mrf.mxu0
        %v1533 = vadd.f32 %v1484, %v1532
        %1534 = vmatmul.bf16.gmra.mxu0 %v570
        %v1535 = vpop.f32.mrf.mxu0
        %v1536 = vadd.f32 %v1487, %v1535
        %v1537 = vpop.f32.mrf.mxu0
        %v1538 = vadd.f32 %v1489, %v1537
        %1539 = vmatmul.bf16.gmra.mxu0 %v573
        %v1540 = vpop.f32.mrf.mxu0
        %v1541 = vadd.f32 %v1492, %v1540
        %v1542 = vpop.f32.mrf.mxu0
        %v1543 = vadd.f32 %v1494, %v1542
        %1544 = vmatmul.bf16.gmra.mxu0 %v576
        %v1545 = vpop.f32.mrf.mxu0
        %v1546 = vadd.f32 %v1497, %v1545
        %v1547 = vpop.f32.mrf.mxu0
        %v1548 = vadd.f32 %v1499, %v1547
        %1549 = vmatmul.bf16.gmra.mxu0 %v579
        %v1550 = vpop.f32.mrf.mxu0
        %v1551 = vadd.f32 %v1502, %v1550
        %v1552 = vpop.f32.mrf.mxu0
        %v1553 = vadd.f32 %v1504, %v1552
        %1554 = vmatmul.bf16.gmra.mxu0 %v582
        %v1555 = vpop.f32.mrf.mxu0
        %v1556 = vadd.f32 %v1507, %v1555
        %v1557 = vpop.f32.mrf.mxu0
        %v1558 = vadd.f32 %v1509, %v1557
        %1559 = vmatmul.bf16.gmra.mxu0 %v585
        %v1560 = vpop.f32.mrf.mxu0
        %v1561 = vadd.f32 %v1512, %v1560
        %v1562 = vpop.f32.mrf.mxu0
        %v1563 = vadd.f32 %v1514, %v1562
        %1564 = vmatmul.bf16.gmra.mxu0 %v588
        %v1565 = vpop.f32.mrf.mxu0
        %v1566 = vadd.f32 %v1517, %v1565
        %v1567 = vpop.f32.mrf.mxu0
        %v1568 = vadd.f32 %v1519, %v1567
        %1569 = vdwg.mxu0
        %1570 = vmatpush.bf16.msra.mxu0 0
        %1571 = vmatpush.bf16.msra.mxu0 0
        %1572 = vmatpush.bf16.msra.mxu0 0
        %1573 = vmatpush.bf16.msra.mxu0 0
        %1574 = vmatpush.bf16.msra.mxu0 %v925
        %1575 = vmatpush.bf16.msra.mxu0 %v921
        %1576 = vmatpush.bf16.msra.mxu0 %v917
        %1577 = vmatpush.bf16.msra.mxu0 %v913
        %1578 = vmatmul.bf16.gmra.mxu0 %v1008
        %v1579 = vpop.f32.mrf.mxu0
        %v1580 = vadd.f32 %v1531, %v1579
        %v1581 = vpop.f32.mrf.mxu0
        %v1582 = vadd.f32 %v1533, %v1581
        %1583 = vmatmul.bf16.gmra.mxu0 %v1011
        %v1584 = vpop.f32.mrf.mxu0
        %v1585 = vadd.f32 %v1536, %v1584
        %v1586 = vpop.f32.mrf.mxu0
        %v1587 = vadd.f32 %v1538, %v1586
        %1588 = vmatmul.bf16.gmra.mxu0 %v1014
        %v1589 = vpop.f32.mrf.mxu0
        %v1590 = vadd.f32 %v1541, %v1589
        %v1591 = vpop.f32.mrf.mxu0
        %v1592 = vadd.f32 %v1543, %v1591
        %1593 = vmatmul.bf16.gmra.mxu0 %v1017
        %v1594 = vpop.f32.mrf.mxu0
        %v1595 = vadd.f32 %v1546, %v1594
        %v1596 = vpop.f32.mrf.mxu0
        %v1597 = vadd.f32 %v1548, %v1596
        %1598 = vmatmul.bf16.gmra.mxu0 %v1020
        %v1599 = vpop.f32.mrf.mxu0
        %v1600 = vadd.f32 %v1551, %v1599
        %v1601 = vpop.f32.mrf.mxu0
        %v1602 = vadd.f32 %v1553, %v1601
        %1603 = vmatmul.bf16.gmra.mxu0 %v1023
        %v1604 = vpop.f32.mrf.mxu0
        %v1605 = vadd.f32 %v1556, %v1604
        %v1606 = vpop.f32.mrf.mxu0
        %v1607 = vadd.f32 %v1558, %v1606
        %1608 = vmatmul.bf16.gmra.mxu0 %v1026
        %v1609 = vpop.f32.mrf.mxu0
        %v1610 = vadd.f32 %v1561, %v1609
        %v1611 = vpop.f32.mrf.mxu0
        %v1612 = vadd.f32 %v1563, %v1611
        %1613 = vmatmul.bf16.gmra.mxu0 %v1029
        %v1614 = vpop.f32.mrf.mxu0
        %v1615 = vadd.f32 %v1566, %v1614
        %v1616 = vpop.f32.mrf.mxu0
        %v1617 = vadd.f32 %v1568, %v1616
        %1618 = vdwg.mxu0
        %v1619 = vpack.c.bf16 %v1286, %v1139
        %v1620 = vpack.c.bf16 %v1580, %v1433
        %v1621 = vpack.c.bf16 %v1288, %v1141
        %v1622 = vpack.c.bf16 %v1582, %v1435
        %v1623 = vpack.c.bf16 %v1291, %v1144
        %v1624 = vpack.c.bf16 %v1585, %v1438
        %v1625 = vpack.c.bf16 %v1293, %v1146
        %v1626 = vpack.c.bf16 %v1587, %v1440
        %v1627 = vpack.c.bf16 %v1296, %v1149
        %v1628 = vpack.c.bf16 %v1590, %v1443
        %v1629 = vpack.c.bf16 %v1298, %v1151
        %v1630 = vpack.c.bf16 %v1592, %v1445
        %v1631 = vpack.c.bf16 %v1301, %v1154
        %v1632 = vpack.c.bf16 %v1595, %v1448
        %v1633 = vpack.c.bf16 %v1303, %v1156
        %v1634 = vpack.c.bf16 %v1597, %v1450
        %v1635 = vpack.c.bf16 %v1306, %v1159
        %v1636 = vpack.c.bf16 %v1600, %v1453
        %v1637 = vpack.c.bf16 %v1308, %v1161
        %v1638 = vpack.c.bf16 %v1602, %v1455
        %v1639 = vpack.c.bf16 %v1311, %v1164
        %v1640 = vpack.c.bf16 %v1605, %v1458
        %v1641 = vpack.c.bf16 %v1313, %v1166
        %v1642 = vpack.c.bf16 %v1607, %v1460
        %v1643 = vpack.c.bf16 %v1316, %v1169
        %v1644 = vpack.c.bf16 %v1610, %v1463
        %v1645 = vpack.c.bf16 %v1318, %v1171
        %v1646 = vpack.c.bf16 %v1612, %v1465
        %v1647 = vpack.c.bf16 %v1321, %v1174
        %v1648 = vpack.c.bf16 %v1615, %v1468
        %v1649 = vpack.c.bf16 %v1323, %v1176
        %v1650 = vpack.c.bf16 %v1617, %v1470
        %v1651 = vld [vmem:[#allocation2] sm:$0xff]
        %v1652 = vld [vmem:[#allocation2 + $0x8] sm:$0xff]
        %v1653 = vld [vmem:[#allocation2 + $0x10] sm:$0xff]
        %v1654 = vld [vmem:[#allocation2 + $0x18] sm:$0xff]
        %v1655 = vld [vmem:[#allocation2 + $0x20] sm:$0xff]
        %v1656 = vld [vmem:[#allocation2 + $0x28] sm:$0xff]
        %v1657 = vld [vmem:[#allocation2 + $0x30] sm:$0xff]
        %v1658 = vld [vmem:[#allocation2 + $0x38] sm:$0xff]
        %v1659 = vld [vmem:[#allocation2 + $0x40] sm:$0xff]
        %v1660 = vld [vmem:[#allocation2 + $0x48] sm:$0xff]
        %v1661 = vld [vmem:[#allocation2 + $0x50] sm:$0xff]
        %v1662 = vld [vmem:[#allocation2 + $0x58] sm:$0xff]
        %v1663 = vld [vmem:[#allocation2 + $0x60] sm:$0xff]
        %v1664 = vld [vmem:[#allocation2 + $0x68] sm:$0xff]
        %v1665 = vld [vmem:[#allocation2 + $0x70] sm:$0xff]
        %v1666 = vld [vmem:[#allocation2 + $0x78] sm:$0xff]
        %v1667 = vld [vmem:[#allocation2 + $0x80] sm:$0xff]
        %v1668 = vld [vmem:[#allocation2 + $0x88] sm:$0xff]
        %v1669 = vld [vmem:[#allocation2 + $0x90] sm:$0xff]
        %v1670 = vld [vmem:[#allocation2 + $0x98] sm:$0xff]
        %v1671 = vld [vmem:[#allocation2 + $0xa0] sm:$0xff]
        %v1672 = vld [vmem:[#allocation2 + $0xa8] sm:$0xff]
        %v1673 = vld [vmem:[#allocation2 + $0xb0] sm:$0xff]
        %v1674 = vld [vmem:[#allocation2 + $0xb8] sm:$0xff]
        %v1675 = vld [vmem:[#allocation2 + $0xc0] sm:$0xff]
        %v1676 = vld [vmem:[#allocation2 + $0xc8] sm:$0xff]
        %v1677 = vld [vmem:[#allocation2 + $0xd0] sm:$0xff]
        %v1678 = vld [vmem:[#allocation2 + $0xd8] sm:$0xff]
        %v1679 = vld [vmem:[#allocation2 + $0xe0] sm:$0xff]
        %v1680 = vld [vmem:[#allocation2 + $0xe8] sm:$0xff]
        %v1681 = vld [vmem:[#allocation2 + $0xf0] sm:$0xff]
        %v1682 = vld [vmem:[#allocation2 + $0xf8] sm:$0xff]
        %v1683 = vld [vmem:[#allocation2 + $0x100] sm:$0xff]
        %v1684 = vld [vmem:[#allocation2 + $0x108] sm:$0xff]
        %v1685 = vld [vmem:[#allocation2 + $0x110] sm:$0xff]
        %v1686 = vld [vmem:[#allocation2 + $0x118] sm:$0xff]
        %v1687 = vld [vmem:[#allocation2 + $0x120] sm:$0xff]
        %v1688 = vld [vmem:[#allocation2 + $0x128] sm:$0xff]
        %v1689 = vld [vmem:[#allocation2 + $0x130] sm:$0xff]
        %v1690 = vld [vmem:[#allocation2 + $0x138] sm:$0xff]
        %v1691 = vld [vmem:[#allocation2 + $0x140] sm:$0xff]
        %v1692 = vld [vmem:[#allocation2 + $0x148] sm:$0xff]
        %v1693 = vld [vmem:[#allocation2 + $0x150] sm:$0xff]
        %v1694 = vld [vmem:[#allocation2 + $0x158] sm:$0xff]
        %v1695 = vld [vmem:[#allocation2 + $0x160] sm:$0xff]
        %v1696 = vld [vmem:[#allocation2 + $0x168] sm:$0xff]
        %v1697 = vld [vmem:[#allocation2 + $0x170] sm:$0xff]
        %v1698 = vld [vmem:[#allocation2 + $0x178] sm:$0xff]
        %v1699 = vld [vmem:[#allocation2 + $0x180] sm:$0xff]
        %v1700 = vld [vmem:[#allocation2 + $0x188] sm:$0xff]
        %v1701 = vld [vmem:[#allocation2 + $0x190] sm:$0xff]
        %v1702 = vld [vmem:[#allocation2 + $0x198] sm:$0xff]
        %v1703 = vld [vmem:[#allocation2 + $0x1a0] sm:$0xff]
        %v1704 = vld [vmem:[#allocation2 + $0x1a8] sm:$0xff]
        %v1705 = vld [vmem:[#allocation2 + $0x1b0] sm:$0xff]
        %v1706 = vld [vmem:[#allocation2 + $0x1b8] sm:$0xff]
        %v1707 = vld [vmem:[#allocation2 + $0x1c0] sm:$0xff]
        %v1708 = vld [vmem:[#allocation2 + $0x1c8] sm:$0xff]
        %v1709 = vld [vmem:[#allocation2 + $0x1d0] sm:$0xff]
        %v1710 = vld [vmem:[#allocation2 + $0x1d8] sm:$0xff]
        %v1711 = vld [vmem:[#allocation2 + $0x1e0] sm:$0xff]
        %v1712 = vld [vmem:[#allocation2 + $0x1e8] sm:$0xff]
        %v1713 = vld [vmem:[#allocation2 + $0x1f0] sm:$0xff]
        %v1714 = vld [vmem:[#allocation2 + $0x1f8] sm:$0xff]
        %v1715 = vld [vmem:[#allocation2 + $0x200] sm:$0xff]
        %v1716 = vld [vmem:[#allocation2 + $0x208] sm:$0xff]
        %v1717 = vld [vmem:[#allocation2 + $0x210] sm:$0xff]
        %v1718 = vld [vmem:[#allocation2 + $0x218] sm:$0xff]
        %v1719 = vld [vmem:[#allocation2 + $0x220] sm:$0xff]
        %v1720 = vld [vmem:[#allocation2 + $0x228] sm:$0xff]
        %v1721 = vld [vmem:[#allocation2 + $0x230] sm:$0xff]
        %v1722 = vld [vmem:[#allocation2 + $0x238] sm:$0xff]
        %v1723 = vld [vmem:[#allocation2 + $0x240] sm:$0xff]
        %v1724 = vld [vmem:[#allocation2 + $0x248] sm:$0xff]
        %v1725 = vld [vmem:[#allocation2 + $0x250] sm:$0xff]
        %v1726 = vld [vmem:[#allocation2 + $0x258] sm:$0xff]
        %v1727 = vld [vmem:[#allocation2 + $0x260] sm:$0xff]
        %v1728 = vld [vmem:[#allocation2 + $0x268] sm:$0xff]
        %v1729 = vld [vmem:[#allocation2 + $0x270] sm:$0xff]
        %v1730 = vld [vmem:[#allocation2 + $0x278] sm:$0xff]
        %v1731 = vld [vmem:[%s5] sm:$0xf]
        %v1732 = vunpack.c.l.bf16 %v1731
        %v1734 = vperm.slane %v1732, 0
        %v1735 = vperm.slane %v1732, 2
        %v1736 = vperm.slane %v1732, 4
        %v1737 = vperm.slane %v1732, 6
        %v1742 = vperm.slane %v1734, 0
        %v1743 = vperm.slane %v1735, 0
        %v1744 = vperm.slane %v1736, 0
        %v1745 = vperm.slane %v1737, 0
        %v1826 = vunpack.c.l.b16 %v1651
        %v1827 = vunpack.c.h.b16 %v1651
        %v1828 = vunpack.c.l.b16 %v1652
        %v1829 = vunpack.c.h.b16 %v1652
        %v1830 = vunpack.c.l.b16 %v1653
        %v1831 = vunpack.c.h.b16 %v1653
        %v1832 = vunpack.c.l.b16 %v1654
        %v1833 = vunpack.c.h.b16 %v1654
        %v1834 = vunpack.c.l.b16 %v1655
        %v1835 = vunpack.c.h.b16 %v1655
        %v1836 = vunpack.c.l.b16 %v1656
        %v1837 = vunpack.c.h.b16 %v1656
        %v1838 = vunpack.c.l.b16 %v1657
        %v1839 = vunpack.c.h.b16 %v1657
        %v1840 = vunpack.c.l.b16 %v1658
        %v1841 = vunpack.c.h.b16 %v1658
        %v1842 = vunpack.c.l.b16 %v1659
        %v1843 = vunpack.c.h.b16 %v1659
        %v1844 = vunpack.c.l.b16 %v1660
        %v1845 = vunpack.c.h.b16 %v1660
        %v1846 = vunpack.c.l.b16 %v1661
        %v1847 = vunpack.c.h.b16 %v1661
        %v1848 = vunpack.c.l.b16 %v1662
        %v1849 = vunpack.c.h.b16 %v1662
        %v1850 = vunpack.c.l.b16 %v1663
        %v1851 = vunpack.c.h.b16 %v1663
        %v1852 = vunpack.c.l.b16 %v1664
        %v1853 = vunpack.c.h.b16 %v1664
        %v1854 = vunpack.c.l.b16 %v1665
        %v1855 = vunpack.c.h.b16 %v1665
        %v1856 = vunpack.c.l.b16 %v1666
        %v1857 = vunpack.c.h.b16 %v1666
        %v1858 = vunpack.c.l.b16 %v1667
        %v1859 = vunpack.c.h.b16 %v1667
        %v1860 = vunpack.c.l.b16 %v1668
        %v1861 = vunpack.c.h.b16 %v1668
        %v1862 = vunpack.c.l.b16 %v1669
        %v1863 = vunpack.c.h.b16 %v1669
        %v1864 = vunpack.c.l.b16 %v1670
        %v1865 = vunpack.c.h.b16 %v1670
        %v1866 = vunpack.c.l.b16 %v1671
        %v1867 = vunpack.c.h.b16 %v1671
        %v1868 = vunpack.c.l.b16 %v1672
        %v1869 = vunpack.c.h.b16 %v1672
        %v1870 = vunpack.c.l.b16 %v1673
        %v1871 = vunpack.c.h.b16 %v1673
        %v1872 = vunpack.c.l.b16 %v1674
        %v1873 = vunpack.c.h.b16 %v1674
        %v1874 = vunpack.c.l.b16 %v1675
        %v1875 = vunpack.c.h.b16 %v1675
        %v1876 = vunpack.c.l.b16 %v1676
        %v1877 = vunpack.c.h.b16 %v1676
        %v1878 = vunpack.c.l.b16 %v1677
        %v1879 = vunpack.c.h.b16 %v1677
        %v1880 = vunpack.c.l.b16 %v1678
        %v1881 = vunpack.c.h.b16 %v1678
        %v1882 = vunpack.c.l.b16 %v1679
        %v1883 = vunpack.c.h.b16 %v1679
        %v1884 = vunpack.c.l.b16 %v1680
        %v1885 = vunpack.c.h.b16 %v1680
        %v1886 = vunpack.c.l.b16 %v1681
        %v1887 = vunpack.c.h.b16 %v1681
        %v1888 = vunpack.c.l.b16 %v1682
        %v1889 = vunpack.c.h.b16 %v1682
        %v1890 = vunpack.c.l.b16 %v1683
        %v1891 = vunpack.c.h.b16 %v1683
        %v1892 = vunpack.c.l.b16 %v1684
        %v1893 = vunpack.c.h.b16 %v1684
        %v1894 = vunpack.c.l.b16 %v1685
        %v1895 = vunpack.c.h.b16 %v1685
        %v1896 = vunpack.c.l.b16 %v1686
        %v1897 = vunpack.c.h.b16 %v1686
        %v1898 = vunpack.c.l.b16 %v1687
        %v1899 = vunpack.c.h.b16 %v1687
        %v1900 = vunpack.c.l.b16 %v1688
        %v1901 = vunpack.c.h.b16 %v1688
        %v1902 = vunpack.c.l.b16 %v1689
        %v1903 = vunpack.c.h.b16 %v1689
        %v1904 = vunpack.c.l.b16 %v1690
        %v1905 = vunpack.c.h.b16 %v1690
        %v1906 = vunpack.c.l.b16 %v1691
        %v1907 = vunpack.c.h.b16 %v1691
        %v1908 = vunpack.c.l.b16 %v1692
        %v1909 = vunpack.c.h.b16 %v1692
        %v1910 = vunpack.c.l.b16 %v1693
        %v1911 = vunpack.c.h.b16 %v1693
        %v1912 = vunpack.c.l.b16 %v1694
        %v1913 = vunpack.c.h.b16 %v1694
        %v1914 = vunpack.c.l.b16 %v1695
        %v1915 = vunpack.c.h.b16 %v1695
        %v1916 = vunpack.c.l.b16 %v1696
        %v1917 = vunpack.c.h.b16 %v1696
        %v1918 = vunpack.c.l.b16 %v1697
        %v1919 = vunpack.c.h.b16 %v1697
        %v1920 = vunpack.c.l.b16 %v1698
        %v1921 = vunpack.c.h.b16 %v1698
        %v1922 = vunpack.c.l.b16 %v1699
        %v1923 = vunpack.c.h.b16 %v1699
        %v1924 = vunpack.c.l.b16 %v1700
        %v1925 = vunpack.c.h.b16 %v1700
        %v1926 = vunpack.c.l.b16 %v1701
        %v1927 = vunpack.c.h.b16 %v1701
        %v1928 = vunpack.c.l.b16 %v1702
        %v1929 = vunpack.c.h.b16 %v1702
        %v1930 = vunpack.c.l.b16 %v1703
        %v1931 = vunpack.c.h.b16 %v1703
        %v1932 = vunpack.c.l.b16 %v1704
        %v1933 = vunpack.c.h.b16 %v1704
        %v1934 = vunpack.c.l.b16 %v1705
        %v1935 = vunpack.c.h.b16 %v1705
        %v1936 = vunpack.c.l.b16 %v1706
        %v1937 = vunpack.c.h.b16 %v1706
        %v1938 = vunpack.c.l.b16 %v1707
        %v1939 = vunpack.c.h.b16 %v1707
        %v1940 = vunpack.c.l.b16 %v1708
        %v1941 = vunpack.c.h.b16 %v1708
        %v1942 = vunpack.c.l.b16 %v1709
        %v1943 = vunpack.c.h.b16 %v1709
        %v1944 = vunpack.c.l.b16 %v1710
        %v1945 = vunpack.c.h.b16 %v1710
        %v1946 = vunpack.c.l.b16 %v1711
        %v1947 = vunpack.c.h.b16 %v1711
        %v1948 = vunpack.c.l.b16 %v1712
        %v1949 = vunpack.c.h.b16 %v1712
        %v1950 = vunpack.c.l.b16 %v1713
        %v1951 = vunpack.c.h.b16 %v1713
        %v1952 = vunpack.c.l.b16 %v1714
        %v1953 = vunpack.c.h.b16 %v1714
        %v1954 = vunpack.c.l.b16 %v1715
        %v1955 = vunpack.c.h.b16 %v1715
        %v1956 = vunpack.c.l.b16 %v1716
        %v1957 = vunpack.c.h.b16 %v1716
        %v1958 = vunpack.c.l.b16 %v1717
        %v1959 = vunpack.c.h.b16 %v1717
        %v1960 = vunpack.c.l.b16 %v1718
        %v1961 = vunpack.c.h.b16 %v1718
        %v1962 = vunpack.c.l.b16 %v1719
        %v1963 = vunpack.c.h.b16 %v1719
        %v1964 = vunpack.c.l.b16 %v1720
        %v1965 = vunpack.c.h.b16 %v1720
        %v1966 = vunpack.c.l.b16 %v1721
        %v1967 = vunpack.c.h.b16 %v1721
        %v1968 = vunpack.c.l.b16 %v1722
        %v1969 = vunpack.c.h.b16 %v1722
        %v1970 = vunpack.c.l.b16 %v1723
        %v1971 = vunpack.c.h.b16 %v1723
        %v1972 = vunpack.c.l.b16 %v1724
        %v1973 = vunpack.c.h.b16 %v1724
        %v1974 = vunpack.c.l.b16 %v1725
        %v1975 = vunpack.c.h.b16 %v1725
        %v1976 = vunpack.c.l.b16 %v1726
        %v1977 = vunpack.c.h.b16 %v1726
        %v1978 = vunpack.c.l.b16 %v1727
        %v1979 = vunpack.c.h.b16 %v1727
        %v1980 = vunpack.c.l.b16 %v1728
        %v1981 = vunpack.c.h.b16 %v1728
        %v1982 = vunpack.c.l.b16 %v1729
        %v1983 = vunpack.c.h.b16 %v1729
        %v1984 = vunpack.c.l.b16 %v1730
        %v1985 = vunpack.c.h.b16 %v1730
        %v1986 = vpack.c.b16 %v1830, %v1826
        %v1987 = vpack.c.b16 %v1831, %v1827
        %v1988 = vpack.c.b16 %v1832, %v1828
        %v1989 = vpack.c.b16 %v1833, %v1829
        %v1990 = vpack.c.b16 %v1838, %v1834
        %v1991 = vpack.c.b16 %v1839, %v1835
        %v1992 = vpack.c.b16 %v1840, %v1836
        %v1993 = vpack.c.b16 %v1841, %v1837
        %v1994 = vpack.c.b16 %v1846, %v1842
        %v1995 = vpack.c.b16 %v1847, %v1843
        %v1996 = vpack.c.b16 %v1848, %v1844
        %v1997 = vpack.c.b16 %v1849, %v1845
        %v1998 = vpack.c.b16 %v1854, %v1850
        %v1999 = vpack.c.b16 %v1855, %v1851
        %v2000 = vpack.c.b16 %v1856, %v1852
        %v2001 = vpack.c.b16 %v1857, %v1853
        %v2002 = vpack.c.b16 %v1862, %v1858
        %v2003 = vpack.c.b16 %v1863, %v1859
        %v2004 = vpack.c.b16 %v1864, %v1860
        %v2005 = vpack.c.b16 %v1865, %v1861
        %v2006 = vpack.c.b16 %v1870, %v1866
        %v2007 = vpack.c.b16 %v1871, %v1867
        %v2008 = vpack.c.b16 %v1872, %v1868
        %v2009 = vpack.c.b16 %v1873, %v1869
        %v2010 = vpack.c.b16 %v1878, %v1874
        %v2011 = vpack.c.b16 %v1879, %v1875
        %v2012 = vpack.c.b16 %v1880, %v1876
        %v2013 = vpack.c.b16 %v1881, %v1877
        %v2014 = vpack.c.b16 %v1886, %v1882
        %v2015 = vpack.c.b16 %v1887, %v1883
        %v2016 = vpack.c.b16 %v1888, %v1884
        %v2017 = vpack.c.b16 %v1889, %v1885
        %v2018 = vpack.c.b16 %v1894, %v1890
        %v2019 = vpack.c.b16 %v1895, %v1891
        %v2020 = vpack.c.b16 %v1896, %v1892
        %v2021 = vpack.c.b16 %v1897, %v1893
        %v2022 = vpack.c.b16 %v1902, %v1898
        %v2023 = vpack.c.b16 %v1903, %v1899
        %v2024 = vpack.c.b16 %v1904, %v1900
        %v2025 = vpack.c.b16 %v1905, %v1901
        %v2026 = vpack.c.b16 %v1910, %v1906
        %v2027 = vpack.c.b16 %v1911, %v1907
        %v2028 = vpack.c.b16 %v1912, %v1908
        %v2029 = vpack.c.b16 %v1913, %v1909
        %v2030 = vpack.c.b16 %v1918, %v1914
        %v2031 = vpack.c.b16 %v1919, %v1915
        %v2032 = vpack.c.b16 %v1920, %v1916
        %v2033 = vpack.c.b16 %v1921, %v1917
        %v2034 = vpack.c.b16 %v1926, %v1922
        %v2035 = vpack.c.b16 %v1927, %v1923
        %v2036 = vpack.c.b16 %v1928, %v1924
        %v2037 = vpack.c.b16 %v1929, %v1925
        %v2038 = vpack.c.b16 %v1934, %v1930
        %v2039 = vpack.c.b16 %v1935, %v1931
        %v2040 = vpack.c.b16 %v1936, %v1932
        %v2041 = vpack.c.b16 %v1937, %v1933
        %v2042 = vpack.c.b16 %v1942, %v1938
        %v2043 = vpack.c.b16 %v1943, %v1939
        %v2044 = vpack.c.b16 %v1944, %v1940
        %v2045 = vpack.c.b16 %v1945, %v1941
        %v2046 = vpack.c.b16 %v1950, %v1946
        %v2047 = vpack.c.b16 %v1951, %v1947
        %v2048 = vpack.c.b16 %v1952, %v1948
        %v2049 = vpack.c.b16 %v1953, %v1949
        %v2050 = vpack.c.b16 %v1958, %v1954
        %v2051 = vpack.c.b16 %v1959, %v1955
        %v2052 = vpack.c.b16 %v1960, %v1956
        %v2053 = vpack.c.b16 %v1961, %v1957
        %v2054 = vpack.c.b16 %v1966, %v1962
        %v2055 = vpack.c.b16 %v1967, %v1963
        %v2056 = vpack.c.b16 %v1968, %v1964
        %v2057 = vpack.c.b16 %v1969, %v1965
        %v2058 = vpack.c.b16 %v1974, %v1970
        %v2059 = vpack.c.b16 %v1975, %v1971
        %v2060 = vpack.c.b16 %v1976, %v1972
        %v2061 = vpack.c.b16 %v1977, %v1973
        %v2062 = vpack.c.b16 %v1982, %v1978
        %v2063 = vpack.c.b16 %v1983, %v1979
        %v2064 = vpack.c.b16 %v1984, %v1980
        %v2065 = vpack.c.b16 %v1985, %v1981
        %2146 = vmatpush.bf16.msra.mxu0 %v2014
        %2147 = vmatpush.bf16.msra.mxu0 %v2010
        %2148 = vmatpush.bf16.msra.mxu0 %v2006
        %2149 = vmatpush.bf16.msra.mxu0 %v2002
        %2150 = vmatpush.bf16.msra.mxu0 %v1998
        %2151 = vmatpush.bf16.msra.mxu0 %v1994
        %2152 = vmatpush.bf16.msra.mxu0 %v1990
        %2153 = vmatpush.bf16.msra.mxu0 %v1986
        %2154 = vmatmul.bf16.gmra.mxu0 %v566
        %v2155 = vpop.f32.mrf.mxu0
        %v2156 = vadd.f32 %v1742, %v2155
        %v2157 = vpop.f32.mrf.mxu0
        %v2158 = vadd.f32 %v1742, %v2157
        %2159 = vmatmul.bf16.gmra.mxu0 %v569
        %v2160 = vpop.f32.mrf.mxu0
        %v2161 = vadd.f32 %v1742, %v2160
        %v2162 = vpop.f32.mrf.mxu0
        %v2163 = vadd.f32 %v1742, %v2162
        %2164 = vmatmul.bf16.gmra.mxu0 %v572
        %v2165 = vpop.f32.mrf.mxu0
        %v2166 = vadd.f32 %v1742, %v2165
        %v2167 = vpop.f32.mrf.mxu0
        %v2168 = vadd.f32 %v1742, %v2167
        %2169 = vmatmul.bf16.gmra.mxu0 %v575
        %v2170 = vpop.f32.mrf.mxu0
        %v2171 = vadd.f32 %v1742, %v2170
        %v2172 = vpop.f32.mrf.mxu0
        %v2173 = vadd.f32 %v1742, %v2172
        %2174 = vmatmul.bf16.gmra.mxu0 %v578
        %v2175 = vpop.f32.mrf.mxu0
        %v2176 = vadd.f32 %v1742, %v2175
        %v2177 = vpop.f32.mrf.mxu0
        %v2178 = vadd.f32 %v1742, %v2177
        %2179 = vmatmul.bf16.gmra.mxu0 %v581
        %v2180 = vpop.f32.mrf.mxu0
        %v2181 = vadd.f32 %v1742, %v2180
        %v2182 = vpop.f32.mrf.mxu0
        %v2183 = vadd.f32 %v1742, %v2182
        %2184 = vmatmul.bf16.gmra.mxu0 %v584
        %v2185 = vpop.f32.mrf.mxu0
        %v2186 = vadd.f32 %v1742, %v2185
        %v2187 = vpop.f32.mrf.mxu0
        %v2188 = vadd.f32 %v1742, %v2187
        %2189 = vmatmul.bf16.gmra.mxu0 %v587
        %v2190 = vpop.f32.mrf.mxu0
        %v2191 = vadd.f32 %v1742, %v2190
        %v2192 = vpop.f32.mrf.mxu0
        %v2193 = vadd.f32 %v1742, %v2192
        %2194 = vdwg.mxu0
        %2195 = vmatpush.bf16.msra.mxu0 %v2046
        %2196 = vmatpush.bf16.msra.mxu0 %v2042
        %2197 = vmatpush.bf16.msra.mxu0 %v2038
        %2198 = vmatpush.bf16.msra.mxu0 %v2034
        %2199 = vmatpush.bf16.msra.mxu0 %v2030
        %2200 = vmatpush.bf16.msra.mxu0 %v2026
        %2201 = vmatpush.bf16.msra.mxu0 %v2022
        %2202 = vmatpush.bf16.msra.mxu0 %v2018
        %2203 = vmatmul.bf16.gmra.mxu0 %v567
        %v2204 = vpop.f32.mrf.mxu0
        %v2205 = vadd.f32 %v2156, %v2204
        %v2206 = vpop.f32.mrf.mxu0
        %v2207 = vadd.f32 %v2158, %v2206
        %2208 = vmatmul.bf16.gmra.mxu0 %v570
        %v2209 = vpop.f32.mrf.mxu0
        %v2210 = vadd.f32 %v2161, %v2209
        %v2211 = vpop.f32.mrf.mxu0
        %v2212 = vadd.f32 %v2163, %v2211
        %2213 = vmatmul.bf16.gmra.mxu0 %v573
        %v2214 = vpop.f32.mrf.mxu0
        %v2215 = vadd.f32 %v2166, %v2214
        %v2216 = vpop.f32.mrf.mxu0
        %v2217 = vadd.f32 %v2168, %v2216
        %2218 = vmatmul.bf16.gmra.mxu0 %v576
        %v2219 = vpop.f32.mrf.mxu0
        %v2220 = vadd.f32 %v2171, %v2219
        %v2221 = vpop.f32.mrf.mxu0
        %v2222 = vadd.f32 %v2173, %v2221
        %2223 = vmatmul.bf16.gmra.mxu0 %v579
        %v2224 = vpop.f32.mrf.mxu0
        %v2225 = vadd.f32 %v2176, %v2224
        %v2226 = vpop.f32.mrf.mxu0
        %v2227 = vadd.f32 %v2178, %v2226
        %2228 = vmatmul.bf16.gmra.mxu0 %v582
        %v2229 = vpop.f32.mrf.mxu0
        %v2230 = vadd.f32 %v2181, %v2229
        %v2231 = vpop.f32.mrf.mxu0
        %v2232 = vadd.f32 %v2183, %v2231
        %2233 = vmatmul.bf16.gmra.mxu0 %v585
        %v2234 = vpop.f32.mrf.mxu0
        %v2235 = vadd.f32 %v2186, %v2234
        %v2236 = vpop.f32.mrf.mxu0
        %v2237 = vadd.f32 %v2188, %v2236
        %2238 = vmatmul.bf16.gmra.mxu0 %v588
        %v2239 = vpop.f32.mrf.mxu0
        %v2240 = vadd.f32 %v2191, %v2239
        %v2241 = vpop.f32.mrf.mxu0
        %v2242 = vadd.f32 %v2193, %v2241
        %2243 = vdwg.mxu0
        %2244 = vmatpush.bf16.msra.mxu0 0
        %2245 = vmatpush.bf16.msra.mxu0 0
        %2246 = vmatpush.bf16.msra.mxu0 0
        %2247 = vmatpush.bf16.msra.mxu0 0
        %2248 = vmatpush.bf16.msra.mxu0 %v2062
        %2249 = vmatpush.bf16.msra.mxu0 %v2058
        %2250 = vmatpush.bf16.msra.mxu0 %v2054
        %2251 = vmatpush.bf16.msra.mxu0 %v2050
        %2252 = vmatmul.bf16.gmra.mxu0 %v1008
        %v2253 = vpop.f32.mrf.mxu0
        %v2254 = vadd.f32 %v2205, %v2253
        %v2255 = vpop.f32.mrf.mxu0
        %v2256 = vadd.f32 %v2207, %v2255
        %2257 = vmatmul.bf16.gmra.mxu0 %v1011
        %v2258 = vpop.f32.mrf.mxu0
        %v2259 = vadd.f32 %v2210, %v2258
        %v2260 = vpop.f32.mrf.mxu0
        %v2261 = vadd.f32 %v2212, %v2260
        %2262 = vmatmul.bf16.gmra.mxu0 %v1014
        %v2263 = vpop.f32.mrf.mxu0
        %v2264 = vadd.f32 %v2215, %v2263
        %v2265 = vpop.f32.mrf.mxu0
        %v2266 = vadd.f32 %v2217, %v2265
        %2267 = vmatmul.bf16.gmra.mxu0 %v1017
        %v2268 = vpop.f32.mrf.mxu0
        %v2269 = vadd.f32 %v2220, %v2268
        %v2270 = vpop.f32.mrf.mxu0
        %v2271 = vadd.f32 %v2222, %v2270
        %2272 = vmatmul.bf16.gmra.mxu0 %v1020
        %v2273 = vpop.f32.mrf.mxu0
        %v2274 = vadd.f32 %v2225, %v2273
        %v2275 = vpop.f32.mrf.mxu0
        %v2276 = vadd.f32 %v2227, %v2275
        %2277 = vmatmul.bf16.gmra.mxu0 %v1023
        %v2278 = vpop.f32.mrf.mxu0
        %v2279 = vadd.f32 %v2230, %v2278
        %v2280 = vpop.f32.mrf.mxu0
        %v2281 = vadd.f32 %v2232, %v2280
        %2282 = vmatmul.bf16.gmra.mxu0 %v1026
        %v2283 = vpop.f32.mrf.mxu0
        %v2284 = vadd.f32 %v2235, %v2283
        %v2285 = vpop.f32.mrf.mxu0
        %v2286 = vadd.f32 %v2237, %v2285
        %2287 = vmatmul.bf16.gmra.mxu0 %v1029
        %v2288 = vpop.f32.mrf.mxu0
        %v2289 = vadd.f32 %v2240, %v2288
        %v2290 = vpop.f32.mrf.mxu0
        %v2291 = vadd.f32 %v2242, %v2290
        %2292 = vdwg.mxu0
        %2293 = vmatpush.bf16.msra.mxu0 %v2015
        %2294 = vmatpush.bf16.msra.mxu0 %v2011
        %2295 = vmatpush.bf16.msra.mxu0 %v2007
        %2296 = vmatpush.bf16.msra.mxu0 %v2003
        %2297 = vmatpush.bf16.msra.mxu0 %v1999
        %2298 = vmatpush.bf16.msra.mxu0 %v1995
        %2299 = vmatpush.bf16.msra.mxu0 %v1991
        %2300 = vmatpush.bf16.msra.mxu0 %v1987
        %2301 = vmatmul.bf16.gmra.mxu0 %v566
        %v2302 = vpop.f32.mrf.mxu0
        %v2303 = vadd.f32 %v1743, %v2302
        %v2304 = vpop.f32.mrf.mxu0
        %v2305 = vadd.f32 %v1743, %v2304
        %2306 = vmatmul.bf16.gmra.mxu0 %v569
        %v2307 = vpop.f32.mrf.mxu0
        %v2308 = vadd.f32 %v1743, %v2307
        %v2309 = vpop.f32.mrf.mxu0
        %v2310 = vadd.f32 %v1743, %v2309
        %2311 = vmatmul.bf16.gmra.mxu0 %v572
        %v2312 = vpop.f32.mrf.mxu0
        %v2313 = vadd.f32 %v1743, %v2312
        %v2314 = vpop.f32.mrf.mxu0
        %v2315 = vadd.f32 %v1743, %v2314
        %2316 = vmatmul.bf16.gmra.mxu0 %v575
        %v2317 = vpop.f32.mrf.mxu0
        %v2318 = vadd.f32 %v1743, %v2317
        %v2319 = vpop.f32.mrf.mxu0
        %v2320 = vadd.f32 %v1743, %v2319
        %2321 = vmatmul.bf16.gmra.mxu0 %v578
        %v2322 = vpop.f32.mrf.mxu0
        %v2323 = vadd.f32 %v1743, %v2322
        %v2324 = vpop.f32.mrf.mxu0
        %v2325 = vadd.f32 %v1743, %v2324
        %2326 = vmatmul.bf16.gmra.mxu0 %v581
        %v2327 = vpop.f32.mrf.mxu0
        %v2328 = vadd.f32 %v1743, %v2327
        %v2329 = vpop.f32.mrf.mxu0
        %v2330 = vadd.f32 %v1743, %v2329
        %2331 = vmatmul.bf16.gmra.mxu0 %v584
        %v2332 = vpop.f32.mrf.mxu0
        %v2333 = vadd.f32 %v1743, %v2332
        %v2334 = vpop.f32.mrf.mxu0
        %v2335 = vadd.f32 %v1743, %v2334
        %2336 = vmatmul.bf16.gmra.mxu0 %v587
        %v2337 = vpop.f32.mrf.mxu0
        %v2338 = vadd.f32 %v1743, %v2337
        %v2339 = vpop.f32.mrf.mxu0
        %v2340 = vadd.f32 %v1743, %v2339
        %2341 = vdwg.mxu0
        %2342 = vmatpush.bf16.msra.mxu0 %v2047
        %2343 = vmatpush.bf16.msra.mxu0 %v2043
        %2344 = vmatpush.bf16.msra.mxu0 %v2039
        %2345 = vmatpush.bf16.msra.mxu0 %v2035
        %2346 = vmatpush.bf16.msra.mxu0 %v2031
        %2347 = vmatpush.bf16.msra.mxu0 %v2027
        %2348 = vmatpush.bf16.msra.mxu0 %v2023
        %2349 = vmatpush.bf16.msra.mxu0 %v2019
        %2350 = vmatmul.bf16.gmra.mxu0 %v567
        %v2351 = vpop.f32.mrf.mxu0
        %v2352 = vadd.f32 %v2303, %v2351
        %v2353 = vpop.f32.mrf.mxu0
        %v2354 = vadd.f32 %v2305, %v2353
        %2355 = vmatmul.bf16.gmra.mxu0 %v570
        %v2356 = vpop.f32.mrf.mxu0
        %v2357 = vadd.f32 %v2308, %v2356
        %v2358 = vpop.f32.mrf.mxu0
        %v2359 = vadd.f32 %v2310, %v2358
        %2360 = vmatmul.bf16.gmra.mxu0 %v573
        %v2361 = vpop.f32.mrf.mxu0
        %v2362 = vadd.f32 %v2313, %v2361
        %v2363 = vpop.f32.mrf.mxu0
        %v2364 = vadd.f32 %v2315, %v2363
        %2365 = vmatmul.bf16.gmra.mxu0 %v576
        %v2366 = vpop.f32.mrf.mxu0
        %v2367 = vadd.f32 %v2318, %v2366
        %v2368 = vpop.f32.mrf.mxu0
        %v2369 = vadd.f32 %v2320, %v2368
        %2370 = vmatmul.bf16.gmra.mxu0 %v579
        %v2371 = vpop.f32.mrf.mxu0
        %v2372 = vadd.f32 %v2323, %v2371
        %v2373 = vpop.f32.mrf.mxu0
        %v2374 = vadd.f32 %v2325, %v2373
        %2375 = vmatmul.bf16.gmra.mxu0 %v582
        %v2376 = vpop.f32.mrf.mxu0
        %v2377 = vadd.f32 %v2328, %v2376
        %v2378 = vpop.f32.mrf.mxu0
        %v2379 = vadd.f32 %v2330, %v2378
        %2380 = vmatmul.bf16.gmra.mxu0 %v585
        %v2381 = vpop.f32.mrf.mxu0
        %v2382 = vadd.f32 %v2333, %v2381
        %v2383 = vpop.f32.mrf.mxu0
        %v2384 = vadd.f32 %v2335, %v2383
        %2385 = vmatmul.bf16.gmra.mxu0 %v588
        %v2386 = vpop.f32.mrf.mxu0
        %v2387 = vadd.f32 %v2338, %v2386
        %v2388 = vpop.f32.mrf.mxu0
        %v2389 = vadd.f32 %v2340, %v2388
        %2390 = vdwg.mxu0
        %2391 = vmatpush.bf16.msra.mxu0 0
        %2392 = vmatpush.bf16.msra.mxu0 0
        %2393 = vmatpush.bf16.msra.mxu0 0
        %2394 = vmatpush.bf16.msra.mxu0 0
        %2395 = vmatpush.bf16.msra.mxu0 %v2063
        %2396 = vmatpush.bf16.msra.mxu0 %v2059
        %2397 = vmatpush.bf16.msra.mxu0 %v2055
        %2398 = vmatpush.bf16.msra.mxu0 %v2051
        %2399 = vmatmul.bf16.gmra.mxu0 %v1008
        %v2400 = vpop.f32.mrf.mxu0
        %v2401 = vadd.f32 %v2352, %v2400
        %v2402 = vpop.f32.mrf.mxu0
        %v2403 = vadd.f32 %v2354, %v2402
        %2404 = vmatmul.bf16.gmra.mxu0 %v1011
        %v2405 = vpop.f32.mrf.mxu0
        %v2406 = vadd.f32 %v2357, %v2405
        %v2407 = vpop.f32.mrf.mxu0
        %v2408 = vadd.f32 %v2359, %v2407
        %2409 = vmatmul.bf16.gmra.mxu0 %v1014
        %v2410 = vpop.f32.mrf.mxu0
        %v2411 = vadd.f32 %v2362, %v2410
        %v2412 = vpop.f32.mrf.mxu0
        %v2413 = vadd.f32 %v2364, %v2412
        %2414 = vmatmul.bf16.gmra.mxu0 %v1017
        %v2415 = vpop.f32.mrf.mxu0
        %v2416 = vadd.f32 %v2367, %v2415
        %v2417 = vpop.f32.mrf.mxu0
        %v2418 = vadd.f32 %v2369, %v2417
        %2419 = vmatmul.bf16.gmra.mxu0 %v1020
        %v2420 = vpop.f32.mrf.mxu0
        %v2421 = vadd.f32 %v2372, %v2420
        %v2422 = vpop.f32.mrf.mxu0
        %v2423 = vadd.f32 %v2374, %v2422
        %2424 = vmatmul.bf16.gmra.mxu0 %v1023
        %v2425 = vpop.f32.mrf.mxu0
        %v2426 = vadd.f32 %v2377, %v2425
        %v2427 = vpop.f32.mrf.mxu0
        %v2428 = vadd.f32 %v2379, %v2427
        %2429 = vmatmul.bf16.gmra.mxu0 %v1026
        %v2430 = vpop.f32.mrf.mxu0
        %v2431 = vadd.f32 %v2382, %v2430
        %v2432 = vpop.f32.mrf.mxu0
        %v2433 = vadd.f32 %v2384, %v2432
        %2434 = vmatmul.bf16.gmra.mxu0 %v1029
        %v2435 = vpop.f32.mrf.mxu0
        %v2436 = vadd.f32 %v2387, %v2435
        %v2437 = vpop.f32.mrf.mxu0
        %v2438 = vadd.f32 %v2389, %v2437
        %2439 = vdwg.mxu0
        %2440 = vmatpush.bf16.msra.mxu0 %v2016
        %2441 = vmatpush.bf16.msra.mxu0 %v2012
        %2442 = vmatpush.bf16.msra.mxu0 %v2008
        %2443 = vmatpush.bf16.msra.mxu0 %v2004
        %2444 = vmatpush.bf16.msra.mxu0 %v2000
        %2445 = vmatpush.bf16.msra.mxu0 %v1996
        %2446 = vmatpush.bf16.msra.mxu0 %v1992
        %2447 = vmatpush.bf16.msra.mxu0 %v1988
        %2448 = vmatmul.bf16.gmra.mxu0 %v566
        %v2449 = vpop.f32.mrf.mxu0
        %v2450 = vadd.f32 %v1744, %v2449
        %v2451 = vpop.f32.mrf.mxu0
        %v2452 = vadd.f32 %v1744, %v2451
        %2453 = vmatmul.bf16.gmra.mxu0 %v569
        %v2454 = vpop.f32.mrf.mxu0
        %v2455 = vadd.f32 %v1744, %v2454
        %v2456 = vpop.f32.mrf.mxu0
        %v2457 = vadd.f32 %v1744, %v2456
        %2458 = vmatmul.bf16.gmra.mxu0 %v572
        %v2459 = vpop.f32.mrf.mxu0
        %v2460 = vadd.f32 %v1744, %v2459
        %v2461 = vpop.f32.mrf.mxu0
        %v2462 = vadd.f32 %v1744, %v2461
        %2463 = vmatmul.bf16.gmra.mxu0 %v575
        %v2464 = vpop.f32.mrf.mxu0
        %v2465 = vadd.f32 %v1744, %v2464
        %v2466 = vpop.f32.mrf.mxu0
        %v2467 = vadd.f32 %v1744, %v2466
        %2468 = vmatmul.bf16.gmra.mxu0 %v578
        %v2469 = vpop.f32.mrf.mxu0
        %v2470 = vadd.f32 %v1744, %v2469
        %v2471 = vpop.f32.mrf.mxu0
        %v2472 = vadd.f32 %v1744, %v2471
        %2473 = vmatmul.bf16.gmra.mxu0 %v581
        %v2474 = vpop.f32.mrf.mxu0
        %v2475 = vadd.f32 %v1744, %v2474
        %v2476 = vpop.f32.mrf.mxu0
        %v2477 = vadd.f32 %v1744, %v2476
        %2478 = vmatmul.bf16.gmra.mxu0 %v584
        %v2479 = vpop.f32.mrf.mxu0
        %v2480 = vadd.f32 %v1744, %v2479
        %v2481 = vpop.f32.mrf.mxu0
        %v2482 = vadd.f32 %v1744, %v2481
        %2483 = vmatmul.bf16.gmra.mxu0 %v587
        %v2484 = vpop.f32.mrf.mxu0
        %v2485 = vadd.f32 %v1744, %v2484
        %v2486 = vpop.f32.mrf.mxu0
        %v2487 = vadd.f32 %v1744, %v2486
        %2488 = vdwg.mxu0
        %2489 = vmatpush.bf16.msra.mxu0 %v2048
        %2490 = vmatpush.bf16.msra.mxu0 %v2044
        %2491 = vmatpush.bf16.msra.mxu0 %v2040
        %2492 = vmatpush.bf16.msra.mxu0 %v2036
        %2493 = vmatpush.bf16.msra.mxu0 %v2032
        %2494 = vmatpush.bf16.msra.mxu0 %v2028
        %2495 = vmatpush.bf16.msra.mxu0 %v2024
        %2496 = vmatpush.bf16.msra.mxu0 %v2020
        %2497 = vmatmul.bf16.gmra.mxu0 %v567
        %v2498 = vpop.f32.mrf.mxu0
        %v2499 = vadd.f32 %v2450, %v2498
        %v2500 = vpop.f32.mrf.mxu0
        %v2501 = vadd.f32 %v2452, %v2500
        %2502 = vmatmul.bf16.gmra.mxu0 %v570
        %v2503 = vpop.f32.mrf.mxu0
        %v2504 = vadd.f32 %v2455, %v2503
        %v2505 = vpop.f32.mrf.mxu0
        %v2506 = vadd.f32 %v2457, %v2505
        %2507 = vmatmul.bf16.gmra.mxu0 %v573
        %v2508 = vpop.f32.mrf.mxu0
        %v2509 = vadd.f32 %v2460, %v2508
        %v2510 = vpop.f32.mrf.mxu0
        %v2511 = vadd.f32 %v2462, %v2510
        %2512 = vmatmul.bf16.gmra.mxu0 %v576
        %v2513 = vpop.f32.mrf.mxu0
        %v2514 = vadd.f32 %v2465, %v2513
        %v2515 = vpop.f32.mrf.mxu0
        %v2516 = vadd.f32 %v2467, %v2515
        %2517 = vmatmul.bf16.gmra.mxu0 %v579
        %v2518 = vpop.f32.mrf.mxu0
        %v2519 = vadd.f32 %v2470, %v2518
        %v2520 = vpop.f32.mrf.mxu0
        %v2521 = vadd.f32 %v2472, %v2520
        %2522 = vmatmul.bf16.gmra.mxu0 %v582
        %v2523 = vpop.f32.mrf.mxu0
        %v2524 = vadd.f32 %v2475, %v2523
        %v2525 = vpop.f32.mrf.mxu0
        %v2526 = vadd.f32 %v2477, %v2525
        %2527 = vmatmul.bf16.gmra.mxu0 %v585
        %v2528 = vpop.f32.mrf.mxu0
        %v2529 = vadd.f32 %v2480, %v2528
        %v2530 = vpop.f32.mrf.mxu0
        %v2531 = vadd.f32 %v2482, %v2530
        %2532 = vmatmul.bf16.gmra.mxu0 %v588
        %v2533 = vpop.f32.mrf.mxu0
        %v2534 = vadd.f32 %v2485, %v2533
        %v2535 = vpop.f32.mrf.mxu0
        %v2536 = vadd.f32 %v2487, %v2535
        %2537 = vdwg.mxu0
        %2538 = vmatpush.bf16.msra.mxu0 0
        %2539 = vmatpush.bf16.msra.mxu0 0
        %2540 = vmatpush.bf16.msra.mxu0 0
        %2541 = vmatpush.bf16.msra.mxu0 0
        %2542 = vmatpush.bf16.msra.mxu0 %v2064
        %2543 = vmatpush.bf16.msra.mxu0 %v2060
        %2544 = vmatpush.bf16.msra.mxu0 %v2056
        %2545 = vmatpush.bf16.msra.mxu0 %v2052
        %2546 = vmatmul.bf16.gmra.mxu0 %v1008
        %v2547 = vpop.f32.mrf.mxu0
        %v2548 = vadd.f32 %v2499, %v2547
        %v2549 = vpop.f32.mrf.mxu0
        %v2550 = vadd.f32 %v2501, %v2549
        %2551 = vmatmul.bf16.gmra.mxu0 %v1011
        %v2552 = vpop.f32.mrf.mxu0
        %v2553 = vadd.f32 %v2504, %v2552
        %v2554 = vpop.f32.mrf.mxu0
        %v2555 = vadd.f32 %v2506, %v2554
        %2556 = vmatmul.bf16.gmra.mxu0 %v1014
        %v2557 = vpop.f32.mrf.mxu0
        %v2558 = vadd.f32 %v2509, %v2557
        %v2559 = vpop.f32.mrf.mxu0
        %v2560 = vadd.f32 %v2511, %v2559
        %2561 = vmatmul.bf16.gmra.mxu0 %v1017
        %v2562 = vpop.f32.mrf.mxu0
        %v2563 = vadd.f32 %v2514, %v2562
        %v2564 = vpop.f32.mrf.mxu0
        %v2565 = vadd.f32 %v2516, %v2564
        %2566 = vmatmul.bf16.gmra.mxu0 %v1020
        %v2567 = vpop.f32.mrf.mxu0
        %v2568 = vadd.f32 %v2519, %v2567
        %v2569 = vpop.f32.mrf.mxu0
        %v2570 = vadd.f32 %v2521, %v2569
        %2571 = vmatmul.bf16.gmra.mxu0 %v1023
        %v2572 = vpop.f32.mrf.mxu0
        %v2573 = vadd.f32 %v2524, %v2572
        %v2574 = vpop.f32.mrf.mxu0
        %v2575 = vadd.f32 %v2526, %v2574
        %2576 = vmatmul.bf16.gmra.mxu0 %v1026
        %v2577 = vpop.f32.mrf.mxu0
        %v2578 = vadd.f32 %v2529, %v2577
        %v2579 = vpop.f32.mrf.mxu0
        %v2580 = vadd.f32 %v2531, %v2579
        %2581 = vmatmul.bf16.gmra.mxu0 %v1029
        %v2582 = vpop.f32.mrf.mxu0
        %v2583 = vadd.f32 %v2534, %v2582
        %v2584 = vpop.f32.mrf.mxu0
        %v2585 = vadd.f32 %v2536, %v2584
        %2586 = vdwg.mxu0
        %2587 = vmatpush.bf16.msra.mxu0 %v2017
        %2588 = vmatpush.bf16.msra.mxu0 %v2013
        %2589 = vmatpush.bf16.msra.mxu0 %v2009
        %2590 = vmatpush.bf16.msra.mxu0 %v2005
        %2591 = vmatpush.bf16.msra.mxu0 %v2001
        %2592 = vmatpush.bf16.msra.mxu0 %v1997
        %2593 = vmatpush.bf16.msra.mxu0 %v1993
        %2594 = vmatpush.bf16.msra.mxu0 %v1989
        %2595 = vmatmul.bf16.gmra.mxu0 %v566
        %v2596 = vpop.f32.mrf.mxu0
        %v2597 = vadd.f32 %v1745, %v2596
        %v2598 = vpop.f32.mrf.mxu0
        %v2599 = vadd.f32 %v1745, %v2598
        %2600 = vmatmul.bf16.gmra.mxu0 %v569
        %v2601 = vpop.f32.mrf.mxu0
        %v2602 = vadd.f32 %v1745, %v2601
        %v2603 = vpop.f32.mrf.mxu0
        %v2604 = vadd.f32 %v1745, %v2603
        %2605 = vmatmul.bf16.gmra.mxu0 %v572
        %v2606 = vpop.f32.mrf.mxu0
        %v2607 = vadd.f32 %v1745, %v2606
        %v2608 = vpop.f32.mrf.mxu0
        %v2609 = vadd.f32 %v1745, %v2608
        %2610 = vmatmul.bf16.gmra.mxu0 %v575
        %v2611 = vpop.f32.mrf.mxu0
        %v2612 = vadd.f32 %v1745, %v2611
        %v2613 = vpop.f32.mrf.mxu0
        %v2614 = vadd.f32 %v1745, %v2613
        %2615 = vmatmul.bf16.gmra.mxu0 %v578
        %v2616 = vpop.f32.mrf.mxu0
        %v2617 = vadd.f32 %v1745, %v2616
        %v2618 = vpop.f32.mrf.mxu0
        %v2619 = vadd.f32 %v1745, %v2618
        %2620 = vmatmul.bf16.gmra.mxu0 %v581
        %v2621 = vpop.f32.mrf.mxu0
        %v2622 = vadd.f32 %v1745, %v2621
        %v2623 = vpop.f32.mrf.mxu0
        %v2624 = vadd.f32 %v1745, %v2623
        %2625 = vmatmul.bf16.gmra.mxu0 %v584
        %v2626 = vpop.f32.mrf.mxu0
        %v2627 = vadd.f32 %v1745, %v2626
        %v2628 = vpop.f32.mrf.mxu0
        %v2629 = vadd.f32 %v1745, %v2628
        %2630 = vmatmul.bf16.gmra.mxu0 %v587
        %v2631 = vpop.f32.mrf.mxu0
        %v2632 = vadd.f32 %v1745, %v2631
        %v2633 = vpop.f32.mrf.mxu0
        %v2634 = vadd.f32 %v1745, %v2633
        %2635 = vdwg.mxu0
        %2636 = vmatpush.bf16.msra.mxu0 %v2049
        %2637 = vmatpush.bf16.msra.mxu0 %v2045
        %2638 = vmatpush.bf16.msra.mxu0 %v2041
        %2639 = vmatpush.bf16.msra.mxu0 %v2037
        %2640 = vmatpush.bf16.msra.mxu0 %v2033
        %2641 = vmatpush.bf16.msra.mxu0 %v2029
        %2642 = vmatpush.bf16.msra.mxu0 %v2025
        %2643 = vmatpush.bf16.msra.mxu0 %v2021
        %2644 = vmatmul.bf16.gmra.mxu0 %v567
        %v2645 = vpop.f32.mrf.mxu0
        %v2646 = vadd.f32 %v2597, %v2645
        %v2647 = vpop.f32.mrf.mxu0
        %v2648 = vadd.f32 %v2599, %v2647
        %2649 = vmatmul.bf16.gmra.mxu0 %v570
        %v2650 = vpop.f32.mrf.mxu0
        %v2651 = vadd.f32 %v2602, %v2650
        %v2652 = vpop.f32.mrf.mxu0
        %v2653 = vadd.f32 %v2604, %v2652
        %2654 = vmatmul.bf16.gmra.mxu0 %v573
        %v2655 = vpop.f32.mrf.mxu0
        %v2656 = vadd.f32 %v2607, %v2655
        %v2657 = vpop.f32.mrf.mxu0
        %v2658 = vadd.f32 %v2609, %v2657
        %2659 = vmatmul.bf16.gmra.mxu0 %v576
        %v2660 = vpop.f32.mrf.mxu0
        %v2661 = vadd.f32 %v2612, %v2660
        %v2662 = vpop.f32.mrf.mxu0
        %v2663 = vadd.f32 %v2614, %v2662
        %2664 = vmatmul.bf16.gmra.mxu0 %v579
        %v2665 = vpop.f32.mrf.mxu0
        %v2666 = vadd.f32 %v2617, %v2665
        %v2667 = vpop.f32.mrf.mxu0
        %v2668 = vadd.f32 %v2619, %v2667
        %2669 = vmatmul.bf16.gmra.mxu0 %v582
        %v2670 = vpop.f32.mrf.mxu0
        %v2671 = vadd.f32 %v2622, %v2670
        %v2672 = vpop.f32.mrf.mxu0
        %v2673 = vadd.f32 %v2624, %v2672
        %2674 = vmatmul.bf16.gmra.mxu0 %v585
        %v2675 = vpop.f32.mrf.mxu0
        %v2676 = vadd.f32 %v2627, %v2675
        %v2677 = vpop.f32.mrf.mxu0
        %v2678 = vadd.f32 %v2629, %v2677
        %2679 = vmatmul.bf16.gmra.mxu0 %v588
        %v2680 = vpop.f32.mrf.mxu0
        %v2681 = vadd.f32 %v2632, %v2680
        %v2682 = vpop.f32.mrf.mxu0
        %v2683 = vadd.f32 %v2634, %v2682
        %2684 = vdwg.mxu0
        %2685 = vmatpush.bf16.msra.mxu0 0
        %2686 = vmatpush.bf16.msra.mxu0 0
        %2687 = vmatpush.bf16.msra.mxu0 0
        %2688 = vmatpush.bf16.msra.mxu0 0
        %2689 = vmatpush.bf16.msra.mxu0 %v2065
        %2690 = vmatpush.bf16.msra.mxu0 %v2061
        %2691 = vmatpush.bf16.msra.mxu0 %v2057
        %2692 = vmatpush.bf16.msra.mxu0 %v2053
        %2693 = vmatmul.bf16.gmra.mxu0 %v1008
        %v2694 = vpop.f32.mrf.mxu0
        %v2695 = vadd.f32 %v2646, %v2694
        %v2696 = vpop.f32.mrf.mxu0
        %v2697 = vadd.f32 %v2648, %v2696
        %2698 = vmatmul.bf16.gmra.mxu0 %v1011
        %v2699 = vpop.f32.mrf.mxu0
        %v2700 = vadd.f32 %v2651, %v2699
        %v2701 = vpop.f32.mrf.mxu0
        %v2702 = vadd.f32 %v2653, %v2701
        %2703 = vmatmul.bf16.gmra.mxu0 %v1014
        %v2704 = vpop.f32.mrf.mxu0
        %v2705 = vadd.f32 %v2656, %v2704
        %v2706 = vpop.f32.mrf.mxu0
        %v2707 = vadd.f32 %v2658, %v2706
        %2708 = vmatmul.bf16.gmra.mxu0 %v1017
        %v2709 = vpop.f32.mrf.mxu0
        %v2710 = vadd.f32 %v2661, %v2709
        %v2711 = vpop.f32.mrf.mxu0
        %v2712 = vadd.f32 %v2663, %v2711
        %2713 = vmatmul.bf16.gmra.mxu0 %v1020
        %v2714 = vpop.f32.mrf.mxu0
        %v2715 = vadd.f32 %v2666, %v2714
        %v2716 = vpop.f32.mrf.mxu0
        %v2717 = vadd.f32 %v2668, %v2716
        %2718 = vmatmul.bf16.gmra.mxu0 %v1023
        %v2719 = vpop.f32.mrf.mxu0
        %v2720 = vadd.f32 %v2671, %v2719
        %v2721 = vpop.f32.mrf.mxu0
        %v2722 = vadd.f32 %v2673, %v2721
        %2723 = vmatmul.bf16.gmra.mxu0 %v1026
        %v2724 = vpop.f32.mrf.mxu0
        %v2725 = vadd.f32 %v2676, %v2724
        %v2726 = vpop.f32.mrf.mxu0
        %v2727 = vadd.f32 %v2678, %v2726
        %2728 = vmatmul.bf16.gmra.mxu0 %v1029
        %v2729 = vpop.f32.mrf.mxu0
        %v2730 = vadd.f32 %v2681, %v2729
        %v2731 = vpop.f32.mrf.mxu0
        %v2732 = vadd.f32 %v2683, %v2731
        %2733 = vdwg.mxu0
        %v2734 = vpack.c.bf16 %v2401, %v2254
        %v2735 = vpack.c.bf16 %v2695, %v2548
        %v2736 = vpack.c.bf16 %v2403, %v2256
        %v2737 = vpack.c.bf16 %v2697, %v2550
        %v2738 = vpack.c.bf16 %v2406, %v2259
        %v2739 = vpack.c.bf16 %v2700, %v2553
        %v2740 = vpack.c.bf16 %v2408, %v2261
        %v2741 = vpack.c.bf16 %v2702, %v2555
        %v2742 = vpack.c.bf16 %v2411, %v2264
        %v2743 = vpack.c.bf16 %v2705, %v2558
        %v2744 = vpack.c.bf16 %v2413, %v2266
        %v2745 = vpack.c.bf16 %v2707, %v2560
        %v2746 = vpack.c.bf16 %v2416, %v2269
        %v2747 = vpack.c.bf16 %v2710, %v2563
        %v2748 = vpack.c.bf16 %v2418, %v2271
        %v2749 = vpack.c.bf16 %v2712, %v2565
        %v2750 = vpack.c.bf16 %v2421, %v2274
        %v2751 = vpack.c.bf16 %v2715, %v2568
        %v2752 = vpack.c.bf16 %v2423, %v2276
        %v2753 = vpack.c.bf16 %v2717, %v2570
        %v2754 = vpack.c.bf16 %v2426, %v2279
        %v2755 = vpack.c.bf16 %v2720, %v2573
        %v2756 = vpack.c.bf16 %v2428, %v2281
        %v2757 = vpack.c.bf16 %v2722, %v2575
        %v2758 = vpack.c.bf16 %v2431, %v2284
        %v2759 = vpack.c.bf16 %v2725, %v2578
        %v2760 = vpack.c.bf16 %v2433, %v2286
        %v2761 = vpack.c.bf16 %v2727, %v2580
        %v2762 = vpack.c.bf16 %v2436, %v2289
        %v2763 = vpack.c.bf16 %v2730, %v2583
        %v2764 = vpack.c.bf16 %v2438, %v2291
        %v2765 = vpack.c.bf16 %v2732, %v2585
        %v2766 = vld [vmem:[#allocation5] sm:$0xff]
        %v2767 = vld [vmem:[#allocation5 + $0x8] sm:$0xff]
        %v2768 = vld [vmem:[#allocation5 + $0x10] sm:$0xff]
        %v2769 = vld [vmem:[#allocation5 + $0x18] sm:$0xff]
        %v2770 = vld [vmem:[#allocation5 + $0x20] sm:$0xff]
        %v2771 = vld [vmem:[#allocation5 + $0x28] sm:$0xff]
        %v2772 = vld [vmem:[#allocation5 + $0x30] sm:$0xff]
        %v2773 = vld [vmem:[#allocation5 + $0x38] sm:$0xff]
        %v2774 = vld [vmem:[#allocation5 + $0x40] sm:$0xff]
        %v2775 = vld [vmem:[#allocation5 + $0x48] sm:$0xff]
        %v2776 = vld [vmem:[#allocation5 + $0x50] sm:$0xff]
        %v2777 = vld [vmem:[#allocation5 + $0x58] sm:$0xff]
        %v2778 = vld [vmem:[#allocation5 + $0x60] sm:$0xff]
        %v2779 = vld [vmem:[#allocation5 + $0x68] sm:$0xff]
        %v2780 = vld [vmem:[#allocation5 + $0x70] sm:$0xff]
        %v2781 = vld [vmem:[#allocation5 + $0x78] sm:$0xff]
        %v2782 = vld [vmem:[#allocation5 + $0x80] sm:$0xff]
        %v2783 = vld [vmem:[#allocation5 + $0x88] sm:$0xff]
        %v2784 = vld [vmem:[#allocation5 + $0x90] sm:$0xff]
        %v2785 = vld [vmem:[#allocation5 + $0x98] sm:$0xff]
        %v2786 = vld [vmem:[#allocation5 + $0xa0] sm:$0xff]
        %v2787 = vld [vmem:[#allocation5 + $0xa8] sm:$0xff]
        %v2788 = vld [vmem:[#allocation5 + $0xb0] sm:$0xff]
        %v2789 = vld [vmem:[#allocation5 + $0xb8] sm:$0xff]
        %v2790 = vld [vmem:[#allocation5 + $0xc0] sm:$0xff]
        %v2791 = vld [vmem:[#allocation5 + $0xc8] sm:$0xff]
        %v2792 = vld [vmem:[#allocation5 + $0xd0] sm:$0xff]
        %v2793 = vld [vmem:[#allocation5 + $0xd8] sm:$0xff]
        %v2794 = vld [vmem:[#allocation5 + $0xe0] sm:$0xff]
        %v2795 = vld [vmem:[#allocation5 + $0xe8] sm:$0xff]
        %v2796 = vld [vmem:[#allocation5 + $0xf0] sm:$0xff]
        %v2797 = vld [vmem:[#allocation5 + $0xf8] sm:$0xff]
        %v2798 = vld [vmem:[#allocation5 + $0x100] sm:$0xff]
        %v2799 = vld [vmem:[#allocation5 + $0x108] sm:$0xff]
        %v2800 = vld [vmem:[#allocation5 + $0x110] sm:$0xff]
        %v2801 = vld [vmem:[#allocation5 + $0x118] sm:$0xff]
        %v2802 = vld [vmem:[#allocation5 + $0x120] sm:$0xff]
        %v2803 = vld [vmem:[#allocation5 + $0x128] sm:$0xff]
        %v2804 = vld [vmem:[#allocation5 + $0x130] sm:$0xff]
        %v2805 = vld [vmem:[#allocation5 + $0x138] sm:$0xff]
        %v2806 = vld [vmem:[#allocation5 + $0x140] sm:$0xff]
        %v2807 = vld [vmem:[#allocation5 + $0x148] sm:$0xff]
        %v2808 = vld [vmem:[#allocation5 + $0x150] sm:$0xff]
        %v2809 = vld [vmem:[#allocation5 + $0x158] sm:$0xff]
        %v2810 = vld [vmem:[#allocation5 + $0x160] sm:$0xff]
        %v2811 = vld [vmem:[#allocation5 + $0x168] sm:$0xff]
        %v2812 = vld [vmem:[#allocation5 + $0x170] sm:$0xff]
        %v2813 = vld [vmem:[#allocation5 + $0x178] sm:$0xff]
        %v2814 = vld [vmem:[#allocation5 + $0x180] sm:$0xff]
        %v2815 = vld [vmem:[#allocation5 + $0x188] sm:$0xff]
        %v2816 = vld [vmem:[#allocation5 + $0x190] sm:$0xff]
        %v2817 = vld [vmem:[#allocation5 + $0x198] sm:$0xff]
        %v2818 = vld [vmem:[#allocation5 + $0x1a0] sm:$0xff]
        %v2819 = vld [vmem:[#allocation5 + $0x1a8] sm:$0xff]
        %v2820 = vld [vmem:[#allocation5 + $0x1b0] sm:$0xff]
        %v2821 = vld [vmem:[#allocation5 + $0x1b8] sm:$0xff]
        %v2822 = vld [vmem:[#allocation5 + $0x1c0] sm:$0xff]
        %v2823 = vld [vmem:[#allocation5 + $0x1c8] sm:$0xff]
        %v2824 = vld [vmem:[#allocation5 + $0x1d0] sm:$0xff]
        %v2825 = vld [vmem:[#allocation5 + $0x1d8] sm:$0xff]
        %v2826 = vld [vmem:[#allocation5 + $0x1e0] sm:$0xff]
        %v2827 = vld [vmem:[#allocation5 + $0x1e8] sm:$0xff]
        %v2828 = vld [vmem:[#allocation5 + $0x1f0] sm:$0xff]
        %v2829 = vld [vmem:[#allocation5 + $0x1f8] sm:$0xff]
        %v2830 = vld [vmem:[#allocation5 + $0x200] sm:$0xff]
        %v2831 = vld [vmem:[#allocation5 + $0x208] sm:$0xff]
        %v2832 = vld [vmem:[#allocation5 + $0x210] sm:$0xff]
        %v2833 = vld [vmem:[#allocation5 + $0x218] sm:$0xff]
        %v2834 = vld [vmem:[#allocation5 + $0x220] sm:$0xff]
        %v2835 = vld [vmem:[#allocation5 + $0x228] sm:$0xff]
        %v2836 = vld [vmem:[#allocation5 + $0x230] sm:$0xff]
        %v2837 = vld [vmem:[#allocation5 + $0x238] sm:$0xff]
        %v2838 = vld [vmem:[#allocation5 + $0x240] sm:$0xff]
        %v2839 = vld [vmem:[#allocation5 + $0x248] sm:$0xff]
        %v2840 = vld [vmem:[#allocation5 + $0x250] sm:$0xff]
        %v2841 = vld [vmem:[#allocation5 + $0x258] sm:$0xff]
        %v2842 = vld [vmem:[#allocation5 + $0x260] sm:$0xff]
        %v2843 = vld [vmem:[#allocation5 + $0x268] sm:$0xff]
        %v2844 = vld [vmem:[#allocation5 + $0x270] sm:$0xff]
        %v2845 = vld [vmem:[#allocation5 + $0x278] sm:$0xff]
        %v2846 = vld [vmem:[%s6] sm:$0xf]
        %v2847 = vunpack.c.l.bf16 %v2846
        %v2849 = vperm.slane %v2847, 0
        %v2850 = vperm.slane %v2847, 2
        %v2851 = vperm.slane %v2847, 4
        %v2852 = vperm.slane %v2847, 6
        %v2857 = vperm.slane %v2849, 0
        %v2858 = vperm.slane %v2850, 0
        %v2859 = vperm.slane %v2851, 0
        %v2860 = vperm.slane %v2852, 0
        %v2941 = vunpack.c.l.b16 %v2766
        %v2942 = vunpack.c.h.b16 %v2766
        %v2943 = vunpack.c.l.b16 %v2767
        %v2944 = vunpack.c.h.b16 %v2767
        %v2945 = vunpack.c.l.b16 %v2768
        %v2946 = vunpack.c.h.b16 %v2768
        %v2947 = vunpack.c.l.b16 %v2769
        %v2948 = vunpack.c.h.b16 %v2769
        %v2949 = vunpack.c.l.b16 %v2770
        %v2950 = vunpack.c.h.b16 %v2770
        %v2951 = vunpack.c.l.b16 %v2771
        %v2952 = vunpack.c.h.b16 %v2771
        %v2953 = vunpack.c.l.b16 %v2772
        %v2954 = vunpack.c.h.b16 %v2772
        %v2955 = vunpack.c.l.b16 %v2773
        %v2956 = vunpack.c.h.b16 %v2773
        %v2957 = vunpack.c.l.b16 %v2774
        %v2958 = vunpack.c.h.b16 %v2774
        %v2959 = vunpack.c.l.b16 %v2775
        %v2960 = vunpack.c.h.b16 %v2775
        %v2961 = vunpack.c.l.b16 %v2776
        %v2962 = vunpack.c.h.b16 %v2776
        %v2963 = vunpack.c.l.b16 %v2777
        %v2964 = vunpack.c.h.b16 %v2777
        %v2965 = vunpack.c.l.b16 %v2778
        %v2966 = vunpack.c.h.b16 %v2778
        %v2967 = vunpack.c.l.b16 %v2779
        %v2968 = vunpack.c.h.b16 %v2779
        %v2969 = vunpack.c.l.b16 %v2780
        %v2970 = vunpack.c.h.b16 %v2780
        %v2971 = vunpack.c.l.b16 %v2781
        %v2972 = vunpack.c.h.b16 %v2781
        %v2973 = vunpack.c.l.b16 %v2782
        %v2974 = vunpack.c.h.b16 %v2782
        %v2975 = vunpack.c.l.b16 %v2783
        %v2976 = vunpack.c.h.b16 %v2783
        %v2977 = vunpack.c.l.b16 %v2784
        %v2978 = vunpack.c.h.b16 %v2784
        %v2979 = vunpack.c.l.b16 %v2785
        %v2980 = vunpack.c.h.b16 %v2785
        %v2981 = vunpack.c.l.b16 %v2786
        %v2982 = vunpack.c.h.b16 %v2786
        %v2983 = vunpack.c.l.b16 %v2787
        %v2984 = vunpack.c.h.b16 %v2787
        %v2985 = vunpack.c.l.b16 %v2788
        %v2986 = vunpack.c.h.b16 %v2788
        %v2987 = vunpack.c.l.b16 %v2789
        %v2988 = vunpack.c.h.b16 %v2789
        %v2989 = vunpack.c.l.b16 %v2790
        %v2990 = vunpack.c.h.b16 %v2790
        %v2991 = vunpack.c.l.b16 %v2791
        %v2992 = vunpack.c.h.b16 %v2791
        %v2993 = vunpack.c.l.b16 %v2792
        %v2994 = vunpack.c.h.b16 %v2792
        %v2995 = vunpack.c.l.b16 %v2793
        %v2996 = vunpack.c.h.b16 %v2793
        %v2997 = vunpack.c.l.b16 %v2794
        %v2998 = vunpack.c.h.b16 %v2794
        %v2999 = vunpack.c.l.b16 %v2795
        %v3000 = vunpack.c.h.b16 %v2795
        %v3001 = vunpack.c.l.b16 %v2796
        %v3002 = vunpack.c.h.b16 %v2796
        %v3003 = vunpack.c.l.b16 %v2797
        %v3004 = vunpack.c.h.b16 %v2797
        %v3005 = vunpack.c.l.b16 %v2798
        %v3006 = vunpack.c.h.b16 %v2798
        %v3007 = vunpack.c.l.b16 %v2799
        %v3008 = vunpack.c.h.b16 %v2799
        %v3009 = vunpack.c.l.b16 %v2800
        %v3010 = vunpack.c.h.b16 %v2800
        %v3011 = vunpack.c.l.b16 %v2801
        %v3012 = vunpack.c.h.b16 %v2801
        %v3013 = vunpack.c.l.b16 %v2802
        %v3014 = vunpack.c.h.b16 %v2802
        %v3015 = vunpack.c.l.b16 %v2803
        %v3016 = vunpack.c.h.b16 %v2803
        %v3017 = vunpack.c.l.b16 %v2804
        %v3018 = vunpack.c.h.b16 %v2804
        %v3019 = vunpack.c.l.b16 %v2805
        %v3020 = vunpack.c.h.b16 %v2805
        %v3021 = vunpack.c.l.b16 %v2806
        %v3022 = vunpack.c.h.b16 %v2806
        %v3023 = vunpack.c.l.b16 %v2807
        %v3024 = vunpack.c.h.b16 %v2807
        %v3025 = vunpack.c.l.b16 %v2808
        %v3026 = vunpack.c.h.b16 %v2808
        %v3027 = vunpack.c.l.b16 %v2809
        %v3028 = vunpack.c.h.b16 %v2809
        %v3029 = vunpack.c.l.b16 %v2810
        %v3030 = vunpack.c.h.b16 %v2810
        %v3031 = vunpack.c.l.b16 %v2811
        %v3032 = vunpack.c.h.b16 %v2811
        %v3033 = vunpack.c.l.b16 %v2812
        %v3034 = vunpack.c.h.b16 %v2812
        %v3035 = vunpack.c.l.b16 %v2813
        %v3036 = vunpack.c.h.b16 %v2813
        %v3037 = vunpack.c.l.b16 %v2814
        %v3038 = vunpack.c.h.b16 %v2814
        %v3039 = vunpack.c.l.b16 %v2815
        %v3040 = vunpack.c.h.b16 %v2815
        %v3041 = vunpack.c.l.b16 %v2816
        %v3042 = vunpack.c.h.b16 %v2816
        %v3043 = vunpack.c.l.b16 %v2817
        %v3044 = vunpack.c.h.b16 %v2817
        %v3045 = vunpack.c.l.b16 %v2818
        %v3046 = vunpack.c.h.b16 %v2818
        %v3047 = vunpack.c.l.b16 %v2819
        %v3048 = vunpack.c.h.b16 %v2819
        %v3049 = vunpack.c.l.b16 %v2820
        %v3050 = vunpack.c.h.b16 %v2820
        %v3051 = vunpack.c.l.b16 %v2821
        %v3052 = vunpack.c.h.b16 %v2821
        %v3053 = vunpack.c.l.b16 %v2822
        %v3054 = vunpack.c.h.b16 %v2822
        %v3055 = vunpack.c.l.b16 %v2823
        %v3056 = vunpack.c.h.b16 %v2823
        %v3057 = vunpack.c.l.b16 %v2824
        %v3058 = vunpack.c.h.b16 %v2824
        %v3059 = vunpack.c.l.b16 %v2825
        %v3060 = vunpack.c.h.b16 %v2825
        %v3061 = vunpack.c.l.b16 %v2826
        %v3062 = vunpack.c.h.b16 %v2826
        %v3063 = vunpack.c.l.b16 %v2827
        %v3064 = vunpack.c.h.b16 %v2827
        %v3065 = vunpack.c.l.b16 %v2828
        %v3066 = vunpack.c.h.b16 %v2828
        %v3067 = vunpack.c.l.b16 %v2829
        %v3068 = vunpack.c.h.b16 %v2829
        %v3069 = vunpack.c.l.b16 %v2830
        %v3070 = vunpack.c.h.b16 %v2830
        %v3071 = vunpack.c.l.b16 %v2831
        %v3072 = vunpack.c.h.b16 %v2831
        %v3073 = vunpack.c.l.b16 %v2832
        %v3074 = vunpack.c.h.b16 %v2832
        %v3075 = vunpack.c.l.b16 %v2833
        %v3076 = vunpack.c.h.b16 %v2833
        %v3077 = vunpack.c.l.b16 %v2834
        %v3078 = vunpack.c.h.b16 %v2834
        %v3079 = vunpack.c.l.b16 %v2835
        %v3080 = vunpack.c.h.b16 %v2835
        %v3081 = vunpack.c.l.b16 %v2836
        %v3082 = vunpack.c.h.b16 %v2836
        %v3083 = vunpack.c.l.b16 %v2837
        %v3084 = vunpack.c.h.b16 %v2837
        %v3085 = vunpack.c.l.b16 %v2838
        %v3086 = vunpack.c.h.b16 %v2838
        %v3087 = vunpack.c.l.b16 %v2839
        %v3088 = vunpack.c.h.b16 %v2839
        %v3089 = vunpack.c.l.b16 %v2840
        %v3090 = vunpack.c.h.b16 %v2840
        %v3091 = vunpack.c.l.b16 %v2841
        %v3092 = vunpack.c.h.b16 %v2841
        %v3093 = vunpack.c.l.b16 %v2842
        %v3094 = vunpack.c.h.b16 %v2842
        %v3095 = vunpack.c.l.b16 %v2843
        %v3096 = vunpack.c.h.b16 %v2843
        %v3097 = vunpack.c.l.b16 %v2844
        %v3098 = vunpack.c.h.b16 %v2844
        %v3099 = vunpack.c.l.b16 %v2845
        %v3100 = vunpack.c.h.b16 %v2845
        %v3101 = vpack.c.b16 %v2945, %v2941
        %v3102 = vpack.c.b16 %v2946, %v2942
        %v3103 = vpack.c.b16 %v2947, %v2943
        %v3104 = vpack.c.b16 %v2948, %v2944
        %v3105 = vpack.c.b16 %v2953, %v2949
        %v3106 = vpack.c.b16 %v2954, %v2950
        %v3107 = vpack.c.b16 %v2955, %v2951
        %v3108 = vpack.c.b16 %v2956, %v2952
        %v3109 = vpack.c.b16 %v2961, %v2957
        %v3110 = vpack.c.b16 %v2962, %v2958
        %v3111 = vpack.c.b16 %v2963, %v2959
        %v3112 = vpack.c.b16 %v2964, %v2960
        %v3113 = vpack.c.b16 %v2969, %v2965
        %v3114 = vpack.c.b16 %v2970, %v2966
        %v3115 = vpack.c.b16 %v2971, %v2967
        %v3116 = vpack.c.b16 %v2972, %v2968
        %v3117 = vpack.c.b16 %v2977, %v2973
        %v3118 = vpack.c.b16 %v2978, %v2974
        %v3119 = vpack.c.b16 %v2979, %v2975
        %v3120 = vpack.c.b16 %v2980, %v2976
        %v3121 = vpack.c.b16 %v2985, %v2981
        %v3122 = vpack.c.b16 %v2986, %v2982
        %v3123 = vpack.c.b16 %v2987, %v2983
        %v3124 = vpack.c.b16 %v2988, %v2984
        %v3125 = vpack.c.b16 %v2993, %v2989
        %v3126 = vpack.c.b16 %v2994, %v2990
        %v3127 = vpack.c.b16 %v2995, %v2991
        %v3128 = vpack.c.b16 %v2996, %v2992
        %v3129 = vpack.c.b16 %v3001, %v2997
        %v3130 = vpack.c.b16 %v3002, %v2998
        %v3131 = vpack.c.b16 %v3003, %v2999
        %v3132 = vpack.c.b16 %v3004, %v3000
        %v3133 = vpack.c.b16 %v3009, %v3005
        %v3134 = vpack.c.b16 %v3010, %v3006
        %v3135 = vpack.c.b16 %v3011, %v3007
        %v3136 = vpack.c.b16 %v3012, %v3008
        %v3137 = vpack.c.b16 %v3017, %v3013
        %v3138 = vpack.c.b16 %v3018, %v3014
        %v3139 = vpack.c.b16 %v3019, %v3015
        %v3140 = vpack.c.b16 %v3020, %v3016
        %v3141 = vpack.c.b16 %v3025, %v3021
        %v3142 = vpack.c.b16 %v3026, %v3022
        %v3143 = vpack.c.b16 %v3027, %v3023
        %v3144 = vpack.c.b16 %v3028, %v3024
        %v3145 = vpack.c.b16 %v3033, %v3029
        %v3146 = vpack.c.b16 %v3034, %v3030
        %v3147 = vpack.c.b16 %v3035, %v3031
        %v3148 = vpack.c.b16 %v3036, %v3032
        %v3149 = vpack.c.b16 %v3041, %v3037
        %v3150 = vpack.c.b16 %v3042, %v3038
        %v3151 = vpack.c.b16 %v3043, %v3039
        %v3152 = vpack.c.b16 %v3044, %v3040
        %v3153 = vpack.c.b16 %v3049, %v3045
        %v3154 = vpack.c.b16 %v3050, %v3046
        %v3155 = vpack.c.b16 %v3051, %v3047
        %v3156 = vpack.c.b16 %v3052, %v3048
        %v3157 = vpack.c.b16 %v3057, %v3053
        %v3158 = vpack.c.b16 %v3058, %v3054
        %v3159 = vpack.c.b16 %v3059, %v3055
        %v3160 = vpack.c.b16 %v3060, %v3056
        %v3161 = vpack.c.b16 %v3065, %v3061
        %v3162 = vpack.c.b16 %v3066, %v3062
        %v3163 = vpack.c.b16 %v3067, %v3063
        %v3164 = vpack.c.b16 %v3068, %v3064
        %v3165 = vpack.c.b16 %v3073, %v3069
        %v3166 = vpack.c.b16 %v3074, %v3070
        %v3167 = vpack.c.b16 %v3075, %v3071
        %v3168 = vpack.c.b16 %v3076, %v3072
        %v3169 = vpack.c.b16 %v3081, %v3077
        %v3170 = vpack.c.b16 %v3082, %v3078
        %v3171 = vpack.c.b16 %v3083, %v3079
        %v3172 = vpack.c.b16 %v3084, %v3080
        %v3173 = vpack.c.b16 %v3089, %v3085
        %v3174 = vpack.c.b16 %v3090, %v3086
        %v3175 = vpack.c.b16 %v3091, %v3087
        %v3176 = vpack.c.b16 %v3092, %v3088
        %v3177 = vpack.c.b16 %v3097, %v3093
        %v3178 = vpack.c.b16 %v3098, %v3094
        %v3179 = vpack.c.b16 %v3099, %v3095
        %v3180 = vpack.c.b16 %v3100, %v3096
        %3261 = vmatpush.bf16.msra.mxu0 %v3129
        %3262 = vmatpush.bf16.msra.mxu0 %v3125
        %3263 = vmatpush.bf16.msra.mxu0 %v3121
        %3264 = vmatpush.bf16.msra.mxu0 %v3117
        %3265 = vmatpush.bf16.msra.mxu0 %v3113
        %3266 = vmatpush.bf16.msra.mxu0 %v3109
        %3267 = vmatpush.bf16.msra.mxu0 %v3105
        %3268 = vmatpush.bf16.msra.mxu0 %v3101
        %3269 = vmatmul.bf16.gmra.mxu0 %v566
        %v3270 = vpop.f32.mrf.mxu0
        %v3271 = vadd.f32 %v2857, %v3270
        %v3272 = vpop.f32.mrf.mxu0
        %v3273 = vadd.f32 %v2857, %v3272
        %3274 = vmatmul.bf16.gmra.mxu0 %v569
        %v3275 = vpop.f32.mrf.mxu0
        %v3276 = vadd.f32 %v2857, %v3275
        %v3277 = vpop.f32.mrf.mxu0
        %v3278 = vadd.f32 %v2857, %v3277
        %3279 = vmatmul.bf16.gmra.mxu0 %v572
        %v3280 = vpop.f32.mrf.mxu0
        %v3281 = vadd.f32 %v2857, %v3280
        %v3282 = vpop.f32.mrf.mxu0
        %v3283 = vadd.f32 %v2857, %v3282
        %3284 = vmatmul.bf16.gmra.mxu0 %v575
        %v3285 = vpop.f32.mrf.mxu0
        %v3286 = vadd.f32 %v2857, %v3285
        %v3287 = vpop.f32.mrf.mxu0
        %v3288 = vadd.f32 %v2857, %v3287
        %3289 = vmatmul.bf16.gmra.mxu0 %v578
        %v3290 = vpop.f32.mrf.mxu0
        %v3291 = vadd.f32 %v2857, %v3290
        %v3292 = vpop.f32.mrf.mxu0
        %v3293 = vadd.f32 %v2857, %v3292
        %3294 = vmatmul.bf16.gmra.mxu0 %v581
        %v3295 = vpop.f32.mrf.mxu0
        %v3296 = vadd.f32 %v2857, %v3295
        %v3297 = vpop.f32.mrf.mxu0
        %v3298 = vadd.f32 %v2857, %v3297
        %3299 = vmatmul.bf16.gmra.mxu0 %v584
        %v3300 = vpop.f32.mrf.mxu0
        %v3301 = vadd.f32 %v2857, %v3300
        %v3302 = vpop.f32.mrf.mxu0
        %v3303 = vadd.f32 %v2857, %v3302
        %3304 = vmatmul.bf16.gmra.mxu0 %v587
        %v3305 = vpop.f32.mrf.mxu0
        %v3306 = vadd.f32 %v2857, %v3305
        %v3307 = vpop.f32.mrf.mxu0
        %v3308 = vadd.f32 %v2857, %v3307
        %3309 = vdwg.mxu0
        %3310 = vmatpush.bf16.msra.mxu0 %v3161
        %3311 = vmatpush.bf16.msra.mxu0 %v3157
        %3312 = vmatpush.bf16.msra.mxu0 %v3153
        %3313 = vmatpush.bf16.msra.mxu0 %v3149
        %3314 = vmatpush.bf16.msra.mxu0 %v3145
        %3315 = vmatpush.bf16.msra.mxu0 %v3141
        %3316 = vmatpush.bf16.msra.mxu0 %v3137
        %3317 = vmatpush.bf16.msra.mxu0 %v3133
        %3318 = vmatmul.bf16.gmra.mxu0 %v567
        %v3319 = vpop.f32.mrf.mxu0
        %v3320 = vadd.f32 %v3271, %v3319
        %v3321 = vpop.f32.mrf.mxu0
        %v3322 = vadd.f32 %v3273, %v3321
        %3323 = vmatmul.bf16.gmra.mxu0 %v570
        %v3324 = vpop.f32.mrf.mxu0
        %v3325 = vadd.f32 %v3276, %v3324
        %v3326 = vpop.f32.mrf.mxu0
        %v3327 = vadd.f32 %v3278, %v3326
        %3328 = vmatmul.bf16.gmra.mxu0 %v573
        %v3329 = vpop.f32.mrf.mxu0
        %v3330 = vadd.f32 %v3281, %v3329
        %v3331 = vpop.f32.mrf.mxu0
        %v3332 = vadd.f32 %v3283, %v3331
        %3333 = vmatmul.bf16.gmra.mxu0 %v576
        %v3334 = vpop.f32.mrf.mxu0
        %v3335 = vadd.f32 %v3286, %v3334
        %v3336 = vpop.f32.mrf.mxu0
        %v3337 = vadd.f32 %v3288, %v3336
        %3338 = vmatmul.bf16.gmra.mxu0 %v579
        %v3339 = vpop.f32.mrf.mxu0
        %v3340 = vadd.f32 %v3291, %v3339
        %v3341 = vpop.f32.mrf.mxu0
        %v3342 = vadd.f32 %v3293, %v3341
        %3343 = vmatmul.bf16.gmra.mxu0 %v582
        %v3344 = vpop.f32.mrf.mxu0
        %v3345 = vadd.f32 %v3296, %v3344
        %v3346 = vpop.f32.mrf.mxu0
        %v3347 = vadd.f32 %v3298, %v3346
        %3348 = vmatmul.bf16.gmra.mxu0 %v585
        %v3349 = vpop.f32.mrf.mxu0
        %v3350 = vadd.f32 %v3301, %v3349
        %v3351 = vpop.f32.mrf.mxu0
        %v3352 = vadd.f32 %v3303, %v3351
        %3353 = vmatmul.bf16.gmra.mxu0 %v588
        %v3354 = vpop.f32.mrf.mxu0
        %v3355 = vadd.f32 %v3306, %v3354
        %v3356 = vpop.f32.mrf.mxu0
        %v3357 = vadd.f32 %v3308, %v3356
        %3358 = vdwg.mxu0
        %3359 = vmatpush.bf16.msra.mxu0 0
        %3360 = vmatpush.bf16.msra.mxu0 0
        %3361 = vmatpush.bf16.msra.mxu0 0
        %3362 = vmatpush.bf16.msra.mxu0 0
        %3363 = vmatpush.bf16.msra.mxu0 %v3177
        %3364 = vmatpush.bf16.msra.mxu0 %v3173
        %3365 = vmatpush.bf16.msra.mxu0 %v3169
        %3366 = vmatpush.bf16.msra.mxu0 %v3165
        %3367 = vmatmul.bf16.gmra.mxu0 %v1008
        %v3368 = vpop.f32.mrf.mxu0
        %v3369 = vadd.f32 %v3320, %v3368
        %v3370 = vpop.f32.mrf.mxu0
        %v3371 = vadd.f32 %v3322, %v3370
        %3372 = vmatmul.bf16.gmra.mxu0 %v1011
        %v3373 = vpop.f32.mrf.mxu0
        %v3374 = vadd.f32 %v3325, %v3373
        %v3375 = vpop.f32.mrf.mxu0
        %v3376 = vadd.f32 %v3327, %v3375
        %3377 = vmatmul.bf16.gmra.mxu0 %v1014
        %v3378 = vpop.f32.mrf.mxu0
        %v3379 = vadd.f32 %v3330, %v3378
        %v3380 = vpop.f32.mrf.mxu0
        %v3381 = vadd.f32 %v3332, %v3380
        %3382 = vmatmul.bf16.gmra.mxu0 %v1017
        %v3383 = vpop.f32.mrf.mxu0
        %v3384 = vadd.f32 %v3335, %v3383
        %v3385 = vpop.f32.mrf.mxu0
        %v3386 = vadd.f32 %v3337, %v3385
        %3387 = vmatmul.bf16.gmra.mxu0 %v1020
        %v3388 = vpop.f32.mrf.mxu0
        %v3389 = vadd.f32 %v3340, %v3388
        %v3390 = vpop.f32.mrf.mxu0
        %v3391 = vadd.f32 %v3342, %v3390
        %3392 = vmatmul.bf16.gmra.mxu0 %v1023
        %v3393 = vpop.f32.mrf.mxu0
        %v3394 = vadd.f32 %v3345, %v3393
        %v3395 = vpop.f32.mrf.mxu0
        %v3396 = vadd.f32 %v3347, %v3395
        %3397 = vmatmul.bf16.gmra.mxu0 %v1026
        %v3398 = vpop.f32.mrf.mxu0
        %v3399 = vadd.f32 %v3350, %v3398
        %v3400 = vpop.f32.mrf.mxu0
        %v3401 = vadd.f32 %v3352, %v3400
        %3402 = vmatmul.bf16.gmra.mxu0 %v1029
        %v3403 = vpop.f32.mrf.mxu0
        %v3404 = vadd.f32 %v3355, %v3403
        %v3405 = vpop.f32.mrf.mxu0
        %v3406 = vadd.f32 %v3357, %v3405
        %3407 = vdwg.mxu0
        %3408 = vmatpush.bf16.msra.mxu0 %v3130
        %3409 = vmatpush.bf16.msra.mxu0 %v3126
        %3410 = vmatpush.bf16.msra.mxu0 %v3122
        %3411 = vmatpush.bf16.msra.mxu0 %v3118
        %3412 = vmatpush.bf16.msra.mxu0 %v3114
        %3413 = vmatpush.bf16.msra.mxu0 %v3110
        %3414 = vmatpush.bf16.msra.mxu0 %v3106
        %3415 = vmatpush.bf16.msra.mxu0 %v3102
        %3416 = vmatmul.bf16.gmra.mxu0 %v566
        %v3417 = vpop.f32.mrf.mxu0
        %v3418 = vadd.f32 %v2858, %v3417
        %v3419 = vpop.f32.mrf.mxu0
        %v3420 = vadd.f32 %v2858, %v3419
        %3421 = vmatmul.bf16.gmra.mxu0 %v569
        %v3422 = vpop.f32.mrf.mxu0
        %v3423 = vadd.f32 %v2858, %v3422
        %v3424 = vpop.f32.mrf.mxu0
        %v3425 = vadd.f32 %v2858, %v3424
        %3426 = vmatmul.bf16.gmra.mxu0 %v572
        %v3427 = vpop.f32.mrf.mxu0
        %v3428 = vadd.f32 %v2858, %v3427
        %v3429 = vpop.f32.mrf.mxu0
        %v3430 = vadd.f32 %v2858, %v3429
        %3431 = vmatmul.bf16.gmra.mxu0 %v575
        %v3432 = vpop.f32.mrf.mxu0
        %v3433 = vadd.f32 %v2858, %v3432
        %v3434 = vpop.f32.mrf.mxu0
        %v3435 = vadd.f32 %v2858, %v3434
        %3436 = vmatmul.bf16.gmra.mxu0 %v578
        %v3437 = vpop.f32.mrf.mxu0
        %v3438 = vadd.f32 %v2858, %v3437
        %v3439 = vpop.f32.mrf.mxu0
        %v3440 = vadd.f32 %v2858, %v3439
        %3441 = vmatmul.bf16.gmra.mxu0 %v581
        %v3442 = vpop.f32.mrf.mxu0
        %v3443 = vadd.f32 %v2858, %v3442
        %v3444 = vpop.f32.mrf.mxu0
        %v3445 = vadd.f32 %v2858, %v3444
        %3446 = vmatmul.bf16.gmra.mxu0 %v584
        %v3447 = vpop.f32.mrf.mxu0
        %v3448 = vadd.f32 %v2858, %v3447
        %v3449 = vpop.f32.mrf.mxu0
        %v3450 = vadd.f32 %v2858, %v3449
        %3451 = vmatmul.bf16.gmra.mxu0 %v587
        %v3452 = vpop.f32.mrf.mxu0
        %v3453 = vadd.f32 %v2858, %v3452
        %v3454 = vpop.f32.mrf.mxu0
        %v3455 = vadd.f32 %v2858, %v3454
        %3456 = vdwg.mxu0
        %3457 = vmatpush.bf16.msra.mxu0 %v3162
        %3458 = vmatpush.bf16.msra.mxu0 %v3158
        %3459 = vmatpush.bf16.msra.mxu0 %v3154
        %3460 = vmatpush.bf16.msra.mxu0 %v3150
        %3461 = vmatpush.bf16.msra.mxu0 %v3146
        %3462 = vmatpush.bf16.msra.mxu0 %v3142
        %3463 = vmatpush.bf16.msra.mxu0 %v3138
        %3464 = vmatpush.bf16.msra.mxu0 %v3134
        %3465 = vmatmul.bf16.gmra.mxu0 %v567
        %v3466 = vpop.f32.mrf.mxu0
        %v3467 = vadd.f32 %v3418, %v3466
        %v3468 = vpop.f32.mrf.mxu0
        %v3469 = vadd.f32 %v3420, %v3468
        %3470 = vmatmul.bf16.gmra.mxu0 %v570
        %v3471 = vpop.f32.mrf.mxu0
        %v3472 = vadd.f32 %v3423, %v3471
        %v3473 = vpop.f32.mrf.mxu0
        %v3474 = vadd.f32 %v3425, %v3473
        %3475 = vmatmul.bf16.gmra.mxu0 %v573
        %v3476 = vpop.f32.mrf.mxu0
        %v3477 = vadd.f32 %v3428, %v3476
        %v3478 = vpop.f32.mrf.mxu0
        %v3479 = vadd.f32 %v3430, %v3478
        %3480 = vmatmul.bf16.gmra.mxu0 %v576
        %v3481 = vpop.f32.mrf.mxu0
        %v3482 = vadd.f32 %v3433, %v3481
        %v3483 = vpop.f32.mrf.mxu0
        %v3484 = vadd.f32 %v3435, %v3483
        %3485 = vmatmul.bf16.gmra.mxu0 %v579
        %v3486 = vpop.f32.mrf.mxu0
        %v3487 = vadd.f32 %v3438, %v3486
        %v3488 = vpop.f32.mrf.mxu0
        %v3489 = vadd.f32 %v3440, %v3488
        %3490 = vmatmul.bf16.gmra.mxu0 %v582
        %v3491 = vpop.f32.mrf.mxu0
        %v3492 = vadd.f32 %v3443, %v3491
        %v3493 = vpop.f32.mrf.mxu0
        %v3494 = vadd.f32 %v3445, %v3493
        %3495 = vmatmul.bf16.gmra.mxu0 %v585
        %v3496 = vpop.f32.mrf.mxu0
        %v3497 = vadd.f32 %v3448, %v3496
        %v3498 = vpop.f32.mrf.mxu0
        %v3499 = vadd.f32 %v3450, %v3498
        %3500 = vmatmul.bf16.gmra.mxu0 %v588
        %v3501 = vpop.f32.mrf.mxu0
        %v3502 = vadd.f32 %v3453, %v3501
        %v3503 = vpop.f32.mrf.mxu0
        %v3504 = vadd.f32 %v3455, %v3503
        %3505 = vdwg.mxu0
        %3506 = vmatpush.bf16.msra.mxu0 0
        %3507 = vmatpush.bf16.msra.mxu0 0
        %3508 = vmatpush.bf16.msra.mxu0 0
        %3509 = vmatpush.bf16.msra.mxu0 0
        %3510 = vmatpush.bf16.msra.mxu0 %v3178
        %3511 = vmatpush.bf16.msra.mxu0 %v3174
        %3512 = vmatpush.bf16.msra.mxu0 %v3170
        %3513 = vmatpush.bf16.msra.mxu0 %v3166
        %3514 = vmatmul.bf16.gmra.mxu0 %v1008
        %v3515 = vpop.f32.mrf.mxu0
        %v3516 = vadd.f32 %v3467, %v3515
        %v3517 = vpop.f32.mrf.mxu0
        %v3518 = vadd.f32 %v3469, %v3517
        %3519 = vmatmul.bf16.gmra.mxu0 %v1011
        %v3520 = vpop.f32.mrf.mxu0
        %v3521 = vadd.f32 %v3472, %v3520
        %v3522 = vpop.f32.mrf.mxu0
        %v3523 = vadd.f32 %v3474, %v3522
        %3524 = vmatmul.bf16.gmra.mxu0 %v1014
        %v3525 = vpop.f32.mrf.mxu0
        %v3526 = vadd.f32 %v3477, %v3525
        %v3527 = vpop.f32.mrf.mxu0
        %v3528 = vadd.f32 %v3479, %v3527
        %3529 = vmatmul.bf16.gmra.mxu0 %v1017
        %v3530 = vpop.f32.mrf.mxu0
        %v3531 = vadd.f32 %v3482, %v3530
        %v3532 = vpop.f32.mrf.mxu0
        %v3533 = vadd.f32 %v3484, %v3532
        %3534 = vmatmul.bf16.gmra.mxu0 %v1020
        %v3535 = vpop.f32.mrf.mxu0
        %v3536 = vadd.f32 %v3487, %v3535
        %v3537 = vpop.f32.mrf.mxu0
        %v3538 = vadd.f32 %v3489, %v3537
        %3539 = vmatmul.bf16.gmra.mxu0 %v1023
        %v3540 = vpop.f32.mrf.mxu0
        %v3541 = vadd.f32 %v3492, %v3540
        %v3542 = vpop.f32.mrf.mxu0
        %v3543 = vadd.f32 %v3494, %v3542
        %3544 = vmatmul.bf16.gmra.mxu0 %v1026
        %v3545 = vpop.f32.mrf.mxu0
        %v3546 = vadd.f32 %v3497, %v3545
        %v3547 = vpop.f32.mrf.mxu0
        %v3548 = vadd.f32 %v3499, %v3547
        %3549 = vmatmul.bf16.gmra.mxu0 %v1029
        %v3550 = vpop.f32.mrf.mxu0
        %v3551 = vadd.f32 %v3502, %v3550
        %v3552 = vpop.f32.mrf.mxu0
        %v3553 = vadd.f32 %v3504, %v3552
        %3554 = vdwg.mxu0
        %3555 = vmatpush.bf16.msra.mxu0 %v3131
        %3556 = vmatpush.bf16.msra.mxu0 %v3127
        %3557 = vmatpush.bf16.msra.mxu0 %v3123
        %3558 = vmatpush.bf16.msra.mxu0 %v3119
        %3559 = vmatpush.bf16.msra.mxu0 %v3115
        %3560 = vmatpush.bf16.msra.mxu0 %v3111
        %3561 = vmatpush.bf16.msra.mxu0 %v3107
        %3562 = vmatpush.bf16.msra.mxu0 %v3103
        %3563 = vmatmul.bf16.gmra.mxu0 %v566
        %v3564 = vpop.f32.mrf.mxu0
        %v3565 = vadd.f32 %v2859, %v3564
        %v3566 = vpop.f32.mrf.mxu0
        %v3567 = vadd.f32 %v2859, %v3566
        %3568 = vmatmul.bf16.gmra.mxu0 %v569
        %v3569 = vpop.f32.mrf.mxu0
        %v3570 = vadd.f32 %v2859, %v3569
        %v3571 = vpop.f32.mrf.mxu0
        %v3572 = vadd.f32 %v2859, %v3571
        %3573 = vmatmul.bf16.gmra.mxu0 %v572
        %v3574 = vpop.f32.mrf.mxu0
        %v3575 = vadd.f32 %v2859, %v3574
        %v3576 = vpop.f32.mrf.mxu0
        %v3577 = vadd.f32 %v2859, %v3576
        %3578 = vmatmul.bf16.gmra.mxu0 %v575
        %v3579 = vpop.f32.mrf.mxu0
        %v3580 = vadd.f32 %v2859, %v3579
        %v3581 = vpop.f32.mrf.mxu0
        %v3582 = vadd.f32 %v2859, %v3581
        %3583 = vmatmul.bf16.gmra.mxu0 %v578
        %v3584 = vpop.f32.mrf.mxu0
        %v3585 = vadd.f32 %v2859, %v3584
        %v3586 = vpop.f32.mrf.mxu0
        %v3587 = vadd.f32 %v2859, %v3586
        %3588 = vmatmul.bf16.gmra.mxu0 %v581
        %v3589 = vpop.f32.mrf.mxu0
        %v3590 = vadd.f32 %v2859, %v3589
        %v3591 = vpop.f32.mrf.mxu0
        %v3592 = vadd.f32 %v2859, %v3591
        %3593 = vmatmul.bf16.gmra.mxu0 %v584
        %v3594 = vpop.f32.mrf.mxu0
        %v3595 = vadd.f32 %v2859, %v3594
        %v3596 = vpop.f32.mrf.mxu0
        %v3597 = vadd.f32 %v2859, %v3596
        %3598 = vmatmul.bf16.gmra.mxu0 %v587
        %v3599 = vpop.f32.mrf.mxu0
        %v3600 = vadd.f32 %v2859, %v3599
        %v3601 = vpop.f32.mrf.mxu0
        %v3602 = vadd.f32 %v2859, %v3601
        %3603 = vdwg.mxu0
        %3604 = vmatpush.bf16.msra.mxu0 %v3163
        %3605 = vmatpush.bf16.msra.mxu0 %v3159
        %3606 = vmatpush.bf16.msra.mxu0 %v3155
        %3607 = vmatpush.bf16.msra.mxu0 %v3151
        %3608 = vmatpush.bf16.msra.mxu0 %v3147
        %3609 = vmatpush.bf16.msra.mxu0 %v3143
        %3610 = vmatpush.bf16.msra.mxu0 %v3139
        %3611 = vmatpush.bf16.msra.mxu0 %v3135
        %3612 = vmatmul.bf16.gmra.mxu0 %v567
        %v3613 = vpop.f32.mrf.mxu0
        %v3614 = vadd.f32 %v3565, %v3613
        %v3615 = vpop.f32.mrf.mxu0
        %v3616 = vadd.f32 %v3567, %v3615
        %3617 = vmatmul.bf16.gmra.mxu0 %v570
        %v3618 = vpop.f32.mrf.mxu0
        %v3619 = vadd.f32 %v3570, %v3618
        %v3620 = vpop.f32.mrf.mxu0
        %v3621 = vadd.f32 %v3572, %v3620
        %3622 = vmatmul.bf16.gmra.mxu0 %v573
        %v3623 = vpop.f32.mrf.mxu0
        %v3624 = vadd.f32 %v3575, %v3623
        %v3625 = vpop.f32.mrf.mxu0
        %v3626 = vadd.f32 %v3577, %v3625
        %3627 = vmatmul.bf16.gmra.mxu0 %v576
        %v3628 = vpop.f32.mrf.mxu0
        %v3629 = vadd.f32 %v3580, %v3628
        %v3630 = vpop.f32.mrf.mxu0
        %v3631 = vadd.f32 %v3582, %v3630
        %3632 = vmatmul.bf16.gmra.mxu0 %v579
        %v3633 = vpop.f32.mrf.mxu0
        %v3634 = vadd.f32 %v3585, %v3633
        %v3635 = vpop.f32.mrf.mxu0
        %v3636 = vadd.f32 %v3587, %v3635
        %3637 = vmatmul.bf16.gmra.mxu0 %v582
        %v3638 = vpop.f32.mrf.mxu0
        %v3639 = vadd.f32 %v3590, %v3638
        %v3640 = vpop.f32.mrf.mxu0
        %v3641 = vadd.f32 %v3592, %v3640
        %3642 = vmatmul.bf16.gmra.mxu0 %v585
        %v3643 = vpop.f32.mrf.mxu0
        %v3644 = vadd.f32 %v3595, %v3643
        %v3645 = vpop.f32.mrf.mxu0
        %v3646 = vadd.f32 %v3597, %v3645
        %3647 = vmatmul.bf16.gmra.mxu0 %v588
        %v3648 = vpop.f32.mrf.mxu0
        %v3649 = vadd.f32 %v3600, %v3648
        %v3650 = vpop.f32.mrf.mxu0
        %v3651 = vadd.f32 %v3602, %v3650
        %3652 = vdwg.mxu0
        %3653 = vmatpush.bf16.msra.mxu0 0
        %3654 = vmatpush.bf16.msra.mxu0 0
        %3655 = vmatpush.bf16.msra.mxu0 0
        %3656 = vmatpush.bf16.msra.mxu0 0
        %3657 = vmatpush.bf16.msra.mxu0 %v3179
        %3658 = vmatpush.bf16.msra.mxu0 %v3175
        %3659 = vmatpush.bf16.msra.mxu0 %v3171
        %3660 = vmatpush.bf16.msra.mxu0 %v3167
        %3661 = vmatmul.bf16.gmra.mxu0 %v1008
        %v3662 = vpop.f32.mrf.mxu0
        %v3663 = vadd.f32 %v3614, %v3662
        %v3664 = vpop.f32.mrf.mxu0
        %v3665 = vadd.f32 %v3616, %v3664
        %3666 = vmatmul.bf16.gmra.mxu0 %v1011
        %v3667 = vpop.f32.mrf.mxu0
        %v3668 = vadd.f32 %v3619, %v3667
        %v3669 = vpop.f32.mrf.mxu0
        %v3670 = vadd.f32 %v3621, %v3669
        %3671 = vmatmul.bf16.gmra.mxu0 %v1014
        %v3672 = vpop.f32.mrf.mxu0
        %v3673 = vadd.f32 %v3624, %v3672
        %v3674 = vpop.f32.mrf.mxu0
        %v3675 = vadd.f32 %v3626, %v3674
        %3676 = vmatmul.bf16.gmra.mxu0 %v1017
        %v3677 = vpop.f32.mrf.mxu0
        %v3678 = vadd.f32 %v3629, %v3677
        %v3679 = vpop.f32.mrf.mxu0
        %v3680 = vadd.f32 %v3631, %v3679
        %3681 = vmatmul.bf16.gmra.mxu0 %v1020
        %v3682 = vpop.f32.mrf.mxu0
        %v3683 = vadd.f32 %v3634, %v3682
        %v3684 = vpop.f32.mrf.mxu0
        %v3685 = vadd.f32 %v3636, %v3684
        %3686 = vmatmul.bf16.gmra.mxu0 %v1023
        %v3687 = vpop.f32.mrf.mxu0
        %v3688 = vadd.f32 %v3639, %v3687
        %v3689 = vpop.f32.mrf.mxu0
        %v3690 = vadd.f32 %v3641, %v3689
        %3691 = vmatmul.bf16.gmra.mxu0 %v1026
        %v3692 = vpop.f32.mrf.mxu0
        %v3693 = vadd.f32 %v3644, %v3692
        %v3694 = vpop.f32.mrf.mxu0
        %v3695 = vadd.f32 %v3646, %v3694
        %3696 = vmatmul.bf16.gmra.mxu0 %v1029
        %v3697 = vpop.f32.mrf.mxu0
        %v3698 = vadd.f32 %v3649, %v3697
        %v3699 = vpop.f32.mrf.mxu0
        %v3700 = vadd.f32 %v3651, %v3699
        %3701 = vdwg.mxu0
        %3702 = vmatpush.bf16.msra.mxu0 %v3132
        %3703 = vmatpush.bf16.msra.mxu0 %v3128
        %3704 = vmatpush.bf16.msra.mxu0 %v3124
        %3705 = vmatpush.bf16.msra.mxu0 %v3120
        %3706 = vmatpush.bf16.msra.mxu0 %v3116
        %3707 = vmatpush.bf16.msra.mxu0 %v3112
        %3708 = vmatpush.bf16.msra.mxu0 %v3108
        %3709 = vmatpush.bf16.msra.mxu0 %v3104
        %3710 = vmatmul.bf16.gmra.mxu0 %v566
        %v3711 = vpop.f32.mrf.mxu0
        %v3712 = vadd.f32 %v2860, %v3711
        %v3713 = vpop.f32.mrf.mxu0
        %v3714 = vadd.f32 %v2860, %v3713
        %3715 = vmatmul.bf16.gmra.mxu0 %v569
        %v3716 = vpop.f32.mrf.mxu0
        %v3717 = vadd.f32 %v2860, %v3716
        %v3718 = vpop.f32.mrf.mxu0
        %v3719 = vadd.f32 %v2860, %v3718
        %3720 = vmatmul.bf16.gmra.mxu0 %v572
        %v3721 = vpop.f32.mrf.mxu0
        %v3722 = vadd.f32 %v2860, %v3721
        %v3723 = vpop.f32.mrf.mxu0
        %v3724 = vadd.f32 %v2860, %v3723
        %3725 = vmatmul.bf16.gmra.mxu0 %v575
        %v3726 = vpop.f32.mrf.mxu0
        %v3727 = vadd.f32 %v2860, %v3726
        %v3728 = vpop.f32.mrf.mxu0
        %v3729 = vadd.f32 %v2860, %v3728
        %3730 = vmatmul.bf16.gmra.mxu0 %v578
        %v3731 = vpop.f32.mrf.mxu0
        %v3732 = vadd.f32 %v2860, %v3731
        %v3733 = vpop.f32.mrf.mxu0
        %v3734 = vadd.f32 %v2860, %v3733
        %3735 = vmatmul.bf16.gmra.mxu0 %v581
        %v3736 = vpop.f32.mrf.mxu0
        %v3737 = vadd.f32 %v2860, %v3736
        %v3738 = vpop.f32.mrf.mxu0
        %v3739 = vadd.f32 %v2860, %v3738
        %3740 = vmatmul.bf16.gmra.mxu0 %v584
        %v3741 = vpop.f32.mrf.mxu0
        %v3742 = vadd.f32 %v2860, %v3741
        %v3743 = vpop.f32.mrf.mxu0
        %v3744 = vadd.f32 %v2860, %v3743
        %3745 = vmatmul.bf16.gmra.mxu0 %v587
        %v3746 = vpop.f32.mrf.mxu0
        %v3747 = vadd.f32 %v2860, %v3746
        %v3748 = vpop.f32.mrf.mxu0
        %v3749 = vadd.f32 %v2860, %v3748
        %3750 = vdwg.mxu0
        %3751 = vmatpush.bf16.msra.mxu0 %v3164
        %3752 = vmatpush.bf16.msra.mxu0 %v3160
        %3753 = vmatpush.bf16.msra.mxu0 %v3156
        %3754 = vmatpush.bf16.msra.mxu0 %v3152
        %3755 = vmatpush.bf16.msra.mxu0 %v3148
        %3756 = vmatpush.bf16.msra.mxu0 %v3144
        %3757 = vmatpush.bf16.msra.mxu0 %v3140
        %3758 = vmatpush.bf16.msra.mxu0 %v3136
        %3759 = vmatmul.bf16.gmra.mxu0 %v567
        %v3760 = vpop.f32.mrf.mxu0
        %v3761 = vadd.f32 %v3712, %v3760
        %v3762 = vpop.f32.mrf.mxu0
        %v3763 = vadd.f32 %v3714, %v3762
        %3764 = vmatmul.bf16.gmra.mxu0 %v570
        %v3765 = vpop.f32.mrf.mxu0
        %v3766 = vadd.f32 %v3717, %v3765
        %v3767 = vpop.f32.mrf.mxu0
        %v3768 = vadd.f32 %v3719, %v3767
        %3769 = vmatmul.bf16.gmra.mxu0 %v573
        %v3770 = vpop.f32.mrf.mxu0
        %v3771 = vadd.f32 %v3722, %v3770
        %v3772 = vpop.f32.mrf.mxu0
        %v3773 = vadd.f32 %v3724, %v3772
        %3774 = vmatmul.bf16.gmra.mxu0 %v576
        %v3775 = vpop.f32.mrf.mxu0
        %v3776 = vadd.f32 %v3727, %v3775
        %v3777 = vpop.f32.mrf.mxu0
        %v3778 = vadd.f32 %v3729, %v3777
        %3779 = vmatmul.bf16.gmra.mxu0 %v579
        %v3780 = vpop.f32.mrf.mxu0
        %v3781 = vadd.f32 %v3732, %v3780
        %v3782 = vpop.f32.mrf.mxu0
        %v3783 = vadd.f32 %v3734, %v3782
        %3784 = vmatmul.bf16.gmra.mxu0 %v582
        %v3785 = vpop.f32.mrf.mxu0
        %v3786 = vadd.f32 %v3737, %v3785
        %v3787 = vpop.f32.mrf.mxu0
        %v3788 = vadd.f32 %v3739, %v3787
        %3789 = vmatmul.bf16.gmra.mxu0 %v585
        %v3790 = vpop.f32.mrf.mxu0
        %v3791 = vadd.f32 %v3742, %v3790
        %v3792 = vpop.f32.mrf.mxu0
        %v3793 = vadd.f32 %v3744, %v3792
        %3794 = vmatmul.bf16.gmra.mxu0 %v588
        %v3795 = vpop.f32.mrf.mxu0
        %v3796 = vadd.f32 %v3747, %v3795
        %v3797 = vpop.f32.mrf.mxu0
        %v3798 = vadd.f32 %v3749, %v3797
        %3799 = vdwg.mxu0
        %3800 = vmatpush.bf16.msra.mxu0 0
        %3801 = vmatpush.bf16.msra.mxu0 0
        %3802 = vmatpush.bf16.msra.mxu0 0
        %3803 = vmatpush.bf16.msra.mxu0 0
        %3804 = vmatpush.bf16.msra.mxu0 %v3180
        %3805 = vmatpush.bf16.msra.mxu0 %v3176
        %3806 = vmatpush.bf16.msra.mxu0 %v3172
        %3807 = vmatpush.bf16.msra.mxu0 %v3168
        %3808 = vmatmul.bf16.gmra.mxu0 %v1008
        %v3809 = vpop.f32.mrf.mxu0
        %v3810 = vadd.f32 %v3761, %v3809
        %v3811 = vpop.f32.mrf.mxu0
        %v3812 = vadd.f32 %v3763, %v3811
        %3813 = vmatmul.bf16.gmra.mxu0 %v1011
        %v3814 = vpop.f32.mrf.mxu0
        %v3815 = vadd.f32 %v3766, %v3814
        %v3816 = vpop.f32.mrf.mxu0
        %v3817 = vadd.f32 %v3768, %v3816
        %3818 = vmatmul.bf16.gmra.mxu0 %v1014
        %v3819 = vpop.f32.mrf.mxu0
        %v3820 = vadd.f32 %v3771, %v3819
        %v3821 = vpop.f32.mrf.mxu0
        %v3822 = vadd.f32 %v3773, %v3821
        %3823 = vmatmul.bf16.gmra.mxu0 %v1017
        %v3824 = vpop.f32.mrf.mxu0
        %v3825 = vadd.f32 %v3776, %v3824
        %v3826 = vpop.f32.mrf.mxu0
        %v3827 = vadd.f32 %v3778, %v3826
        %3828 = vmatmul.bf16.gmra.mxu0 %v1020
        %v3829 = vpop.f32.mrf.mxu0
        %v3830 = vadd.f32 %v3781, %v3829
        %v3831 = vpop.f32.mrf.mxu0
        %v3832 = vadd.f32 %v3783, %v3831
        %3833 = vmatmul.bf16.gmra.mxu0 %v1023
        %v3834 = vpop.f32.mrf.mxu0
        %v3835 = vadd.f32 %v3786, %v3834
        %v3836 = vpop.f32.mrf.mxu0
        %v3837 = vadd.f32 %v3788, %v3836
        %3838 = vmatmul.bf16.gmra.mxu0 %v1026
        %v3839 = vpop.f32.mrf.mxu0
        %v3840 = vadd.f32 %v3791, %v3839
        %v3841 = vpop.f32.mrf.mxu0
        %v3842 = vadd.f32 %v3793, %v3841
        %3843 = vmatmul.bf16.gmra.mxu0 %v1029
        %v3844 = vpop.f32.mrf.mxu0
        %v3845 = vadd.f32 %v3796, %v3844
        %v3846 = vpop.f32.mrf.mxu0
        %v3847 = vadd.f32 %v3798, %v3846
        %3848 = vdwg.mxu0
        %v3849 = vpack.c.bf16 %v3516, %v3369
        %v3850 = vpack.c.bf16 %v3810, %v3663
        %v3851 = vpack.c.bf16 %v3518, %v3371
        %v3852 = vpack.c.bf16 %v3812, %v3665
        %v3853 = vpack.c.bf16 %v3521, %v3374
        %v3854 = vpack.c.bf16 %v3815, %v3668
        %v3855 = vpack.c.bf16 %v3523, %v3376
        %v3856 = vpack.c.bf16 %v3817, %v3670
        %v3857 = vpack.c.bf16 %v3526, %v3379
        %v3858 = vpack.c.bf16 %v3820, %v3673
        %v3859 = vpack.c.bf16 %v3528, %v3381
        %v3860 = vpack.c.bf16 %v3822, %v3675
        %v3861 = vpack.c.bf16 %v3531, %v3384
        %v3862 = vpack.c.bf16 %v3825, %v3678
        %v3863 = vpack.c.bf16 %v3533, %v3386
        %v3864 = vpack.c.bf16 %v3827, %v3680
        %v3865 = vpack.c.bf16 %v3536, %v3389
        %v3866 = vpack.c.bf16 %v3830, %v3683
        %v3867 = vpack.c.bf16 %v3538, %v3391
        %v3868 = vpack.c.bf16 %v3832, %v3685
        %v3869 = vpack.c.bf16 %v3541, %v3394
        %v3870 = vpack.c.bf16 %v3835, %v3688
        %v3871 = vpack.c.bf16 %v3543, %v3396
        %v3872 = vpack.c.bf16 %v3837, %v3690
        %v3873 = vpack.c.bf16 %v3546, %v3399
        %v3874 = vpack.c.bf16 %v3840, %v3693
        %v3875 = vpack.c.bf16 %v3548, %v3401
        %v3876 = vpack.c.bf16 %v3842, %v3695
        %v3877 = vpack.c.bf16 %v3551, %v3404
        %v3878 = vpack.c.bf16 %v3845, %v3698
        %v3879 = vpack.c.bf16 %v3553, %v3406
        %v3880 = vpack.c.bf16 %v3847, %v3700
        %v3881 = vld [vmem:[%s357] sm:$0xf]
        %v3882 = vld [vmem:[%s357 + $0x4] sm:$0xf]
        %v3883 = vld [vmem:[%s357 + $0x8] sm:$0xf]
        %v3884 = vld [vmem:[%s357 + $0xc] sm:$0xf]
        %v3885 = vld [vmem:[%s357 + $0x10] sm:$0xf]
        %v3886 = vld [vmem:[%s357 + $0x14] sm:$0xf]
        %v3887 = vld [vmem:[%s357 + $0x18] sm:$0xf]
        %v3888 = vld [vmem:[%s357 + $0x1c] sm:$0xf]
        %v3889 = vld [vmem:[%s357 + $0x20] sm:$0xf]
        %v3890 = vld [vmem:[%s357 + $0x24] sm:$0xf]
        %v3891 = vld [vmem:[%s357 + $0x28] sm:$0xf]
        %v3892 = vld [vmem:[%s357 + $0x2c] sm:$0xf]
        %v3893 = vld [vmem:[%s357 + $0x30] sm:$0xf]
        %v3894 = vld [vmem:[%s357 + $0x34] sm:$0xf]
        %v3895 = vld [vmem:[%s357 + $0x38] sm:$0xf]
        %v3896 = vld [vmem:[%s357 + $0x3c] sm:$0xf]
        %v3897 = vunpack.c.l.bf16 %v3881
        %v3898 = vunpack.c.l.bf16 %v3882
        %v3899 = vunpack.c.l.bf16 %v3883
        %v3900 = vunpack.c.l.bf16 %v3884
        %v3901 = vunpack.c.l.bf16 %v3885
        %v3902 = vunpack.c.l.bf16 %v3886
        %v3903 = vunpack.c.l.bf16 %v3887
        %v3904 = vunpack.c.l.bf16 %v3888
        %v3905 = vunpack.c.l.bf16 %v3889
        %v3906 = vunpack.c.l.bf16 %v3890
        %v3907 = vunpack.c.l.bf16 %v3891
        %v3908 = vunpack.c.l.bf16 %v3892
        %v3909 = vunpack.c.l.bf16 %v3893
        %v3910 = vunpack.c.l.bf16 %v3894
        %v3911 = vunpack.c.l.bf16 %v3895
        %v3912 = vunpack.c.l.bf16 %v3896
        %v3929 = vunpack.c.l.b16 %v1619
        %v3930 = vunpack.c.l.b16 %v1621
        %v3931 = vunpack.c.l.b16 %v1623
        %v3932 = vunpack.c.l.b16 %v1625
        %v3933 = vunpack.c.l.b16 %v1627
        %v3934 = vunpack.c.l.b16 %v1629
        %v3935 = vunpack.c.l.b16 %v1631
        %v3936 = vunpack.c.l.b16 %v1633
        %v3937 = vunpack.c.l.b16 %v1635
        %v3938 = vunpack.c.l.b16 %v1637
        %v3939 = vunpack.c.l.b16 %v1639
        %v3940 = vunpack.c.l.b16 %v1641
        %v3941 = vunpack.c.l.b16 %v1643
        %v3942 = vunpack.c.l.b16 %v1645
        %v3943 = vunpack.c.l.b16 %v1647
        %v3944 = vunpack.c.l.b16 %v1649
        %v3945 = vpack.c.b16 %v3930, %v3929
        %v3946 = vpack.c.b16 %v3932, %v3931
        %v3947 = vpack.c.b16 %v3934, %v3933
        %v3948 = vpack.c.b16 %v3936, %v3935
        %v3949 = vpack.c.b16 %v3938, %v3937
        %v3950 = vpack.c.b16 %v3940, %v3939
        %v3951 = vpack.c.b16 %v3942, %v3941
        %v3952 = vpack.c.b16 %v3944, %v3943
        %v3969 = vunpack.c.l.b16 %v2734
        %v3970 = vunpack.c.l.b16 %v2736
        %v3971 = vunpack.c.l.b16 %v2738
        %v3972 = vunpack.c.l.b16 %v2740
        %v3973 = vunpack.c.l.b16 %v2742
        %v3974 = vunpack.c.l.b16 %v2744
        %v3975 = vunpack.c.l.b16 %v2746
        %v3976 = vunpack.c.l.b16 %v2748
        %v3977 = vunpack.c.l.b16 %v2750
        %v3978 = vunpack.c.l.b16 %v2752
        %v3979 = vunpack.c.l.b16 %v2754
        %v3980 = vunpack.c.l.b16 %v2756
        %v3981 = vunpack.c.l.b16 %v2758
        %v3982 = vunpack.c.l.b16 %v2760
        %v3983 = vunpack.c.l.b16 %v2762
        %v3984 = vunpack.c.l.b16 %v2764
        %v3985 = vpack.c.b16 %v3970, %v3969
        %v3986 = vpack.c.b16 %v3972, %v3971
        %v3987 = vpack.c.b16 %v3974, %v3973
        %v3988 = vpack.c.b16 %v3976, %v3975
        %v3989 = vpack.c.b16 %v3978, %v3977
        %v3990 = vpack.c.b16 %v3980, %v3979
        %v3991 = vpack.c.b16 %v3982, %v3981
        %v3992 = vpack.c.b16 %v3984, %v3983
        %v3994 = vsel %vm1006, %v3945, 0
        %v3997 = vsel %vm1006, %v3946, 0
        %v4000 = vsel %vm1006, %v3947, 0
        %v4003 = vsel %vm1006, %v3948, 0
        %v4006 = vsel %vm1006, %v3949, 0
        %v4009 = vsel %vm1006, %v3950, 0
        %v4012 = vsel %vm1006, %v3951, 0
        %v4015 = vsel %vm1006, %v3952, 0
        %v4018 = vsel %vm1006, %v3985, 0
        %v4021 = vsel %vm1006, %v3986, 0
        %v4024 = vsel %vm1006, %v3987, 0
        %v4027 = vsel %vm1006, %v3988, 0
        %v4030 = vsel %vm1006, %v3989, 0
        %v4033 = vsel %vm1006, %v3990, 0
        %v4036 = vsel %vm1006, %v3991, 0
        %v4039 = vsel %vm1006, %v3992, 0
        %4041 = vmatpush.bf16.xpose.msra.mxu0 %v4039
        %4042 = vmatpush.bf16.xpose.msra.mxu0 %v4036
        %4043 = vmatpush.bf16.xpose.msra.mxu0 %v4033
        %4044 = vmatpush.bf16.xpose.msra.mxu0 %v4030
        %4045 = vmatpush.bf16.xpose.msra.mxu0 %v4027
        %4046 = vmatpush.bf16.xpose.msra.mxu0 %v4024
        %4047 = vmatpush.bf16.xpose.msra.mxu0 %v4021
        %4048 = vmatpush.bf16.xpose.msra.mxu0 %v4018
        %4049 = vmatmul.bf16.gmra.mxu0 %v3994
        %v4050 = vpop.f32.mrf.mxu0
        %v4051 = vadd.f32 0.0, %v4050
        %v4052 = vpop.f32.mrf.mxu0
        %v4053 = vadd.f32 0.0, %v4052
        %4054 = vmatmul.bf16.gmra.mxu0 %v3997
        %v4055 = vpop.f32.mrf.mxu0
        %v4056 = vadd.f32 0.0, %v4055
        %v4057 = vpop.f32.mrf.mxu0
        %v4058 = vadd.f32 0.0, %v4057
        %4059 = vmatmul.bf16.gmra.mxu0 %v4000
        %v4060 = vpop.f32.mrf.mxu0
        %v4061 = vadd.f32 0.0, %v4060
        %v4062 = vpop.f32.mrf.mxu0
        %v4063 = vadd.f32 0.0, %v4062
        %4064 = vmatmul.bf16.gmra.mxu0 %v4003
        %v4065 = vpop.f32.mrf.mxu0
        %v4066 = vadd.f32 0.0, %v4065
        %v4067 = vpop.f32.mrf.mxu0
        %v4068 = vadd.f32 0.0, %v4067
        %4069 = vmatmul.bf16.gmra.mxu0 %v4006
        %v4070 = vpop.f32.mrf.mxu0
        %v4071 = vadd.f32 0.0, %v4070
        %v4072 = vpop.f32.mrf.mxu0
        %v4073 = vadd.f32 0.0, %v4072
        %4074 = vmatmul.bf16.gmra.mxu0 %v4009
        %v4075 = vpop.f32.mrf.mxu0
        %v4076 = vadd.f32 0.0, %v4075
        %v4077 = vpop.f32.mrf.mxu0
        %v4078 = vadd.f32 0.0, %v4077
        %4079 = vmatmul.bf16.gmra.mxu0 %v4012
        %v4080 = vpop.f32.mrf.mxu0
        %v4081 = vadd.f32 0.0, %v4080
        %v4082 = vpop.f32.mrf.mxu0
        %v4083 = vadd.f32 0.0, %v4082
        %4084 = vmatmul.bf16.gmra.mxu0 %v4015
        %v4085 = vpop.f32.mrf.mxu0
        %v4086 = vadd.f32 0.0, %v4085
        %v4087 = vpop.f32.mrf.mxu0
        %v4088 = vadd.f32 0.0, %v4087
        %4089 = vdwg.mxu0
        %v4090 = vmul.f32 %v4051, 0.125
        %v4091 = vmul.f32 %v4053, 0.125
        %v4092 = vmul.f32 %v4056, 0.125
        %v4093 = vmul.f32 %v4058, 0.125
        %v4094 = vmul.f32 %v4061, 0.125
        %v4095 = vmul.f32 %v4063, 0.125
        %v4096 = vmul.f32 %v4066, 0.125
        %v4097 = vmul.f32 %v4068, 0.125
        %v4098 = vmul.f32 %v4071, 0.125
        %v4099 = vmul.f32 %v4073, 0.125
        %v4100 = vmul.f32 %v4076, 0.125
        %v4101 = vmul.f32 %v4078, 0.125
        %v4102 = vmul.f32 %v4081, 0.125
        %v4103 = vmul.f32 %v4083, 0.125
        %v4104 = vmul.f32 %v4086, 0.125
        %v4105 = vmul.f32 %v4088, 0.125
        %4107 = vset.pattern.permute.xlu0 0
        %4108 = vperm.xlu0 %4107, %v3897
        %v4109 = vpop.permute.xlu0 %4108
        %4112 = vset.pattern.permute.xlu0 0
        %4113 = vperm.xlu0 %4112, %v3898
        %v4114 = vpop.permute.xlu0 %4113
        %4117 = vset.pattern.permute.xlu0 0
        %4118 = vperm.xlu0 %4117, %v3899
        %v4119 = vpop.permute.xlu0 %4118
        %4122 = vset.pattern.permute.xlu0 0
        %4123 = vperm.xlu0 %4122, %v3900
        %v4124 = vpop.permute.xlu0 %4123
        %4127 = vset.pattern.permute.xlu0 0
        %4128 = vperm.xlu0 %4127, %v3901
        %v4129 = vpop.permute.xlu0 %4128
        %4132 = vset.pattern.permute.xlu0 0
        %4133 = vperm.xlu0 %4132, %v3902
        %v4134 = vpop.permute.xlu0 %4133
        %4137 = vset.pattern.permute.xlu0 0
        %4138 = vperm.xlu0 %4137, %v3903
        %v4139 = vpop.permute.xlu0 %4138
        %4142 = vset.pattern.permute.xlu0 0
        %4143 = vperm.xlu0 %4142, %v3904
        %v4144 = vpop.permute.xlu0 %4143
        %4147 = vset.pattern.permute.xlu0 0
        %4148 = vperm.xlu0 %4147, %v3905
        %v4149 = vpop.permute.xlu0 %4148
        %4152 = vset.pattern.permute.xlu0 0
        %4153 = vperm.xlu0 %4152, %v3906
        %v4154 = vpop.permute.xlu0 %4153
        %4157 = vset.pattern.permute.xlu0 0
        %4158 = vperm.xlu0 %4157, %v3907
        %v4159 = vpop.permute.xlu0 %4158
        %4162 = vset.pattern.permute.xlu0 0
        %4163 = vperm.xlu0 %4162, %v3908
        %v4164 = vpop.permute.xlu0 %4163
        %4167 = vset.pattern.permute.xlu0 0
        %4168 = vperm.xlu0 %4167, %v3909
        %v4169 = vpop.permute.xlu0 %4168
        %4172 = vset.pattern.permute.xlu0 0
        %4173 = vperm.xlu0 %4172, %v3910
        %v4174 = vpop.permute.xlu0 %4173
        %4177 = vset.pattern.permute.xlu0 0
        %4178 = vperm.xlu0 %4177, %v3911
        %v4179 = vpop.permute.xlu0 %4178
        %4182 = vset.pattern.permute.xlu0 0
        %4183 = vperm.xlu0 %4182, %v3912
        %v4184 = vpop.permute.xlu0 %4183
        %v4186 = vadd.f32 %v4090, %v4109
        %v4187 = vadd.f32 %v4091, %v4114
        %v4188 = vadd.f32 %v4092, %v4119
        %v4189 = vadd.f32 %v4093, %v4124
        %v4190 = vadd.f32 %v4094, %v4129
        %v4191 = vadd.f32 %v4095, %v4134
        %v4192 = vadd.f32 %v4096, %v4139
        %v4193 = vadd.f32 %v4097, %v4144
        %v4194 = vadd.f32 %v4098, %v4149
        %v4195 = vadd.f32 %v4099, %v4154
        %v4196 = vadd.f32 %v4100, %v4159
        %v4197 = vadd.f32 %v4101, %v4164
        %v4198 = vadd.f32 %v4102, %v4169
        %v4199 = vadd.f32 %v4103, %v4174
        %v4200 = vadd.f32 %v4104, %v4179
        %v4201 = vadd.f32 %v4105, %v4184
        %4202 = vmax.xlane.f32.xlu0 %v4186
        %v4203 = vpop.xlane.xlu0 %4202
        %4204 = vmax.xlane.f32.xlu0 %v4187
        %v4205 = vpop.xlane.xlu0 %4204
        %4206 = vmax.xlane.f32.xlu0 %v4188
        %v4207 = vpop.xlane.xlu0 %4206
        %4208 = vmax.xlane.f32.xlu0 %v4189
        %v4209 = vpop.xlane.xlu0 %4208
        %4210 = vmax.xlane.f32.xlu0 %v4190
        %v4211 = vpop.xlane.xlu0 %4210
        %4212 = vmax.xlane.f32.xlu0 %v4191
        %v4213 = vpop.xlane.xlu0 %4212
        %4214 = vmax.xlane.f32.xlu0 %v4192
        %v4215 = vpop.xlane.xlu0 %4214
        %4216 = vmax.xlane.f32.xlu0 %v4193
        %v4217 = vpop.xlane.xlu0 %4216
        %4218 = vmax.xlane.f32.xlu0 %v4194
        %v4219 = vpop.xlane.xlu0 %4218
        %4220 = vmax.xlane.f32.xlu0 %v4195
        %v4221 = vpop.xlane.xlu0 %4220
        %4222 = vmax.xlane.f32.xlu0 %v4196
        %v4223 = vpop.xlane.xlu0 %4222
        %4224 = vmax.xlane.f32.xlu0 %v4197
        %v4225 = vpop.xlane.xlu0 %4224
        %4226 = vmax.xlane.f32.xlu0 %v4198
        %v4227 = vpop.xlane.xlu0 %4226
        %4228 = vmax.xlane.f32.xlu0 %v4199
        %v4229 = vpop.xlane.xlu0 %4228
        %4230 = vmax.xlane.f32.xlu0 %v4200
        %v4231 = vpop.xlane.xlu0 %4230
        %4232 = vmax.xlane.f32.xlu0 %v4201
        %v4233 = vpop.xlane.xlu0 %4232
        %v4234 = vsub.f32 %v4186, %v4203
        %v4235 = vsub.f32 %v4187, %v4205
        %v4236 = vsub.f32 %v4188, %v4207
        %v4237 = vsub.f32 %v4189, %v4209
        %v4238 = vsub.f32 %v4190, %v4211
        %v4239 = vsub.f32 %v4191, %v4213
        %v4240 = vsub.f32 %v4192, %v4215
        %v4241 = vsub.f32 %v4193, %v4217
        %v4242 = vsub.f32 %v4194, %v4219
        %v4243 = vsub.f32 %v4195, %v4221
        %v4244 = vsub.f32 %v4196, %v4223
        %v4245 = vsub.f32 %v4197, %v4225
        %v4246 = vsub.f32 %v4198, %v4227
        %v4247 = vsub.f32 %v4199, %v4229
        %v4248 = vsub.f32 %v4200, %v4231
        %v4249 = vsub.f32 %v4201, %v4233
        %v4250 = vmul.f32 %v4234, 1.442695
        %v4251 = vpow.pop %v4250
        %v4252 = vmul.f32 %v4235, 1.442695
        %v4253 = vpow.pop %v4252
        %v4254 = vmul.f32 %v4236, 1.442695
        %v4255 = vpow.pop %v4254
        %v4256 = vmul.f32 %v4237, 1.442695
        %v4257 = vpow.pop %v4256
        %v4258 = vmul.f32 %v4238, 1.442695
        %v4259 = vpow.pop %v4258
        %v4260 = vmul.f32 %v4239, 1.442695
        %v4261 = vpow.pop %v4260
        %v4262 = vmul.f32 %v4240, 1.442695
        %v4263 = vpow.pop %v4262
        %v4264 = vmul.f32 %v4241, 1.442695
        %v4265 = vpow.pop %v4264
        %v4266 = vmul.f32 %v4242, 1.442695
        %v4267 = vpow.pop %v4266
        %v4268 = vmul.f32 %v4243, 1.442695
        %v4269 = vpow.pop %v4268
        %v4270 = vmul.f32 %v4244, 1.442695
        %v4271 = vpow.pop %v4270
        %v4272 = vmul.f32 %v4245, 1.442695
        %v4273 = vpow.pop %v4272
        %v4274 = vmul.f32 %v4246, 1.442695
        %v4275 = vpow.pop %v4274
        %v4276 = vmul.f32 %v4247, 1.442695
        %v4277 = vpow.pop %v4276
        %v4278 = vmul.f32 %v4248, 1.442695
        %v4279 = vpow.pop %v4278
        %v4280 = vmul.f32 %v4249, 1.442695
        %v4281 = vpow.pop %v4280
        %4282 = vadd.xlane.f32.xlu0 %v4251
        %v4283 = vpop.xlane.xlu0 %4282
        %4284 = vadd.xlane.f32.xlu0 %v4253
        %v4285 = vpop.xlane.xlu0 %4284
        %4286 = vadd.xlane.f32.xlu0 %v4255
        %v4287 = vpop.xlane.xlu0 %4286
        %4288 = vadd.xlane.f32.xlu0 %v4257
        %v4289 = vpop.xlane.xlu0 %4288
        %4290 = vadd.xlane.f32.xlu0 %v4259
        %v4291 = vpop.xlane.xlu0 %4290
        %4292 = vadd.xlane.f32.xlu0 %v4261
        %v4293 = vpop.xlane.xlu0 %4292
        %4294 = vadd.xlane.f32.xlu0 %v4263
        %v4295 = vpop.xlane.xlu0 %4294
        %4296 = vadd.xlane.f32.xlu0 %v4265
        %v4297 = vpop.xlane.xlu0 %4296
        %4298 = vadd.xlane.f32.xlu0 %v4267
        %v4299 = vpop.xlane.xlu0 %4298
        %4300 = vadd.xlane.f32.xlu0 %v4269
        %v4301 = vpop.xlane.xlu0 %4300
        %4302 = vadd.xlane.f32.xlu0 %v4271
        %v4303 = vpop.xlane.xlu0 %4302
        %4304 = vadd.xlane.f32.xlu0 %v4273
        %v4305 = vpop.xlane.xlu0 %4304
        %4306 = vadd.xlane.f32.xlu0 %v4275
        %v4307 = vpop.xlane.xlu0 %4306
        %4308 = vadd.xlane.f32.xlu0 %v4277
        %v4309 = vpop.xlane.xlu0 %4308
        %4310 = vadd.xlane.f32.xlu0 %v4279
        %v4311 = vpop.xlane.xlu0 %4310
        %4312 = vadd.xlane.f32.xlu0 %v4281
        %v4313 = vpop.xlane.xlu0 %4312
        %v4314 = vrcp.pop %v4283
        %v4315 = vrcp.pop %v4285
        %v4316 = vrcp.pop %v4287
        %v4317 = vrcp.pop %v4289
        %v4318 = vrcp.pop %v4291
        %v4319 = vrcp.pop %v4293
        %v4320 = vrcp.pop %v4295
        %v4321 = vrcp.pop %v4297
        %v4322 = vrcp.pop %v4299
        %v4323 = vrcp.pop %v4301
        %v4324 = vrcp.pop %v4303
        %v4325 = vrcp.pop %v4305
        %v4326 = vrcp.pop %v4307
        %v4327 = vrcp.pop %v4309
        %v4328 = vrcp.pop %v4311
        %v4329 = vrcp.pop %v4313
        %v4330 = vmul.f32 %v4251, %v4314
        %v4331 = vmul.f32 %v4253, %v4315
        %v4332 = vmul.f32 %v4255, %v4316
        %v4333 = vmul.f32 %v4257, %v4317
        %v4334 = vmul.f32 %v4259, %v4318
        %v4335 = vmul.f32 %v4261, %v4319
        %v4336 = vmul.f32 %v4263, %v4320
        %v4337 = vmul.f32 %v4265, %v4321
        %v4338 = vmul.f32 %v4267, %v4322
        %v4339 = vmul.f32 %v4269, %v4323
        %v4340 = vmul.f32 %v4271, %v4324
        %v4341 = vmul.f32 %v4273, %v4325
        %v4342 = vmul.f32 %v4275, %v4326
        %v4343 = vmul.f32 %v4277, %v4327
        %v4344 = vmul.f32 %v4279, %v4328
        %v4345 = vmul.f32 %v4281, %v4329
        %v4346 = vpack.c.bf16 %v4331, %v4330
        %v4347 = vpack.c.bf16 %v4333, %v4332
        %v4348 = vpack.c.bf16 %v4335, %v4334
        %v4349 = vpack.c.bf16 %v4337, %v4336
        %v4350 = vpack.c.bf16 %v4339, %v4338
        %v4351 = vpack.c.bf16 %v4341, %v4340
        %v4352 = vpack.c.bf16 %v4343, %v4342
        %v4353 = vpack.c.bf16 %v4345, %v4344
        %v4370 = vunpack.c.l.b16 %v3849
        %v4371 = vunpack.c.l.b16 %v3851
        %v4372 = vunpack.c.l.b16 %v3853
        %v4373 = vunpack.c.l.b16 %v3855
        %v4374 = vunpack.c.l.b16 %v3857
        %v4375 = vunpack.c.l.b16 %v3859
        %v4376 = vunpack.c.l.b16 %v3861
        %v4377 = vunpack.c.l.b16 %v3863
        %v4378 = vunpack.c.l.b16 %v3865
        %v4379 = vunpack.c.l.b16 %v3867
        %v4380 = vunpack.c.l.b16 %v3869
        %v4381 = vunpack.c.l.b16 %v3871
        %v4382 = vunpack.c.l.b16 %v3873
        %v4383 = vunpack.c.l.b16 %v3875
        %v4384 = vunpack.c.l.b16 %v3877
        %v4385 = vunpack.c.l.b16 %v3879
        %v4386 = vpack.c.b16 %v4371, %v4370
        %v4387 = vpack.c.b16 %v4373, %v4372
        %v4388 = vpack.c.b16 %v4375, %v4374
        %v4389 = vpack.c.b16 %v4377, %v4376
        %v4390 = vpack.c.b16 %v4379, %v4378
        %v4391 = vpack.c.b16 %v4381, %v4380
        %v4392 = vpack.c.b16 %v4383, %v4382
        %v4393 = vpack.c.b16 %v4385, %v4384
        %4402 = vmatpush.bf16.msra.mxu0 %v4393
        %4403 = vmatpush.bf16.msra.mxu0 %v4392
        %4404 = vmatpush.bf16.msra.mxu0 %v4391
        %4405 = vmatpush.bf16.msra.mxu0 %v4390
        %4406 = vmatpush.bf16.msra.mxu0 %v4389
        %4407 = vmatpush.bf16.msra.mxu0 %v4388
        %4408 = vmatpush.bf16.msra.mxu0 %v4387
        %4409 = vmatpush.bf16.msra.mxu0 %v4386
        %4410 = vmatmul.bf16.gmra.mxu0 %v4346
        %v4411 = vpop.f32.mrf.mxu0
        %v4412 = vadd.f32 0.0, %v4411
        %v4413 = vpop.f32.mrf.mxu0
        %v4414 = vadd.f32 0.0, %v4413
        %4415 = vmatmul.bf16.gmra.mxu0 %v4347
        %v4416 = vpop.f32.mrf.mxu0
        %v4417 = vadd.f32 0.0, %v4416
        %v4418 = vpop.f32.mrf.mxu0
        %v4419 = vadd.f32 0.0, %v4418
        %4420 = vmatmul.bf16.gmra.mxu0 %v4348
        %v4421 = vpop.f32.mrf.mxu0
        %v4422 = vadd.f32 0.0, %v4421
        %v4423 = vpop.f32.mrf.mxu0
        %v4424 = vadd.f32 0.0, %v4423
        %4425 = vmatmul.bf16.gmra.mxu0 %v4349
        %v4426 = vpop.f32.mrf.mxu0
        %v4427 = vadd.f32 0.0, %v4426
        %v4428 = vpop.f32.mrf.mxu0
        %v4429 = vadd.f32 0.0, %v4428
        %4430 = vmatmul.bf16.gmra.mxu0 %v4350
        %v4431 = vpop.f32.mrf.mxu0
        %v4432 = vadd.f32 0.0, %v4431
        %v4433 = vpop.f32.mrf.mxu0
        %v4434 = vadd.f32 0.0, %v4433
        %4435 = vmatmul.bf16.gmra.mxu0 %v4351
        %v4436 = vpop.f32.mrf.mxu0
        %v4437 = vadd.f32 0.0, %v4436
        %v4438 = vpop.f32.mrf.mxu0
        %v4439 = vadd.f32 0.0, %v4438
        %4440 = vmatmul.bf16.gmra.mxu0 %v4352
        %v4441 = vpop.f32.mrf.mxu0
        %v4442 = vadd.f32 0.0, %v4441
        %v4443 = vpop.f32.mrf.mxu0
        %v4444 = vadd.f32 0.0, %v4443
        %4445 = vmatmul.bf16.gmra.mxu0 %v4353
        %v4446 = vpop.f32.mrf.mxu0
        %v4447 = vadd.f32 0.0, %v4446
        %v4448 = vpop.f32.mrf.mxu0
        %v4449 = vadd.f32 0.0, %v4448
        %4450 = vdwg.mxu0
        %v4451 = vpack.c.bf16 %v4412, %v4412
        %v4452 = vpack.c.bf16 %v4414, %v4414
        %v4453 = vpack.c.bf16 %v4417, %v4417
        %v4454 = vpack.c.bf16 %v4419, %v4419
        %v4455 = vpack.c.bf16 %v4422, %v4422
        %v4456 = vpack.c.bf16 %v4424, %v4424
        %v4457 = vpack.c.bf16 %v4427, %v4427
        %v4458 = vpack.c.bf16 %v4429, %v4429
        %v4459 = vpack.c.bf16 %v4432, %v4432
        %v4460 = vpack.c.bf16 %v4434, %v4434
        %v4461 = vpack.c.bf16 %v4437, %v4437
        %v4462 = vpack.c.bf16 %v4439, %v4439
        %v4463 = vpack.c.bf16 %v4442, %v4442
        %v4464 = vpack.c.bf16 %v4444, %v4444
        %v4465 = vpack.c.bf16 %v4447, %v4447
        %v4466 = vpack.c.bf16 %v4449, %v4449
        %vm4467 = vcmask 519168
        %4468 = vst.msk [vmem:[%s347] sm:$0xf] %vm4467, %v4451
        %4469 = vst.msk [vmem:[%s347 + $0x10] sm:$0xf] %vm4467, %v4452
        %4470 = vst.msk [vmem:[%s347 + $0x20] sm:$0xf] %vm4467, %v4453
        %4471 = vst.msk [vmem:[%s347 + $0x30] sm:$0xf] %vm4467, %v4454
        %4472 = vst.msk [vmem:[%s347 + $0x40] sm:$0xf] %vm4467, %v4455
        %4473 = vst.msk [vmem:[%s347 + $0x50] sm:$0xf] %vm4467, %v4456
        %4474 = vst.msk [vmem:[%s347 + $0x60] sm:$0xf] %vm4467, %v4457
        %4475 = vst.msk [vmem:[%s347 + $0x70] sm:$0xf] %vm4467, %v4458
        %4476 = vst.msk [vmem:[%s347 + $0x80] sm:$0xf] %vm4467, %v4459
        %4477 = vst.msk [vmem:[%s347 + $0x90] sm:$0xf] %vm4467, %v4460
        %4478 = vst.msk [vmem:[%s347 + $0xa0] sm:$0xf] %vm4467, %v4461
        %4479 = vst.msk [vmem:[%s347 + $0xb0] sm:$0xf] %vm4467, %v4462
        %4480 = vst.msk [vmem:[%s347 + $0xc0] sm:$0xf] %vm4467, %v4463
        %4481 = vst.msk [vmem:[%s347 + $0xd0] sm:$0xf] %vm4467, %v4464
        %4482 = vst.msk [vmem:[%s347 + $0xe0] sm:$0xf] %vm4467, %v4465
        %4483 = vst.msk [vmem:[%s347 + $0xf0] sm:$0xf] %vm4467, %v4466
        %4484 = vrot.lane.b32.xlu0 %v3945, 64
        %v4485 = vpop.permute.xlu0 %4484
        %4486 = vrot.lane.b32.xlu0 %v3946, 64
        %v4487 = vpop.permute.xlu0 %4486
        %4488 = vrot.lane.b32.xlu0 %v3947, 64
        %v4489 = vpop.permute.xlu0 %4488
        %4490 = vrot.lane.b32.xlu0 %v3948, 64
        %v4491 = vpop.permute.xlu0 %4490
        %4492 = vrot.lane.b32.xlu0 %v3949, 64
        %v4493 = vpop.permute.xlu0 %4492
        %4494 = vrot.lane.b32.xlu0 %v3950, 64
        %v4495 = vpop.permute.xlu0 %4494
        %4496 = vrot.lane.b32.xlu0 %v3951, 64
        %v4497 = vpop.permute.xlu0 %4496
        %4498 = vrot.lane.b32.xlu0 %v3952, 64
        %v4499 = vpop.permute.xlu0 %4498
        %4500 = vrot.lane.b32.xlu0 %v3985, 64
        %v4501 = vpop.permute.xlu0 %4500
        %4502 = vrot.lane.b32.xlu0 %v3986, 64
        %v4503 = vpop.permute.xlu0 %4502
        %4504 = vrot.lane.b32.xlu0 %v3987, 64
        %v4505 = vpop.permute.xlu0 %4504
        %4506 = vrot.lane.b32.xlu0 %v3988, 64
        %v4507 = vpop.permute.xlu0 %4506
        %4508 = vrot.lane.b32.xlu0 %v3989, 64
        %v4509 = vpop.permute.xlu0 %4508
        %4510 = vrot.lane.b32.xlu0 %v3990, 64
        %v4511 = vpop.permute.xlu0 %4510
        %4512 = vrot.lane.b32.xlu0 %v3991, 64
        %v4513 = vpop.permute.xlu0 %4512
        %4514 = vrot.lane.b32.xlu0 %v3992, 64
        %v4515 = vpop.permute.xlu0 %4514
        %v4517 = vsel %vm1006, %v4485, 0
        %v4520 = vsel %vm1006, %v4487, 0
        %v4523 = vsel %vm1006, %v4489, 0
        %v4526 = vsel %vm1006, %v4491, 0
        %v4529 = vsel %vm1006, %v4493, 0
        %v4532 = vsel %vm1006, %v4495, 0
        %v4535 = vsel %vm1006, %v4497, 0
        %v4538 = vsel %vm1006, %v4499, 0
        %v4541 = vsel %vm1006, %v4501, 0
        %v4544 = vsel %vm1006, %v4503, 0
        %v4547 = vsel %vm1006, %v4505, 0
        %v4550 = vsel %vm1006, %v4507, 0
        %v4553 = vsel %vm1006, %v4509, 0
        %v4556 = vsel %vm1006, %v4511, 0
        %v4559 = vsel %vm1006, %v4513, 0
        %v4562 = vsel %vm1006, %v4515, 0
        %4564 = vmatpush.bf16.xpose.msra.mxu0 %v4562
        %4565 = vmatpush.bf16.xpose.msra.mxu0 %v4559
        %4566 = vmatpush.bf16.xpose.msra.mxu0 %v4556
        %4567 = vmatpush.bf16.xpose.msra.mxu0 %v4553
        %4568 = vmatpush.bf16.xpose.msra.mxu0 %v4550
        %4569 = vmatpush.bf16.xpose.msra.mxu0 %v4547
        %4570 = vmatpush.bf16.xpose.msra.mxu0 %v4544
        %4571 = vmatpush.bf16.xpose.msra.mxu0 %v4541
        %4572 = vmatmul.bf16.gmra.mxu0 %v4517
        %v4573 = vpop.f32.mrf.mxu0
        %v4574 = vadd.f32 0.0, %v4573
        %v4575 = vpop.f32.mrf.mxu0
        %v4576 = vadd.f32 0.0, %v4575
        %4577 = vmatmul.bf16.gmra.mxu0 %v4520
        %v4578 = vpop.f32.mrf.mxu0
        %v4579 = vadd.f32 0.0, %v4578
        %v4580 = vpop.f32.mrf.mxu0
        %v4581 = vadd.f32 0.0, %v4580
        %4582 = vmatmul.bf16.gmra.mxu0 %v4523
        %v4583 = vpop.f32.mrf.mxu0
        %v4584 = vadd.f32 0.0, %v4583
        %v4585 = vpop.f32.mrf.mxu0
        %v4586 = vadd.f32 0.0, %v4585
        %4587 = vmatmul.bf16.gmra.mxu0 %v4526
        %v4588 = vpop.f32.mrf.mxu0
        %v4589 = vadd.f32 0.0, %v4588
        %v4590 = vpop.f32.mrf.mxu0
        %v4591 = vadd.f32 0.0, %v4590
        %4592 = vmatmul.bf16.gmra.mxu0 %v4529
        %v4593 = vpop.f32.mrf.mxu0
        %v4594 = vadd.f32 0.0, %v4593
        %v4595 = vpop.f32.mrf.mxu0
        %v4596 = vadd.f32 0.0, %v4595
        %4597 = vmatmul.bf16.gmra.mxu0 %v4532
        %v4598 = vpop.f32.mrf.mxu0
        %v4599 = vadd.f32 0.0, %v4598
        %v4600 = vpop.f32.mrf.mxu0
        %v4601 = vadd.f32 0.0, %v4600
        %4602 = vmatmul.bf16.gmra.mxu0 %v4535
        %v4603 = vpop.f32.mrf.mxu0
        %v4604 = vadd.f32 0.0, %v4603
        %v4605 = vpop.f32.mrf.mxu0
        %v4606 = vadd.f32 0.0, %v4605
        %4607 = vmatmul.bf16.gmra.mxu0 %v4538
        %v4608 = vpop.f32.mrf.mxu0
        %v4609 = vadd.f32 0.0, %v4608
        %v4610 = vpop.f32.mrf.mxu0
        %v4611 = vadd.f32 0.0, %v4610
        %4612 = vdwg.mxu0
        %v4613 = vmul.f32 %v4574, 0.125
        %v4614 = vmul.f32 %v4576, 0.125
        %v4615 = vmul.f32 %v4579, 0.125
        %v4616 = vmul.f32 %v4581, 0.125
        %v4617 = vmul.f32 %v4584, 0.125
        %v4618 = vmul.f32 %v4586, 0.125
        %v4619 = vmul.f32 %v4589, 0.125
        %v4620 = vmul.f32 %v4591, 0.125
        %v4621 = vmul.f32 %v4594, 0.125
        %v4622 = vmul.f32 %v4596, 0.125
        %v4623 = vmul.f32 %v4599, 0.125
        %v4624 = vmul.f32 %v4601, 0.125
        %v4625 = vmul.f32 %v4604, 0.125
        %v4626 = vmul.f32 %v4606, 0.125
        %v4627 = vmul.f32 %v4609, 0.125
        %v4628 = vmul.f32 %v4611, 0.125
        %v4629 = vadd.f32 %v4613, %v4109
        %v4630 = vadd.f32 %v4614, %v4114
        %v4631 = vadd.f32 %v4615, %v4119
        %v4632 = vadd.f32 %v4616, %v4124
        %v4633 = vadd.f32 %v4617, %v4129
        %v4634 = vadd.f32 %v4618, %v4134
        %v4635 = vadd.f32 %v4619, %v4139
        %v4636 = vadd.f32 %v4620, %v4144
        %v4637 = vadd.f32 %v4621, %v4149
        %v4638 = vadd.f32 %v4622, %v4154
        %v4639 = vadd.f32 %v4623, %v4159
        %v4640 = vadd.f32 %v4624, %v4164
        %v4641 = vadd.f32 %v4625, %v4169
        %v4642 = vadd.f32 %v4626, %v4174
        %v4643 = vadd.f32 %v4627, %v4179
        %v4644 = vadd.f32 %v4628, %v4184
        %4645 = vmax.xlane.f32.xlu0 %v4629
        %v4646 = vpop.xlane.xlu0 %4645
        %4647 = vmax.xlane.f32.xlu0 %v4630
        %v4648 = vpop.xlane.xlu0 %4647
        %4649 = vmax.xlane.f32.xlu0 %v4631
        %v4650 = vpop.xlane.xlu0 %4649
        %4651 = vmax.xlane.f32.xlu0 %v4632
        %v4652 = vpop.xlane.xlu0 %4651
        %4653 = vmax.xlane.f32.xlu0 %v4633
        %v4654 = vpop.xlane.xlu0 %4653
        %4655 = vmax.xlane.f32.xlu0 %v4634
        %v4656 = vpop.xlane.xlu0 %4655
        %4657 = vmax.xlane.f32.xlu0 %v4635
        %v4658 = vpop.xlane.xlu0 %4657
        %4659 = vmax.xlane.f32.xlu0 %v4636
        %v4660 = vpop.xlane.xlu0 %4659
        %4661 = vmax.xlane.f32.xlu0 %v4637
        %v4662 = vpop.xlane.xlu0 %4661
        %4663 = vmax.xlane.f32.xlu0 %v4638
        %v4664 = vpop.xlane.xlu0 %4663
        %4665 = vmax.xlane.f32.xlu0 %v4639
        %v4666 = vpop.xlane.xlu0 %4665
        %4667 = vmax.xlane.f32.xlu0 %v4640
        %v4668 = vpop.xlane.xlu0 %4667
        %4669 = vmax.xlane.f32.xlu0 %v4641
        %v4670 = vpop.xlane.xlu0 %4669
        %4671 = vmax.xlane.f32.xlu0 %v4642
        %v4672 = vpop.xlane.xlu0 %4671
        %4673 = vmax.xlane.f32.xlu0 %v4643
        %v4674 = vpop.xlane.xlu0 %4673
        %4675 = vmax.xlane.f32.xlu0 %v4644
        %v4676 = vpop.xlane.xlu0 %4675
        %v4677 = vsub.f32 %v4629, %v4646
        %v4678 = vsub.f32 %v4630, %v4648
        %v4679 = vsub.f32 %v4631, %v4650
        %v4680 = vsub.f32 %v4632, %v4652
        %v4681 = vsub.f32 %v4633, %v4654
        %v4682 = vsub.f32 %v4634, %v4656
        %v4683 = vsub.f32 %v4635, %v4658
        %v4684 = vsub.f32 %v4636, %v4660
        %v4685 = vsub.f32 %v4637, %v4662
        %v4686 = vsub.f32 %v4638, %v4664
        %v4687 = vsub.f32 %v4639, %v4666
        %v4688 = vsub.f32 %v4640, %v4668
        %v4689 = vsub.f32 %v4641, %v4670
        %v4690 = vsub.f32 %v4642, %v4672
        %v4691 = vsub.f32 %v4643, %v4674
        %v4692 = vsub.f32 %v4644, %v4676
        %v4693 = vmul.f32 %v4677, 1.442695
        %v4694 = vpow.pop %v4693
        %v4695 = vmul.f32 %v4678, 1.442695
        %v4696 = vpow.pop %v4695
        %v4697 = vmul.f32 %v4679, 1.442695
        %v4698 = vpow.pop %v4697
        %v4699 = vmul.f32 %v4680, 1.442695
        %v4700 = vpow.pop %v4699
        %v4701 = vmul.f32 %v4681, 1.442695
        %v4702 = vpow.pop %v4701
        %v4703 = vmul.f32 %v4682, 1.442695
        %v4704 = vpow.pop %v4703
        %v4705 = vmul.f32 %v4683, 1.442695
        %v4706 = vpow.pop %v4705
        %v4707 = vmul.f32 %v4684, 1.442695
        %v4708 = vpow.pop %v4707
        %v4709 = vmul.f32 %v4685, 1.442695
        %v4710 = vpow.pop %v4709
        %v4711 = vmul.f32 %v4686, 1.442695
        %v4712 = vpow.pop %v4711
        %v4713 = vmul.f32 %v4687, 1.442695
        %v4714 = vpow.pop %v4713
        %v4715 = vmul.f32 %v4688, 1.442695
        %v4716 = vpow.pop %v4715
        %v4717 = vmul.f32 %v4689, 1.442695
        %v4718 = vpow.pop %v4717
        %v4719 = vmul.f32 %v4690, 1.442695
        %v4720 = vpow.pop %v4719
        %v4721 = vmul.f32 %v4691, 1.442695
        %v4722 = vpow.pop %v4721
        %v4723 = vmul.f32 %v4692, 1.442695
        %v4724 = vpow.pop %v4723
        %4725 = vadd.xlane.f32.xlu0 %v4694
        %v4726 = vpop.xlane.xlu0 %4725
        %4727 = vadd.xlane.f32.xlu0 %v4696
        %v4728 = vpop.xlane.xlu0 %4727
        %4729 = vadd.xlane.f32.xlu0 %v4698
        %v4730 = vpop.xlane.xlu0 %4729
        %4731 = vadd.xlane.f32.xlu0 %v4700
        %v4732 = vpop.xlane.xlu0 %4731
        %4733 = vadd.xlane.f32.xlu0 %v4702
        %v4734 = vpop.xlane.xlu0 %4733
        %4735 = vadd.xlane.f32.xlu0 %v4704
        %v4736 = vpop.xlane.xlu0 %4735
        %4737 = vadd.xlane.f32.xlu0 %v4706
        %v4738 = vpop.xlane.xlu0 %4737
        %4739 = vadd.xlane.f32.xlu0 %v4708
        %v4740 = vpop.xlane.xlu0 %4739
        %4741 = vadd.xlane.f32.xlu0 %v4710
        %v4742 = vpop.xlane.xlu0 %4741
        %4743 = vadd.xlane.f32.xlu0 %v4712
        %v4744 = vpop.xlane.xlu0 %4743
        %4745 = vadd.xlane.f32.xlu0 %v4714
        %v4746 = vpop.xlane.xlu0 %4745
        %4747 = vadd.xlane.f32.xlu0 %v4716
        %v4748 = vpop.xlane.xlu0 %4747
        %4749 = vadd.xlane.f32.xlu0 %v4718
        %v4750 = vpop.xlane.xlu0 %4749
        %4751 = vadd.xlane.f32.xlu0 %v4720
        %v4752 = vpop.xlane.xlu0 %4751
        %4753 = vadd.xlane.f32.xlu0 %v4722
        %v4754 = vpop.xlane.xlu0 %4753
        %4755 = vadd.xlane.f32.xlu0 %v4724
        %v4756 = vpop.xlane.xlu0 %4755
        %v4757 = vrcp.pop %v4726
        %v4758 = vrcp.pop %v4728
        %v4759 = vrcp.pop %v4730
        %v4760 = vrcp.pop %v4732
        %v4761 = vrcp.pop %v4734
        %v4762 = vrcp.pop %v4736
        %v4763 = vrcp.pop %v4738
        %v4764 = vrcp.pop %v4740
        %v4765 = vrcp.pop %v4742
        %v4766 = vrcp.pop %v4744
        %v4767 = vrcp.pop %v4746
        %v4768 = vrcp.pop %v4748
        %v4769 = vrcp.pop %v4750
        %v4770 = vrcp.pop %v4752
        %v4771 = vrcp.pop %v4754
        %v4772 = vrcp.pop %v4756
        %v4773 = vmul.f32 %v4694, %v4757
        %v4774 = vmul.f32 %v4696, %v4758
        %v4775 = vmul.f32 %v4698, %v4759
        %v4776 = vmul.f32 %v4700, %v4760
        %v4777 = vmul.f32 %v4702, %v4761
        %v4778 = vmul.f32 %v4704, %v4762
        %v4779 = vmul.f32 %v4706, %v4763
        %v4780 = vmul.f32 %v4708, %v4764
        %v4781 = vmul.f32 %v4710, %v4765
        %v4782 = vmul.f32 %v4712, %v4766
        %v4783 = vmul.f32 %v4714, %v4767
        %v4784 = vmul.f32 %v4716, %v4768
        %v4785 = vmul.f32 %v4718, %v4769
        %v4786 = vmul.f32 %v4720, %v4770
        %v4787 = vmul.f32 %v4722, %v4771
        %v4788 = vmul.f32 %v4724, %v4772
        %v4789 = vpack.c.bf16 %v4774, %v4773
        %v4790 = vpack.c.bf16 %v4776, %v4775
        %v4791 = vpack.c.bf16 %v4778, %v4777
        %v4792 = vpack.c.bf16 %v4780, %v4779
        %v4793 = vpack.c.bf16 %v4782, %v4781
        %v4794 = vpack.c.bf16 %v4784, %v4783
        %v4795 = vpack.c.bf16 %v4786, %v4785
        %v4796 = vpack.c.bf16 %v4788, %v4787
        %4797 = vrot.lane.b32.xlu0 %v4386, 64
        %v4798 = vpop.permute.xlu0 %4797
        %4799 = vrot.lane.b32.xlu0 %v4387, 64
        %v4800 = vpop.permute.xlu0 %4799
        %4801 = vrot.lane.b32.xlu0 %v4388, 64
        %v4802 = vpop.permute.xlu0 %4801
        %4803 = vrot.lane.b32.xlu0 %v4389, 64
        %v4804 = vpop.permute.xlu0 %4803
        %4805 = vrot.lane.b32.xlu0 %v4390, 64
        %v4806 = vpop.permute.xlu0 %4805
        %4807 = vrot.lane.b32.xlu0 %v4391, 64
        %v4808 = vpop.permute.xlu0 %4807
        %4809 = vrot.lane.b32.xlu0 %v4392, 64
        %v4810 = vpop.permute.xlu0 %4809
        %4811 = vrot.lane.b32.xlu0 %v4393, 64
        %v4812 = vpop.permute.xlu0 %4811
        %4821 = vmatpush.bf16.msra.mxu0 %v4812
        %4822 = vmatpush.bf16.msra.mxu0 %v4810
        %4823 = vmatpush.bf16.msra.mxu0 %v4808
        %4824 = vmatpush.bf16.msra.mxu0 %v4806
        %4825 = vmatpush.bf16.msra.mxu0 %v4804
        %4826 = vmatpush.bf16.msra.mxu0 %v4802
        %4827 = vmatpush.bf16.msra.mxu0 %v4800
        %4828 = vmatpush.bf16.msra.mxu0 %v4798
        %4829 = vmatmul.bf16.gmra.mxu0 %v4789
        %v4830 = vpop.f32.mrf.mxu0
        %v4831 = vadd.f32 0.0, %v4830
        %v4832 = vpop.f32.mrf.mxu0
        %v4833 = vadd.f32 0.0, %v4832
        %4834 = vmatmul.bf16.gmra.mxu0 %v4790
        %v4835 = vpop.f32.mrf.mxu0
        %v4836 = vadd.f32 0.0, %v4835
        %v4837 = vpop.f32.mrf.mxu0
        %v4838 = vadd.f32 0.0, %v4837
        %4839 = vmatmul.bf16.gmra.mxu0 %v4791
        %v4840 = vpop.f32.mrf.mxu0
        %v4841 = vadd.f32 0.0, %v4840
        %v4842 = vpop.f32.mrf.mxu0
        %v4843 = vadd.f32 0.0, %v4842
        %4844 = vmatmul.bf16.gmra.mxu0 %v4792
        %v4845 = vpop.f32.mrf.mxu0
        %v4846 = vadd.f32 0.0, %v4845
        %v4847 = vpop.f32.mrf.mxu0
        %v4848 = vadd.f32 0.0, %v4847
        %4849 = vmatmul.bf16.gmra.mxu0 %v4793
        %v4850 = vpop.f32.mrf.mxu0
        %v4851 = vadd.f32 0.0, %v4850
        %v4852 = vpop.f32.mrf.mxu0
        %v4853 = vadd.f32 0.0, %v4852
        %4854 = vmatmul.bf16.gmra.mxu0 %v4794
        %v4855 = vpop.f32.mrf.mxu0
        %v4856 = vadd.f32 0.0, %v4855
        %v4857 = vpop.f32.mrf.mxu0
        %v4858 = vadd.f32 0.0, %v4857
        %4859 = vmatmul.bf16.gmra.mxu0 %v4795
        %v4860 = vpop.f32.mrf.mxu0
        %v4861 = vadd.f32 0.0, %v4860
        %v4862 = vpop.f32.mrf.mxu0
        %v4863 = vadd.f32 0.0, %v4862
        %4864 = vmatmul.bf16.gmra.mxu0 %v4796
        %v4865 = vpop.f32.mrf.mxu0
        %v4866 = vadd.f32 0.0, %v4865
        %v4867 = vpop.f32.mrf.mxu0
        %v4868 = vadd.f32 0.0, %v4867
        %4869 = vdwg.mxu0
        %v4870 = vpack.c.bf16 %v4831, %v4831
        %v4871 = vpack.c.bf16 %v4833, %v4833
        %v4872 = vpack.c.bf16 %v4836, %v4836
        %v4873 = vpack.c.bf16 %v4838, %v4838
        %v4874 = vpack.c.bf16 %v4841, %v4841
        %v4875 = vpack.c.bf16 %v4843, %v4843
        %v4876 = vpack.c.bf16 %v4846, %v4846
        %v4877 = vpack.c.bf16 %v4848, %v4848
        %v4878 = vpack.c.bf16 %v4851, %v4851
        %v4879 = vpack.c.bf16 %v4853, %v4853
        %v4880 = vpack.c.bf16 %v4856, %v4856
        %v4881 = vpack.c.bf16 %v4858, %v4858
        %v4882 = vpack.c.bf16 %v4861, %v4861
        %v4883 = vpack.c.bf16 %v4863, %v4863
        %v4884 = vpack.c.bf16 %v4866, %v4866
        %v4885 = vpack.c.bf16 %v4868, %v4868
        %4902 = vrot.lane.b32.xlu0 %v4870, 64
        %v4903 = vpop.permute.xlu0 %4902
        %4904 = vrot.lane.b32.xlu0 %v4871, 64
        %v4905 = vpop.permute.xlu0 %4904
        %4906 = vrot.lane.b32.xlu0 %v4872, 64
        %v4907 = vpop.permute.xlu0 %4906
        %4908 = vrot.lane.b32.xlu0 %v4873, 64
        %v4909 = vpop.permute.xlu0 %4908
        %4910 = vrot.lane.b32.xlu0 %v4874, 64
        %v4911 = vpop.permute.xlu0 %4910
        %4912 = vrot.lane.b32.xlu0 %v4875, 64
        %v4913 = vpop.permute.xlu0 %4912
        %4914 = vrot.lane.b32.xlu0 %v4876, 64
        %v4915 = vpop.permute.xlu0 %4914
        %4916 = vrot.lane.b32.xlu0 %v4877, 64
        %v4917 = vpop.permute.xlu0 %4916
        %4918 = vrot.lane.b32.xlu0 %v4878, 64
        %v4919 = vpop.permute.xlu0 %4918
        %4920 = vrot.lane.b32.xlu0 %v4879, 64
        %v4921 = vpop.permute.xlu0 %4920
        %4922 = vrot.lane.b32.xlu0 %v4880, 64
        %v4923 = vpop.permute.xlu0 %4922
        %4924 = vrot.lane.b32.xlu0 %v4881, 64
        %v4925 = vpop.permute.xlu0 %4924
        %4926 = vrot.lane.b32.xlu0 %v4882, 64
        %v4927 = vpop.permute.xlu0 %4926
        %4928 = vrot.lane.b32.xlu0 %v4883, 64
        %v4929 = vpop.permute.xlu0 %4928
        %4930 = vrot.lane.b32.xlu0 %v4884, 64
        %v4931 = vpop.permute.xlu0 %4930
        %4932 = vrot.lane.b32.xlu0 %v4885, 64
        %v4933 = vpop.permute.xlu0 %4932
        %vm4950 = vcmask 1043968
        %4951 = vst.msk [vmem:[%s347] sm:$0xf] %vm4950, %v4903
        %4952 = vst.msk [vmem:[%s347 + $0x10] sm:$0xf] %vm4950, %v4905
        %4953 = vst.msk [vmem:[%s347 + $0x20] sm:$0xf] %vm4950, %v4907
        %4954 = vst.msk [vmem:[%s347 + $0x30] sm:$0xf] %vm4950, %v4909
        %4955 = vst.msk [vmem:[%s347 + $0x40] sm:$0xf] %vm4950, %v4911
        %4956 = vst.msk [vmem:[%s347 + $0x50] sm:$0xf] %vm4950, %v4913
        %4957 = vst.msk [vmem:[%s347 + $0x60] sm:$0xf] %vm4950, %v4915
        %4958 = vst.msk [vmem:[%s347 + $0x70] sm:$0xf] %vm4950, %v4917
        %4959 = vst.msk [vmem:[%s347 + $0x80] sm:$0xf] %vm4950, %v4919
        %4960 = vst.msk [vmem:[%s347 + $0x90] sm:$0xf] %vm4950, %v4921
        %4961 = vst.msk [vmem:[%s347 + $0xa0] sm:$0xf] %vm4950, %v4923
        %4962 = vst.msk [vmem:[%s347 + $0xb0] sm:$0xf] %vm4950, %v4925
        %4963 = vst.msk [vmem:[%s347 + $0xc0] sm:$0xf] %vm4950, %v4927
        %4964 = vst.msk [vmem:[%s347 + $0xd0] sm:$0xf] %vm4950, %v4929
        %4965 = vst.msk [vmem:[%s347 + $0xe0] sm:$0xf] %vm4950, %v4931
        %4966 = vst.msk [vmem:[%s347 + $0xf0] sm:$0xf] %vm4950, %v4933
        %v4967 = vunpack.c.h.b16 %v1619
        %v4968 = vunpack.c.h.b16 %v1621
        %v4969 = vunpack.c.h.b16 %v1623
        %v4970 = vunpack.c.h.b16 %v1625
        %v4971 = vunpack.c.h.b16 %v1627
        %v4972 = vunpack.c.h.b16 %v1629
        %v4973 = vunpack.c.h.b16 %v1631
        %v4974 = vunpack.c.h.b16 %v1633
        %v4975 = vunpack.c.h.b16 %v1635
        %v4976 = vunpack.c.h.b16 %v1637
        %v4977 = vunpack.c.h.b16 %v1639
        %v4978 = vunpack.c.h.b16 %v1641
        %v4979 = vunpack.c.h.b16 %v1643
        %v4980 = vunpack.c.h.b16 %v1645
        %v4981 = vunpack.c.h.b16 %v1647
        %v4982 = vunpack.c.h.b16 %v1649
        %v4983 = vpack.c.b16 %v4968, %v4967
        %v4984 = vpack.c.b16 %v4970, %v4969
        %v4985 = vpack.c.b16 %v4972, %v4971
        %v4986 = vpack.c.b16 %v4974, %v4973
        %v4987 = vpack.c.b16 %v4976, %v4975
        %v4988 = vpack.c.b16 %v4978, %v4977
        %v4989 = vpack.c.b16 %v4980, %v4979
        %v4990 = vpack.c.b16 %v4982, %v4981
        %v4991 = vunpack.c.h.b16 %v2734
        %v4992 = vunpack.c.h.b16 %v2736
        %v4993 = vunpack.c.h.b16 %v2738
        %v4994 = vunpack.c.h.b16 %v2740
        %v4995 = vunpack.c.h.b16 %v2742
        %v4996 = vunpack.c.h.b16 %v2744
        %v4997 = vunpack.c.h.b16 %v2746
        %v4998 = vunpack.c.h.b16 %v2748
        %v4999 = vunpack.c.h.b16 %v2750
        %v5000 = vunpack.c.h.b16 %v2752
        %v5001 = vunpack.c.h.b16 %v2754
        %v5002 = vunpack.c.h.b16 %v2756
        %v5003 = vunpack.c.h.b16 %v2758
        %v5004 = vunpack.c.h.b16 %v2760
        %v5005 = vunpack.c.h.b16 %v2762
        %v5006 = vunpack.c.h.b16 %v2764
        %v5007 = vpack.c.b16 %v4992, %v4991
        %v5008 = vpack.c.b16 %v4994, %v4993
        %v5009 = vpack.c.b16 %v4996, %v4995
        %v5010 = vpack.c.b16 %v4998, %v4997
        %v5011 = vpack.c.b16 %v5000, %v4999
        %v5012 = vpack.c.b16 %v5002, %v5001
        %v5013 = vpack.c.b16 %v5004, %v5003
        %v5014 = vpack.c.b16 %v5006, %v5005
        %v5016 = vsel %vm1006, %v4983, 0
        %v5019 = vsel %vm1006, %v4984, 0
        %v5022 = vsel %vm1006, %v4985, 0
        %v5025 = vsel %vm1006, %v4986, 0
        %v5028 = vsel %vm1006, %v4987, 0
        %v5031 = vsel %vm1006, %v4988, 0
        %v5034 = vsel %vm1006, %v4989, 0
        %v5037 = vsel %vm1006, %v4990, 0
        %v5040 = vsel %vm1006, %v5007, 0
        %v5043 = vsel %vm1006, %v5008, 0
        %v5046 = vsel %vm1006, %v5009, 0
        %v5049 = vsel %vm1006, %v5010, 0
        %v5052 = vsel %vm1006, %v5011, 0
        %v5055 = vsel %vm1006, %v5012, 0
        %v5058 = vsel %vm1006, %v5013, 0
        %v5061 = vsel %vm1006, %v5014, 0
        %5063 = vmatpush.bf16.xpose.msra.mxu0 %v5061
        %5064 = vmatpush.bf16.xpose.msra.mxu0 %v5058
        %5065 = vmatpush.bf16.xpose.msra.mxu0 %v5055
        %5066 = vmatpush.bf16.xpose.msra.mxu0 %v5052
        %5067 = vmatpush.bf16.xpose.msra.mxu0 %v5049
        %5068 = vmatpush.bf16.xpose.msra.mxu0 %v5046
        %5069 = vmatpush.bf16.xpose.msra.mxu0 %v5043
        %5070 = vmatpush.bf16.xpose.msra.mxu0 %v5040
        %5071 = vmatmul.bf16.gmra.mxu0 %v5016
        %v5072 = vpop.f32.mrf.mxu0
        %v5073 = vadd.f32 0.0, %v5072
        %v5074 = vpop.f32.mrf.mxu0
        %v5075 = vadd.f32 0.0, %v5074
        %5076 = vmatmul.bf16.gmra.mxu0 %v5019
        %v5077 = vpop.f32.mrf.mxu0
        %v5078 = vadd.f32 0.0, %v5077
        %v5079 = vpop.f32.mrf.mxu0
        %v5080 = vadd.f32 0.0, %v5079
        %5081 = vmatmul.bf16.gmra.mxu0 %v5022
        %v5082 = vpop.f32.mrf.mxu0
        %v5083 = vadd.f32 0.0, %v5082
        %v5084 = vpop.f32.mrf.mxu0
        %v5085 = vadd.f32 0.0, %v5084
        %5086 = vmatmul.bf16.gmra.mxu0 %v5025
        %v5087 = vpop.f32.mrf.mxu0
        %v5088 = vadd.f32 0.0, %v5087
        %v5089 = vpop.f32.mrf.mxu0
        %v5090 = vadd.f32 0.0, %v5089
        %5091 = vmatmul.bf16.gmra.mxu0 %v5028
        %v5092 = vpop.f32.mrf.mxu0
        %v5093 = vadd.f32 0.0, %v5092
        %v5094 = vpop.f32.mrf.mxu0
        %v5095 = vadd.f32 0.0, %v5094
        %5096 = vmatmul.bf16.gmra.mxu0 %v5031
        %v5097 = vpop.f32.mrf.mxu0
        %v5098 = vadd.f32 0.0, %v5097
        %v5099 = vpop.f32.mrf.mxu0
        %v5100 = vadd.f32 0.0, %v5099
        %5101 = vmatmul.bf16.gmra.mxu0 %v5034
        %v5102 = vpop.f32.mrf.mxu0
        %v5103 = vadd.f32 0.0, %v5102
        %v5104 = vpop.f32.mrf.mxu0
        %v5105 = vadd.f32 0.0, %v5104
        %5106 = vmatmul.bf16.gmra.mxu0 %v5037
        %v5107 = vpop.f32.mrf.mxu0
        %v5108 = vadd.f32 0.0, %v5107
        %v5109 = vpop.f32.mrf.mxu0
        %v5110 = vadd.f32 0.0, %v5109
        %5111 = vdwg.mxu0
        %v5112 = vmul.f32 %v5073, 0.125
        %v5113 = vmul.f32 %v5075, 0.125
        %v5114 = vmul.f32 %v5078, 0.125
        %v5115 = vmul.f32 %v5080, 0.125
        %v5116 = vmul.f32 %v5083, 0.125
        %v5117 = vmul.f32 %v5085, 0.125
        %v5118 = vmul.f32 %v5088, 0.125
        %v5119 = vmul.f32 %v5090, 0.125
        %v5120 = vmul.f32 %v5093, 0.125
        %v5121 = vmul.f32 %v5095, 0.125
        %v5122 = vmul.f32 %v5098, 0.125
        %v5123 = vmul.f32 %v5100, 0.125
        %v5124 = vmul.f32 %v5103, 0.125
        %v5125 = vmul.f32 %v5105, 0.125
        %v5126 = vmul.f32 %v5108, 0.125
        %v5127 = vmul.f32 %v5110, 0.125
        %v5128 = vadd.f32 %v5112, %v4109
        %v5129 = vadd.f32 %v5113, %v4114
        %v5130 = vadd.f32 %v5114, %v4119
        %v5131 = vadd.f32 %v5115, %v4124
        %v5132 = vadd.f32 %v5116, %v4129
        %v5133 = vadd.f32 %v5117, %v4134
        %v5134 = vadd.f32 %v5118, %v4139
        %v5135 = vadd.f32 %v5119, %v4144
        %v5136 = vadd.f32 %v5120, %v4149
        %v5137 = vadd.f32 %v5121, %v4154
        %v5138 = vadd.f32 %v5122, %v4159
        %v5139 = vadd.f32 %v5123, %v4164
        %v5140 = vadd.f32 %v5124, %v4169
        %v5141 = vadd.f32 %v5125, %v4174
        %v5142 = vadd.f32 %v5126, %v4179
        %v5143 = vadd.f32 %v5127, %v4184
        %5144 = vmax.xlane.f32.xlu0 %v5128
        %v5145 = vpop.xlane.xlu0 %5144
        %5146 = vmax.xlane.f32.xlu0 %v5129
        %v5147 = vpop.xlane.xlu0 %5146
        %5148 = vmax.xlane.f32.xlu0 %v5130
        %v5149 = vpop.xlane.xlu0 %5148
        %5150 = vmax.xlane.f32.xlu0 %v5131
        %v5151 = vpop.xlane.xlu0 %5150
        %5152 = vmax.xlane.f32.xlu0 %v5132
        %v5153 = vpop.xlane.xlu0 %5152
        %5154 = vmax.xlane.f32.xlu0 %v5133
        %v5155 = vpop.xlane.xlu0 %5154
        %5156 = vmax.xlane.f32.xlu0 %v5134
        %v5157 = vpop.xlane.xlu0 %5156
        %5158 = vmax.xlane.f32.xlu0 %v5135
        %v5159 = vpop.xlane.xlu0 %5158
        %5160 = vmax.xlane.f32.xlu0 %v5136
        %v5161 = vpop.xlane.xlu0 %5160
        %5162 = vmax.xlane.f32.xlu0 %v5137
        %v5163 = vpop.xlane.xlu0 %5162
        %5164 = vmax.xlane.f32.xlu0 %v5138
        %v5165 = vpop.xlane.xlu0 %5164
        %5166 = vmax.xlane.f32.xlu0 %v5139
        %v5167 = vpop.xlane.xlu0 %5166
        %5168 = vmax.xlane.f32.xlu0 %v5140
        %v5169 = vpop.xlane.xlu0 %5168
        %5170 = vmax.xlane.f32.xlu0 %v5141
        %v5171 = vpop.xlane.xlu0 %5170
        %5172 = vmax.xlane.f32.xlu0 %v5142
        %v5173 = vpop.xlane.xlu0 %5172
        %5174 = vmax.xlane.f32.xlu0 %v5143
        %v5175 = vpop.xlane.xlu0 %5174
        %v5176 = vsub.f32 %v5128, %v5145
        %v5177 = vsub.f32 %v5129, %v5147
        %v5178 = vsub.f32 %v5130, %v5149
        %v5179 = vsub.f32 %v5131, %v5151
        %v5180 = vsub.f32 %v5132, %v5153
        %v5181 = vsub.f32 %v5133, %v5155
        %v5182 = vsub.f32 %v5134, %v5157
        %v5183 = vsub.f32 %v5135, %v5159
        %v5184 = vsub.f32 %v5136, %v5161
        %v5185 = vsub.f32 %v5137, %v5163
        %v5186 = vsub.f32 %v5138, %v5165
        %v5187 = vsub.f32 %v5139, %v5167
        %v5188 = vsub.f32 %v5140, %v5169
        %v5189 = vsub.f32 %v5141, %v5171
        %v5190 = vsub.f32 %v5142, %v5173
        %v5191 = vsub.f32 %v5143, %v5175
        %v5192 = vmul.f32 %v5176, 1.442695
        %v5193 = vpow.pop %v5192
        %v5194 = vmul.f32 %v5177, 1.442695
        %v5195 = vpow.pop %v5194
        %v5196 = vmul.f32 %v5178, 1.442695
        %v5197 = vpow.pop %v5196
        %v5198 = vmul.f32 %v5179, 1.442695
        %v5199 = vpow.pop %v5198
        %v5200 = vmul.f32 %v5180, 1.442695
        %v5201 = vpow.pop %v5200
        %v5202 = vmul.f32 %v5181, 1.442695
        %v5203 = vpow.pop %v5202
        %v5204 = vmul.f32 %v5182, 1.442695
        %v5205 = vpow.pop %v5204
        %v5206 = vmul.f32 %v5183, 1.442695
        %v5207 = vpow.pop %v5206
        %v5208 = vmul.f32 %v5184, 1.442695
        %v5209 = vpow.pop %v5208
        %v5210 = vmul.f32 %v5185, 1.442695
        %v5211 = vpow.pop %v5210
        %v5212 = vmul.f32 %v5186, 1.442695
        %v5213 = vpow.pop %v5212
        %v5214 = vmul.f32 %v5187, 1.442695
        %v5215 = vpow.pop %v5214
        %v5216 = vmul.f32 %v5188, 1.442695
        %v5217 = vpow.pop %v5216
        %v5218 = vmul.f32 %v5189, 1.442695
        %v5219 = vpow.pop %v5218
        %v5220 = vmul.f32 %v5190, 1.442695
        %v5221 = vpow.pop %v5220
        %v5222 = vmul.f32 %v5191, 1.442695
        %v5223 = vpow.pop %v5222
        %5224 = vadd.xlane.f32.xlu0 %v5193
        %v5225 = vpop.xlane.xlu0 %5224
        %5226 = vadd.xlane.f32.xlu0 %v5195
        %v5227 = vpop.xlane.xlu0 %5226
        %5228 = vadd.xlane.f32.xlu0 %v5197
        %v5229 = vpop.xlane.xlu0 %5228
        %5230 = vadd.xlane.f32.xlu0 %v5199
        %v5231 = vpop.xlane.xlu0 %5230
        %5232 = vadd.xlane.f32.xlu0 %v5201
        %v5233 = vpop.xlane.xlu0 %5232
        %5234 = vadd.xlane.f32.xlu0 %v5203
        %v5235 = vpop.xlane.xlu0 %5234
        %5236 = vadd.xlane.f32.xlu0 %v5205
        %v5237 = vpop.xlane.xlu0 %5236
        %5238 = vadd.xlane.f32.xlu0 %v5207
        %v5239 = vpop.xlane.xlu0 %5238
        %5240 = vadd.xlane.f32.xlu0 %v5209
        %v5241 = vpop.xlane.xlu0 %5240
        %5242 = vadd.xlane.f32.xlu0 %v5211
        %v5243 = vpop.xlane.xlu0 %5242
        %5244 = vadd.xlane.f32.xlu0 %v5213
        %v5245 = vpop.xlane.xlu0 %5244
        %5246 = vadd.xlane.f32.xlu0 %v5215
        %v5247 = vpop.xlane.xlu0 %5246
        %5248 = vadd.xlane.f32.xlu0 %v5217
        %v5249 = vpop.xlane.xlu0 %5248
        %5250 = vadd.xlane.f32.xlu0 %v5219
        %v5251 = vpop.xlane.xlu0 %5250
        %5252 = vadd.xlane.f32.xlu0 %v5221
        %v5253 = vpop.xlane.xlu0 %5252
        %5254 = vadd.xlane.f32.xlu0 %v5223
        %v5255 = vpop.xlane.xlu0 %5254
        %v5256 = vrcp.pop %v5225
        %v5257 = vrcp.pop %v5227
        %v5258 = vrcp.pop %v5229
        %v5259 = vrcp.pop %v5231
        %v5260 = vrcp.pop %v5233
        %v5261 = vrcp.pop %v5235
        %v5262 = vrcp.pop %v5237
        %v5263 = vrcp.pop %v5239
        %v5264 = vrcp.pop %v5241
        %v5265 = vrcp.pop %v5243
        %v5266 = vrcp.pop %v5245
        %v5267 = vrcp.pop %v5247
        %v5268 = vrcp.pop %v5249
        %v5269 = vrcp.pop %v5251
        %v5270 = vrcp.pop %v5253
        %v5271 = vrcp.pop %v5255
        %v5272 = vmul.f32 %v5193, %v5256
        %v5273 = vmul.f32 %v5195, %v5257
        %v5274 = vmul.f32 %v5197, %v5258
        %v5275 = vmul.f32 %v5199, %v5259
        %v5276 = vmul.f32 %v5201, %v5260
        %v5277 = vmul.f32 %v5203, %v5261
        %v5278 = vmul.f32 %v5205, %v5262
        %v5279 = vmul.f32 %v5207, %v5263
        %v5280 = vmul.f32 %v5209, %v5264
        %v5281 = vmul.f32 %v5211, %v5265
        %v5282 = vmul.f32 %v5213, %v5266
        %v5283 = vmul.f32 %v5215, %v5267
        %v5284 = vmul.f32 %v5217, %v5268
        %v5285 = vmul.f32 %v5219, %v5269
        %v5286 = vmul.f32 %v5221, %v5270
        %v5287 = vmul.f32 %v5223, %v5271
        %v5288 = vpack.c.bf16 %v5273, %v5272
        %v5289 = vpack.c.bf16 %v5275, %v5274
        %v5290 = vpack.c.bf16 %v5277, %v5276
        %v5291 = vpack.c.bf16 %v5279, %v5278
        %v5292 = vpack.c.bf16 %v5281, %v5280
        %v5293 = vpack.c.bf16 %v5283, %v5282
        %v5294 = vpack.c.bf16 %v5285, %v5284
        %v5295 = vpack.c.bf16 %v5287, %v5286
        %v5296 = vunpack.c.h.b16 %v3849
        %v5297 = vunpack.c.h.b16 %v3851
        %v5298 = vunpack.c.h.b16 %v3853
        %v5299 = vunpack.c.h.b16 %v3855
        %v5300 = vunpack.c.h.b16 %v3857
        %v5301 = vunpack.c.h.b16 %v3859
        %v5302 = vunpack.c.h.b16 %v3861
        %v5303 = vunpack.c.h.b16 %v3863
        %v5304 = vunpack.c.h.b16 %v3865
        %v5305 = vunpack.c.h.b16 %v3867
        %v5306 = vunpack.c.h.b16 %v3869
        %v5307 = vunpack.c.h.b16 %v3871
        %v5308 = vunpack.c.h.b16 %v3873
        %v5309 = vunpack.c.h.b16 %v3875
        %v5310 = vunpack.c.h.b16 %v3877
        %v5311 = vunpack.c.h.b16 %v3879
        %v5312 = vpack.c.b16 %v5297, %v5296
        %v5313 = vpack.c.b16 %v5299, %v5298
        %v5314 = vpack.c.b16 %v5301, %v5300
        %v5315 = vpack.c.b16 %v5303, %v5302
        %v5316 = vpack.c.b16 %v5305, %v5304
        %v5317 = vpack.c.b16 %v5307, %v5306
        %v5318 = vpack.c.b16 %v5309, %v5308
        %v5319 = vpack.c.b16 %v5311, %v5310
        %5328 = vmatpush.bf16.msra.mxu0 %v5319
        %5329 = vmatpush.bf16.msra.mxu0 %v5318
        %5330 = vmatpush.bf16.msra.mxu0 %v5317
        %5331 = vmatpush.bf16.msra.mxu0 %v5316
        %5332 = vmatpush.bf16.msra.mxu0 %v5315
        %5333 = vmatpush.bf16.msra.mxu0 %v5314
        %5334 = vmatpush.bf16.msra.mxu0 %v5313
        %5335 = vmatpush.bf16.msra.mxu0 %v5312
        %5336 = vmatmul.bf16.gmra.mxu0 %v5288
        %v5337 = vpop.f32.mrf.mxu0
        %v5338 = vadd.f32 0.0, %v5337
        %v5339 = vpop.f32.mrf.mxu0
        %v5340 = vadd.f32 0.0, %v5339
        %5341 = vmatmul.bf16.gmra.mxu0 %v5289
        %v5342 = vpop.f32.mrf.mxu0
        %v5343 = vadd.f32 0.0, %v5342
        %v5344 = vpop.f32.mrf.mxu0
        %v5345 = vadd.f32 0.0, %v5344
        %5346 = vmatmul.bf16.gmra.mxu0 %v5290
        %v5347 = vpop.f32.mrf.mxu0
        %v5348 = vadd.f32 0.0, %v5347
        %v5349 = vpop.f32.mrf.mxu0
        %v5350 = vadd.f32 0.0, %v5349
        %5351 = vmatmul.bf16.gmra.mxu0 %v5291
        %v5352 = vpop.f32.mrf.mxu0
        %v5353 = vadd.f32 0.0, %v5352
        %v5354 = vpop.f32.mrf.mxu0
        %v5355 = vadd.f32 0.0, %v5354
        %5356 = vmatmul.bf16.gmra.mxu0 %v5292
        %v5357 = vpop.f32.mrf.mxu0
        %v5358 = vadd.f32 0.0, %v5357
        %v5359 = vpop.f32.mrf.mxu0
        %v5360 = vadd.f32 0.0, %v5359
        %5361 = vmatmul.bf16.gmra.mxu0 %v5293
        %v5362 = vpop.f32.mrf.mxu0
        %v5363 = vadd.f32 0.0, %v5362
        %v5364 = vpop.f32.mrf.mxu0
        %v5365 = vadd.f32 0.0, %v5364
        %5366 = vmatmul.bf16.gmra.mxu0 %v5294
        %v5367 = vpop.f32.mrf.mxu0
        %v5368 = vadd.f32 0.0, %v5367
        %v5369 = vpop.f32.mrf.mxu0
        %v5370 = vadd.f32 0.0, %v5369
        %5371 = vmatmul.bf16.gmra.mxu0 %v5295
        %v5372 = vpop.f32.mrf.mxu0
        %v5373 = vadd.f32 0.0, %v5372
        %v5374 = vpop.f32.mrf.mxu0
        %v5375 = vadd.f32 0.0, %v5374
        %5376 = vdwg.mxu0
        %v5377 = vpack.c.bf16 %v5338, %v5338
        %v5378 = vpack.c.bf16 %v5340, %v5340
        %v5379 = vpack.c.bf16 %v5343, %v5343
        %v5380 = vpack.c.bf16 %v5345, %v5345
        %v5381 = vpack.c.bf16 %v5348, %v5348
        %v5382 = vpack.c.bf16 %v5350, %v5350
        %v5383 = vpack.c.bf16 %v5353, %v5353
        %v5384 = vpack.c.bf16 %v5355, %v5355
        %v5385 = vpack.c.bf16 %v5358, %v5358
        %v5386 = vpack.c.bf16 %v5360, %v5360
        %v5387 = vpack.c.bf16 %v5363, %v5363
        %v5388 = vpack.c.bf16 %v5365, %v5365
        %v5389 = vpack.c.bf16 %v5368, %v5368
        %v5390 = vpack.c.bf16 %v5370, %v5370
        %v5391 = vpack.c.bf16 %v5373, %v5373
        %v5392 = vpack.c.bf16 %v5375, %v5375
        %5393 = vst.msk [vmem:[%s347 + $0x4] sm:$0xf] %vm4467, %v5377
        %5394 = vst.msk [vmem:[%s347 + $0x14] sm:$0xf] %vm4467, %v5378
        %5395 = vst.msk [vmem:[%s347 + $0x24] sm:$0xf] %vm4467, %v5379
        %5396 = vst.msk [vmem:[%s347 + $0x34] sm:$0xf] %vm4467, %v5380
        %5397 = vst.msk [vmem:[%s347 + $0x44] sm:$0xf] %vm4467, %v5381
        %5398 = vst.msk [vmem:[%s347 + $0x54] sm:$0xf] %vm4467, %v5382
        %5399 = vst.msk [vmem:[%s347 + $0x64] sm:$0xf] %vm4467, %v5383
        %5400 = vst.msk [vmem:[%s347 + $0x74] sm:$0xf] %vm4467, %v5384
        %5401 = vst.msk [vmem:[%s347 + $0x84] sm:$0xf] %vm4467, %v5385
        %5402 = vst.msk [vmem:[%s347 + $0x94] sm:$0xf] %vm4467, %v5386
        %5403 = vst.msk [vmem:[%s347 + $0xa4] sm:$0xf] %vm4467, %v5387
        %5404 = vst.msk [vmem:[%s347 + $0xb4] sm:$0xf] %vm4467, %v5388
        %5405 = vst.msk [vmem:[%s347 + $0xc4] sm:$0xf] %vm4467, %v5389
        %5406 = vst.msk [vmem:[%s347 + $0xd4] sm:$0xf] %vm4467, %v5390
        %5407 = vst.msk [vmem:[%s347 + $0xe4] sm:$0xf] %vm4467, %v5391
        %5408 = vst.msk [vmem:[%s347 + $0xf4] sm:$0xf] %vm4467, %v5392
        %5409 = vrot.lane.b32.xlu0 %v4983, 64
        %v5410 = vpop.permute.xlu0 %5409
        %5411 = vrot.lane.b32.xlu0 %v4984, 64
        %v5412 = vpop.permute.xlu0 %5411
        %5413 = vrot.lane.b32.xlu0 %v4985, 64
        %v5414 = vpop.permute.xlu0 %5413
        %5415 = vrot.lane.b32.xlu0 %v4986, 64
        %v5416 = vpop.permute.xlu0 %5415
        %5417 = vrot.lane.b32.xlu0 %v4987, 64
        %v5418 = vpop.permute.xlu0 %5417
        %5419 = vrot.lane.b32.xlu0 %v4988, 64
        %v5420 = vpop.permute.xlu0 %5419
        %5421 = vrot.lane.b32.xlu0 %v4989, 64
        %v5422 = vpop.permute.xlu0 %5421
        %5423 = vrot.lane.b32.xlu0 %v4990, 64
        %v5424 = vpop.permute.xlu0 %5423
        %5425 = vrot.lane.b32.xlu0 %v5007, 64
        %v5426 = vpop.permute.xlu0 %5425
        %5427 = vrot.lane.b32.xlu0 %v5008, 64
        %v5428 = vpop.permute.xlu0 %5427
        %5429 = vrot.lane.b32.xlu0 %v5009, 64
        %v5430 = vpop.permute.xlu0 %5429
        %5431 = vrot.lane.b32.xlu0 %v5010, 64
        %v5432 = vpop.permute.xlu0 %5431
        %5433 = vrot.lane.b32.xlu0 %v5011, 64
        %v5434 = vpop.permute.xlu0 %5433
        %5435 = vrot.lane.b32.xlu0 %v5012, 64
        %v5436 = vpop.permute.xlu0 %5435
        %5437 = vrot.lane.b32.xlu0 %v5013, 64
        %v5438 = vpop.permute.xlu0 %5437
        %5439 = vrot.lane.b32.xlu0 %v5014, 64
        %v5440 = vpop.permute.xlu0 %5439
        %v5442 = vsel %vm1006, %v5410, 0
        %v5445 = vsel %vm1006, %v5412, 0
        %v5448 = vsel %vm1006, %v5414, 0
        %v5451 = vsel %vm1006, %v5416, 0
        %v5454 = vsel %vm1006, %v5418, 0
        %v5457 = vsel %vm1006, %v5420, 0
        %v5460 = vsel %vm1006, %v5422, 0
        %v5463 = vsel %vm1006, %v5424, 0
        %v5466 = vsel %vm1006, %v5426, 0
        %v5469 = vsel %vm1006, %v5428, 0
        %v5472 = vsel %vm1006, %v5430, 0
        %v5475 = vsel %vm1006, %v5432, 0
        %v5478 = vsel %vm1006, %v5434, 0
        %v5481 = vsel %vm1006, %v5436, 0
        %v5484 = vsel %vm1006, %v5438, 0
        %v5487 = vsel %vm1006, %v5440, 0
        %5489 = vmatpush.bf16.xpose.msra.mxu0 %v5487
        %5490 = vmatpush.bf16.xpose.msra.mxu0 %v5484
        %5491 = vmatpush.bf16.xpose.msra.mxu0 %v5481
        %5492 = vmatpush.bf16.xpose.msra.mxu0 %v5478
        %5493 = vmatpush.bf16.xpose.msra.mxu0 %v5475
        %5494 = vmatpush.bf16.xpose.msra.mxu0 %v5472
        %5495 = vmatpush.bf16.xpose.msra.mxu0 %v5469
        %5496 = vmatpush.bf16.xpose.msra.mxu0 %v5466
        %5497 = vmatmul.bf16.gmra.mxu0 %v5442
        %v5498 = vpop.f32.mrf.mxu0
        %v5499 = vadd.f32 0.0, %v5498
        %v5500 = vpop.f32.mrf.mxu0
        %v5501 = vadd.f32 0.0, %v5500
        %5502 = vmatmul.bf16.gmra.mxu0 %v5445
        %v5503 = vpop.f32.mrf.mxu0
        %v5504 = vadd.f32 0.0, %v5503
        %v5505 = vpop.f32.mrf.mxu0
        %v5506 = vadd.f32 0.0, %v5505
        %5507 = vmatmul.bf16.gmra.mxu0 %v5448
        %v5508 = vpop.f32.mrf.mxu0
        %v5509 = vadd.f32 0.0, %v5508
        %v5510 = vpop.f32.mrf.mxu0
        %v5511 = vadd.f32 0.0, %v5510
        %5512 = vmatmul.bf16.gmra.mxu0 %v5451
        %v5513 = vpop.f32.mrf.mxu0
        %v5514 = vadd.f32 0.0, %v5513
        %v5515 = vpop.f32.mrf.mxu0
        %v5516 = vadd.f32 0.0, %v5515
        %5517 = vmatmul.bf16.gmra.mxu0 %v5454
        %v5518 = vpop.f32.mrf.mxu0
        %v5519 = vadd.f32 0.0, %v5518
        %v5520 = vpop.f32.mrf.mxu0
        %v5521 = vadd.f32 0.0, %v5520
        %5522 = vmatmul.bf16.gmra.mxu0 %v5457
        %v5523 = vpop.f32.mrf.mxu0
        %v5524 = vadd.f32 0.0, %v5523
        %v5525 = vpop.f32.mrf.mxu0
        %v5526 = vadd.f32 0.0, %v5525
        %5527 = vmatmul.bf16.gmra.mxu0 %v5460
        %v5528 = vpop.f32.mrf.mxu0
        %v5529 = vadd.f32 0.0, %v5528
        %v5530 = vpop.f32.mrf.mxu0
        %v5531 = vadd.f32 0.0, %v5530
        %5532 = vmatmul.bf16.gmra.mxu0 %v5463
        %v5533 = vpop.f32.mrf.mxu0
        %v5534 = vadd.f32 0.0, %v5533
        %v5535 = vpop.f32.mrf.mxu0
        %v5536 = vadd.f32 0.0, %v5535
        %5537 = vdwg.mxu0
        %v5538 = vmul.f32 %v5499, 0.125
        %v5539 = vmul.f32 %v5501, 0.125
        %v5540 = vmul.f32 %v5504, 0.125
        %v5541 = vmul.f32 %v5506, 0.125
        %v5542 = vmul.f32 %v5509, 0.125
        %v5543 = vmul.f32 %v5511, 0.125
        %v5544 = vmul.f32 %v5514, 0.125
        %v5545 = vmul.f32 %v5516, 0.125
        %v5546 = vmul.f32 %v5519, 0.125
        %v5547 = vmul.f32 %v5521, 0.125
        %v5548 = vmul.f32 %v5524, 0.125
        %v5549 = vmul.f32 %v5526, 0.125
        %v5550 = vmul.f32 %v5529, 0.125
        %v5551 = vmul.f32 %v5531, 0.125
        %v5552 = vmul.f32 %v5534, 0.125
        %v5553 = vmul.f32 %v5536, 0.125
        %v5554 = vadd.f32 %v5538, %v4109
        %v5555 = vadd.f32 %v5539, %v4114
        %v5556 = vadd.f32 %v5540, %v4119
        %v5557 = vadd.f32 %v5541, %v4124
        %v5558 = vadd.f32 %v5542, %v4129
        %v5559 = vadd.f32 %v5543, %v4134
        %v5560 = vadd.f32 %v5544, %v4139
        %v5561 = vadd.f32 %v5545, %v4144
        %v5562 = vadd.f32 %v5546, %v4149
        %v5563 = vadd.f32 %v5547, %v4154
        %v5564 = vadd.f32 %v5548, %v4159
        %v5565 = vadd.f32 %v5549, %v4164
        %v5566 = vadd.f32 %v5550, %v4169
        %v5567 = vadd.f32 %v5551, %v4174
        %v5568 = vadd.f32 %v5552, %v4179
        %v5569 = vadd.f32 %v5553, %v4184
        %5570 = vmax.xlane.f32.xlu0 %v5554
        %v5571 = vpop.xlane.xlu0 %5570
        %5572 = vmax.xlane.f32.xlu0 %v5555
        %v5573 = vpop.xlane.xlu0 %5572
        %5574 = vmax.xlane.f32.xlu0 %v5556
        %v5575 = vpop.xlane.xlu0 %5574
        %5576 = vmax.xlane.f32.xlu0 %v5557
        %v5577 = vpop.xlane.xlu0 %5576
        %5578 = vmax.xlane.f32.xlu0 %v5558
        %v5579 = vpop.xlane.xlu0 %5578
        %5580 = vmax.xlane.f32.xlu0 %v5559
        %v5581 = vpop.xlane.xlu0 %5580
        %5582 = vmax.xlane.f32.xlu0 %v5560
        %v5583 = vpop.xlane.xlu0 %5582
        %5584 = vmax.xlane.f32.xlu0 %v5561
        %v5585 = vpop.xlane.xlu0 %5584
        %5586 = vmax.xlane.f32.xlu0 %v5562
        %v5587 = vpop.xlane.xlu0 %5586
        %5588 = vmax.xlane.f32.xlu0 %v5563
        %v5589 = vpop.xlane.xlu0 %5588
        %5590 = vmax.xlane.f32.xlu0 %v5564
        %v5591 = vpop.xlane.xlu0 %5590
        %5592 = vmax.xlane.f32.xlu0 %v5565
        %v5593 = vpop.xlane.xlu0 %5592
        %5594 = vmax.xlane.f32.xlu0 %v5566
        %v5595 = vpop.xlane.xlu0 %5594
        %5596 = vmax.xlane.f32.xlu0 %v5567
        %v5597 = vpop.xlane.xlu0 %5596
        %5598 = vmax.xlane.f32.xlu0 %v5568
        %v5599 = vpop.xlane.xlu0 %5598
        %5600 = vmax.xlane.f32.xlu0 %v5569
        %v5601 = vpop.xlane.xlu0 %5600
        %v5602 = vsub.f32 %v5554, %v5571
        %v5603 = vsub.f32 %v5555, %v5573
        %v5604 = vsub.f32 %v5556, %v5575
        %v5605 = vsub.f32 %v5557, %v5577
        %v5606 = vsub.f32 %v5558, %v5579
        %v5607 = vsub.f32 %v5559, %v5581
        %v5608 = vsub.f32 %v5560, %v5583
        %v5609 = vsub.f32 %v5561, %v5585
        %v5610 = vsub.f32 %v5562, %v5587
        %v5611 = vsub.f32 %v5563, %v5589
        %v5612 = vsub.f32 %v5564, %v5591
        %v5613 = vsub.f32 %v5565, %v5593
        %v5614 = vsub.f32 %v5566, %v5595
        %v5615 = vsub.f32 %v5567, %v5597
        %v5616 = vsub.f32 %v5568, %v5599
        %v5617 = vsub.f32 %v5569, %v5601
        %v5618 = vmul.f32 %v5602, 1.442695
        %v5619 = vpow.pop %v5618
        %v5620 = vmul.f32 %v5603, 1.442695
        %v5621 = vpow.pop %v5620
        %v5622 = vmul.f32 %v5604, 1.442695
        %v5623 = vpow.pop %v5622
        %v5624 = vmul.f32 %v5605, 1.442695
        %v5625 = vpow.pop %v5624
        %v5626 = vmul.f32 %v5606, 1.442695
        %v5627 = vpow.pop %v5626
        %v5628 = vmul.f32 %v5607, 1.442695
        %v5629 = vpow.pop %v5628
        %v5630 = vmul.f32 %v5608, 1.442695
        %v5631 = vpow.pop %v5630
        %v5632 = vmul.f32 %v5609, 1.442695
        %v5633 = vpow.pop %v5632
        %v5634 = vmul.f32 %v5610, 1.442695
        %v5635 = vpow.pop %v5634
        %v5636 = vmul.f32 %v5611, 1.442695
        %v5637 = vpow.pop %v5636
        %v5638 = vmul.f32 %v5612, 1.442695
        %v5639 = vpow.pop %v5638
        %v5640 = vmul.f32 %v5613, 1.442695
        %v5641 = vpow.pop %v5640
        %v5642 = vmul.f32 %v5614, 1.442695
        %v5643 = vpow.pop %v5642
        %v5644 = vmul.f32 %v5615, 1.442695
        %v5645 = vpow.pop %v5644
        %v5646 = vmul.f32 %v5616, 1.442695
        %v5647 = vpow.pop %v5646
        %v5648 = vmul.f32 %v5617, 1.442695
        %v5649 = vpow.pop %v5648
        %5650 = vadd.xlane.f32.xlu0 %v5619
        %v5651 = vpop.xlane.xlu0 %5650
        %5652 = vadd.xlane.f32.xlu0 %v5621
        %v5653 = vpop.xlane.xlu0 %5652
        %5654 = vadd.xlane.f32.xlu0 %v5623
        %v5655 = vpop.xlane.xlu0 %5654
        %5656 = vadd.xlane.f32.xlu0 %v5625
        %v5657 = vpop.xlane.xlu0 %5656
        %5658 = vadd.xlane.f32.xlu0 %v5627
        %v5659 = vpop.xlane.xlu0 %5658
        %5660 = vadd.xlane.f32.xlu0 %v5629
        %v5661 = vpop.xlane.xlu0 %5660
        %5662 = vadd.xlane.f32.xlu0 %v5631
        %v5663 = vpop.xlane.xlu0 %5662
        %5664 = vadd.xlane.f32.xlu0 %v5633
        %v5665 = vpop.xlane.xlu0 %5664
        %5666 = vadd.xlane.f32.xlu0 %v5635
        %v5667 = vpop.xlane.xlu0 %5666
        %5668 = vadd.xlane.f32.xlu0 %v5637
        %v5669 = vpop.xlane.xlu0 %5668
        %5670 = vadd.xlane.f32.xlu0 %v5639
        %v5671 = vpop.xlane.xlu0 %5670
        %5672 = vadd.xlane.f32.xlu0 %v5641
        %v5673 = vpop.xlane.xlu0 %5672
        %5674 = vadd.xlane.f32.xlu0 %v5643
        %v5675 = vpop.xlane.xlu0 %5674
        %5676 = vadd.xlane.f32.xlu0 %v5645
        %v5677 = vpop.xlane.xlu0 %5676
        %5678 = vadd.xlane.f32.xlu0 %v5647
        %v5679 = vpop.xlane.xlu0 %5678
        %5680 = vadd.xlane.f32.xlu0 %v5649
        %v5681 = vpop.xlane.xlu0 %5680
        %v5682 = vrcp.pop %v5651
        %v5683 = vrcp.pop %v5653
        %v5684 = vrcp.pop %v5655
        %v5685 = vrcp.pop %v5657
        %v5686 = vrcp.pop %v5659
        %v5687 = vrcp.pop %v5661
        %v5688 = vrcp.pop %v5663
        %v5689 = vrcp.pop %v5665
        %v5690 = vrcp.pop %v5667
        %v5691 = vrcp.pop %v5669
        %v5692 = vrcp.pop %v5671
        %v5693 = vrcp.pop %v5673
        %v5694 = vrcp.pop %v5675
        %v5695 = vrcp.pop %v5677
        %v5696 = vrcp.pop %v5679
        %v5697 = vrcp.pop %v5681
        %v5698 = vmul.f32 %v5619, %v5682
        %v5699 = vmul.f32 %v5621, %v5683
        %v5700 = vmul.f32 %v5623, %v5684
        %v5701 = vmul.f32 %v5625, %v5685
        %v5702 = vmul.f32 %v5627, %v5686
        %v5703 = vmul.f32 %v5629, %v5687
        %v5704 = vmul.f32 %v5631, %v5688
        %v5705 = vmul.f32 %v5633, %v5689
        %v5706 = vmul.f32 %v5635, %v5690
        %v5707 = vmul.f32 %v5637, %v5691
        %v5708 = vmul.f32 %v5639, %v5692
        %v5709 = vmul.f32 %v5641, %v5693
        %v5710 = vmul.f32 %v5643, %v5694
        %v5711 = vmul.f32 %v5645, %v5695
        %v5712 = vmul.f32 %v5647, %v5696
        %v5713 = vmul.f32 %v5649, %v5697
        %v5714 = vpack.c.bf16 %v5699, %v5698
        %v5715 = vpack.c.bf16 %v5701, %v5700
        %v5716 = vpack.c.bf16 %v5703, %v5702
        %v5717 = vpack.c.bf16 %v5705, %v5704
        %v5718 = vpack.c.bf16 %v5707, %v5706
        %v5719 = vpack.c.bf16 %v5709, %v5708
        %v5720 = vpack.c.bf16 %v5711, %v5710
        %v5721 = vpack.c.bf16 %v5713, %v5712
        %5722 = vrot.lane.b32.xlu0 %v5312, 64
        %v5723 = vpop.permute.xlu0 %5722
        %5724 = vrot.lane.b32.xlu0 %v5313, 64
        %v5725 = vpop.permute.xlu0 %5724
        %5726 = vrot.lane.b32.xlu0 %v5314, 64
        %v5727 = vpop.permute.xlu0 %5726
        %5728 = vrot.lane.b32.xlu0 %v5315, 64
        %v5729 = vpop.permute.xlu0 %5728
        %5730 = vrot.lane.b32.xlu0 %v5316, 64
        %v5731 = vpop.permute.xlu0 %5730
        %5732 = vrot.lane.b32.xlu0 %v5317, 64
        %v5733 = vpop.permute.xlu0 %5732
        %5734 = vrot.lane.b32.xlu0 %v5318, 64
        %v5735 = vpop.permute.xlu0 %5734
        %5736 = vrot.lane.b32.xlu0 %v5319, 64
        %v5737 = vpop.permute.xlu0 %5736
        %5746 = vmatpush.bf16.msra.mxu0 %v5737
        %5747 = vmatpush.bf16.msra.mxu0 %v5735
        %5748 = vmatpush.bf16.msra.mxu0 %v5733
        %5749 = vmatpush.bf16.msra.mxu0 %v5731
        %5750 = vmatpush.bf16.msra.mxu0 %v5729
        %5751 = vmatpush.bf16.msra.mxu0 %v5727
        %5752 = vmatpush.bf16.msra.mxu0 %v5725
        %5753 = vmatpush.bf16.msra.mxu0 %v5723
        %5754 = vmatmul.bf16.gmra.mxu0 %v5714
        %v5755 = vpop.f32.mrf.mxu0
        %v5756 = vadd.f32 0.0, %v5755
        %v5757 = vpop.f32.mrf.mxu0
        %v5758 = vadd.f32 0.0, %v5757
        %5759 = vmatmul.bf16.gmra.mxu0 %v5715
        %v5760 = vpop.f32.mrf.mxu0
        %v5761 = vadd.f32 0.0, %v5760
        %v5762 = vpop.f32.mrf.mxu0
        %v5763 = vadd.f32 0.0, %v5762
        %5764 = vmatmul.bf16.gmra.mxu0 %v5716
        %v5765 = vpop.f32.mrf.mxu0
        %v5766 = vadd.f32 0.0, %v5765
        %v5767 = vpop.f32.mrf.mxu0
        %v5768 = vadd.f32 0.0, %v5767
        %5769 = vmatmul.bf16.gmra.mxu0 %v5717
        %v5770 = vpop.f32.mrf.mxu0
        %v5771 = vadd.f32 0.0, %v5770
        %v5772 = vpop.f32.mrf.mxu0
        %v5773 = vadd.f32 0.0, %v5772
        %5774 = vmatmul.bf16.gmra.mxu0 %v5718
        %v5775 = vpop.f32.mrf.mxu0
        %v5776 = vadd.f32 0.0, %v5775
        %v5777 = vpop.f32.mrf.mxu0
        %v5778 = vadd.f32 0.0, %v5777
        %5779 = vmatmul.bf16.gmra.mxu0 %v5719
        %v5780 = vpop.f32.mrf.mxu0
        %v5781 = vadd.f32 0.0, %v5780
        %v5782 = vpop.f32.mrf.mxu0
        %v5783 = vadd.f32 0.0, %v5782
        %5784 = vmatmul.bf16.gmra.mxu0 %v5720
        %v5785 = vpop.f32.mrf.mxu0
        %v5786 = vadd.f32 0.0, %v5785
        %v5787 = vpop.f32.mrf.mxu0
        %v5788 = vadd.f32 0.0, %v5787
        %5789 = vmatmul.bf16.gmra.mxu0 %v5721
        %v5790 = vpop.f32.mrf.mxu0
        %v5791 = vadd.f32 0.0, %v5790
        %v5792 = vpop.f32.mrf.mxu0
        %v5793 = vadd.f32 0.0, %v5792
        %5794 = vdwg.mxu0
        %v5795 = vpack.c.bf16 %v5756, %v5756
        %v5796 = vpack.c.bf16 %v5758, %v5758
        %v5797 = vpack.c.bf16 %v5761, %v5761
        %v5798 = vpack.c.bf16 %v5763, %v5763
        %v5799 = vpack.c.bf16 %v5766, %v5766
        %v5800 = vpack.c.bf16 %v5768, %v5768
        %v5801 = vpack.c.bf16 %v5771, %v5771
        %v5802 = vpack.c.bf16 %v5773, %v5773
        %v5803 = vpack.c.bf16 %v5776, %v5776
        %v5804 = vpack.c.bf16 %v5778, %v5778
        %v5805 = vpack.c.bf16 %v5781, %v5781
        %v5806 = vpack.c.bf16 %v5783, %v5783
        %v5807 = vpack.c.bf16 %v5786, %v5786
        %v5808 = vpack.c.bf16 %v5788, %v5788
        %v5809 = vpack.c.bf16 %v5791, %v5791
        %v5810 = vpack.c.bf16 %v5793, %v5793
        %5827 = vrot.lane.b32.xlu0 %v5795, 64
        %v5828 = vpop.permute.xlu0 %5827
        %5829 = vrot.lane.b32.xlu0 %v5796, 64
        %v5830 = vpop.permute.xlu0 %5829
        %5831 = vrot.lane.b32.xlu0 %v5797, 64
        %v5832 = vpop.permute.xlu0 %5831
        %5833 = vrot.lane.b32.xlu0 %v5798, 64
        %v5834 = vpop.permute.xlu0 %5833
        %5835 = vrot.lane.b32.xlu0 %v5799, 64
        %v5836 = vpop.permute.xlu0 %5835
        %5837 = vrot.lane.b32.xlu0 %v5800, 64
        %v5838 = vpop.permute.xlu0 %5837
        %5839 = vrot.lane.b32.xlu0 %v5801, 64
        %v5840 = vpop.permute.xlu0 %5839
        %5841 = vrot.lane.b32.xlu0 %v5802, 64
        %v5842 = vpop.permute.xlu0 %5841
        %5843 = vrot.lane.b32.xlu0 %v5803, 64
        %v5844 = vpop.permute.xlu0 %5843
        %5845 = vrot.lane.b32.xlu0 %v5804, 64
        %v5846 = vpop.permute.xlu0 %5845
        %5847 = vrot.lane.b32.xlu0 %v5805, 64
        %v5848 = vpop.permute.xlu0 %5847
        %5849 = vrot.lane.b32.xlu0 %v5806, 64
        %v5850 = vpop.permute.xlu0 %5849
        %5851 = vrot.lane.b32.xlu0 %v5807, 64
        %v5852 = vpop.permute.xlu0 %5851
        %5853 = vrot.lane.b32.xlu0 %v5808, 64
        %v5854 = vpop.permute.xlu0 %5853
        %5855 = vrot.lane.b32.xlu0 %v5809, 64
        %v5856 = vpop.permute.xlu0 %5855
        %5857 = vrot.lane.b32.xlu0 %v5810, 64
        %v5858 = vpop.permute.xlu0 %5857
        %5875 = vst.msk [vmem:[%s347 + $0x4] sm:$0xf] %vm4950, %v5828
        %5876 = vst.msk [vmem:[%s347 + $0x14] sm:$0xf] %vm4950, %v5830
        %5877 = vst.msk [vmem:[%s347 + $0x24] sm:$0xf] %vm4950, %v5832
        %5878 = vst.msk [vmem:[%s347 + $0x34] sm:$0xf] %vm4950, %v5834
        %5879 = vst.msk [vmem:[%s347 + $0x44] sm:$0xf] %vm4950, %v5836
        %5880 = vst.msk [vmem:[%s347 + $0x54] sm:$0xf] %vm4950, %v5838
        %5881 = vst.msk [vmem:[%s347 + $0x64] sm:$0xf] %vm4950, %v5840
        %5882 = vst.msk [vmem:[%s347 + $0x74] sm:$0xf] %vm4950, %v5842
        %5883 = vst.msk [vmem:[%s347 + $0x84] sm:$0xf] %vm4950, %v5844
        %5884 = vst.msk [vmem:[%s347 + $0x94] sm:$0xf] %vm4950, %v5846
        %5885 = vst.msk [vmem:[%s347 + $0xa4] sm:$0xf] %vm4950, %v5848
        %5886 = vst.msk [vmem:[%s347 + $0xb4] sm:$0xf] %vm4950, %v5850
        %5887 = vst.msk [vmem:[%s347 + $0xc4] sm:$0xf] %vm4950, %v5852
        %5888 = vst.msk [vmem:[%s347 + $0xd4] sm:$0xf] %vm4950, %v5854
        %5889 = vst.msk [vmem:[%s347 + $0xe4] sm:$0xf] %vm4950, %v5856
        %5890 = vst.msk [vmem:[%s347 + $0xf4] sm:$0xf] %vm4950, %v5858
        %v5907 = vunpack.c.l.b16 %v1620
        %v5908 = vunpack.c.l.b16 %v1622
        %v5909 = vunpack.c.l.b16 %v1624
        %v5910 = vunpack.c.l.b16 %v1626
        %v5911 = vunpack.c.l.b16 %v1628
        %v5912 = vunpack.c.l.b16 %v1630
        %v5913 = vunpack.c.l.b16 %v1632
        %v5914 = vunpack.c.l.b16 %v1634
        %v5915 = vunpack.c.l.b16 %v1636
        %v5916 = vunpack.c.l.b16 %v1638
        %v5917 = vunpack.c.l.b16 %v1640
        %v5918 = vunpack.c.l.b16 %v1642
        %v5919 = vunpack.c.l.b16 %v1644
        %v5920 = vunpack.c.l.b16 %v1646
        %v5921 = vunpack.c.l.b16 %v1648
        %v5922 = vunpack.c.l.b16 %v1650
        %v5923 = vpack.c.b16 %v5908, %v5907
        %v5924 = vpack.c.b16 %v5910, %v5909
        %v5925 = vpack.c.b16 %v5912, %v5911
        %v5926 = vpack.c.b16 %v5914, %v5913
        %v5927 = vpack.c.b16 %v5916, %v5915
        %v5928 = vpack.c.b16 %v5918, %v5917
        %v5929 = vpack.c.b16 %v5920, %v5919
        %v5930 = vpack.c.b16 %v5922, %v5921
        %v5947 = vunpack.c.l.b16 %v2735
        %v5948 = vunpack.c.l.b16 %v2737
        %v5949 = vunpack.c.l.b16 %v2739
        %v5950 = vunpack.c.l.b16 %v2741
        %v5951 = vunpack.c.l.b16 %v2743
        %v5952 = vunpack.c.l.b16 %v2745
        %v5953 = vunpack.c.l.b16 %v2747
        %v5954 = vunpack.c.l.b16 %v2749
        %v5955 = vunpack.c.l.b16 %v2751
        %v5956 = vunpack.c.l.b16 %v2753
        %v5957 = vunpack.c.l.b16 %v2755
        %v5958 = vunpack.c.l.b16 %v2757
        %v5959 = vunpack.c.l.b16 %v2759
        %v5960 = vunpack.c.l.b16 %v2761
        %v5961 = vunpack.c.l.b16 %v2763
        %v5962 = vunpack.c.l.b16 %v2765
        %v5963 = vpack.c.b16 %v5948, %v5947
        %v5964 = vpack.c.b16 %v5950, %v5949
        %v5965 = vpack.c.b16 %v5952, %v5951
        %v5966 = vpack.c.b16 %v5954, %v5953
        %v5967 = vpack.c.b16 %v5956, %v5955
        %v5968 = vpack.c.b16 %v5958, %v5957
        %v5969 = vpack.c.b16 %v5960, %v5959
        %v5970 = vpack.c.b16 %v5962, %v5961
        %v5972 = vsel %vm1006, %v5923, 0
        %v5975 = vsel %vm1006, %v5924, 0
        %v5978 = vsel %vm1006, %v5925, 0
        %v5981 = vsel %vm1006, %v5926, 0
        %v5984 = vsel %vm1006, %v5927, 0
        %v5987 = vsel %vm1006, %v5928, 0
        %v5990 = vsel %vm1006, %v5929, 0
        %v5993 = vsel %vm1006, %v5930, 0
        %v5996 = vsel %vm1006, %v5963, 0
        %v5999 = vsel %vm1006, %v5964, 0
        %v6002 = vsel %vm1006, %v5965, 0
        %v6005 = vsel %vm1006, %v5966, 0
        %v6008 = vsel %vm1006, %v5967, 0
        %v6011 = vsel %vm1006, %v5968, 0
        %v6014 = vsel %vm1006, %v5969, 0
        %v6017 = vsel %vm1006, %v5970, 0
        %6019 = vmatpush.bf16.xpose.msra.mxu0 %v6017
        %6020 = vmatpush.bf16.xpose.msra.mxu0 %v6014
        %6021 = vmatpush.bf16.xpose.msra.mxu0 %v6011
        %6022 = vmatpush.bf16.xpose.msra.mxu0 %v6008
        %6023 = vmatpush.bf16.xpose.msra.mxu0 %v6005
        %6024 = vmatpush.bf16.xpose.msra.mxu0 %v6002
        %6025 = vmatpush.bf16.xpose.msra.mxu0 %v5999
        %6026 = vmatpush.bf16.xpose.msra.mxu0 %v5996
        %6027 = vmatmul.bf16.gmra.mxu0 %v5972
        %v6028 = vpop.f32.mrf.mxu0
        %v6029 = vadd.f32 0.0, %v6028
        %v6030 = vpop.f32.mrf.mxu0
        %v6031 = vadd.f32 0.0, %v6030
        %6032 = vmatmul.bf16.gmra.mxu0 %v5975
        %v6033 = vpop.f32.mrf.mxu0
        %v6034 = vadd.f32 0.0, %v6033
        %v6035 = vpop.f32.mrf.mxu0
        %v6036 = vadd.f32 0.0, %v6035
        %6037 = vmatmul.bf16.gmra.mxu0 %v5978
        %v6038 = vpop.f32.mrf.mxu0
        %v6039 = vadd.f32 0.0, %v6038
        %v6040 = vpop.f32.mrf.mxu0
        %v6041 = vadd.f32 0.0, %v6040
        %6042 = vmatmul.bf16.gmra.mxu0 %v5981
        %v6043 = vpop.f32.mrf.mxu0
        %v6044 = vadd.f32 0.0, %v6043
        %v6045 = vpop.f32.mrf.mxu0
        %v6046 = vadd.f32 0.0, %v6045
        %6047 = vmatmul.bf16.gmra.mxu0 %v5984
        %v6048 = vpop.f32.mrf.mxu0
        %v6049 = vadd.f32 0.0, %v6048
        %v6050 = vpop.f32.mrf.mxu0
        %v6051 = vadd.f32 0.0, %v6050
        %6052 = vmatmul.bf16.gmra.mxu0 %v5987
        %v6053 = vpop.f32.mrf.mxu0
        %v6054 = vadd.f32 0.0, %v6053
        %v6055 = vpop.f32.mrf.mxu0
        %v6056 = vadd.f32 0.0, %v6055
        %6057 = vmatmul.bf16.gmra.mxu0 %v5990
        %v6058 = vpop.f32.mrf.mxu0
        %v6059 = vadd.f32 0.0, %v6058
        %v6060 = vpop.f32.mrf.mxu0
        %v6061 = vadd.f32 0.0, %v6060
        %6062 = vmatmul.bf16.gmra.mxu0 %v5993
        %v6063 = vpop.f32.mrf.mxu0
        %v6064 = vadd.f32 0.0, %v6063
        %v6065 = vpop.f32.mrf.mxu0
        %v6066 = vadd.f32 0.0, %v6065
        %6067 = vdwg.mxu0
        %v6068 = vmul.f32 %v6029, 0.125
        %v6069 = vmul.f32 %v6031, 0.125
        %v6070 = vmul.f32 %v6034, 0.125
        %v6071 = vmul.f32 %v6036, 0.125
        %v6072 = vmul.f32 %v6039, 0.125
        %v6073 = vmul.f32 %v6041, 0.125
        %v6074 = vmul.f32 %v6044, 0.125
        %v6075 = vmul.f32 %v6046, 0.125
        %v6076 = vmul.f32 %v6049, 0.125
        %v6077 = vmul.f32 %v6051, 0.125
        %v6078 = vmul.f32 %v6054, 0.125
        %v6079 = vmul.f32 %v6056, 0.125
        %v6080 = vmul.f32 %v6059, 0.125
        %v6081 = vmul.f32 %v6061, 0.125
        %v6082 = vmul.f32 %v6064, 0.125
        %v6083 = vmul.f32 %v6066, 0.125
        %v6084 = vadd.f32 %v6068, %v4109
        %v6085 = vadd.f32 %v6069, %v4114
        %v6086 = vadd.f32 %v6070, %v4119
        %v6087 = vadd.f32 %v6071, %v4124
        %v6088 = vadd.f32 %v6072, %v4129
        %v6089 = vadd.f32 %v6073, %v4134
        %v6090 = vadd.f32 %v6074, %v4139
        %v6091 = vadd.f32 %v6075, %v4144
        %v6092 = vadd.f32 %v6076, %v4149
        %v6093 = vadd.f32 %v6077, %v4154
        %v6094 = vadd.f32 %v6078, %v4159
        %v6095 = vadd.f32 %v6079, %v4164
        %v6096 = vadd.f32 %v6080, %v4169
        %v6097 = vadd.f32 %v6081, %v4174
        %v6098 = vadd.f32 %v6082, %v4179
        %v6099 = vadd.f32 %v6083, %v4184
        %6100 = vmax.xlane.f32.xlu0 %v6084
        %v6101 = vpop.xlane.xlu0 %6100
        %6102 = vmax.xlane.f32.xlu0 %v6085
        %v6103 = vpop.xlane.xlu0 %6102
        %6104 = vmax.xlane.f32.xlu0 %v6086
        %v6105 = vpop.xlane.xlu0 %6104
        %6106 = vmax.xlane.f32.xlu0 %v6087
        %v6107 = vpop.xlane.xlu0 %6106
        %6108 = vmax.xlane.f32.xlu0 %v6088
        %v6109 = vpop.xlane.xlu0 %6108
        %6110 = vmax.xlane.f32.xlu0 %v6089
        %v6111 = vpop.xlane.xlu0 %6110
        %6112 = vmax.xlane.f32.xlu0 %v6090
        %v6113 = vpop.xlane.xlu0 %6112
        %6114 = vmax.xlane.f32.xlu0 %v6091
        %v6115 = vpop.xlane.xlu0 %6114
        %6116 = vmax.xlane.f32.xlu0 %v6092
        %v6117 = vpop.xlane.xlu0 %6116
        %6118 = vmax.xlane.f32.xlu0 %v6093
        %v6119 = vpop.xlane.xlu0 %6118
        %6120 = vmax.xlane.f32.xlu0 %v6094
        %v6121 = vpop.xlane.xlu0 %6120
        %6122 = vmax.xlane.f32.xlu0 %v6095
        %v6123 = vpop.xlane.xlu0 %6122
        %6124 = vmax.xlane.f32.xlu0 %v6096
        %v6125 = vpop.xlane.xlu0 %6124
        %6126 = vmax.xlane.f32.xlu0 %v6097
        %v6127 = vpop.xlane.xlu0 %6126
        %6128 = vmax.xlane.f32.xlu0 %v6098
        %v6129 = vpop.xlane.xlu0 %6128
        %6130 = vmax.xlane.f32.xlu0 %v6099
        %v6131 = vpop.xlane.xlu0 %6130
        %v6132 = vsub.f32 %v6084, %v6101
        %v6133 = vsub.f32 %v6085, %v6103
        %v6134 = vsub.f32 %v6086, %v6105
        %v6135 = vsub.f32 %v6087, %v6107
        %v6136 = vsub.f32 %v6088, %v6109
        %v6137 = vsub.f32 %v6089, %v6111
        %v6138 = vsub.f32 %v6090, %v6113
        %v6139 = vsub.f32 %v6091, %v6115
        %v6140 = vsub.f32 %v6092, %v6117
        %v6141 = vsub.f32 %v6093, %v6119
        %v6142 = vsub.f32 %v6094, %v6121
        %v6143 = vsub.f32 %v6095, %v6123
        %v6144 = vsub.f32 %v6096, %v6125
        %v6145 = vsub.f32 %v6097, %v6127
        %v6146 = vsub.f32 %v6098, %v6129
        %v6147 = vsub.f32 %v6099, %v6131
        %v6148 = vmul.f32 %v6132, 1.442695
        %v6149 = vpow.pop %v6148
        %v6150 = vmul.f32 %v6133, 1.442695
        %v6151 = vpow.pop %v6150
        %v6152 = vmul.f32 %v6134, 1.442695
        %v6153 = vpow.pop %v6152
        %v6154 = vmul.f32 %v6135, 1.442695
        %v6155 = vpow.pop %v6154
        %v6156 = vmul.f32 %v6136, 1.442695
        %v6157 = vpow.pop %v6156
        %v6158 = vmul.f32 %v6137, 1.442695
        %v6159 = vpow.pop %v6158
        %v6160 = vmul.f32 %v6138, 1.442695
        %v6161 = vpow.pop %v6160
        %v6162 = vmul.f32 %v6139, 1.442695
        %v6163 = vpow.pop %v6162
        %v6164 = vmul.f32 %v6140, 1.442695
        %v6165 = vpow.pop %v6164
        %v6166 = vmul.f32 %v6141, 1.442695
        %v6167 = vpow.pop %v6166
        %v6168 = vmul.f32 %v6142, 1.442695
        %v6169 = vpow.pop %v6168
        %v6170 = vmul.f32 %v6143, 1.442695
        %v6171 = vpow.pop %v6170
        %v6172 = vmul.f32 %v6144, 1.442695
        %v6173 = vpow.pop %v6172
        %v6174 = vmul.f32 %v6145, 1.442695
        %v6175 = vpow.pop %v6174
        %v6176 = vmul.f32 %v6146, 1.442695
        %v6177 = vpow.pop %v6176
        %v6178 = vmul.f32 %v6147, 1.442695
        %v6179 = vpow.pop %v6178
        %6180 = vadd.xlane.f32.xlu0 %v6149
        %v6181 = vpop.xlane.xlu0 %6180
        %6182 = vadd.xlane.f32.xlu0 %v6151
        %v6183 = vpop.xlane.xlu0 %6182
        %6184 = vadd.xlane.f32.xlu0 %v6153
        %v6185 = vpop.xlane.xlu0 %6184
        %6186 = vadd.xlane.f32.xlu0 %v6155
        %v6187 = vpop.xlane.xlu0 %6186
        %6188 = vadd.xlane.f32.xlu0 %v6157
        %v6189 = vpop.xlane.xlu0 %6188
        %6190 = vadd.xlane.f32.xlu0 %v6159
        %v6191 = vpop.xlane.xlu0 %6190
        %6192 = vadd.xlane.f32.xlu0 %v6161
        %v6193 = vpop.xlane.xlu0 %6192
        %6194 = vadd.xlane.f32.xlu0 %v6163
        %v6195 = vpop.xlane.xlu0 %6194
        %6196 = vadd.xlane.f32.xlu0 %v6165
        %v6197 = vpop.xlane.xlu0 %6196
        %6198 = vadd.xlane.f32.xlu0 %v6167
        %v6199 = vpop.xlane.xlu0 %6198
        %6200 = vadd.xlane.f32.xlu0 %v6169
        %v6201 = vpop.xlane.xlu0 %6200
        %6202 = vadd.xlane.f32.xlu0 %v6171
        %v6203 = vpop.xlane.xlu0 %6202
        %6204 = vadd.xlane.f32.xlu0 %v6173
        %v6205 = vpop.xlane.xlu0 %6204
        %6206 = vadd.xlane.f32.xlu0 %v6175
        %v6207 = vpop.xlane.xlu0 %6206
        %6208 = vadd.xlane.f32.xlu0 %v6177
        %v6209 = vpop.xlane.xlu0 %6208
        %6210 = vadd.xlane.f32.xlu0 %v6179
        %v6211 = vpop.xlane.xlu0 %6210
        %v6212 = vrcp.pop %v6181
        %v6213 = vrcp.pop %v6183
        %v6214 = vrcp.pop %v6185
        %v6215 = vrcp.pop %v6187
        %v6216 = vrcp.pop %v6189
        %v6217 = vrcp.pop %v6191
        %v6218 = vrcp.pop %v6193
        %v6219 = vrcp.pop %v6195
        %v6220 = vrcp.pop %v6197
        %v6221 = vrcp.pop %v6199
        %v6222 = vrcp.pop %v6201
        %v6223 = vrcp.pop %v6203
        %v6224 = vrcp.pop %v6205
        %v6225 = vrcp.pop %v6207
        %v6226 = vrcp.pop %v6209
        %v6227 = vrcp.pop %v6211
        %v6228 = vmul.f32 %v6149, %v6212
        %v6229 = vmul.f32 %v6151, %v6213
        %v6230 = vmul.f32 %v6153, %v6214
        %v6231 = vmul.f32 %v6155, %v6215
        %v6232 = vmul.f32 %v6157, %v6216
        %v6233 = vmul.f32 %v6159, %v6217
        %v6234 = vmul.f32 %v6161, %v6218
        %v6235 = vmul.f32 %v6163, %v6219
        %v6236 = vmul.f32 %v6165, %v6220
        %v6237 = vmul.f32 %v6167, %v6221
        %v6238 = vmul.f32 %v6169, %v6222
        %v6239 = vmul.f32 %v6171, %v6223
        %v6240 = vmul.f32 %v6173, %v6224
        %v6241 = vmul.f32 %v6175, %v6225
        %v6242 = vmul.f32 %v6177, %v6226
        %v6243 = vmul.f32 %v6179, %v6227
        %v6244 = vpack.c.bf16 %v6229, %v6228
        %v6245 = vpack.c.bf16 %v6231, %v6230
        %v6246 = vpack.c.bf16 %v6233, %v6232
        %v6247 = vpack.c.bf16 %v6235, %v6234
        %v6248 = vpack.c.bf16 %v6237, %v6236
        %v6249 = vpack.c.bf16 %v6239, %v6238
        %v6250 = vpack.c.bf16 %v6241, %v6240
        %v6251 = vpack.c.bf16 %v6243, %v6242
        %v6268 = vunpack.c.l.b16 %v3850
        %v6269 = vunpack.c.l.b16 %v3852
        %v6270 = vunpack.c.l.b16 %v3854
        %v6271 = vunpack.c.l.b16 %v3856
        %v6272 = vunpack.c.l.b16 %v3858
        %v6273 = vunpack.c.l.b16 %v3860
        %v6274 = vunpack.c.l.b16 %v3862
        %v6275 = vunpack.c.l.b16 %v3864
        %v6276 = vunpack.c.l.b16 %v3866
        %v6277 = vunpack.c.l.b16 %v3868
        %v6278 = vunpack.c.l.b16 %v3870
        %v6279 = vunpack.c.l.b16 %v3872
        %v6280 = vunpack.c.l.b16 %v3874
        %v6281 = vunpack.c.l.b16 %v3876
        %v6282 = vunpack.c.l.b16 %v3878
        %v6283 = vunpack.c.l.b16 %v3880
        %v6284 = vpack.c.b16 %v6269, %v6268
        %v6285 = vpack.c.b16 %v6271, %v6270
        %v6286 = vpack.c.b16 %v6273, %v6272
        %v6287 = vpack.c.b16 %v6275, %v6274
        %v6288 = vpack.c.b16 %v6277, %v6276
        %v6289 = vpack.c.b16 %v6279, %v6278
        %v6290 = vpack.c.b16 %v6281, %v6280
        %v6291 = vpack.c.b16 %v6283, %v6282
        %6300 = vmatpush.bf16.msra.mxu0 %v6291
        %6301 = vmatpush.bf16.msra.mxu0 %v6290
        %6302 = vmatpush.bf16.msra.mxu0 %v6289
        %6303 = vmatpush.bf16.msra.mxu0 %v6288
        %6304 = vmatpush.bf16.msra.mxu0 %v6287
        %6305 = vmatpush.bf16.msra.mxu0 %v6286
        %6306 = vmatpush.bf16.msra.mxu0 %v6285
        %6307 = vmatpush.bf16.msra.mxu0 %v6284
        %6308 = vmatmul.bf16.gmra.mxu0 %v6244
        %v6309 = vpop.f32.mrf.mxu0
        %v6310 = vadd.f32 0.0, %v6309
        %v6311 = vpop.f32.mrf.mxu0
        %v6312 = vadd.f32 0.0, %v6311
        %6313 = vmatmul.bf16.gmra.mxu0 %v6245
        %v6314 = vpop.f32.mrf.mxu0
        %v6315 = vadd.f32 0.0, %v6314
        %v6316 = vpop.f32.mrf.mxu0
        %v6317 = vadd.f32 0.0, %v6316
        %6318 = vmatmul.bf16.gmra.mxu0 %v6246
        %v6319 = vpop.f32.mrf.mxu0
        %v6320 = vadd.f32 0.0, %v6319
        %v6321 = vpop.f32.mrf.mxu0
        %v6322 = vadd.f32 0.0, %v6321
        %6323 = vmatmul.bf16.gmra.mxu0 %v6247
        %v6324 = vpop.f32.mrf.mxu0
        %v6325 = vadd.f32 0.0, %v6324
        %v6326 = vpop.f32.mrf.mxu0
        %v6327 = vadd.f32 0.0, %v6326
        %6328 = vmatmul.bf16.gmra.mxu0 %v6248
        %v6329 = vpop.f32.mrf.mxu0
        %v6330 = vadd.f32 0.0, %v6329
        %v6331 = vpop.f32.mrf.mxu0
        %v6332 = vadd.f32 0.0, %v6331
        %6333 = vmatmul.bf16.gmra.mxu0 %v6249
        %v6334 = vpop.f32.mrf.mxu0
        %v6335 = vadd.f32 0.0, %v6334
        %v6336 = vpop.f32.mrf.mxu0
        %v6337 = vadd.f32 0.0, %v6336
        %6338 = vmatmul.bf16.gmra.mxu0 %v6250
        %v6339 = vpop.f32.mrf.mxu0
        %v6340 = vadd.f32 0.0, %v6339
        %v6341 = vpop.f32.mrf.mxu0
        %v6342 = vadd.f32 0.0, %v6341
        %6343 = vmatmul.bf16.gmra.mxu0 %v6251
        %v6344 = vpop.f32.mrf.mxu0
        %v6345 = vadd.f32 0.0, %v6344
        %v6346 = vpop.f32.mrf.mxu0
        %v6347 = vadd.f32 0.0, %v6346
        %6348 = vdwg.mxu0
        %v6349 = vpack.c.bf16 %v6310, %v6310
        %v6350 = vpack.c.bf16 %v6312, %v6312
        %v6351 = vpack.c.bf16 %v6315, %v6315
        %v6352 = vpack.c.bf16 %v6317, %v6317
        %v6353 = vpack.c.bf16 %v6320, %v6320
        %v6354 = vpack.c.bf16 %v6322, %v6322
        %v6355 = vpack.c.bf16 %v6325, %v6325
        %v6356 = vpack.c.bf16 %v6327, %v6327
        %v6357 = vpack.c.bf16 %v6330, %v6330
        %v6358 = vpack.c.bf16 %v6332, %v6332
        %v6359 = vpack.c.bf16 %v6335, %v6335
        %v6360 = vpack.c.bf16 %v6337, %v6337
        %v6361 = vpack.c.bf16 %v6340, %v6340
        %v6362 = vpack.c.bf16 %v6342, %v6342
        %v6363 = vpack.c.bf16 %v6345, %v6345
        %v6364 = vpack.c.bf16 %v6347, %v6347
        %6365 = vst.msk [vmem:[%s347 + $0x8] sm:$0xf] %vm4467, %v6349
        %6366 = vst.msk [vmem:[%s347 + $0x18] sm:$0xf] %vm4467, %v6350
        %6367 = vst.msk [vmem:[%s347 + $0x28] sm:$0xf] %vm4467, %v6351
        %6368 = vst.msk [vmem:[%s347 + $0x38] sm:$0xf] %vm4467, %v6352
        %6369 = vst.msk [vmem:[%s347 + $0x48] sm:$0xf] %vm4467, %v6353
        %6370 = vst.msk [vmem:[%s347 + $0x58] sm:$0xf] %vm4467, %v6354
        %6371 = vst.msk [vmem:[%s347 + $0x68] sm:$0xf] %vm4467, %v6355
        %6372 = vst.msk [vmem:[%s347 + $0x78] sm:$0xf] %vm4467, %v6356
        %6373 = vst.msk [vmem:[%s347 + $0x88] sm:$0xf] %vm4467, %v6357
        %6374 = vst.msk [vmem:[%s347 + $0x98] sm:$0xf] %vm4467, %v6358
        %6375 = vst.msk [vmem:[%s347 + $0xa8] sm:$0xf] %vm4467, %v6359
        %6376 = vst.msk [vmem:[%s347 + $0xb8] sm:$0xf] %vm4467, %v6360
        %6377 = vst.msk [vmem:[%s347 + $0xc8] sm:$0xf] %vm4467, %v6361
        %6378 = vst.msk [vmem:[%s347 + $0xd8] sm:$0xf] %vm4467, %v6362
        %6379 = vst.msk [vmem:[%s347 + $0xe8] sm:$0xf] %vm4467, %v6363
        %6380 = vst.msk [vmem:[%s347 + $0xf8] sm:$0xf] %vm4467, %v6364
        %6381 = vrot.lane.b32.xlu0 %v5923, 64
        %v6382 = vpop.permute.xlu0 %6381
        %6383 = vrot.lane.b32.xlu0 %v5924, 64
        %v6384 = vpop.permute.xlu0 %6383
        %6385 = vrot.lane.b32.xlu0 %v5925, 64
        %v6386 = vpop.permute.xlu0 %6385
        %6387 = vrot.lane.b32.xlu0 %v5926, 64
        %v6388 = vpop.permute.xlu0 %6387
        %6389 = vrot.lane.b32.xlu0 %v5927, 64
        %v6390 = vpop.permute.xlu0 %6389
        %6391 = vrot.lane.b32.xlu0 %v5928, 64
        %v6392 = vpop.permute.xlu0 %6391
        %6393 = vrot.lane.b32.xlu0 %v5929, 64
        %v6394 = vpop.permute.xlu0 %6393
        %6395 = vrot.lane.b32.xlu0 %v5930, 64
        %v6396 = vpop.permute.xlu0 %6395
        %6397 = vrot.lane.b32.xlu0 %v5963, 64
        %v6398 = vpop.permute.xlu0 %6397
        %6399 = vrot.lane.b32.xlu0 %v5964, 64
        %v6400 = vpop.permute.xlu0 %6399
        %6401 = vrot.lane.b32.xlu0 %v5965, 64
        %v6402 = vpop.permute.xlu0 %6401
        %6403 = vrot.lane.b32.xlu0 %v5966, 64
        %v6404 = vpop.permute.xlu0 %6403
        %6405 = vrot.lane.b32.xlu0 %v5967, 64
        %v6406 = vpop.permute.xlu0 %6405
        %6407 = vrot.lane.b32.xlu0 %v5968, 64
        %v6408 = vpop.permute.xlu0 %6407
        %6409 = vrot.lane.b32.xlu0 %v5969, 64
        %v6410 = vpop.permute.xlu0 %6409
        %6411 = vrot.lane.b32.xlu0 %v5970, 64
        %v6412 = vpop.permute.xlu0 %6411
        %v6414 = vsel %vm1006, %v6382, 0
        %v6417 = vsel %vm1006, %v6384, 0
        %v6420 = vsel %vm1006, %v6386, 0
        %v6423 = vsel %vm1006, %v6388, 0
        %v6426 = vsel %vm1006, %v6390, 0
        %v6429 = vsel %vm1006, %v6392, 0
        %v6432 = vsel %vm1006, %v6394, 0
        %v6435 = vsel %vm1006, %v6396, 0
        %v6438 = vsel %vm1006, %v6398, 0
        %v6441 = vsel %vm1006, %v6400, 0
        %v6444 = vsel %vm1006, %v6402, 0
        %v6447 = vsel %vm1006, %v6404, 0
        %v6450 = vsel %vm1006, %v6406, 0
        %v6453 = vsel %vm1006, %v6408, 0
        %v6456 = vsel %vm1006, %v6410, 0
        %v6459 = vsel %vm1006, %v6412, 0
        %6461 = vmatpush.bf16.xpose.msra.mxu0 %v6459
        %6462 = vmatpush.bf16.xpose.msra.mxu0 %v6456
        %6463 = vmatpush.bf16.xpose.msra.mxu0 %v6453
        %6464 = vmatpush.bf16.xpose.msra.mxu0 %v6450
        %6465 = vmatpush.bf16.xpose.msra.mxu0 %v6447
        %6466 = vmatpush.bf16.xpose.msra.mxu0 %v6444
        %6467 = vmatpush.bf16.xpose.msra.mxu0 %v6441
        %6468 = vmatpush.bf16.xpose.msra.mxu0 %v6438
        %6469 = vmatmul.bf16.gmra.mxu0 %v6414
        %v6470 = vpop.f32.mrf.mxu0
        %v6471 = vadd.f32 0.0, %v6470
        %v6472 = vpop.f32.mrf.mxu0
        %v6473 = vadd.f32 0.0, %v6472
        %6474 = vmatmul.bf16.gmra.mxu0 %v6417
        %v6475 = vpop.f32.mrf.mxu0
        %v6476 = vadd.f32 0.0, %v6475
        %v6477 = vpop.f32.mrf.mxu0
        %v6478 = vadd.f32 0.0, %v6477
        %6479 = vmatmul.bf16.gmra.mxu0 %v6420
        %v6480 = vpop.f32.mrf.mxu0
        %v6481 = vadd.f32 0.0, %v6480
        %v6482 = vpop.f32.mrf.mxu0
        %v6483 = vadd.f32 0.0, %v6482
        %6484 = vmatmul.bf16.gmra.mxu0 %v6423
        %v6485 = vpop.f32.mrf.mxu0
        %v6486 = vadd.f32 0.0, %v6485
        %v6487 = vpop.f32.mrf.mxu0
        %v6488 = vadd.f32 0.0, %v6487
        %6489 = vmatmul.bf16.gmra.mxu0 %v6426
        %v6490 = vpop.f32.mrf.mxu0
        %v6491 = vadd.f32 0.0, %v6490
        %v6492 = vpop.f32.mrf.mxu0
        %v6493 = vadd.f32 0.0, %v6492
        %6494 = vmatmul.bf16.gmra.mxu0 %v6429
        %v6495 = vpop.f32.mrf.mxu0
        %v6496 = vadd.f32 0.0, %v6495
        %v6497 = vpop.f32.mrf.mxu0
        %v6498 = vadd.f32 0.0, %v6497
        %6499 = vmatmul.bf16.gmra.mxu0 %v6432
        %v6500 = vpop.f32.mrf.mxu0
        %v6501 = vadd.f32 0.0, %v6500
        %v6502 = vpop.f32.mrf.mxu0
        %v6503 = vadd.f32 0.0, %v6502
        %6504 = vmatmul.bf16.gmra.mxu0 %v6435
        %v6505 = vpop.f32.mrf.mxu0
        %v6506 = vadd.f32 0.0, %v6505
        %v6507 = vpop.f32.mrf.mxu0
        %v6508 = vadd.f32 0.0, %v6507
        %6509 = vdwg.mxu0
        %v6510 = vmul.f32 %v6471, 0.125
        %v6511 = vmul.f32 %v6473, 0.125
        %v6512 = vmul.f32 %v6476, 0.125
        %v6513 = vmul.f32 %v6478, 0.125
        %v6514 = vmul.f32 %v6481, 0.125
        %v6515 = vmul.f32 %v6483, 0.125
        %v6516 = vmul.f32 %v6486, 0.125
        %v6517 = vmul.f32 %v6488, 0.125
        %v6518 = vmul.f32 %v6491, 0.125
        %v6519 = vmul.f32 %v6493, 0.125
        %v6520 = vmul.f32 %v6496, 0.125
        %v6521 = vmul.f32 %v6498, 0.125
        %v6522 = vmul.f32 %v6501, 0.125
        %v6523 = vmul.f32 %v6503, 0.125
        %v6524 = vmul.f32 %v6506, 0.125
        %v6525 = vmul.f32 %v6508, 0.125
        %v6526 = vadd.f32 %v6510, %v4109
        %v6527 = vadd.f32 %v6511, %v4114
        %v6528 = vadd.f32 %v6512, %v4119
        %v6529 = vadd.f32 %v6513, %v4124
        %v6530 = vadd.f32 %v6514, %v4129
        %v6531 = vadd.f32 %v6515, %v4134
        %v6532 = vadd.f32 %v6516, %v4139
        %v6533 = vadd.f32 %v6517, %v4144
        %v6534 = vadd.f32 %v6518, %v4149
        %v6535 = vadd.f32 %v6519, %v4154
        %v6536 = vadd.f32 %v6520, %v4159
        %v6537 = vadd.f32 %v6521, %v4164
        %v6538 = vadd.f32 %v6522, %v4169
        %v6539 = vadd.f32 %v6523, %v4174
        %v6540 = vadd.f32 %v6524, %v4179
        %v6541 = vadd.f32 %v6525, %v4184
        %6542 = vmax.xlane.f32.xlu0 %v6526
        %v6543 = vpop.xlane.xlu0 %6542
        %6544 = vmax.xlane.f32.xlu0 %v6527
        %v6545 = vpop.xlane.xlu0 %6544
        %6546 = vmax.xlane.f32.xlu0 %v6528
        %v6547 = vpop.xlane.xlu0 %6546
        %6548 = vmax.xlane.f32.xlu0 %v6529
        %v6549 = vpop.xlane.xlu0 %6548
        %6550 = vmax.xlane.f32.xlu0 %v6530
        %v6551 = vpop.xlane.xlu0 %6550
        %6552 = vmax.xlane.f32.xlu0 %v6531
        %v6553 = vpop.xlane.xlu0 %6552
        %6554 = vmax.xlane.f32.xlu0 %v6532
        %v6555 = vpop.xlane.xlu0 %6554
        %6556 = vmax.xlane.f32.xlu0 %v6533
        %v6557 = vpop.xlane.xlu0 %6556
        %6558 = vmax.xlane.f32.xlu0 %v6534
        %v6559 = vpop.xlane.xlu0 %6558
        %6560 = vmax.xlane.f32.xlu0 %v6535
        %v6561 = vpop.xlane.xlu0 %6560
        %6562 = vmax.xlane.f32.xlu0 %v6536
        %v6563 = vpop.xlane.xlu0 %6562
        %6564 = vmax.xlane.f32.xlu0 %v6537
        %v6565 = vpop.xlane.xlu0 %6564
        %6566 = vmax.xlane.f32.xlu0 %v6538
        %v6567 = vpop.xlane.xlu0 %6566
        %6568 = vmax.xlane.f32.xlu0 %v6539
        %v6569 = vpop.xlane.xlu0 %6568
        %6570 = vmax.xlane.f32.xlu0 %v6540
        %v6571 = vpop.xlane.xlu0 %6570
        %6572 = vmax.xlane.f32.xlu0 %v6541
        %v6573 = vpop.xlane.xlu0 %6572
        %v6574 = vsub.f32 %v6526, %v6543
        %v6575 = vsub.f32 %v6527, %v6545
        %v6576 = vsub.f32 %v6528, %v6547
        %v6577 = vsub.f32 %v6529, %v6549
        %v6578 = vsub.f32 %v6530, %v6551
        %v6579 = vsub.f32 %v6531, %v6553
        %v6580 = vsub.f32 %v6532, %v6555
        %v6581 = vsub.f32 %v6533, %v6557
        %v6582 = vsub.f32 %v6534, %v6559
        %v6583 = vsub.f32 %v6535, %v6561
        %v6584 = vsub.f32 %v6536, %v6563
        %v6585 = vsub.f32 %v6537, %v6565
        %v6586 = vsub.f32 %v6538, %v6567
        %v6587 = vsub.f32 %v6539, %v6569
        %v6588 = vsub.f32 %v6540, %v6571
        %v6589 = vsub.f32 %v6541, %v6573
        %v6590 = vmul.f32 %v6574, 1.442695
        %v6591 = vpow.pop %v6590
        %v6592 = vmul.f32 %v6575, 1.442695
        %v6593 = vpow.pop %v6592
        %v6594 = vmul.f32 %v6576, 1.442695
        %v6595 = vpow.pop %v6594
        %v6596 = vmul.f32 %v6577, 1.442695
        %v6597 = vpow.pop %v6596
        %v6598 = vmul.f32 %v6578, 1.442695
        %v6599 = vpow.pop %v6598
        %v6600 = vmul.f32 %v6579, 1.442695
        %v6601 = vpow.pop %v6600
        %v6602 = vmul.f32 %v6580, 1.442695
        %v6603 = vpow.pop %v6602
        %v6604 = vmul.f32 %v6581, 1.442695
        %v6605 = vpow.pop %v6604
        %v6606 = vmul.f32 %v6582, 1.442695
        %v6607 = vpow.pop %v6606
        %v6608 = vmul.f32 %v6583, 1.442695
        %v6609 = vpow.pop %v6608
        %v6610 = vmul.f32 %v6584, 1.442695
        %v6611 = vpow.pop %v6610
        %v6612 = vmul.f32 %v6585, 1.442695
        %v6613 = vpow.pop %v6612
        %v6614 = vmul.f32 %v6586, 1.442695
        %v6615 = vpow.pop %v6614
        %v6616 = vmul.f32 %v6587, 1.442695
        %v6617 = vpow.pop %v6616
        %v6618 = vmul.f32 %v6588, 1.442695
        %v6619 = vpow.pop %v6618
        %v6620 = vmul.f32 %v6589, 1.442695
        %v6621 = vpow.pop %v6620
        %6622 = vadd.xlane.f32.xlu0 %v6591
        %v6623 = vpop.xlane.xlu0 %6622
        %6624 = vadd.xlane.f32.xlu0 %v6593
        %v6625 = vpop.xlane.xlu0 %6624
        %6626 = vadd.xlane.f32.xlu0 %v6595
        %v6627 = vpop.xlane.xlu0 %6626
        %6628 = vadd.xlane.f32.xlu0 %v6597
        %v6629 = vpop.xlane.xlu0 %6628
        %6630 = vadd.xlane.f32.xlu0 %v6599
        %v6631 = vpop.xlane.xlu0 %6630
        %6632 = vadd.xlane.f32.xlu0 %v6601
        %v6633 = vpop.xlane.xlu0 %6632
        %6634 = vadd.xlane.f32.xlu0 %v6603
        %v6635 = vpop.xlane.xlu0 %6634
        %6636 = vadd.xlane.f32.xlu0 %v6605
        %v6637 = vpop.xlane.xlu0 %6636
        %6638 = vadd.xlane.f32.xlu0 %v6607
        %v6639 = vpop.xlane.xlu0 %6638
        %6640 = vadd.xlane.f32.xlu0 %v6609
        %v6641 = vpop.xlane.xlu0 %6640
        %6642 = vadd.xlane.f32.xlu0 %v6611
        %v6643 = vpop.xlane.xlu0 %6642
        %6644 = vadd.xlane.f32.xlu0 %v6613
        %v6645 = vpop.xlane.xlu0 %6644
        %6646 = vadd.xlane.f32.xlu0 %v6615
        %v6647 = vpop.xlane.xlu0 %6646
        %6648 = vadd.xlane.f32.xlu0 %v6617
        %v6649 = vpop.xlane.xlu0 %6648
        %6650 = vadd.xlane.f32.xlu0 %v6619
        %v6651 = vpop.xlane.xlu0 %6650
        %6652 = vadd.xlane.f32.xlu0 %v6621
        %v6653 = vpop.xlane.xlu0 %6652
        %v6654 = vrcp.pop %v6623
        %v6655 = vrcp.pop %v6625
        %v6656 = vrcp.pop %v6627
        %v6657 = vrcp.pop %v6629
        %v6658 = vrcp.pop %v6631
        %v6659 = vrcp.pop %v6633
        %v6660 = vrcp.pop %v6635
        %v6661 = vrcp.pop %v6637
        %v6662 = vrcp.pop %v6639
        %v6663 = vrcp.pop %v6641
        %v6664 = vrcp.pop %v6643
        %v6665 = vrcp.pop %v6645
        %v6666 = vrcp.pop %v6647
        %v6667 = vrcp.pop %v6649
        %v6668 = vrcp.pop %v6651
        %v6669 = vrcp.pop %v6653
        %v6670 = vmul.f32 %v6591, %v6654
        %v6671 = vmul.f32 %v6593, %v6655
        %v6672 = vmul.f32 %v6595, %v6656
        %v6673 = vmul.f32 %v6597, %v6657
        %v6674 = vmul.f32 %v6599, %v6658
        %v6675 = vmul.f32 %v6601, %v6659
        %v6676 = vmul.f32 %v6603, %v6660
        %v6677 = vmul.f32 %v6605, %v6661
        %v6678 = vmul.f32 %v6607, %v6662
        %v6679 = vmul.f32 %v6609, %v6663
        %v6680 = vmul.f32 %v6611, %v6664
        %v6681 = vmul.f32 %v6613, %v6665
        %v6682 = vmul.f32 %v6615, %v6666
        %v6683 = vmul.f32 %v6617, %v6667
        %v6684 = vmul.f32 %v6619, %v6668
        %v6685 = vmul.f32 %v6621, %v6669
        %v6686 = vpack.c.bf16 %v6671, %v6670
        %v6687 = vpack.c.bf16 %v6673, %v6672
        %v6688 = vpack.c.bf16 %v6675, %v6674
        %v6689 = vpack.c.bf16 %v6677, %v6676
        %v6690 = vpack.c.bf16 %v6679, %v6678
        %v6691 = vpack.c.bf16 %v6681, %v6680
        %v6692 = vpack.c.bf16 %v6683, %v6682
        %v6693 = vpack.c.bf16 %v6685, %v6684
        %6694 = vrot.lane.b32.xlu0 %v6284, 64
        %v6695 = vpop.permute.xlu0 %6694
        %6696 = vrot.lane.b32.xlu0 %v6285, 64
        %v6697 = vpop.permute.xlu0 %6696
        %6698 = vrot.lane.b32.xlu0 %v6286, 64
        %v6699 = vpop.permute.xlu0 %6698
        %6700 = vrot.lane.b32.xlu0 %v6287, 64
        %v6701 = vpop.permute.xlu0 %6700
        %6702 = vrot.lane.b32.xlu0 %v6288, 64
        %v6703 = vpop.permute.xlu0 %6702
        %6704 = vrot.lane.b32.xlu0 %v6289, 64
        %v6705 = vpop.permute.xlu0 %6704
        %6706 = vrot.lane.b32.xlu0 %v6290, 64
        %v6707 = vpop.permute.xlu0 %6706
        %6708 = vrot.lane.b32.xlu0 %v6291, 64
        %v6709 = vpop.permute.xlu0 %6708
        %6718 = vmatpush.bf16.msra.mxu0 %v6709
        %6719 = vmatpush.bf16.msra.mxu0 %v6707
        %6720 = vmatpush.bf16.msra.mxu0 %v6705
        %6721 = vmatpush.bf16.msra.mxu0 %v6703
        %6722 = vmatpush.bf16.msra.mxu0 %v6701
        %6723 = vmatpush.bf16.msra.mxu0 %v6699
        %6724 = vmatpush.bf16.msra.mxu0 %v6697
        %6725 = vmatpush.bf16.msra.mxu0 %v6695
        %6726 = vmatmul.bf16.gmra.mxu0 %v6686
        %v6727 = vpop.f32.mrf.mxu0
        %v6728 = vadd.f32 0.0, %v6727
        %v6729 = vpop.f32.mrf.mxu0
        %v6730 = vadd.f32 0.0, %v6729
        %6731 = vmatmul.bf16.gmra.mxu0 %v6687
        %v6732 = vpop.f32.mrf.mxu0
        %v6733 = vadd.f32 0.0, %v6732
        %v6734 = vpop.f32.mrf.mxu0
        %v6735 = vadd.f32 0.0, %v6734
        %6736 = vmatmul.bf16.gmra.mxu0 %v6688
        %v6737 = vpop.f32.mrf.mxu0
        %v6738 = vadd.f32 0.0, %v6737
        %v6739 = vpop.f32.mrf.mxu0
        %v6740 = vadd.f32 0.0, %v6739
        %6741 = vmatmul.bf16.gmra.mxu0 %v6689
        %v6742 = vpop.f32.mrf.mxu0
        %v6743 = vadd.f32 0.0, %v6742
        %v6744 = vpop.f32.mrf.mxu0
        %v6745 = vadd.f32 0.0, %v6744
        %6746 = vmatmul.bf16.gmra.mxu0 %v6690
        %v6747 = vpop.f32.mrf.mxu0
        %v6748 = vadd.f32 0.0, %v6747
        %v6749 = vpop.f32.mrf.mxu0
        %v6750 = vadd.f32 0.0, %v6749
        %6751 = vmatmul.bf16.gmra.mxu0 %v6691
        %v6752 = vpop.f32.mrf.mxu0
        %v6753 = vadd.f32 0.0, %v6752
        %v6754 = vpop.f32.mrf.mxu0
        %v6755 = vadd.f32 0.0, %v6754
        %6756 = vmatmul.bf16.gmra.mxu0 %v6692
        %v6757 = vpop.f32.mrf.mxu0
        %v6758 = vadd.f32 0.0, %v6757
        %v6759 = vpop.f32.mrf.mxu0
        %v6760 = vadd.f32 0.0, %v6759
        %6761 = vmatmul.bf16.gmra.mxu0 %v6693
        %v6762 = vpop.f32.mrf.mxu0
        %v6763 = vadd.f32 0.0, %v6762
        %v6764 = vpop.f32.mrf.mxu0
        %v6765 = vadd.f32 0.0, %v6764
        %6766 = vdwg.mxu0
        %v6767 = vpack.c.bf16 %v6728, %v6728
        %v6768 = vpack.c.bf16 %v6730, %v6730
        %v6769 = vpack.c.bf16 %v6733, %v6733
        %v6770 = vpack.c.bf16 %v6735, %v6735
        %v6771 = vpack.c.bf16 %v6738, %v6738
        %v6772 = vpack.c.bf16 %v6740, %v6740
        %v6773 = vpack.c.bf16 %v6743, %v6743
        %v6774 = vpack.c.bf16 %v6745, %v6745
        %v6775 = vpack.c.bf16 %v6748, %v6748
        %v6776 = vpack.c.bf16 %v6750, %v6750
        %v6777 = vpack.c.bf16 %v6753, %v6753
        %v6778 = vpack.c.bf16 %v6755, %v6755
        %v6779 = vpack.c.bf16 %v6758, %v6758
        %v6780 = vpack.c.bf16 %v6760, %v6760
        %v6781 = vpack.c.bf16 %v6763, %v6763
        %v6782 = vpack.c.bf16 %v6765, %v6765
        %6799 = vrot.lane.b32.xlu0 %v6767, 64
        %v6800 = vpop.permute.xlu0 %6799
        %6801 = vrot.lane.b32.xlu0 %v6768, 64
        %v6802 = vpop.permute.xlu0 %6801
        %6803 = vrot.lane.b32.xlu0 %v6769, 64
        %v6804 = vpop.permute.xlu0 %6803
        %6805 = vrot.lane.b32.xlu0 %v6770, 64
        %v6806 = vpop.permute.xlu0 %6805
        %6807 = vrot.lane.b32.xlu0 %v6771, 64
        %v6808 = vpop.permute.xlu0 %6807
        %6809 = vrot.lane.b32.xlu0 %v6772, 64
        %v6810 = vpop.permute.xlu0 %6809
        %6811 = vrot.lane.b32.xlu0 %v6773, 64
        %v6812 = vpop.permute.xlu0 %6811
        %6813 = vrot.lane.b32.xlu0 %v6774, 64
        %v6814 = vpop.permute.xlu0 %6813
        %6815 = vrot.lane.b32.xlu0 %v6775, 64
        %v6816 = vpop.permute.xlu0 %6815
        %6817 = vrot.lane.b32.xlu0 %v6776, 64
        %v6818 = vpop.permute.xlu0 %6817
        %6819 = vrot.lane.b32.xlu0 %v6777, 64
        %v6820 = vpop.permute.xlu0 %6819
        %6821 = vrot.lane.b32.xlu0 %v6778, 64
        %v6822 = vpop.permute.xlu0 %6821
        %6823 = vrot.lane.b32.xlu0 %v6779, 64
        %v6824 = vpop.permute.xlu0 %6823
        %6825 = vrot.lane.b32.xlu0 %v6780, 64
        %v6826 = vpop.permute.xlu0 %6825
        %6827 = vrot.lane.b32.xlu0 %v6781, 64
        %v6828 = vpop.permute.xlu0 %6827
        %6829 = vrot.lane.b32.xlu0 %v6782, 64
        %v6830 = vpop.permute.xlu0 %6829
        %6847 = vst.msk [vmem:[%s347 + $0x8] sm:$0xf] %vm4950, %v6800
        %6848 = vst.msk [vmem:[%s347 + $0x18] sm:$0xf] %vm4950, %v6802
        %6849 = vst.msk [vmem:[%s347 + $0x28] sm:$0xf] %vm4950, %v6804
        %6850 = vst.msk [vmem:[%s347 + $0x38] sm:$0xf] %vm4950, %v6806
        %6851 = vst.msk [vmem:[%s347 + $0x48] sm:$0xf] %vm4950, %v6808
        %6852 = vst.msk [vmem:[%s347 + $0x58] sm:$0xf] %vm4950, %v6810
        %6853 = vst.msk [vmem:[%s347 + $0x68] sm:$0xf] %vm4950, %v6812
        %6854 = vst.msk [vmem:[%s347 + $0x78] sm:$0xf] %vm4950, %v6814
        %6855 = vst.msk [vmem:[%s347 + $0x88] sm:$0xf] %vm4950, %v6816
        %6856 = vst.msk [vmem:[%s347 + $0x98] sm:$0xf] %vm4950, %v6818
        %6857 = vst.msk [vmem:[%s347 + $0xa8] sm:$0xf] %vm4950, %v6820
        %6858 = vst.msk [vmem:[%s347 + $0xb8] sm:$0xf] %vm4950, %v6822
        %6859 = vst.msk [vmem:[%s347 + $0xc8] sm:$0xf] %vm4950, %v6824
        %6860 = vst.msk [vmem:[%s347 + $0xd8] sm:$0xf] %vm4950, %v6826
        %6861 = vst.msk [vmem:[%s347 + $0xe8] sm:$0xf] %vm4950, %v6828
        %6862 = vst.msk [vmem:[%s347 + $0xf8] sm:$0xf] %vm4950, %v6830
        %v6863 = vunpack.c.h.b16 %v1620
        %v6864 = vunpack.c.h.b16 %v1622
        %v6865 = vunpack.c.h.b16 %v1624
        %v6866 = vunpack.c.h.b16 %v1626
        %v6867 = vunpack.c.h.b16 %v1628
        %v6868 = vunpack.c.h.b16 %v1630
        %v6869 = vunpack.c.h.b16 %v1632
        %v6870 = vunpack.c.h.b16 %v1634
        %v6871 = vunpack.c.h.b16 %v1636
        %v6872 = vunpack.c.h.b16 %v1638
        %v6873 = vunpack.c.h.b16 %v1640
        %v6874 = vunpack.c.h.b16 %v1642
        %v6875 = vunpack.c.h.b16 %v1644
        %v6876 = vunpack.c.h.b16 %v1646
        %v6877 = vunpack.c.h.b16 %v1648
        %v6878 = vunpack.c.h.b16 %v1650
        %v6879 = vpack.c.b16 %v6864, %v6863
        %v6880 = vpack.c.b16 %v6866, %v6865
        %v6881 = vpack.c.b16 %v6868, %v6867
        %v6882 = vpack.c.b16 %v6870, %v6869
        %v6883 = vpack.c.b16 %v6872, %v6871
        %v6884 = vpack.c.b16 %v6874, %v6873
        %v6885 = vpack.c.b16 %v6876, %v6875
        %v6886 = vpack.c.b16 %v6878, %v6877
        %v6887 = vunpack.c.h.b16 %v2735
        %v6888 = vunpack.c.h.b16 %v2737
        %v6889 = vunpack.c.h.b16 %v2739
        %v6890 = vunpack.c.h.b16 %v2741
        %v6891 = vunpack.c.h.b16 %v2743
        %v6892 = vunpack.c.h.b16 %v2745
        %v6893 = vunpack.c.h.b16 %v2747
        %v6894 = vunpack.c.h.b16 %v2749
        %v6895 = vunpack.c.h.b16 %v2751
        %v6896 = vunpack.c.h.b16 %v2753
        %v6897 = vunpack.c.h.b16 %v2755
        %v6898 = vunpack.c.h.b16 %v2757
        %v6899 = vunpack.c.h.b16 %v2759
        %v6900 = vunpack.c.h.b16 %v2761
        %v6901 = vunpack.c.h.b16 %v2763
        %v6902 = vunpack.c.h.b16 %v2765
        %v6903 = vpack.c.b16 %v6888, %v6887
        %v6904 = vpack.c.b16 %v6890, %v6889
        %v6905 = vpack.c.b16 %v6892, %v6891
        %v6906 = vpack.c.b16 %v6894, %v6893
        %v6907 = vpack.c.b16 %v6896, %v6895
        %v6908 = vpack.c.b16 %v6898, %v6897
        %v6909 = vpack.c.b16 %v6900, %v6899
        %v6910 = vpack.c.b16 %v6902, %v6901
        %v6912 = vsel %vm1006, %v6879, 0
        %v6915 = vsel %vm1006, %v6880, 0
        %v6918 = vsel %vm1006, %v6881, 0
        %v6921 = vsel %vm1006, %v6882, 0
        %v6924 = vsel %vm1006, %v6883, 0
        %v6927 = vsel %vm1006, %v6884, 0
        %v6930 = vsel %vm1006, %v6885, 0
        %v6933 = vsel %vm1006, %v6886, 0
        %v6936 = vsel %vm1006, %v6903, 0
        %v6939 = vsel %vm1006, %v6904, 0
        %v6942 = vsel %vm1006, %v6905, 0
        %v6945 = vsel %vm1006, %v6906, 0
        %v6948 = vsel %vm1006, %v6907, 0
        %v6951 = vsel %vm1006, %v6908, 0
        %v6954 = vsel %vm1006, %v6909, 0
        %v6957 = vsel %vm1006, %v6910, 0
        %6959 = vmatpush.bf16.xpose.msra.mxu0 %v6957
        %6960 = vmatpush.bf16.xpose.msra.mxu0 %v6954
        %6961 = vmatpush.bf16.xpose.msra.mxu0 %v6951
        %6962 = vmatpush.bf16.xpose.msra.mxu0 %v6948
        %6963 = vmatpush.bf16.xpose.msra.mxu0 %v6945
        %6964 = vmatpush.bf16.xpose.msra.mxu0 %v6942
        %6965 = vmatpush.bf16.xpose.msra.mxu0 %v6939
        %6966 = vmatpush.bf16.xpose.msra.mxu0 %v6936
        %6967 = vmatmul.bf16.gmra.mxu0 %v6912
        %v6968 = vpop.f32.mrf.mxu0
        %v6969 = vadd.f32 0.0, %v6968
        %v6970 = vpop.f32.mrf.mxu0
        %v6971 = vadd.f32 0.0, %v6970
        %6972 = vmatmul.bf16.gmra.mxu0 %v6915
        %v6973 = vpop.f32.mrf.mxu0
        %v6974 = vadd.f32 0.0, %v6973
        %v6975 = vpop.f32.mrf.mxu0
        %v6976 = vadd.f32 0.0, %v6975
        %6977 = vmatmul.bf16.gmra.mxu0 %v6918
        %v6978 = vpop.f32.mrf.mxu0
        %v6979 = vadd.f32 0.0, %v6978
        %v6980 = vpop.f32.mrf.mxu0
        %v6981 = vadd.f32 0.0, %v6980
        %6982 = vmatmul.bf16.gmra.mxu0 %v6921
        %v6983 = vpop.f32.mrf.mxu0
        %v6984 = vadd.f32 0.0, %v6983
        %v6985 = vpop.f32.mrf.mxu0
        %v6986 = vadd.f32 0.0, %v6985
        %6987 = vmatmul.bf16.gmra.mxu0 %v6924
        %v6988 = vpop.f32.mrf.mxu0
        %v6989 = vadd.f32 0.0, %v6988
        %v6990 = vpop.f32.mrf.mxu0
        %v6991 = vadd.f32 0.0, %v6990
        %6992 = vmatmul.bf16.gmra.mxu0 %v6927
        %v6993 = vpop.f32.mrf.mxu0
        %v6994 = vadd.f32 0.0, %v6993
        %v6995 = vpop.f32.mrf.mxu0
        %v6996 = vadd.f32 0.0, %v6995
        %6997 = vmatmul.bf16.gmra.mxu0 %v6930
        %v6998 = vpop.f32.mrf.mxu0
        %v6999 = vadd.f32 0.0, %v6998
        %v7000 = vpop.f32.mrf.mxu0
        %v7001 = vadd.f32 0.0, %v7000
        %7002 = vmatmul.bf16.gmra.mxu0 %v6933
        %v7003 = vpop.f32.mrf.mxu0
        %v7004 = vadd.f32 0.0, %v7003
        %v7005 = vpop.f32.mrf.mxu0
        %v7006 = vadd.f32 0.0, %v7005
        %7007 = vdwg.mxu0
        %v7008 = vmul.f32 %v6969, 0.125
        %v7009 = vmul.f32 %v6971, 0.125
        %v7010 = vmul.f32 %v6974, 0.125
        %v7011 = vmul.f32 %v6976, 0.125
        %v7012 = vmul.f32 %v6979, 0.125
        %v7013 = vmul.f32 %v6981, 0.125
        %v7014 = vmul.f32 %v6984, 0.125
        %v7015 = vmul.f32 %v6986, 0.125
        %v7016 = vmul.f32 %v6989, 0.125
        %v7017 = vmul.f32 %v6991, 0.125
        %v7018 = vmul.f32 %v6994, 0.125
        %v7019 = vmul.f32 %v6996, 0.125
        %v7020 = vmul.f32 %v6999, 0.125
        %v7021 = vmul.f32 %v7001, 0.125
        %v7022 = vmul.f32 %v7004, 0.125
        %v7023 = vmul.f32 %v7006, 0.125
        %v7024 = vadd.f32 %v7008, %v4109
        %v7025 = vadd.f32 %v7009, %v4114
        %v7026 = vadd.f32 %v7010, %v4119
        %v7027 = vadd.f32 %v7011, %v4124
        %v7028 = vadd.f32 %v7012, %v4129
        %v7029 = vadd.f32 %v7013, %v4134
        %v7030 = vadd.f32 %v7014, %v4139
        %v7031 = vadd.f32 %v7015, %v4144
        %v7032 = vadd.f32 %v7016, %v4149
        %v7033 = vadd.f32 %v7017, %v4154
        %v7034 = vadd.f32 %v7018, %v4159
        %v7035 = vadd.f32 %v7019, %v4164
        %v7036 = vadd.f32 %v7020, %v4169
        %v7037 = vadd.f32 %v7021, %v4174
        %v7038 = vadd.f32 %v7022, %v4179
        %v7039 = vadd.f32 %v7023, %v4184
        %7040 = vmax.xlane.f32.xlu0 %v7024
        %v7041 = vpop.xlane.xlu0 %7040
        %7042 = vmax.xlane.f32.xlu0 %v7025
        %v7043 = vpop.xlane.xlu0 %7042
        %7044 = vmax.xlane.f32.xlu0 %v7026
        %v7045 = vpop.xlane.xlu0 %7044
        %7046 = vmax.xlane.f32.xlu0 %v7027
        %v7047 = vpop.xlane.xlu0 %7046
        %7048 = vmax.xlane.f32.xlu0 %v7028
        %v7049 = vpop.xlane.xlu0 %7048
        %7050 = vmax.xlane.f32.xlu0 %v7029
        %v7051 = vpop.xlane.xlu0 %7050
        %7052 = vmax.xlane.f32.xlu0 %v7030
        %v7053 = vpop.xlane.xlu0 %7052
        %7054 = vmax.xlane.f32.xlu0 %v7031
        %v7055 = vpop.xlane.xlu0 %7054
        %7056 = vmax.xlane.f32.xlu0 %v7032
        %v7057 = vpop.xlane.xlu0 %7056
        %7058 = vmax.xlane.f32.xlu0 %v7033
        %v7059 = vpop.xlane.xlu0 %7058
        %7060 = vmax.xlane.f32.xlu0 %v7034
        %v7061 = vpop.xlane.xlu0 %7060
        %7062 = vmax.xlane.f32.xlu0 %v7035
        %v7063 = vpop.xlane.xlu0 %7062
        %7064 = vmax.xlane.f32.xlu0 %v7036
        %v7065 = vpop.xlane.xlu0 %7064
        %7066 = vmax.xlane.f32.xlu0 %v7037
        %v7067 = vpop.xlane.xlu0 %7066
        %7068 = vmax.xlane.f32.xlu0 %v7038
        %v7069 = vpop.xlane.xlu0 %7068
        %7070 = vmax.xlane.f32.xlu0 %v7039
        %v7071 = vpop.xlane.xlu0 %7070
        %v7072 = vsub.f32 %v7024, %v7041
        %v7073 = vsub.f32 %v7025, %v7043
        %v7074 = vsub.f32 %v7026, %v7045
        %v7075 = vsub.f32 %v7027, %v7047
        %v7076 = vsub.f32 %v7028, %v7049
        %v7077 = vsub.f32 %v7029, %v7051
        %v7078 = vsub.f32 %v7030, %v7053
        %v7079 = vsub.f32 %v7031, %v7055
        %v7080 = vsub.f32 %v7032, %v7057
        %v7081 = vsub.f32 %v7033, %v7059
        %v7082 = vsub.f32 %v7034, %v7061
        %v7083 = vsub.f32 %v7035, %v7063
        %v7084 = vsub.f32 %v7036, %v7065
        %v7085 = vsub.f32 %v7037, %v7067
        %v7086 = vsub.f32 %v7038, %v7069
        %v7087 = vsub.f32 %v7039, %v7071
        %v7088 = vmul.f32 %v7072, 1.442695
        %v7089 = vpow.pop %v7088
        %v7090 = vmul.f32 %v7073, 1.442695
        %v7091 = vpow.pop %v7090
        %v7092 = vmul.f32 %v7074, 1.442695
        %v7093 = vpow.pop %v7092
        %v7094 = vmul.f32 %v7075, 1.442695
        %v7095 = vpow.pop %v7094
        %v7096 = vmul.f32 %v7076, 1.442695
        %v7097 = vpow.pop %v7096
        %v7098 = vmul.f32 %v7077, 1.442695
        %v7099 = vpow.pop %v7098
        %v7100 = vmul.f32 %v7078, 1.442695
        %v7101 = vpow.pop %v7100
        %v7102 = vmul.f32 %v7079, 1.442695
        %v7103 = vpow.pop %v7102
        %v7104 = vmul.f32 %v7080, 1.442695
        %v7105 = vpow.pop %v7104
        %v7106 = vmul.f32 %v7081, 1.442695
        %v7107 = vpow.pop %v7106
        %v7108 = vmul.f32 %v7082, 1.442695
        %v7109 = vpow.pop %v7108
        %v7110 = vmul.f32 %v7083, 1.442695
        %v7111 = vpow.pop %v7110
        %v7112 = vmul.f32 %v7084, 1.442695
        %v7113 = vpow.pop %v7112
        %v7114 = vmul.f32 %v7085, 1.442695
        %v7115 = vpow.pop %v7114
        %v7116 = vmul.f32 %v7086, 1.442695
        %v7117 = vpow.pop %v7116
        %v7118 = vmul.f32 %v7087, 1.442695
        %v7119 = vpow.pop %v7118
        %7120 = vadd.xlane.f32.xlu0 %v7089
        %v7121 = vpop.xlane.xlu0 %7120
        %7122 = vadd.xlane.f32.xlu0 %v7091
        %v7123 = vpop.xlane.xlu0 %7122
        %7124 = vadd.xlane.f32.xlu0 %v7093
        %v7125 = vpop.xlane.xlu0 %7124
        %7126 = vadd.xlane.f32.xlu0 %v7095
        %v7127 = vpop.xlane.xlu0 %7126
        %7128 = vadd.xlane.f32.xlu0 %v7097
        %v7129 = vpop.xlane.xlu0 %7128
        %7130 = vadd.xlane.f32.xlu0 %v7099
        %v7131 = vpop.xlane.xlu0 %7130
        %7132 = vadd.xlane.f32.xlu0 %v7101
        %v7133 = vpop.xlane.xlu0 %7132
        %7134 = vadd.xlane.f32.xlu0 %v7103
        %v7135 = vpop.xlane.xlu0 %7134
        %7136 = vadd.xlane.f32.xlu0 %v7105
        %v7137 = vpop.xlane.xlu0 %7136
        %7138 = vadd.xlane.f32.xlu0 %v7107
        %v7139 = vpop.xlane.xlu0 %7138
        %7140 = vadd.xlane.f32.xlu0 %v7109
        %v7141 = vpop.xlane.xlu0 %7140
        %7142 = vadd.xlane.f32.xlu0 %v7111
        %v7143 = vpop.xlane.xlu0 %7142
        %7144 = vadd.xlane.f32.xlu0 %v7113
        %v7145 = vpop.xlane.xlu0 %7144
        %7146 = vadd.xlane.f32.xlu0 %v7115
        %v7147 = vpop.xlane.xlu0 %7146
        %7148 = vadd.xlane.f32.xlu0 %v7117
        %v7149 = vpop.xlane.xlu0 %7148
        %7150 = vadd.xlane.f32.xlu0 %v7119
        %v7151 = vpop.xlane.xlu0 %7150
        %v7152 = vrcp.pop %v7121
        %v7153 = vrcp.pop %v7123
        %v7154 = vrcp.pop %v7125
        %v7155 = vrcp.pop %v7127
        %v7156 = vrcp.pop %v7129
        %v7157 = vrcp.pop %v7131
        %v7158 = vrcp.pop %v7133
        %v7159 = vrcp.pop %v7135
        %v7160 = vrcp.pop %v7137
        %v7161 = vrcp.pop %v7139
        %v7162 = vrcp.pop %v7141
        %v7163 = vrcp.pop %v7143
        %v7164 = vrcp.pop %v7145
        %v7165 = vrcp.pop %v7147
        %v7166 = vrcp.pop %v7149
        %v7167 = vrcp.pop %v7151
        %v7168 = vmul.f32 %v7089, %v7152
        %v7169 = vmul.f32 %v7091, %v7153
        %v7170 = vmul.f32 %v7093, %v7154
        %v7171 = vmul.f32 %v7095, %v7155
        %v7172 = vmul.f32 %v7097, %v7156
        %v7173 = vmul.f32 %v7099, %v7157
        %v7174 = vmul.f32 %v7101, %v7158
        %v7175 = vmul.f32 %v7103, %v7159
        %v7176 = vmul.f32 %v7105, %v7160
        %v7177 = vmul.f32 %v7107, %v7161
        %v7178 = vmul.f32 %v7109, %v7162
        %v7179 = vmul.f32 %v7111, %v7163
        %v7180 = vmul.f32 %v7113, %v7164
        %v7181 = vmul.f32 %v7115, %v7165
        %v7182 = vmul.f32 %v7117, %v7166
        %v7183 = vmul.f32 %v7119, %v7167
        %v7184 = vpack.c.bf16 %v7169, %v7168
        %v7185 = vpack.c.bf16 %v7171, %v7170
        %v7186 = vpack.c.bf16 %v7173, %v7172
        %v7187 = vpack.c.bf16 %v7175, %v7174
        %v7188 = vpack.c.bf16 %v7177, %v7176
        %v7189 = vpack.c.bf16 %v7179, %v7178
        %v7190 = vpack.c.bf16 %v7181, %v7180
        %v7191 = vpack.c.bf16 %v7183, %v7182
        %v7192 = vunpack.c.h.b16 %v3850
        %v7193 = vunpack.c.h.b16 %v3852
        %v7194 = vunpack.c.h.b16 %v3854
        %v7195 = vunpack.c.h.b16 %v3856
        %v7196 = vunpack.c.h.b16 %v3858
        %v7197 = vunpack.c.h.b16 %v3860
        %v7198 = vunpack.c.h.b16 %v3862
        %v7199 = vunpack.c.h.b16 %v3864
        %v7200 = vunpack.c.h.b16 %v3866
        %v7201 = vunpack.c.h.b16 %v3868
        %v7202 = vunpack.c.h.b16 %v3870
        %v7203 = vunpack.c.h.b16 %v3872
        %v7204 = vunpack.c.h.b16 %v3874
        %v7205 = vunpack.c.h.b16 %v3876
        %v7206 = vunpack.c.h.b16 %v3878
        %v7207 = vunpack.c.h.b16 %v3880
        %v7208 = vpack.c.b16 %v7193, %v7192
        %v7209 = vpack.c.b16 %v7195, %v7194
        %v7210 = vpack.c.b16 %v7197, %v7196
        %v7211 = vpack.c.b16 %v7199, %v7198
        %v7212 = vpack.c.b16 %v7201, %v7200
        %v7213 = vpack.c.b16 %v7203, %v7202
        %v7214 = vpack.c.b16 %v7205, %v7204
        %v7215 = vpack.c.b16 %v7207, %v7206
        %7224 = vmatpush.bf16.msra.mxu0 %v7215
        %7225 = vmatpush.bf16.msra.mxu0 %v7214
        %7226 = vmatpush.bf16.msra.mxu0 %v7213
        %7227 = vmatpush.bf16.msra.mxu0 %v7212
        %7228 = vmatpush.bf16.msra.mxu0 %v7211
        %7229 = vmatpush.bf16.msra.mxu0 %v7210
        %7230 = vmatpush.bf16.msra.mxu0 %v7209
        %7231 = vmatpush.bf16.msra.mxu0 %v7208
        %7232 = vmatmul.bf16.gmra.mxu0 %v7184
        %v7233 = vpop.f32.mrf.mxu0
        %v7234 = vadd.f32 0.0, %v7233
        %v7235 = vpop.f32.mrf.mxu0
        %v7236 = vadd.f32 0.0, %v7235
        %7237 = vmatmul.bf16.gmra.mxu0 %v7185
        %v7238 = vpop.f32.mrf.mxu0
        %v7239 = vadd.f32 0.0, %v7238
        %v7240 = vpop.f32.mrf.mxu0
        %v7241 = vadd.f32 0.0, %v7240
        %7242 = vmatmul.bf16.gmra.mxu0 %v7186
        %v7243 = vpop.f32.mrf.mxu0
        %v7244 = vadd.f32 0.0, %v7243
        %v7245 = vpop.f32.mrf.mxu0
        %v7246 = vadd.f32 0.0, %v7245
        %7247 = vmatmul.bf16.gmra.mxu0 %v7187
        %v7248 = vpop.f32.mrf.mxu0
        %v7249 = vadd.f32 0.0, %v7248
        %v7250 = vpop.f32.mrf.mxu0
        %v7251 = vadd.f32 0.0, %v7250
        %7252 = vmatmul.bf16.gmra.mxu0 %v7188
        %v7253 = vpop.f32.mrf.mxu0
        %v7254 = vadd.f32 0.0, %v7253
        %v7255 = vpop.f32.mrf.mxu0
        %v7256 = vadd.f32 0.0, %v7255
        %7257 = vmatmul.bf16.gmra.mxu0 %v7189
        %v7258 = vpop.f32.mrf.mxu0
        %v7259 = vadd.f32 0.0, %v7258
        %v7260 = vpop.f32.mrf.mxu0
        %v7261 = vadd.f32 0.0, %v7260
        %7262 = vmatmul.bf16.gmra.mxu0 %v7190
        %v7263 = vpop.f32.mrf.mxu0
        %v7264 = vadd.f32 0.0, %v7263
        %v7265 = vpop.f32.mrf.mxu0
        %v7266 = vadd.f32 0.0, %v7265
        %7267 = vmatmul.bf16.gmra.mxu0 %v7191
        %v7268 = vpop.f32.mrf.mxu0
        %v7269 = vadd.f32 0.0, %v7268
        %v7270 = vpop.f32.mrf.mxu0
        %v7271 = vadd.f32 0.0, %v7270
        %7272 = vdwg.mxu0
        %v7273 = vpack.c.bf16 %v7234, %v7234
        %v7274 = vpack.c.bf16 %v7236, %v7236
        %v7275 = vpack.c.bf16 %v7239, %v7239
        %v7276 = vpack.c.bf16 %v7241, %v7241
        %v7277 = vpack.c.bf16 %v7244, %v7244
        %v7278 = vpack.c.bf16 %v7246, %v7246
        %v7279 = vpack.c.bf16 %v7249, %v7249
        %v7280 = vpack.c.bf16 %v7251, %v7251
        %v7281 = vpack.c.bf16 %v7254, %v7254
        %v7282 = vpack.c.bf16 %v7256, %v7256
        %v7283 = vpack.c.bf16 %v7259, %v7259
        %v7284 = vpack.c.bf16 %v7261, %v7261
        %v7285 = vpack.c.bf16 %v7264, %v7264
        %v7286 = vpack.c.bf16 %v7266, %v7266
        %v7287 = vpack.c.bf16 %v7269, %v7269
        %v7288 = vpack.c.bf16 %v7271, %v7271
        %7289 = vst.msk [vmem:[%s347 + $0xc] sm:$0xf] %vm4467, %v7273
        %7290 = vst.msk [vmem:[%s347 + $0x1c] sm:$0xf] %vm4467, %v7274
        %7291 = vst.msk [vmem:[%s347 + $0x2c] sm:$0xf] %vm4467, %v7275
        %7292 = vst.msk [vmem:[%s347 + $0x3c] sm:$0xf] %vm4467, %v7276
        %7293 = vst.msk [vmem:[%s347 + $0x4c] sm:$0xf] %vm4467, %v7277
        %7294 = vst.msk [vmem:[%s347 + $0x5c] sm:$0xf] %vm4467, %v7278
        %7295 = vst.msk [vmem:[%s347 + $0x6c] sm:$0xf] %vm4467, %v7279
        %7296 = vst.msk [vmem:[%s347 + $0x7c] sm:$0xf] %vm4467, %v7280
        %7297 = vst.msk [vmem:[%s347 + $0x8c] sm:$0xf] %vm4467, %v7281
        %7298 = vst.msk [vmem:[%s347 + $0x9c] sm:$0xf] %vm4467, %v7282
        %7299 = vst.msk [vmem:[%s347 + $0xac] sm:$0xf] %vm4467, %v7283
        %7300 = vst.msk [vmem:[%s347 + $0xbc] sm:$0xf] %vm4467, %v7284
        %7301 = vst.msk [vmem:[%s347 + $0xcc] sm:$0xf] %vm4467, %v7285
        %7302 = vst.msk [vmem:[%s347 + $0xdc] sm:$0xf] %vm4467, %v7286
        %7303 = vst.msk [vmem:[%s347 + $0xec] sm:$0xf] %vm4467, %v7287
        %7304 = vst.msk [vmem:[%s347 + $0xfc] sm:$0xf] %vm4467, %v7288
        %7305 = vrot.lane.b32.xlu0 %v6879, 64
        %v7306 = vpop.permute.xlu0 %7305
        %7307 = vrot.lane.b32.xlu0 %v6880, 64
        %v7308 = vpop.permute.xlu0 %7307
        %7309 = vrot.lane.b32.xlu0 %v6881, 64
        %v7310 = vpop.permute.xlu0 %7309
        %7311 = vrot.lane.b32.xlu0 %v6882, 64
        %v7312 = vpop.permute.xlu0 %7311
        %7313 = vrot.lane.b32.xlu0 %v6883, 64
        %v7314 = vpop.permute.xlu0 %7313
        %7315 = vrot.lane.b32.xlu0 %v6884, 64
        %v7316 = vpop.permute.xlu0 %7315
        %7317 = vrot.lane.b32.xlu0 %v6885, 64
        %v7318 = vpop.permute.xlu0 %7317
        %7319 = vrot.lane.b32.xlu0 %v6886, 64
        %v7320 = vpop.permute.xlu0 %7319
        %7321 = vrot.lane.b32.xlu0 %v6903, 64
        %v7322 = vpop.permute.xlu0 %7321
        %7323 = vrot.lane.b32.xlu0 %v6904, 64
        %v7324 = vpop.permute.xlu0 %7323
        %7325 = vrot.lane.b32.xlu0 %v6905, 64
        %v7326 = vpop.permute.xlu0 %7325
        %7327 = vrot.lane.b32.xlu0 %v6906, 64
        %v7328 = vpop.permute.xlu0 %7327
        %7329 = vrot.lane.b32.xlu0 %v6907, 64
        %v7330 = vpop.permute.xlu0 %7329
        %7331 = vrot.lane.b32.xlu0 %v6908, 64
        %v7332 = vpop.permute.xlu0 %7331
        %7333 = vrot.lane.b32.xlu0 %v6909, 64
        %v7334 = vpop.permute.xlu0 %7333
        %7335 = vrot.lane.b32.xlu0 %v6910, 64
        %v7336 = vpop.permute.xlu0 %7335
        %v7338 = vsel %vm1006, %v7306, 0
        %v7341 = vsel %vm1006, %v7308, 0
        %v7344 = vsel %vm1006, %v7310, 0
        %v7347 = vsel %vm1006, %v7312, 0
        %v7350 = vsel %vm1006, %v7314, 0
        %v7353 = vsel %vm1006, %v7316, 0
        %v7356 = vsel %vm1006, %v7318, 0
        %v7359 = vsel %vm1006, %v7320, 0
        %v7362 = vsel %vm1006, %v7322, 0
        %v7365 = vsel %vm1006, %v7324, 0
        %v7368 = vsel %vm1006, %v7326, 0
        %v7371 = vsel %vm1006, %v7328, 0
        %v7374 = vsel %vm1006, %v7330, 0
        %v7377 = vsel %vm1006, %v7332, 0
        %v7380 = vsel %vm1006, %v7334, 0
        %v7383 = vsel %vm1006, %v7336, 0
        %7385 = vmatpush.bf16.xpose.msra.mxu0 %v7383
        %7386 = vmatpush.bf16.xpose.msra.mxu0 %v7380
        %7387 = vmatpush.bf16.xpose.msra.mxu0 %v7377
        %7388 = vmatpush.bf16.xpose.msra.mxu0 %v7374
        %7389 = vmatpush.bf16.xpose.msra.mxu0 %v7371
        %7390 = vmatpush.bf16.xpose.msra.mxu0 %v7368
        %7391 = vmatpush.bf16.xpose.msra.mxu0 %v7365
        %7392 = vmatpush.bf16.xpose.msra.mxu0 %v7362
        %7393 = vmatmul.bf16.gmra.mxu0 %v7338
        %v7394 = vpop.f32.mrf.mxu0
        %v7395 = vadd.f32 0.0, %v7394
        %v7396 = vpop.f32.mrf.mxu0
        %v7397 = vadd.f32 0.0, %v7396
        %7398 = vmatmul.bf16.gmra.mxu0 %v7341
        %v7399 = vpop.f32.mrf.mxu0
        %v7400 = vadd.f32 0.0, %v7399
        %v7401 = vpop.f32.mrf.mxu0
        %v7402 = vadd.f32 0.0, %v7401
        %7403 = vmatmul.bf16.gmra.mxu0 %v7344
        %v7404 = vpop.f32.mrf.mxu0
        %v7405 = vadd.f32 0.0, %v7404
        %v7406 = vpop.f32.mrf.mxu0
        %v7407 = vadd.f32 0.0, %v7406
        %7408 = vmatmul.bf16.gmra.mxu0 %v7347
        %v7409 = vpop.f32.mrf.mxu0
        %v7410 = vadd.f32 0.0, %v7409
        %v7411 = vpop.f32.mrf.mxu0
        %v7412 = vadd.f32 0.0, %v7411
        %7413 = vmatmul.bf16.gmra.mxu0 %v7350
        %v7414 = vpop.f32.mrf.mxu0
        %v7415 = vadd.f32 0.0, %v7414
        %v7416 = vpop.f32.mrf.mxu0
        %v7417 = vadd.f32 0.0, %v7416
        %7418 = vmatmul.bf16.gmra.mxu0 %v7353
        %v7419 = vpop.f32.mrf.mxu0
        %v7420 = vadd.f32 0.0, %v7419
        %v7421 = vpop.f32.mrf.mxu0
        %v7422 = vadd.f32 0.0, %v7421
        %7423 = vmatmul.bf16.gmra.mxu0 %v7356
        %v7424 = vpop.f32.mrf.mxu0
        %v7425 = vadd.f32 0.0, %v7424
        %v7426 = vpop.f32.mrf.mxu0
        %v7427 = vadd.f32 0.0, %v7426
        %7428 = vmatmul.bf16.gmra.mxu0 %v7359
        %v7429 = vpop.f32.mrf.mxu0
        %v7430 = vadd.f32 0.0, %v7429
        %v7431 = vpop.f32.mrf.mxu0
        %v7432 = vadd.f32 0.0, %v7431
        %7433 = vdwg.mxu0
        %v7434 = vmul.f32 %v7395, 0.125
        %v7435 = vmul.f32 %v7397, 0.125
        %v7436 = vmul.f32 %v7400, 0.125
        %v7437 = vmul.f32 %v7402, 0.125
        %v7438 = vmul.f32 %v7405, 0.125
        %v7439 = vmul.f32 %v7407, 0.125
        %v7440 = vmul.f32 %v7410, 0.125
        %v7441 = vmul.f32 %v7412, 0.125
        %v7442 = vmul.f32 %v7415, 0.125
        %v7443 = vmul.f32 %v7417, 0.125
        %v7444 = vmul.f32 %v7420, 0.125
        %v7445 = vmul.f32 %v7422, 0.125
        %v7446 = vmul.f32 %v7425, 0.125
        %v7447 = vmul.f32 %v7427, 0.125
        %v7448 = vmul.f32 %v7430, 0.125
        %v7449 = vmul.f32 %v7432, 0.125
        %v7450 = vadd.f32 %v7434, %v4109
        %v7451 = vadd.f32 %v7435, %v4114
        %v7452 = vadd.f32 %v7436, %v4119
        %v7453 = vadd.f32 %v7437, %v4124
        %v7454 = vadd.f32 %v7438, %v4129
        %v7455 = vadd.f32 %v7439, %v4134
        %v7456 = vadd.f32 %v7440, %v4139
        %v7457 = vadd.f32 %v7441, %v4144
        %v7458 = vadd.f32 %v7442, %v4149
        %v7459 = vadd.f32 %v7443, %v4154
        %v7460 = vadd.f32 %v7444, %v4159
        %v7461 = vadd.f32 %v7445, %v4164
        %v7462 = vadd.f32 %v7446, %v4169
        %v7463 = vadd.f32 %v7447, %v4174
        %v7464 = vadd.f32 %v7448, %v4179
        %v7465 = vadd.f32 %v7449, %v4184
        %7466 = vmax.xlane.f32.xlu0 %v7450
        %v7467 = vpop.xlane.xlu0 %7466
        %7468 = vmax.xlane.f32.xlu0 %v7451
        %v7469 = vpop.xlane.xlu0 %7468
        %7470 = vmax.xlane.f32.xlu0 %v7452
        %v7471 = vpop.xlane.xlu0 %7470
        %7472 = vmax.xlane.f32.xlu0 %v7453
        %v7473 = vpop.xlane.xlu0 %7472
        %7474 = vmax.xlane.f32.xlu0 %v7454
        %v7475 = vpop.xlane.xlu0 %7474
        %7476 = vmax.xlane.f32.xlu0 %v7455
        %v7477 = vpop.xlane.xlu0 %7476
        %7478 = vmax.xlane.f32.xlu0 %v7456
        %v7479 = vpop.xlane.xlu0 %7478
        %7480 = vmax.xlane.f32.xlu0 %v7457
        %v7481 = vpop.xlane.xlu0 %7480
        %7482 = vmax.xlane.f32.xlu0 %v7458
        %v7483 = vpop.xlane.xlu0 %7482
        %7484 = vmax.xlane.f32.xlu0 %v7459
        %v7485 = vpop.xlane.xlu0 %7484
        %7486 = vmax.xlane.f32.xlu0 %v7460
        %v7487 = vpop.xlane.xlu0 %7486
        %7488 = vmax.xlane.f32.xlu0 %v7461
        %v7489 = vpop.xlane.xlu0 %7488
        %7490 = vmax.xlane.f32.xlu0 %v7462
        %v7491 = vpop.xlane.xlu0 %7490
        %7492 = vmax.xlane.f32.xlu0 %v7463
        %v7493 = vpop.xlane.xlu0 %7492
        %7494 = vmax.xlane.f32.xlu0 %v7464
        %v7495 = vpop.xlane.xlu0 %7494
        %7496 = vmax.xlane.f32.xlu0 %v7465
        %v7497 = vpop.xlane.xlu0 %7496
        %v7498 = vsub.f32 %v7450, %v7467
        %v7499 = vsub.f32 %v7451, %v7469
        %v7500 = vsub.f32 %v7452, %v7471
        %v7501 = vsub.f32 %v7453, %v7473
        %v7502 = vsub.f32 %v7454, %v7475
        %v7503 = vsub.f32 %v7455, %v7477
        %v7504 = vsub.f32 %v7456, %v7479
        %v7505 = vsub.f32 %v7457, %v7481
        %v7506 = vsub.f32 %v7458, %v7483
        %v7507 = vsub.f32 %v7459, %v7485
        %v7508 = vsub.f32 %v7460, %v7487
        %v7509 = vsub.f32 %v7461, %v7489
        %v7510 = vsub.f32 %v7462, %v7491
        %v7511 = vsub.f32 %v7463, %v7493
        %v7512 = vsub.f32 %v7464, %v7495
        %v7513 = vsub.f32 %v7465, %v7497
        %v7514 = vmul.f32 %v7498, 1.442695
        %v7515 = vpow.pop %v7514
        %v7516 = vmul.f32 %v7499, 1.442695
        %v7517 = vpow.pop %v7516
        %v7518 = vmul.f32 %v7500, 1.442695
        %v7519 = vpow.pop %v7518
        %v7520 = vmul.f32 %v7501, 1.442695
        %v7521 = vpow.pop %v7520
        %v7522 = vmul.f32 %v7502, 1.442695
        %v7523 = vpow.pop %v7522
        %v7524 = vmul.f32 %v7503, 1.442695
        %v7525 = vpow.pop %v7524
        %v7526 = vmul.f32 %v7504, 1.442695
        %v7527 = vpow.pop %v7526
        %v7528 = vmul.f32 %v7505, 1.442695
        %v7529 = vpow.pop %v7528
        %v7530 = vmul.f32 %v7506, 1.442695
        %v7531 = vpow.pop %v7530
        %v7532 = vmul.f32 %v7507, 1.442695
        %v7533 = vpow.pop %v7532
        %v7534 = vmul.f32 %v7508, 1.442695
        %v7535 = vpow.pop %v7534
        %v7536 = vmul.f32 %v7509, 1.442695
        %v7537 = vpow.pop %v7536
        %v7538 = vmul.f32 %v7510, 1.442695
        %v7539 = vpow.pop %v7538
        %v7540 = vmul.f32 %v7511, 1.442695
        %v7541 = vpow.pop %v7540
        %v7542 = vmul.f32 %v7512, 1.442695
        %v7543 = vpow.pop %v7542
        %v7544 = vmul.f32 %v7513, 1.442695
        %v7545 = vpow.pop %v7544
        %7546 = vadd.xlane.f32.xlu0 %v7515
        %v7547 = vpop.xlane.xlu0 %7546
        %7548 = vadd.xlane.f32.xlu0 %v7517
        %v7549 = vpop.xlane.xlu0 %7548
        %7550 = vadd.xlane.f32.xlu0 %v7519
        %v7551 = vpop.xlane.xlu0 %7550
        %7552 = vadd.xlane.f32.xlu0 %v7521
        %v7553 = vpop.xlane.xlu0 %7552
        %7554 = vadd.xlane.f32.xlu0 %v7523
        %v7555 = vpop.xlane.xlu0 %7554
        %7556 = vadd.xlane.f32.xlu0 %v7525
        %v7557 = vpop.xlane.xlu0 %7556
        %7558 = vadd.xlane.f32.xlu0 %v7527
        %v7559 = vpop.xlane.xlu0 %7558
        %7560 = vadd.xlane.f32.xlu0 %v7529
        %v7561 = vpop.xlane.xlu0 %7560
        %7562 = vadd.xlane.f32.xlu0 %v7531
        %v7563 = vpop.xlane.xlu0 %7562
        %7564 = vadd.xlane.f32.xlu0 %v7533
        %v7565 = vpop.xlane.xlu0 %7564
        %7566 = vadd.xlane.f32.xlu0 %v7535
        %v7567 = vpop.xlane.xlu0 %7566
        %7568 = vadd.xlane.f32.xlu0 %v7537
        %v7569 = vpop.xlane.xlu0 %7568
        %7570 = vadd.xlane.f32.xlu0 %v7539
        %v7571 = vpop.xlane.xlu0 %7570
        %7572 = vadd.xlane.f32.xlu0 %v7541
        %v7573 = vpop.xlane.xlu0 %7572
        %7574 = vadd.xlane.f32.xlu0 %v7543
        %v7575 = vpop.xlane.xlu0 %7574
        %7576 = vadd.xlane.f32.xlu0 %v7545
        %v7577 = vpop.xlane.xlu0 %7576
        %v7578 = vrcp.pop %v7547
        %v7579 = vrcp.pop %v7549
        %v7580 = vrcp.pop %v7551
        %v7581 = vrcp.pop %v7553
        %v7582 = vrcp.pop %v7555
        %v7583 = vrcp.pop %v7557
        %v7584 = vrcp.pop %v7559
        %v7585 = vrcp.pop %v7561
        %v7586 = vrcp.pop %v7563
        %v7587 = vrcp.pop %v7565
        %v7588 = vrcp.pop %v7567
        %v7589 = vrcp.pop %v7569
        %v7590 = vrcp.pop %v7571
        %v7591 = vrcp.pop %v7573
        %v7592 = vrcp.pop %v7575
        %v7593 = vrcp.pop %v7577
        %v7594 = vmul.f32 %v7515, %v7578
        %v7595 = vmul.f32 %v7517, %v7579
        %v7596 = vmul.f32 %v7519, %v7580
        %v7597 = vmul.f32 %v7521, %v7581
        %v7598 = vmul.f32 %v7523, %v7582
        %v7599 = vmul.f32 %v7525, %v7583
        %v7600 = vmul.f32 %v7527, %v7584
        %v7601 = vmul.f32 %v7529, %v7585
        %v7602 = vmul.f32 %v7531, %v7586
        %v7603 = vmul.f32 %v7533, %v7587
        %v7604 = vmul.f32 %v7535, %v7588
        %v7605 = vmul.f32 %v7537, %v7589
        %v7606 = vmul.f32 %v7539, %v7590
        %v7607 = vmul.f32 %v7541, %v7591
        %v7608 = vmul.f32 %v7543, %v7592
        %v7609 = vmul.f32 %v7545, %v7593
        %v7610 = vpack.c.bf16 %v7595, %v7594
        %v7611 = vpack.c.bf16 %v7597, %v7596
        %v7612 = vpack.c.bf16 %v7599, %v7598
        %v7613 = vpack.c.bf16 %v7601, %v7600
        %v7614 = vpack.c.bf16 %v7603, %v7602
        %v7615 = vpack.c.bf16 %v7605, %v7604
        %v7616 = vpack.c.bf16 %v7607, %v7606
        %v7617 = vpack.c.bf16 %v7609, %v7608
        %7618 = vrot.lane.b32.xlu0 %v7208, 64
        %v7619 = vpop.permute.xlu0 %7618
        %7620 = vrot.lane.b32.xlu0 %v7209, 64
        %v7621 = vpop.permute.xlu0 %7620
        %7622 = vrot.lane.b32.xlu0 %v7210, 64
        %v7623 = vpop.permute.xlu0 %7622
        %7624 = vrot.lane.b32.xlu0 %v7211, 64
        %v7625 = vpop.permute.xlu0 %7624
        %7626 = vrot.lane.b32.xlu0 %v7212, 64
        %v7627 = vpop.permute.xlu0 %7626
        %7628 = vrot.lane.b32.xlu0 %v7213, 64
        %v7629 = vpop.permute.xlu0 %7628
        %7630 = vrot.lane.b32.xlu0 %v7214, 64
        %v7631 = vpop.permute.xlu0 %7630
        %7632 = vrot.lane.b32.xlu0 %v7215, 64
        %v7633 = vpop.permute.xlu0 %7632
        %7642 = vmatpush.bf16.msra.mxu0 %v7633
        %7643 = vmatpush.bf16.msra.mxu0 %v7631
        %7644 = vmatpush.bf16.msra.mxu0 %v7629
        %7645 = vmatpush.bf16.msra.mxu0 %v7627
        %7646 = vmatpush.bf16.msra.mxu0 %v7625
        %7647 = vmatpush.bf16.msra.mxu0 %v7623
        %7648 = vmatpush.bf16.msra.mxu0 %v7621
        %7649 = vmatpush.bf16.msra.mxu0 %v7619
        %7650 = vmatmul.bf16.gmra.mxu0 %v7610
        %v7651 = vpop.f32.mrf.mxu0
        %v7652 = vadd.f32 0.0, %v7651
        %v7653 = vpop.f32.mrf.mxu0
        %v7654 = vadd.f32 0.0, %v7653
        %7655 = vmatmul.bf16.gmra.mxu0 %v7611
        %v7656 = vpop.f32.mrf.mxu0
        %v7657 = vadd.f32 0.0, %v7656
        %v7658 = vpop.f32.mrf.mxu0
        %v7659 = vadd.f32 0.0, %v7658
        %7660 = vmatmul.bf16.gmra.mxu0 %v7612
        %v7661 = vpop.f32.mrf.mxu0
        %v7662 = vadd.f32 0.0, %v7661
        %v7663 = vpop.f32.mrf.mxu0
        %v7664 = vadd.f32 0.0, %v7663
        %7665 = vmatmul.bf16.gmra.mxu0 %v7613
        %v7666 = vpop.f32.mrf.mxu0
        %v7667 = vadd.f32 0.0, %v7666
        %v7668 = vpop.f32.mrf.mxu0
        %v7669 = vadd.f32 0.0, %v7668
        %7670 = vmatmul.bf16.gmra.mxu0 %v7614
        %v7671 = vpop.f32.mrf.mxu0
        %v7672 = vadd.f32 0.0, %v7671
        %v7673 = vpop.f32.mrf.mxu0
        %v7674 = vadd.f32 0.0, %v7673
        %7675 = vmatmul.bf16.gmra.mxu0 %v7615
        %v7676 = vpop.f32.mrf.mxu0
        %v7677 = vadd.f32 0.0, %v7676
        %v7678 = vpop.f32.mrf.mxu0
        %v7679 = vadd.f32 0.0, %v7678
        %7680 = vmatmul.bf16.gmra.mxu0 %v7616
        %v7681 = vpop.f32.mrf.mxu0
        %v7682 = vadd.f32 0.0, %v7681
        %v7683 = vpop.f32.mrf.mxu0
        %v7684 = vadd.f32 0.0, %v7683
        %7685 = vmatmul.bf16.gmra.mxu0 %v7617
        %v7686 = vpop.f32.mrf.mxu0
        %v7687 = vadd.f32 0.0, %v7686
        %v7688 = vpop.f32.mrf.mxu0
        %v7689 = vadd.f32 0.0, %v7688
        %7690 = vdwg.mxu0
        %v7691 = vpack.c.bf16 %v7652, %v7652
        %v7692 = vpack.c.bf16 %v7654, %v7654
        %v7693 = vpack.c.bf16 %v7657, %v7657
        %v7694 = vpack.c.bf16 %v7659, %v7659
        %v7695 = vpack.c.bf16 %v7662, %v7662
        %v7696 = vpack.c.bf16 %v7664, %v7664
        %v7697 = vpack.c.bf16 %v7667, %v7667
        %v7698 = vpack.c.bf16 %v7669, %v7669
        %v7699 = vpack.c.bf16 %v7672, %v7672
        %v7700 = vpack.c.bf16 %v7674, %v7674
        %v7701 = vpack.c.bf16 %v7677, %v7677
        %v7702 = vpack.c.bf16 %v7679, %v7679
        %v7703 = vpack.c.bf16 %v7682, %v7682
        %v7704 = vpack.c.bf16 %v7684, %v7684
        %v7705 = vpack.c.bf16 %v7687, %v7687
        %v7706 = vpack.c.bf16 %v7689, %v7689
        %7723 = vrot.lane.b32.xlu0 %v7691, 64
        %v7724 = vpop.permute.xlu0 %7723
        %7725 = vrot.lane.b32.xlu0 %v7692, 64
        %v7726 = vpop.permute.xlu0 %7725
        %7727 = vrot.lane.b32.xlu0 %v7693, 64
        %v7728 = vpop.permute.xlu0 %7727
        %7729 = vrot.lane.b32.xlu0 %v7694, 64
        %v7730 = vpop.permute.xlu0 %7729
        %7731 = vrot.lane.b32.xlu0 %v7695, 64
        %v7732 = vpop.permute.xlu0 %7731
        %7733 = vrot.lane.b32.xlu0 %v7696, 64
        %v7734 = vpop.permute.xlu0 %7733
        %7735 = vrot.lane.b32.xlu0 %v7697, 64
        %v7736 = vpop.permute.xlu0 %7735
        %7737 = vrot.lane.b32.xlu0 %v7698, 64
        %v7738 = vpop.permute.xlu0 %7737
        %7739 = vrot.lane.b32.xlu0 %v7699, 64
        %v7740 = vpop.permute.xlu0 %7739
        %7741 = vrot.lane.b32.xlu0 %v7700, 64
        %v7742 = vpop.permute.xlu0 %7741
        %7743 = vrot.lane.b32.xlu0 %v7701, 64
        %v7744 = vpop.permute.xlu0 %7743
        %7745 = vrot.lane.b32.xlu0 %v7702, 64
        %v7746 = vpop.permute.xlu0 %7745
        %7747 = vrot.lane.b32.xlu0 %v7703, 64
        %v7748 = vpop.permute.xlu0 %7747
        %7749 = vrot.lane.b32.xlu0 %v7704, 64
        %v7750 = vpop.permute.xlu0 %7749
        %7751 = vrot.lane.b32.xlu0 %v7705, 64
        %v7752 = vpop.permute.xlu0 %7751
        %7753 = vrot.lane.b32.xlu0 %v7706, 64
        %v7754 = vpop.permute.xlu0 %7753
        %7771 = vst.msk [vmem:[%s347 + $0xc] sm:$0xf] %vm4950, %v7724
        %7772 = vst.msk [vmem:[%s347 + $0x1c] sm:$0xf] %vm4950, %v7726
        %7773 = vst.msk [vmem:[%s347 + $0x2c] sm:$0xf] %vm4950, %v7728
        %7774 = vst.msk [vmem:[%s347 + $0x3c] sm:$0xf] %vm4950, %v7730
        %7775 = vst.msk [vmem:[%s347 + $0x4c] sm:$0xf] %vm4950, %v7732
        %7776 = vst.msk [vmem:[%s347 + $0x5c] sm:$0xf] %vm4950, %v7734
        %7777 = vst.msk [vmem:[%s347 + $0x6c] sm:$0xf] %vm4950, %v7736
        %7778 = vst.msk [vmem:[%s347 + $0x7c] sm:$0xf] %vm4950, %v7738
        %7779 = vst.msk [vmem:[%s347 + $0x8c] sm:$0xf] %vm4950, %v7740
        %7780 = vst.msk [vmem:[%s347 + $0x9c] sm:$0xf] %vm4950, %v7742
        %7781 = vst.msk [vmem:[%s347 + $0xac] sm:$0xf] %vm4950, %v7744
        %7782 = vst.msk [vmem:[%s347 + $0xbc] sm:$0xf] %vm4950, %v7746
        %7783 = vst.msk [vmem:[%s347 + $0xcc] sm:$0xf] %vm4950, %v7748
        %7784 = vst.msk [vmem:[%s347 + $0xdc] sm:$0xf] %vm4950, %v7750
        %7785 = vst.msk [vmem:[%s347 + $0xec] sm:$0xf] %vm4950, %v7752
        %7786 = vst.msk [vmem:[%s347 + $0xfc] sm:$0xf] %vm4950, %v7754
        %s7787 = sand.u32 %s210, 1
        %s7788 = scalar_lea.sflag [#allocation4], %s7787
        %s7789 = sand.u32 %s210, 1
        %s7790 = smul.addr %s7789, 256
        %s7791 = scalar_lea.vmem [#allocation7], %s7790
        // Predicated region
        $region61: #{tpu_custom_call.1} parent=51 // pred_check
          %p7792 = pneg %p220
        $region62: #{tpu_custom_call.1} parent=51 // pred_check_branch
          %7794 = sbr.rel (%p7792) target = $region64
        $region63: #{tpu_custom_call.1} parent=51 // pred_region
          %7796 = vsyncadd %s7788, 0
          %s7797 = smul.addr %s24, 64
          %s7798 = smul.addr %s7797, 4
          %s7799 = scalar_lea.hbm %s8, %s7798
          %s7800 = sshll.u32 %s7791, 4
          %s7801 = int_to_ptr.vmem [resolvable:$true] %s7800
          %s7802 = sshll.u32 %s7799, 4
          %s7803 = int_to_ptr.hbm [resolvable:$true] %s7802
          %7808 = dma.vmem_to_hbm [thread:$0]  %s7801, 4096, %s7803, %s7788, 256, 256, 16
        $region64: #{tpu_custom_call.1} parent=51 // pred_fallthru
          _
      $region52: #{tpu_custom_call.1} parent=5 // pred_fallthru
        _
      %p7809 = scmp.le.s32.totalorder 2, %s19
      // Predicated region
      $region65: #{tpu_custom_call.1} parent=5 // pred_check
        %p7810 = pneg %p7809
      $region66: #{tpu_custom_call.1} parent=5 // pred_check_branch
        %7812 = sbr.rel (%p7810) target = $region68
      $region67: #{tpu_custom_call.1} parent=5 // pred_region
        %s7813 = ssub.s32 %s19, 2
        // Predicated region
        $region69: #{tpu_custom_call.1} parent=67 // pred_check
          %p7814 = pneg %p226
        $region70: #{tpu_custom_call.1} parent=67 // pred_check_branch
          %7816 = sbr.rel (%p7814) target = $region72
        $region71: #{tpu_custom_call.1} parent=67 // pred_region
          %s7817 = sand.u32 %s211, 1
          %s7818 = scalar_lea.sflag [#allocation4], %s7817
          %s7819 = sand.u32 %s211, 1
          %s7820 = smul.addr %s7819, 256
          %s7821 = scalar_lea.vmem [#allocation7], %s7820
          %7823 = dma.done %s7818, 4096
        $region72: #{tpu_custom_call.1} parent=67 // pred_fallthru
          _
      $region68: #{tpu_custom_call.1} parent=5 // pred_fallthru
        _
    $region6: #{tpu_custom_call.1} parent=1 // loop_footer
      %s23 = sadd.s32 1, %s19
    $region7: #{tpu_custom_call.1} parent=1 // loop_footer_branch
      %18 = sbr.rel target = $region3
    $region8: #{tpu_custom_call.1} parent=1 // loop_exit
      _
    %7824 = vsyncpa [#allocation3], 1
    %s7825 = scalar_lea.sflag [#allocation3], 1
    %7826 = vsyncpa %s7825, 1
    %7827 = vsyncpa [#allocation6], 1
    %7828 = vsyncpa [#allocation4], 1
    %s7829 = scalar_lea.sflag [#allocation4], 1
    %7830 = vsyncpa %s7829, 1

</llo_original>
